<compile_context>
chip_gen: v7x
topology: tpu7x:2x2x1
jax: 0.10.0
libtpu: 0.0.40
codegen_flags: <defaults>
</compile_context>

<pallas_src>
import math
import functools

import jax
import jax.numpy as jnp
from jax import lax
from jax.experimental import pallas as pl
from jax.experimental.pallas import tpu as pltpu

EPS = 1e-5  # torch.nn.LayerNorm default


def _layernorm(x, gamma, beta):
    mu = jnp.mean(x, axis=-1, keepdims=True)
    var = jnp.mean((x - mu) ** 2, axis=-1, keepdims=True)
    return (x - mu) * lax.rsqrt(var + EPS) * gamma + beta


def _gelu_exact(x):
    # torch.nn.GELU() default is the exact (erf) formulation.
    return 0.5 * x * (1.0 + lax.erf(x * (1.0 / math.sqrt(2.0))))


def vit_block_kernel(x_ref,
                     ln1_g_ref, ln1_b_ref,
                     wqkv_ref, wo_ref,
                     ln2_g_ref, ln2_b_ref,
                     w1_ref, b1_ref, w2_ref, b2_ref,
                     o_ref,
                     qkv_scr, attn_scr,
                     *, num_heads, seq_valid):
    Bt, S, D = x_ref.shape            # S is the (padded) per-block sequence length
    dh = D // num_heads
    scale = 1.0 / math.sqrt(dh)
    rows = Bt * S

    x = x_ref[...].astype(jnp.float32).reshape(rows, D)

    # ---- LN1 (f32 elementwise) ----
    xl = _layernorm(x, ln1_g_ref[...].astype(jnp.float32),
                    ln1_b_ref[...].astype(jnp.float32))

    # ---- fused QKV projection: bf16 inputs, f32 accumulation; cast the result to
    #      bf16 ONCE into VMEM scratch so the head loop slices bf16 tiles directly ----
    qkv_scr[...] = jnp.dot(xl.astype(jnp.bfloat16), wqkv_ref[...],
                           preferred_element_type=jnp.float32).astype(jnp.bfloat16)

    # Key-padding mask (S and seq_valid are trace-time constants); only materialized
    # when the wrapper actually padded the sequence.  Hoisted out of the loops.
    if seq_valid < S:
        key_mask = lax.broadcasted_iota(jnp.int32, (S, S), 1) < seq_valid
    else:
        key_mask = None

    # ---- multi-head self-attention (use_bias=False, valid_lens=None) ----
    # fori_loop over batch elements bounds live ranges (no full Bt*H unrolling);
    # head outputs are stored straight into a bf16 (rows, D) scratch so the output
    # projection is a single K=D matmul (no per-head small-K matmuls, no concat).
    # NOTE: for real ViT dims with dh < 128, heads should additionally be grouped
    # into 128-wide lane slabs; per-head static slices are kept here for clarity.
    def attend_one_batch(b, carry):
        r0 = pl.multiple_of(b * S, 8)
        for h in range(num_heads):                       # static lane offsets
            c0 = h * dh
            qh = qkv_scr[pl.ds(r0, S), pl.ds(c0, dh)]
            kh = qkv_scr[pl.ds(r0, S), pl.ds(D + c0, dh)]
            vh = qkv_scr[pl.ds(r0, S), pl.ds(2 * D + c0, dh)]
            # contract on the head dim directly -> no kh.T relayout through the XLU
            s = lax.dot_general(qh, kh, (((1,), (1,)), ((), ())),
                                preferred_element_type=jnp.float32) * scale
            if key_mask is not None:
                s = jnp.where(key_mask, s, -1e30)
            s = s - jnp.max(s, axis=-1, keepdims=True)
            p = jnp.exp(s)
            p = p * pl.reciprocal(jnp.sum(p, axis=-1, keepdims=True), approx=True)
            hout = jnp.dot(p.astype(jnp.bfloat16), vh,
                           preferred_element_type=jnp.float32)       # (S, dh) f32
            attn_scr[pl.ds(r0, S), pl.ds(c0, dh)] = hout.astype(jnp.bfloat16)
        return carry

    lax.fori_loop(0, Bt, attend_one_batch, 0)

    # single output projection over all rows / heads (K = D fills the MXU)
    attn = jnp.dot(attn_scr[...], wo_ref[...], preferred_element_type=jnp.float32)

    x = x + attn                      # residual 1 (f32)
    # TODO(synk): dropout layers are identity at inference; not implemented.

    # ---- LN2 + MLP (Linear -> GELU -> Linear), bf16 matmuls / f32 accumulate ----
    xl2 = _layernorm(x, ln2_g_ref[...].astype(jnp.float32),
                     ln2_b_ref[...].astype(jnp.float32))
    h1 = jnp.dot(xl2.astype(jnp.bfloat16), w1_ref[...],
                 preferred_element_type=jnp.float32) + b1_ref[...].astype(jnp.float32)
    h1 = _gelu_exact(h1)
    h2 = jnp.dot(h1.astype(jnp.bfloat16), w2_ref[...],
                 preferred_element_type=jnp.float32) + b2_ref[...].astype(jnp.float32)

    o_ref[...] = (x + h2).reshape(Bt, S, D).astype(o_ref.dtype)


def _chip_tuning():
    """Derive the scoped-VMEM limit and the rows-per-step target from the chip."""
    try:
        cap = pltpu.get_tpu_info().vmem_capacity_bytes
    except Exception:
        cap = 64 * 1024 * 1024                      # conservative (v7x-sized) default
    # leave headroom for compiler scratch + double-buffered x/o activation blocks
    vmem_limit = min(int(cap * 3 // 4), 112 * 1024 * 1024)
    target_rows = 512 if cap >= 96 * 1024 * 1024 else 256
    return vmem_limit, target_rows


def _pick_block_b(B, S, target_rows):
    """Batch elements per grid step: Bt*S ~ target MXU rows, Bt | B, and keep
    >= min(4, B) grid steps (2 TensorCores on v7x + input/output pipelining)."""
    bt = max(1, min(B, max(1, target_rows // max(S, 1))))
    while B % bt:
        bt -= 1
    want_steps = min(4, B)
    while bt > 1 and B // bt < want_steps:
        bt -= 1
        while B % bt:
            bt -= 1
    return bt


def prepare_vit_block_params(params):
    """One-time weight preprocessing (hoisted out of the per-call path): fuse
    Wq|Wk|Wv and cast matmul weights to bf16 so the kernel's weight DMA is the
    only per-call weight traffic."""
    return {
        "ln1_g": params["ln1_g"].astype(jnp.float32),
        "ln1_b": params["ln1_b"].astype(jnp.float32),
        "wqkv": jnp.concatenate([params["wq"], params["wk"], params["wv"]],
                                axis=1).astype(jnp.bfloat16),          # (D, 3D)
        "wo": params["wo"].astype(jnp.bfloat16),
        "ln2_g": params["ln2_g"].astype(jnp.float32),
        "ln2_b": params["ln2_b"].astype(jnp.float32),
        "w1": params["w1"].astype(jnp.bfloat16),
        "b1": params["b1"].astype(jnp.float32),
        "w2": params["w2"].astype(jnp.bfloat16),
        "b2": params["b2"].astype(jnp.float32),
    }


def _build_call(B, S_pad, D, M, block_b, num_heads, seq_valid, out_dtype,
                vmem_limit, single_buffer_weights):
    def inv_spec(shape):
        index_map = lambda *_, _n=len(shape): (0,) * _n
        if single_buffer_weights:
            # constant index_map -> second buffer is pure VMEM waste; single-buffer it
            return pl.BlockSpec(shape, index_map, pipeline_mode=pl.Buffered(1))
        return pl.BlockSpec(shape, index_map)

    in_specs = [
        pl.BlockSpec((block_b, S_pad, D), lambda b: (b, 0, 0)),   # x
        inv_spec((1, D)), inv_spec((1, D)),                       # ln1 gamma/beta
        inv_spec((D, 3 * D)),                                     # fused Wqkv (bf16)
        inv_spec((D, D)),                                         # Wo (bf16)
        inv_spec((1, D)), inv_spec((1, D)),                       # ln2 gamma/beta
        inv_spec((D, M)), inv_spec((1, M)),                       # MLP dense1 W, b
        inv_spec((M, D)), inv_spec((1, D)),                       # MLP dense2 W, b
    ]
    out_spec = pl.BlockSpec((block_b, S_pad, D), lambda b: (b, 0, 0))

    kernel = functools.partial(vit_block_kernel, num_heads=num_heads,
                               seq_valid=seq_valid)
    return pl.pallas_call(
        kernel,
        out_shape=jax.ShapeDtypeStruct((B, S_pad, D), out_dtype),
        grid=(B // block_b,),
        in_specs=in_specs,
        out_specs=out_spec,
        scratch_shapes=[
            pltpu.VMEM((block_b * S_pad, 3 * D), jnp.bfloat16),   # bf16 qkv
            pltpu.VMEM((block_b * S_pad, D), jnp.bfloat16),       # per-head outputs
        ],
        compiler_params=pltpu.CompilerParams(
            dimension_semantics=("parallel",),
            vmem_limit_bytes=vmem_limit),
    )


def vit_block(x, prepared, *, num_heads, block_b=None):
    B, S, D = x.shape
    M = prepared["w1"].shape[1]
    assert D % num_heads == 0

    S_pad = ((S + 7) // 8) * 8                    # sublane-align the sequence
    vmem_limit, target_rows = _chip_tuning()
    if block_b is None:
        block_b = _pick_block_b(B, S_pad, target_rows)
    assert B % block_b == 0

    x_in = x if S_pad == S else jnp.pad(x, ((0, 0), (0, S_pad - S), (0, 0)))
    args = (x_in,
            prepared["ln1_g"], prepared["ln1_b"],
            prepared["wqkv"], prepared["wo"],
            prepared["ln2_g"], prepared["ln2_b"],
            prepared["w1"], prepared["b1"],
            prepared["w2"], prepared["b2"])

    try:
        out = _build_call(B, S_pad, D, M, block_b, num_heads, S, x.dtype,
                          vmem_limit, single_buffer_weights=True)(*args)
        out = jax.block_until_ready(out)
    except Exception:
        # Fallback for JAX builds without pl.Buffered(1) single-buffering support.
        out = _build_call(B, S_pad, D, M, block_b, num_heads, S, x.dtype,
                          vmem_limit, single_buffer_weights=False)(*args)
    return out if S_pad == S else out[:, :S, :]


def vit_block_ref(x, p, *, num_heads):
    """Pure-JAX f32 reference for correctness checking."""
    B, S, D = x.shape
    dh = D // num_heads

    def ln(z, g, b):
        mu = jnp.mean(z, -1, keepdims=True)
        var = jnp.mean((z - mu) ** 2, -1, keepdims=True)
        return (z - mu) / jnp.sqrt(var + EPS) * g + b

    xl = ln(x, p["ln1_g"], p["ln1_b"])
    q = xl @ p["wq"]
    k = xl @ p["wk"]
    v = xl @ p["wv"]

    def split(t):  # (B,S,D) -> (B,H,S,dh)
        return t.reshape(B, S, num_heads, dh).transpose(0, 2, 1, 3)

    qh, kh, vh = split(q), split(k), split(v)
    s = jnp.einsum("bhqd,bhkd->bhqk", qh, kh) / math.sqrt(dh)
    a = jax.nn.softmax(s, axis=-1)
    o = jnp.einsum("bhqk,bhkd->bhqd", a, vh).transpose(0, 2, 1, 3).reshape(B, S, D)
    x = x + o @ p["wo"]

    xl2 = ln(x, p["ln2_g"], p["ln2_b"])
    h1 = jax.nn.gelu(xl2 @ p["w1"] + p["b1"], approximate=False)
    return x + h1 @ p["w2"] + p["b2"]


if __name__ == "__main__":
    # Shapes implied by the module: X = (2, 100, 24), mlp_num_hiddens = 2*D
    B, S, D = 2, 100, 24
    H, M = 4, 48

    key = jax.random.PRNGKey(0)
    keys = jax.random.split(key, 12)
    params = {
        "ln1_g": 1.0 + 0.1 * jax.random.normal(keys[0], (1, D), jnp.float32),
        "ln1_b": 0.1 * jax.random.normal(keys[1], (1, D), jnp.float32),
        "wq": 0.05 * jax.random.normal(keys[2], (D, D), jnp.float32),
        "wk": 0.05 * jax.random.normal(keys[3], (D, D), jnp.float32),
        "wv": 0.05 * jax.random.normal(keys[4], (D, D), jnp.float32),
        "wo": 0.05 * jax.random.normal(keys[5], (D, D), jnp.float32),
        "ln2_g": 1.0 + 0.1 * jax.random.normal(keys[6], (1, D), jnp.float32),
        "ln2_b": 0.1 * jax.random.normal(keys[7], (1, D), jnp.float32),
        "w1": 0.05 * jax.random.normal(keys[8], (D, M), jnp.float32),
        "b1": 0.05 * jax.random.normal(keys[9], (1, M), jnp.float32),
        "w2": 0.05 * jax.random.normal(keys[10], (M, D), jnp.float32),
        "b2": 0.05 * jax.random.normal(keys[11], (1, D), jnp.float32),
    }
    x = jax.random.normal(jax.random.PRNGKey(42), (B, S, D), jnp.float32)

    prepared = prepare_vit_block_params(params)          # one-time weight prep
    out = jax.block_until_ready(vit_block(x, prepared, num_heads=H))
    ref = jax.block_until_ready(vit_block_ref(x, params, num_heads=H))

    assert out.shape == (B, S, D)
    # bf16 matmul inputs + approx reciprocal -> loosened tolerance vs the f32 reference.
    assert jnp.allclose(out, ref, rtol=2e-2, atol=2e-2), "mismatch vs reference"
    print("KERNEL_OK")
</pallas_src>

<mosaic_0001>
module attributes {stable_mosaic.version = 11 : i64} {
  func.func @vit_block_kernel(%arg0: i32, %arg1: memref<1x104x24xf32, #tpu.memory_space<vmem>>, %arg2: memref<1x24xf32, #tpu.memory_space<vmem>>, %arg3: memref<1x24xf32, #tpu.memory_space<vmem>>, %arg4: memref<24x72xbf16, #tpu.memory_space<vmem>>, %arg5: memref<24x24xbf16, #tpu.memory_space<vmem>>, %arg6: memref<1x24xf32, #tpu.memory_space<vmem>>, %arg7: memref<1x24xf32, #tpu.memory_space<vmem>>, %arg8: memref<24x48xbf16, #tpu.memory_space<vmem>>, %arg9: memref<1x48xf32, #tpu.memory_space<vmem>>, %arg10: memref<48x24xbf16, #tpu.memory_space<vmem>>, %arg11: memref<1x24xf32, #tpu.memory_space<vmem>>, %arg12: memref<1x104x24xf32, #tpu.memory_space<vmem>>, %arg13: memref<104x72xbf16, #tpu.memory_space<vmem>>, %arg14: memref<104x24xbf16, #tpu.memory_space<vmem>>) attributes {dimension_semantics = [#tpu.dimension_semantics<parallel>], iteration_bounds = array<i64: 2>, scalar_prefetch = 0 : i64, scratch_operands = 2 : i64, tpu.core_type = #tpu.core_type<tc>, window_params = [{transform_indices = @transform_0, window_bounds = array<i64: 1, 104, 24>}, {pipeline_mode = #tpu.pipeline_mode<synchronous>, transform_indices = @transform_1, window_bounds = array<i64: 1, 24>}, {pipeline_mode = #tpu.pipeline_mode<synchronous>, transform_indices = @transform_2, window_bounds = array<i64: 1, 24>}, {pipeline_mode = #tpu.pipeline_mode<synchronous>, transform_indices = @transform_3, window_bounds = array<i64: 24, 72>}, {pipeline_mode = #tpu.pipeline_mode<synchronous>, transform_indices = @transform_4, window_bounds = array<i64: 24, 24>}, {pipeline_mode = #tpu.pipeline_mode<synchronous>, transform_indices = @transform_5, window_bounds = array<i64: 1, 24>}, {pipeline_mode = #tpu.pipeline_mode<synchronous>, transform_indices = @transform_6, window_bounds = array<i64: 1, 24>}, {pipeline_mode = #tpu.pipeline_mode<synchronous>, transform_indices = @transform_7, window_bounds = array<i64: 24, 48>}, {pipeline_mode = #tpu.pipeline_mode<synchronous>, transform_indices = @transform_8, window_bounds = array<i64: 1, 48>}, {pipeline_mode = #tpu.pipeline_mode<synchronous>, transform_indices = @transform_9, window_bounds = array<i64: 48, 24>}, {pipeline_mode = #tpu.pipeline_mode<synchronous>, transform_indices = @transform_10, window_bounds = array<i64: 1, 24>}, {transform_indices = @transform_11, window_bounds = array<i64: 1, 104, 24>}]} {
    %c0 = arith.constant 0 : index
    %c0_0 = arith.constant 0 : index
    %c0_1 = arith.constant 0 : index
    %0 = vector.load %arg1[%c0, %c0_0, %c0_1] : memref<1x104x24xf32, #tpu.memory_space<vmem>>, vector<1x104x24xf32>
    %1 = vector.shape_cast %0 : vector<1x104x24xf32> to vector<104x24xf32>
    %c0_2 = arith.constant 0 : index
    %c0_3 = arith.constant 0 : index
    %2 = vector.load %arg2[%c0_2, %c0_3] : memref<1x24xf32, #tpu.memory_space<vmem>>, vector<1x24xf32>
    %c0_4 = arith.constant 0 : index
    %c0_5 = arith.constant 0 : index
    %3 = vector.load %arg3[%c0_4, %c0_5] : memref<1x24xf32, #tpu.memory_space<vmem>>, vector<1x24xf32>
    %cst = arith.constant dense<0.000000e+00> : vector<104xf32>
    %4 = vector.multi_reduction <add>, %1, %cst [1] : vector<104x24xf32> to vector<104xf32>
    %5 = vector.shape_cast %4 : vector<104xf32> to vector<104x1xf32>
    %cst_6 = arith.constant 2.400000e+01 : f32
    %6 = vector.broadcast %cst_6 : f32 to vector<104x1xf32>
    %7 = arith.divf %5, %6 : vector<104x1xf32>
    %8 = vector.broadcast %7 : vector<104x1xf32> to vector<104x24xf32>
    %9 = arith.subf %1, %8 : vector<104x24xf32>
    %10 = arith.mulf %9, %9 : vector<104x24xf32>
    %cst_7 = arith.constant dense<0.000000e+00> : vector<104xf32>
    %11 = vector.multi_reduction <add>, %10, %cst_7 [1] : vector<104x24xf32> to vector<104xf32>
    %12 = vector.shape_cast %11 : vector<104xf32> to vector<104x1xf32>
    %cst_8 = arith.constant 2.400000e+01 : f32
    %13 = vector.broadcast %cst_8 : f32 to vector<104x1xf32>
    %14 = arith.divf %12, %13 : vector<104x1xf32>
    %15 = vector.broadcast %7 : vector<104x1xf32> to vector<104x24xf32>
    %16 = arith.subf %1, %15 : vector<104x24xf32>
    %cst_9 = arith.constant 9.99999974E-6 : f32
    %17 = vector.broadcast %cst_9 : f32 to vector<104x1xf32>
    %18 = arith.addf %14, %17 : vector<104x1xf32>
    %19 = math.rsqrt %18 : vector<104x1xf32>
    %20 = vector.broadcast %19 : vector<104x1xf32> to vector<104x24xf32>
    %21 = arith.mulf %16, %20 : vector<104x24xf32>
    %22 = vector.broadcast %2 : vector<1x24xf32> to vector<104x24xf32>
    %23 = arith.mulf %21, %22 : vector<104x24xf32>
    %24 = vector.broadcast %3 : vector<1x24xf32> to vector<104x24xf32>
    %25 = arith.addf %23, %24 : vector<104x24xf32>
    %26 = arith.truncf %25 : vector<104x24xf32> to vector<104x24xbf16>
    %c0_10 = arith.constant 0 : index
    %c0_11 = arith.constant 0 : index
    %27 = vector.load %arg4[%c0_10, %c0_11] : memref<24x72xbf16, #tpu.memory_space<vmem>>, vector<24x72xbf16>
    %cst_12 = arith.constant dense<0.000000e+00> : vector<104x72xf32>
    %28 = tpu.matmul %26, %27, %cst_12 {dimension_numbers = #tpu.dot_dimension_numbers<[1], [0], [0], [1], [0, 0, 1, 1], [], []>} : vector<104x24xbf16>, vector<24x72xbf16>, vector<104x72xf32> -> vector<104x72xf32>
    %29 = arith.truncf %28 : vector<104x72xf32> to vector<104x72xbf16>
    %c0_13 = arith.constant 0 : index
    %c0_14 = arith.constant 0 : index
    %30 = vector.load %arg13[%c0_13, %c0_14] : memref<104x72xbf16, #tpu.memory_space<vmem>>, vector<104x72xbf16>
    tpu.vector_store %arg13[%c0_13, %c0_14], %29 {strides = array<i32>} : memref<104x72xbf16, #tpu.memory_space<vmem>>, vector<104x72xbf16>,
    %31 = tpu.iota {dimensions = array<i32: 1>} : vector<104x104xi32>
    %c100_i32 = arith.constant 100 : i32
    %32 = vector.broadcast %c100_i32 : i32 to vector<104x104xi32>
    %33 = arith.cmpi slt, %31, %32 : vector<104x104xi32>
    %c0_i32 = arith.constant 0 : i32
    %c104_i32 = arith.constant 104 : i32
    %34 = arith.muli %c0_i32, %c104_i32 : i32
    %35 = tpu.assume_multiple %34, 8 : i32
    %36 = arith.index_cast %35 : i32 to index
    %c0_15 = arith.constant 0 : index
    %37 = vector.load %arg13[%36, %c0_15] : memref<104x72xbf16, #tpu.memory_space<vmem>>, vector<104x6xbf16>
    %38 = arith.index_cast %35 : i32 to index
    %c24 = arith.constant 24 : index
    %39 = vector.load %arg13[%38, %c24] : memref<104x72xbf16, #tpu.memory_space<vmem>>, vector<104x6xbf16>
    %40 = arith.index_cast %35 : i32 to index
    %c48 = arith.constant 48 : index
    %41 = vector.load %arg13[%40, %c48] : memref<104x72xbf16, #tpu.memory_space<vmem>>, vector<104x6xbf16>
    %cst_16 = arith.constant dense<0.000000e+00> : vector<104x104xf32>
    %42 = tpu.matmul %37, %39, %cst_16 {dimension_numbers = #tpu.dot_dimension_numbers<[1], [1], [0], [0], [0, 0, 1, 0], [], []>} : vector<104x6xbf16>, vector<104x6xbf16>, vector<104x104xf32> -> vector<104x104xf32>
    %cst_17 = arith.constant 0.408248305 : f32
    %43 = vector.broadcast %cst_17 : f32 to vector<104x104xf32>
    %44 = arith.mulf %42, %43 : vector<104x104xf32>
    %cst_18 = arith.constant -1.000000e+30 : f32
    %45 = vector.broadcast %cst_18 : f32 to vector<104x104xf32>
    %46 = arith.select %33, %44, %45 : vector<104x104xi1>, vector<104x104xf32>
    %cst_19 = arith.constant dense<0xFF800000> : vector<104xf32>
    %47 = vector.multi_reduction <maximumf>, %46, %cst_19 [1] : vector<104x104xf32> to vector<104xf32>
    %48 = vector.shape_cast %47 : vector<104xf32> to vector<104x1xf32>
    %49 = vector.broadcast %48 : vector<104x1xf32> to vector<104x104xf32>
    %50 = arith.subf %46, %49 : vector<104x104xf32>
    %51 = math.exp %50 : vector<104x104xf32>
    %cst_20 = arith.constant dense<0.000000e+00> : vector<104xf32>
    %52 = vector.multi_reduction <add>, %51, %cst_20 [1] : vector<104x104xf32> to vector<104xf32>
    %53 = vector.shape_cast %52 : vector<104xf32> to vector<104x1xf32>
    %54 = tpu.reciprocal %53 {approx = true} : vector<104x1xf32> -> vector<104x1xf32>
    %55 = vector.broadcast %54 : vector<104x1xf32> to vector<104x104xf32>
    %56 = arith.mulf %51, %55 : vector<104x104xf32>
    %57 = arith.truncf %56 : vector<104x104xf32> to vector<104x104xbf16>
    %cst_21 = arith.constant dense<0.000000e+00> : vector<104x6xf32>
    %58 = tpu.matmul %57, %41, %cst_21 {dimension_numbers = #tpu.dot_dimension_numbers<[1], [0], [0], [1], [0, 0, 1, 1], [], []>} : vector<104x104xbf16>, vector<104x6xbf16>, vector<104x6xf32> -> vector<104x6xf32>
    %59 = arith.truncf %58 : vector<104x6xf32> to vector<104x6xbf16>
    %60 = arith.index_cast %35 : i32 to index
    %c0_22 = arith.constant 0 : index
    %61 = vector.load %arg14[%60, %c0_22] : memref<104x24xbf16, #tpu.memory_space<vmem>>, vector<104x6xbf16>
    tpu.vector_store %arg14[%60, %c0_22], %59 {strides = array<i32>} : memref<104x24xbf16, #tpu.memory_space<vmem>>, vector<104x6xbf16>,
    %62 = arith.index_cast %35 : i32 to index
    %c6 = arith.constant 6 : index
    %63 = vector.load %arg13[%62, %c6] : memref<104x72xbf16, #tpu.memory_space<vmem>>, vector<104x6xbf16>
    %64 = arith.index_cast %35 : i32 to index
    %c30 = arith.constant 30 : index
    %65 = vector.load %arg13[%64, %c30] : memref<104x72xbf16, #tpu.memory_space<vmem>>, vector<104x6xbf16>
    %66 = arith.index_cast %35 : i32 to index
    %c54 = arith.constant 54 : index
    %67 = vector.load %arg13[%66, %c54] : memref<104x72xbf16, #tpu.memory_space<vmem>>, vector<104x6xbf16>
    %cst_23 = arith.constant dense<0.000000e+00> : vector<104x104xf32>
    %68 = tpu.matmul %63, %65, %cst_23 {dimension_numbers = #tpu.dot_dimension_numbers<[1], [1], [0], [0], [0, 0, 1, 0], [], []>} : vector<104x6xbf16>, vector<104x6xbf16>, vector<104x104xf32> -> vector<104x104xf32>
    %cst_24 = arith.constant 0.408248305 : f32
    %69 = vector.broadcast %cst_24 : f32 to vector<104x104xf32>
    %70 = arith.mulf %68, %69 : vector<104x104xf32>
    %cst_25 = arith.constant -1.000000e+30 : f32
    %71 = vector.broadcast %cst_25 : f32 to vector<104x104xf32>
    %72 = arith.select %33, %70, %71 : vector<104x104xi1>, vector<104x104xf32>
    %cst_26 = arith.constant dense<0xFF800000> : vector<104xf32>
    %73 = vector.multi_reduction <maximumf>, %72, %cst_26 [1] : vector<104x104xf32> to vector<104xf32>
    %74 = vector.shape_cast %73 : vector<104xf32> to vector<104x1xf32>
    %75 = vector.broadcast %74 : vector<104x1xf32> to vector<104x104xf32>
    %76 = arith.subf %72, %75 : vector<104x104xf32>
    %77 = math.exp %76 : vector<104x104xf32>
    %cst_27 = arith.constant dense<0.000000e+00> : vector<104xf32>
    %78 = vector.multi_reduction <add>, %77, %cst_27 [1] : vector<104x104xf32> to vector<104xf32>
    %79 = vector.shape_cast %78 : vector<104xf32> to vector<104x1xf32>
    %80 = tpu.reciprocal %79 {approx = true} : vector<104x1xf32> -> vector<104x1xf32>
    %81 = vector.broadcast %80 : vector<104x1xf32> to vector<104x104xf32>
    %82 = arith.mulf %77, %81 : vector<104x104xf32>
    %83 = arith.truncf %82 : vector<104x104xf32> to vector<104x104xbf16>
    %cst_28 = arith.constant dense<0.000000e+00> : vector<104x6xf32>
    %84 = tpu.matmul %83, %67, %cst_28 {dimension_numbers = #tpu.dot_dimension_numbers<[1], [0], [0], [1], [0, 0, 1, 1], [], []>} : vector<104x104xbf16>, vector<104x6xbf16>, vector<104x6xf32> -> vector<104x6xf32>
    %85 = arith.truncf %84 : vector<104x6xf32> to vector<104x6xbf16>
    %86 = arith.index_cast %35 : i32 to index
    %c6_29 = arith.constant 6 : index
    %87 = vector.load %arg14[%86, %c6_29] : memref<104x24xbf16, #tpu.memory_space<vmem>>, vector<104x6xbf16>
    tpu.vector_store %arg14[%86, %c6_29], %85 {strides = array<i32>} : memref<104x24xbf16, #tpu.memory_space<vmem>>, vector<104x6xbf16>,
    %88 = arith.index_cast %35 : i32 to index
    %c12 = arith.constant 12 : index
    %89 = vector.load %arg13[%88, %c12] : memref<104x72xbf16, #tpu.memory_space<vmem>>, vector<104x6xbf16>
    %90 = arith.index_cast %35 : i32 to index
    %c36 = arith.constant 36 : index
    %91 = vector.load %arg13[%90, %c36] : memref<104x72xbf16, #tpu.memory_space<vmem>>, vector<104x6xbf16>
    %92 = arith.index_cast %35 : i32 to index
    %c60 = arith.constant 60 : index
    %93 = vector.load %arg13[%92, %c60] : memref<104x72xbf16, #tpu.memory_space<vmem>>, vector<104x6xbf16>
    %cst_30 = arith.constant dense<0.000000e+00> : vector<104x104xf32>
    %94 = tpu.matmul %89, %91, %cst_30 {dimension_numbers = #tpu.dot_dimension_numbers<[1], [1], [0], [0], [0, 0, 1, 0], [], []>} : vector<104x6xbf16>, vector<104x6xbf16>, vector<104x104xf32> -> vector<104x104xf32>
    %cst_31 = arith.constant 0.408248305 : f32
    %95 = vector.broadcast %cst_31 : f32 to vector<104x104xf32>
    %96 = arith.mulf %94, %95 : vector<104x104xf32>
    %cst_32 = arith.constant -1.000000e+30 : f32
    %97 = vector.broadcast %cst_32 : f32 to vector<104x104xf32>
    %98 = arith.select %33, %96, %97 : vector<104x104xi1>, vector<104x104xf32>
    %cst_33 = arith.constant dense<0xFF800000> : vector<104xf32>
    %99 = vector.multi_reduction <maximumf>, %98, %cst_33 [1] : vector<104x104xf32> to vector<104xf32>
    %100 = vector.shape_cast %99 : vector<104xf32> to vector<104x1xf32>
    %101 = vector.broadcast %100 : vector<104x1xf32> to vector<104x104xf32>
    %102 = arith.subf %98, %101 : vector<104x104xf32>
    %103 = math.exp %102 : vector<104x104xf32>
    %cst_34 = arith.constant dense<0.000000e+00> : vector<104xf32>
    %104 = vector.multi_reduction <add>, %103, %cst_34 [1] : vector<104x104xf32> to vector<104xf32>
    %105 = vector.shape_cast %104 : vector<104xf32> to vector<104x1xf32>
    %106 = tpu.reciprocal %105 {approx = true} : vector<104x1xf32> -> vector<104x1xf32>
    %107 = vector.broadcast %106 : vector<104x1xf32> to vector<104x104xf32>
    %108 = arith.mulf %103, %107 : vector<104x104xf32>
    %109 = arith.truncf %108 : vector<104x104xf32> to vector<104x104xbf16>
    %cst_35 = arith.constant dense<0.000000e+00> : vector<104x6xf32>
    %110 = tpu.matmul %109, %93, %cst_35 {dimension_numbers = #tpu.dot_dimension_numbers<[1], [0], [0], [1], [0, 0, 1, 1], [], []>} : vector<104x104xbf16>, vector<104x6xbf16>, vector<104x6xf32> -> vector<104x6xf32>
    %111 = arith.truncf %110 : vector<104x6xf32> to vector<104x6xbf16>
    %112 = arith.index_cast %35 : i32 to index
    %c12_36 = arith.constant 12 : index
    %113 = vector.load %arg14[%112, %c12_36] : memref<104x24xbf16, #tpu.memory_space<vmem>>, vector<104x6xbf16>
    tpu.vector_store %arg14[%112, %c12_36], %111 {strides = array<i32>} : memref<104x24xbf16, #tpu.memory_space<vmem>>, vector<104x6xbf16>,
    %114 = arith.index_cast %35 : i32 to index
    %c18 = arith.constant 18 : index
    %115 = vector.load %arg13[%114, %c18] : memref<104x72xbf16, #tpu.memory_space<vmem>>, vector<104x6xbf16>
    %116 = arith.index_cast %35 : i32 to index
    %c42 = arith.constant 42 : index
    %117 = vector.load %arg13[%116, %c42] : memref<104x72xbf16, #tpu.memory_space<vmem>>, vector<104x6xbf16>
    %118 = arith.index_cast %35 : i32 to index
    %c66 = arith.constant 66 : index
    %119 = vector.load %arg13[%118, %c66] : memref<104x72xbf16, #tpu.memory_space<vmem>>, vector<104x6xbf16>
    %cst_37 = arith.constant dense<0.000000e+00> : vector<104x104xf32>
    %120 = tpu.matmul %115, %117, %cst_37 {dimension_numbers = #tpu.dot_dimension_numbers<[1], [1], [0], [0], [0, 0, 1, 0], [], []>} : vector<104x6xbf16>, vector<104x6xbf16>, vector<104x104xf32> -> vector<104x104xf32>
    %cst_38 = arith.constant 0.408248305 : f32
    %121 = vector.broadcast %cst_38 : f32 to vector<104x104xf32>
    %122 = arith.mulf %120, %121 : vector<104x104xf32>
    %cst_39 = arith.constant -1.000000e+30 : f32
    %123 = vector.broadcast %cst_39 : f32 to vector<104x104xf32>
    %124 = arith.select %33, %122, %123 : vector<104x104xi1>, vector<104x104xf32>
    %cst_40 = arith.constant dense<0xFF800000> : vector<104xf32>
    %125 = vector.multi_reduction <maximumf>, %124, %cst_40 [1] : vector<104x104xf32> to vector<104xf32>
    %126 = vector.shape_cast %125 : vector<104xf32> to vector<104x1xf32>
    %127 = vector.broadcast %126 : vector<104x1xf32> to vector<104x104xf32>
    %128 = arith.subf %124, %127 : vector<104x104xf32>
    %129 = math.exp %128 : vector<104x104xf32>
    %cst_41 = arith.constant dense<0.000000e+00> : vector<104xf32>
    %130 = vector.multi_reduction <add>, %129, %cst_41 [1] : vector<104x104xf32> to vector<104xf32>
    %131 = vector.shape_cast %130 : vector<104xf32> to vector<104x1xf32>
    %132 = tpu.reciprocal %131 {approx = true} : vector<104x1xf32> -> vector<104x1xf32>
    %133 = vector.broadcast %132 : vector<104x1xf32> to vector<104x104xf32>
    %134 = arith.mulf %129, %133 : vector<104x104xf32>
    %135 = arith.truncf %134 : vector<104x104xf32> to vector<104x104xbf16>
    %cst_42 = arith.constant dense<0.000000e+00> : vector<104x6xf32>
    %136 = tpu.matmul %135, %119, %cst_42 {dimension_numbers = #tpu.dot_dimension_numbers<[1], [0], [0], [1], [0, 0, 1, 1], [], []>} : vector<104x104xbf16>, vector<104x6xbf16>, vector<104x6xf32> -> vector<104x6xf32>
    %137 = arith.truncf %136 : vector<104x6xf32> to vector<104x6xbf16>
    %138 = arith.index_cast %35 : i32 to index
    %c18_43 = arith.constant 18 : index
    %139 = vector.load %arg14[%138, %c18_43] : memref<104x24xbf16, #tpu.memory_space<vmem>>, vector<104x6xbf16>
    tpu.vector_store %arg14[%138, %c18_43], %137 {strides = array<i32>} : memref<104x24xbf16, #tpu.memory_space<vmem>>, vector<104x6xbf16>,
    %c1_i32 = arith.constant 1 : i32
    %c0_44 = arith.constant 0 : index
    %c0_45 = arith.constant 0 : index
    %140 = vector.load %arg14[%c0_44, %c0_45] : memref<104x24xbf16, #tpu.memory_space<vmem>>, vector<104x24xbf16>
    %c0_46 = arith.constant 0 : index
    %c0_47 = arith.constant 0 : index
    %141 = vector.load %arg5[%c0_46, %c0_47] : memref<24x24xbf16, #tpu.memory_space<vmem>>, vector<24x24xbf16>
    %cst_48 = arith.constant dense<0.000000e+00> : vector<104x24xf32>
    %142 = tpu.matmul %140, %141, %cst_48 {dimension_numbers = #tpu.dot_dimension_numbers<[1], [0], [0], [1], [0, 0, 1, 1], [], []>} : vector<104x24xbf16>, vector<24x24xbf16>, vector<104x24xf32> -> vector<104x24xf32>
    %143 = arith.addf %1, %142 : vector<104x24xf32>
    %c0_49 = arith.constant 0 : index
    %c0_50 = arith.constant 0 : index
    %144 = vector.load %arg6[%c0_49, %c0_50] : memref<1x24xf32, #tpu.memory_space<vmem>>, vector<1x24xf32>
    %c0_51 = arith.constant 0 : index
    %c0_52 = arith.constant 0 : index
    %145 = vector.load %arg7[%c0_51, %c0_52] : memref<1x24xf32, #tpu.memory_space<vmem>>, vector<1x24xf32>
    %cst_53 = arith.constant dense<0.000000e+00> : vector<104xf32>
    %146 = vector.multi_reduction <add>, %143, %cst_53 [1] : vector<104x24xf32> to vector<104xf32>
    %147 = vector.shape_cast %146 : vector<104xf32> to vector<104x1xf32>
    %cst_54 = arith.constant 2.400000e+01 : f32
    %148 = vector.broadcast %cst_54 : f32 to vector<104x1xf32>
    %149 = arith.divf %147, %148 : vector<104x1xf32>
    %150 = vector.broadcast %149 : vector<104x1xf32> to vector<104x24xf32>
    %151 = arith.subf %143, %150 : vector<104x24xf32>
    %152 = arith.mulf %151, %151 : vector<104x24xf32>
    %cst_55 = arith.constant dense<0.000000e+00> : vector<104xf32>
    %153 = vector.multi_reduction <add>, %152, %cst_55 [1] : vector<104x24xf32> to vector<104xf32>
    %154 = vector.shape_cast %153 : vector<104xf32> to vector<104x1xf32>
    %cst_56 = arith.constant 2.400000e+01 : f32
    %155 = vector.broadcast %cst_56 : f32 to vector<104x1xf32>
    %156 = arith.divf %154, %155 : vector<104x1xf32>
    %157 = vector.broadcast %149 : vector<104x1xf32> to vector<104x24xf32>
    %158 = arith.subf %143, %157 : vector<104x24xf32>
    %cst_57 = arith.constant 9.99999974E-6 : f32
    %159 = vector.broadcast %cst_57 : f32 to vector<104x1xf32>
    %160 = arith.addf %156, %159 : vector<104x1xf32>
    %161 = math.rsqrt %160 : vector<104x1xf32>
    %162 = vector.broadcast %161 : vector<104x1xf32> to vector<104x24xf32>
    %163 = arith.mulf %158, %162 : vector<104x24xf32>
    %164 = vector.broadcast %144 : vector<1x24xf32> to vector<104x24xf32>
    %165 = arith.mulf %163, %164 : vector<104x24xf32>
    %166 = vector.broadcast %145 : vector<1x24xf32> to vector<104x24xf32>
    %167 = arith.addf %165, %166 : vector<104x24xf32>
    %168 = arith.truncf %167 : vector<104x24xf32> to vector<104x24xbf16>
    %c0_58 = arith.constant 0 : index
    %c0_59 = arith.constant 0 : index
    %169 = vector.load %arg8[%c0_58, %c0_59] : memref<24x48xbf16, #tpu.memory_space<vmem>>, vector<24x48xbf16>
    %cst_60 = arith.constant dense<0.000000e+00> : vector<104x48xf32>
    %170 = tpu.matmul %168, %169, %cst_60 {dimension_numbers = #tpu.dot_dimension_numbers<[1], [0], [0], [1], [0, 0, 1, 1], [], []>} : vector<104x24xbf16>, vector<24x48xbf16>, vector<104x48xf32> -> vector<104x48xf32>
    %c0_61 = arith.constant 0 : index
    %c0_62 = arith.constant 0 : index
    %171 = vector.load %arg9[%c0_61, %c0_62] : memref<1x48xf32, #tpu.memory_space<vmem>>, vector<1x48xf32>
    %172 = vector.broadcast %171 : vector<1x48xf32> to vector<104x48xf32>
    %173 = arith.addf %170, %172 : vector<104x48xf32>
    %cst_63 = arith.constant 5.000000e-01 : f32
    %174 = vector.broadcast %cst_63 : f32 to vector<104x48xf32>
    %175 = arith.mulf %174, %173 : vector<104x48xf32>
    %cst_64 = arith.constant 0.707106769 : f32
    %176 = vector.broadcast %cst_64 : f32 to vector<104x48xf32>
    %177 = arith.mulf %173, %176 : vector<104x48xf32>
    %178 = math.erf %177 : vector<104x48xf32>
    %cst_65 = arith.constant 1.000000e+00 : f32
    %179 = vector.broadcast %cst_65 : f32 to vector<104x48xf32>
    %180 = arith.addf %179, %178 : vector<104x48xf32>
    %181 = arith.mulf %175, %180 : vector<104x48xf32>
    %182 = arith.truncf %181 : vector<104x48xf32> to vector<104x48xbf16>
    %c0_66 = arith.constant 0 : index
    %c0_67 = arith.constant 0 : index
    %183 = vector.load %arg10[%c0_66, %c0_67] : memref<48x24xbf16, #tpu.memory_space<vmem>>, vector<48x24xbf16>
    %cst_68 = arith.constant dense<0.000000e+00> : vector<104x24xf32>
    %184 = tpu.matmul %182, %183, %cst_68 {dimension_numbers = #tpu.dot_dimension_numbers<[1], [0], [0], [1], [0, 0, 1, 1], [], []>} : vector<104x48xbf16>, vector<48x24xbf16>, vector<104x24xf32> -> vector<104x24xf32>
    %c0_69 = arith.constant 0 : index
    %c0_70 = arith.constant 0 : index
    %185 = vector.load %arg11[%c0_69, %c0_70] : memref<1x24xf32, #tpu.memory_space<vmem>>, vector<1x24xf32>
    %186 = vector.broadcast %185 : vector<1x24xf32> to vector<104x24xf32>
    %187 = arith.addf %184, %186 : vector<104x24xf32>
    %188 = arith.addf %143, %187 : vector<104x24xf32>
    %189 = vector.shape_cast %188 : vector<104x24xf32> to vector<1x104x24xf32>
    %c0_71 = arith.constant 0 : index
    %c0_72 = arith.constant 0 : index
    %c0_73 = arith.constant 0 : index
    %190 = vector.load %arg12[%c0_71, %c0_72, %c0_73] : memref<1x104x24xf32, #tpu.memory_space<vmem>>, vector<1x104x24xf32>
    tpu.vector_store %arg12[%c0_71, %c0_72, %c0_73], %189 {strides = array<i32>} : memref<1x104x24xf32, #tpu.memory_space<vmem>>, vector<1x104x24xf32>,
    return
  }
  func.func @transform_0(%arg0: i32) -> (i32, i32, i32) {
    %c0_i32 = arith.constant 0 : i32
    %c0_i32_0 = arith.constant 0 : i32
    %c0_i32_1 = arith.constant 0 : i32
    return %arg0, %c0_i32, %c0_i32_0 : i32, i32, i32
  }
  func.func @transform_1(%arg0: i32) -> (i32, i32) {
    %c0_i32 = arith.constant 0 : i32
    %c0_i32_0 = arith.constant 0 : i32
    %c0_i32_1 = arith.constant 0 : i32
    return %c0_i32, %c0_i32_0 : i32, i32
  }
  func.func @transform_2(%arg0: i32) -> (i32, i32) {
    %c0_i32 = arith.constant 0 : i32
    %c0_i32_0 = arith.constant 0 : i32
    %c0_i32_1 = arith.constant 0 : i32
    return %c0_i32, %c0_i32_0 : i32, i32
  }
  func.func @transform_3(%arg0: i32) -> (i32, i32) {
    %c0_i32 = arith.constant 0 : i32
    %c0_i32_0 = arith.constant 0 : i32
    %c0_i32_1 = arith.constant 0 : i32
    return %c0_i32, %c0_i32_0 : i32, i32
  }
  func.func @transform_4(%arg0: i32) -> (i32, i32) {
    %c0_i32 = arith.constant 0 : i32
    %c0_i32_0 = arith.constant 0 : i32
    %c0_i32_1 = arith.constant 0 : i32
    return %c0_i32, %c0_i32_0 : i32, i32
  }
  func.func @transform_5(%arg0: i32) -> (i32, i32) {
    %c0_i32 = arith.constant 0 : i32
    %c0_i32_0 = arith.constant 0 : i32
    %c0_i32_1 = arith.constant 0 : i32
    return %c0_i32, %c0_i32_0 : i32, i32
  }
  func.func @transform_6(%arg0: i32) -> (i32, i32) {
    %c0_i32 = arith.constant 0 : i32
    %c0_i32_0 = arith.constant 0 : i32
    %c0_i32_1 = arith.constant 0 : i32
    return %c0_i32, %c0_i32_0 : i32, i32
  }
  func.func @transform_7(%arg0: i32) -> (i32, i32) {
    %c0_i32 = arith.constant 0 : i32
    %c0_i32_0 = arith.constant 0 : i32
    %c0_i32_1 = arith.constant 0 : i32
    return %c0_i32, %c0_i32_0 : i32, i32
  }
  func.func @transform_8(%arg0: i32) -> (i32, i32) {
    %c0_i32 = arith.constant 0 : i32
    %c0_i32_0 = arith.constant 0 : i32
    %c0_i32_1 = arith.constant 0 : i32
    return %c0_i32, %c0_i32_0 : i32, i32
  }
  func.func @transform_9(%arg0: i32) -> (i32, i32) {
    %c0_i32 = arith.constant 0 : i32
    %c0_i32_0 = arith.constant 0 : i32
    %c0_i32_1 = arith.constant 0 : i32
    return %c0_i32, %c0_i32_0 : i32, i32
  }
  func.func @transform_10(%arg0: i32) -> (i32, i32) {
    %c0_i32 = arith.constant 0 : i32
    %c0_i32_0 = arith.constant 0 : i32
    %c0_i32_1 = arith.constant 0 : i32
    return %c0_i32, %c0_i32_0 : i32, i32
  }
  func.func @transform_11(%arg0: i32) -> (i32, i32, i32) {
    %c0_i32 = arith.constant 0 : i32
    %c0_i32_0 = arith.constant 0 : i32
    %c0_i32_1 = arith.constant 0 : i32
    return %arg0, %c0_i32, %c0_i32_0 : i32, i32, i32
  }
}

module attributes {stable_mosaic.version = 11 : i64} {
  func.func @vit_block_kernel(%arg0: i32, %arg1: memref<1x104x24xf32, #tpu.memory_space<vmem>>, %arg2: memref<1x24xf32, #tpu.memory_space<vmem>>, %arg3: memref<1x24xf32, #tpu.memory_space<vmem>>, %arg4: memref<24x72xbf16, #tpu.memory_space<vmem>>, %arg5: memref<24x24xbf16, #tpu.memory_space<vmem>>, %arg6: memref<1x24xf32, #tpu.memory_space<vmem>>, %arg7: memref<1x24xf32, #tpu.memory_space<vmem>>, %arg8: memref<24x48xbf16, #tpu.memory_space<vmem>>, %arg9: memref<1x48xf32, #tpu.memory_space<vmem>>, %arg10: memref<48x24xbf16, #tpu.memory_space<vmem>>, %arg11: memref<1x24xf32, #tpu.memory_space<vmem>>, %arg12: memref<1x104x24xf32, #tpu.memory_space<vmem>>, %arg13: memref<104x72xbf16, #tpu.memory_space<vmem>>, %arg14: memref<104x24xbf16, #tpu.memory_space<vmem>>) attributes {dimension_semantics = [#tpu.dimension_semantics<parallel>], iteration_bounds = array<i64: 2>, scalar_prefetch = 0 : i64, scratch_operands = 2 : i64, tpu.core_type = #tpu.core_type<tc>, window_params = [{transform_indices = @transform_0, window_bounds = array<i64: 1, 104, 24>}, {pipeline_mode = #tpu.pipeline_mode<synchronous>, transform_indices = @transform_1, window_bounds = array<i64: 1, 24>}, {pipeline_mode = #tpu.pipeline_mode<synchronous>, transform_indices = @transform_2, window_bounds = array<i64: 1, 24>}, {pipeline_mode = #tpu.pipeline_mode<synchronous>, transform_indices = @transform_3, window_bounds = array<i64: 24, 72>}, {pipeline_mode = #tpu.pipeline_mode<synchronous>, transform_indices = @transform_4, window_bounds = array<i64: 24, 24>}, {pipeline_mode = #tpu.pipeline_mode<synchronous>, transform_indices = @transform_5, window_bounds = array<i64: 1, 24>}, {pipeline_mode = #tpu.pipeline_mode<synchronous>, transform_indices = @transform_6, window_bounds = array<i64: 1, 24>}, {pipeline_mode = #tpu.pipeline_mode<synchronous>, transform_indices = @transform_7, window_bounds = array<i64: 24, 48>}, {pipeline_mode = #tpu.pipeline_mode<synchronous>, transform_indices = @transform_8, window_bounds = array<i64: 1, 48>}, {pipeline_mode = #tpu.pipeline_mode<synchronous>, transform_indices = @transform_9, window_bounds = array<i64: 48, 24>}, {pipeline_mode = #tpu.pipeline_mode<synchronous>, transform_indices = @transform_10, window_bounds = array<i64: 1, 24>}, {transform_indices = @transform_11, window_bounds = array<i64: 1, 104, 24>}]} {
    %c0 = arith.constant 0 : index
    %c0_0 = arith.constant 0 : index
    %c0_1 = arith.constant 0 : index
    %0 = vector.load %arg1[%c0, %c0_0, %c0_1] : memref<1x104x24xf32, #tpu.memory_space<vmem>>, vector<1x104x24xf32>
    %1 = vector.shape_cast %0 : vector<1x104x24xf32> to vector<104x24xf32>
    %c0_2 = arith.constant 0 : index
    %c0_3 = arith.constant 0 : index
    %2 = vector.load %arg2[%c0_2, %c0_3] : memref<1x24xf32, #tpu.memory_space<vmem>>, vector<1x24xf32>
    %c0_4 = arith.constant 0 : index
    %c0_5 = arith.constant 0 : index
    %3 = vector.load %arg3[%c0_4, %c0_5] : memref<1x24xf32, #tpu.memory_space<vmem>>, vector<1x24xf32>
    %cst = arith.constant dense<0.000000e+00> : vector<104xf32>
    %4 = vector.multi_reduction <add>, %1, %cst [1] : vector<104x24xf32> to vector<104xf32>
    %5 = vector.shape_cast %4 : vector<104xf32> to vector<104x1xf32>
    %cst_6 = arith.constant 2.400000e+01 : f32
    %6 = vector.broadcast %cst_6 : f32 to vector<104x1xf32>
    %7 = arith.divf %5, %6 : vector<104x1xf32>
    %8 = vector.broadcast %7 : vector<104x1xf32> to vector<104x24xf32>
    %9 = arith.subf %1, %8 : vector<104x24xf32>
    %10 = arith.mulf %9, %9 : vector<104x24xf32>
    %cst_7 = arith.constant dense<0.000000e+00> : vector<104xf32>
    %11 = vector.multi_reduction <add>, %10, %cst_7 [1] : vector<104x24xf32> to vector<104xf32>
    %12 = vector.shape_cast %11 : vector<104xf32> to vector<104x1xf32>
    %cst_8 = arith.constant 2.400000e+01 : f32
    %13 = vector.broadcast %cst_8 : f32 to vector<104x1xf32>
    %14 = arith.divf %12, %13 : vector<104x1xf32>
    %15 = vector.broadcast %7 : vector<104x1xf32> to vector<104x24xf32>
    %16 = arith.subf %1, %15 : vector<104x24xf32>
    %cst_9 = arith.constant 9.99999974E-6 : f32
    %17 = vector.broadcast %cst_9 : f32 to vector<104x1xf32>
    %18 = arith.addf %14, %17 : vector<104x1xf32>
    %19 = math.rsqrt %18 : vector<104x1xf32>
    %20 = vector.broadcast %19 : vector<104x1xf32> to vector<104x24xf32>
    %21 = arith.mulf %16, %20 : vector<104x24xf32>
    %22 = vector.broadcast %2 : vector<1x24xf32> to vector<104x24xf32>
    %23 = arith.mulf %21, %22 : vector<104x24xf32>
    %24 = vector.broadcast %3 : vector<1x24xf32> to vector<104x24xf32>
    %25 = arith.addf %23, %24 : vector<104x24xf32>
    %26 = arith.truncf %25 : vector<104x24xf32> to vector<104x24xbf16>
    %c0_10 = arith.constant 0 : index
    %c0_11 = arith.constant 0 : index
    %27 = vector.load %arg4[%c0_10, %c0_11] : memref<24x72xbf16, #tpu.memory_space<vmem>>, vector<24x72xbf16>
    %cst_12 = arith.constant dense<0.000000e+00> : vector<104x72xf32>
    %28 = tpu.matmul %26, %27, %cst_12 {dimension_numbers = #tpu.dot_dimension_numbers<[1], [0], [0], [1], [0, 0, 1, 1], [], []>} : vector<104x24xbf16>, vector<24x72xbf16>, vector<104x72xf32> -> vector<104x72xf32>
    %29 = arith.truncf %28 : vector<104x72xf32> to vector<104x72xbf16>
    %c0_13 = arith.constant 0 : index
    %c0_14 = arith.constant 0 : index
    %30 = vector.load %arg13[%c0_13, %c0_14] : memref<104x72xbf16, #tpu.memory_space<vmem>>, vector<104x72xbf16>
    tpu.vector_store %arg13[%c0_13, %c0_14], %29 {strides = array<i32>} : memref<104x72xbf16, #tpu.memory_space<vmem>>, vector<104x72xbf16>,
    %31 = tpu.iota {dimensions = array<i32: 1>} : vector<104x104xi32>
    %c100_i32 = arith.constant 100 : i32
    %32 = vector.broadcast %c100_i32 : i32 to vector<104x104xi32>
    %33 = arith.cmpi slt, %31, %32 : vector<104x104xi32>
    %c0_i32 = arith.constant 0 : i32
    %c104_i32 = arith.constant 104 : i32
    %34 = arith.muli %c0_i32, %c104_i32 : i32
    %35 = tpu.assume_multiple %34, 8 : i32
    %36 = arith.index_cast %35 : i32 to index
    %c0_15 = arith.constant 0 : index
    %37 = vector.load %arg13[%36, %c0_15] : memref<104x72xbf16, #tpu.memory_space<vmem>>, vector<104x6xbf16>
    %38 = arith.index_cast %35 : i32 to index
    %c24 = arith.constant 24 : index
    %39 = vector.load %arg13[%38, %c24] : memref<104x72xbf16, #tpu.memory_space<vmem>>, vector<104x6xbf16>
    %40 = arith.index_cast %35 : i32 to index
    %c48 = arith.constant 48 : index
    %41 = vector.load %arg13[%40, %c48] : memref<104x72xbf16, #tpu.memory_space<vmem>>, vector<104x6xbf16>
    %cst_16 = arith.constant dense<0.000000e+00> : vector<104x104xf32>
    %42 = tpu.matmul %37, %39, %cst_16 {dimension_numbers = #tpu.dot_dimension_numbers<[1], [1], [0], [0], [0, 0, 1, 0], [], []>} : vector<104x6xbf16>, vector<104x6xbf16>, vector<104x104xf32> -> vector<104x104xf32>
    %cst_17 = arith.constant 0.408248305 : f32
    %43 = vector.broadcast %cst_17 : f32 to vector<104x104xf32>
    %44 = arith.mulf %42, %43 : vector<104x104xf32>
    %cst_18 = arith.constant -1.000000e+30 : f32
    %45 = vector.broadcast %cst_18 : f32 to vector<104x104xf32>
    %46 = arith.select %33, %44, %45 : vector<104x104xi1>, vector<104x104xf32>
    %cst_19 = arith.constant dense<0xFF800000> : vector<104xf32>
    %47 = vector.multi_reduction <maximumf>, %46, %cst_19 [1] : vector<104x104xf32> to vector<104xf32>
    %48 = vector.shape_cast %47 : vector<104xf32> to vector<104x1xf32>
    %49 = vector.broadcast %48 : vector<104x1xf32> to vector<104x104xf32>
    %50 = arith.subf %46, %49 : vector<104x104xf32>
    %51 = math.exp %50 : vector<104x104xf32>
    %cst_20 = arith.constant dense<0.000000e+00> : vector<104xf32>
    %52 = vector.multi_reduction <add>, %51, %cst_20 [1] : vector<104x104xf32> to vector<104xf32>
    %53 = vector.shape_cast %52 : vector<104xf32> to vector<104x1xf32>
    %54 = tpu.reciprocal %53 {approx = true} : vector<104x1xf32> -> vector<104x1xf32>
    %55 = vector.broadcast %54 : vector<104x1xf32> to vector<104x104xf32>
    %56 = arith.mulf %51, %55 : vector<104x104xf32>
    %57 = arith.truncf %56 : vector<104x104xf32> to vector<104x104xbf16>
    %cst_21 = arith.constant dense<0.000000e+00> : vector<104x6xf32>
    %58 = tpu.matmul %57, %41, %cst_21 {dimension_numbers = #tpu.dot_dimension_numbers<[1], [0], [0], [1], [0, 0, 1, 1], [], []>} : vector<104x104xbf16>, vector<104x6xbf16>, vector<104x6xf32> -> vector<104x6xf32>
    %59 = arith.truncf %58 : vector<104x6xf32> to vector<104x6xbf16>
    %60 = arith.index_cast %35 : i32 to index
    %c0_22 = arith.constant 0 : index
    %61 = vector.load %arg14[%60, %c0_22] : memref<104x24xbf16, #tpu.memory_space<vmem>>, vector<104x6xbf16>
    tpu.vector_store %arg14[%60, %c0_22], %59 {strides = array<i32>} : memref<104x24xbf16, #tpu.memory_space<vmem>>, vector<104x6xbf16>,
    %62 = arith.index_cast %35 : i32 to index
    %c6 = arith.constant 6 : index
    %63 = vector.load %arg13[%62, %c6] : memref<104x72xbf16, #tpu.memory_space<vmem>>, vector<104x6xbf16>
    %64 = arith.index_cast %35 : i32 to index
    %c30 = arith.constant 30 : index
    %65 = vector.load %arg13[%64, %c30] : memref<104x72xbf16, #tpu.memory_space<vmem>>, vector<104x6xbf16>
    %66 = arith.index_cast %35 : i32 to index
    %c54 = arith.constant 54 : index
    %67 = vector.load %arg13[%66, %c54] : memref<104x72xbf16, #tpu.memory_space<vmem>>, vector<104x6xbf16>
    %cst_23 = arith.constant dense<0.000000e+00> : vector<104x104xf32>
    %68 = tpu.matmul %63, %65, %cst_23 {dimension_numbers = #tpu.dot_dimension_numbers<[1], [1], [0], [0], [0, 0, 1, 0], [], []>} : vector<104x6xbf16>, vector<104x6xbf16>, vector<104x104xf32> -> vector<104x104xf32>
    %cst_24 = arith.constant 0.408248305 : f32
    %69 = vector.broadcast %cst_24 : f32 to vector<104x104xf32>
    %70 = arith.mulf %68, %69 : vector<104x104xf32>
    %cst_25 = arith.constant -1.000000e+30 : f32
    %71 = vector.broadcast %cst_25 : f32 to vector<104x104xf32>
    %72 = arith.select %33, %70, %71 : vector<104x104xi1>, vector<104x104xf32>
    %cst_26 = arith.constant dense<0xFF800000> : vector<104xf32>
    %73 = vector.multi_reduction <maximumf>, %72, %cst_26 [1] : vector<104x104xf32> to vector<104xf32>
    %74 = vector.shape_cast %73 : vector<104xf32> to vector<104x1xf32>
    %75 = vector.broadcast %74 : vector<104x1xf32> to vector<104x104xf32>
    %76 = arith.subf %72, %75 : vector<104x104xf32>
    %77 = math.exp %76 : vector<104x104xf32>
    %cst_27 = arith.constant dense<0.000000e+00> : vector<104xf32>
    %78 = vector.multi_reduction <add>, %77, %cst_27 [1] : vector<104x104xf32> to vector<104xf32>
    %79 = vector.shape_cast %78 : vector<104xf32> to vector<104x1xf32>
    %80 = tpu.reciprocal %79 {approx = true} : vector<104x1xf32> -> vector<104x1xf32>
    %81 = vector.broadcast %80 : vector<104x1xf32> to vector<104x104xf32>
    %82 = arith.mulf %77, %81 : vector<104x104xf32>
    %83 = arith.truncf %82 : vector<104x104xf32> to vector<104x104xbf16>
    %cst_28 = arith.constant dense<0.000000e+00> : vector<104x6xf32>
    %84 = tpu.matmul %83, %67, %cst_28 {dimension_numbers = #tpu.dot_dimension_numbers<[1], [0], [0], [1], [0, 0, 1, 1], [], []>} : vector<104x104xbf16>, vector<104x6xbf16>, vector<104x6xf32> -> vector<104x6xf32>
    %85 = arith.truncf %84 : vector<104x6xf32> to vector<104x6xbf16>
    %86 = arith.index_cast %35 : i32 to index
    %c6_29 = arith.constant 6 : index
    %87 = vector.load %arg14[%86, %c6_29] : memref<104x24xbf16, #tpu.memory_space<vmem>>, vector<104x6xbf16>
    tpu.vector_store %arg14[%86, %c6_29], %85 {strides = array<i32>} : memref<104x24xbf16, #tpu.memory_space<vmem>>, vector<104x6xbf16>,
    %88 = arith.index_cast %35 : i32 to index
    %c12 = arith.constant 12 : index
    %89 = vector.load %arg13[%88, %c12] : memref<104x72xbf16, #tpu.memory_space<vmem>>, vector<104x6xbf16>
    %90 = arith.index_cast %35 : i32 to index
    %c36 = arith.constant 36 : index
    %91 = vector.load %arg13[%90, %c36] : memref<104x72xbf16, #tpu.memory_space<vmem>>, vector<104x6xbf16>
    %92 = arith.index_cast %35 : i32 to index
    %c60 = arith.constant 60 : index
    %93 = vector.load %arg13[%92, %c60] : memref<104x72xbf16, #tpu.memory_space<vmem>>, vector<104x6xbf16>
    %cst_30 = arith.constant dense<0.000000e+00> : vector<104x104xf32>
    %94 = tpu.matmul %89, %91, %cst_30 {dimension_numbers = #tpu.dot_dimension_numbers<[1], [1], [0], [0], [0, 0, 1, 0], [], []>} : vector<104x6xbf16>, vector<104x6xbf16>, vector<104x104xf32> -> vector<104x104xf32>
    %cst_31 = arith.constant 0.408248305 : f32
    %95 = vector.broadcast %cst_31 : f32 to vector<104x104xf32>
    %96 = arith.mulf %94, %95 : vector<104x104xf32>
    %cst_32 = arith.constant -1.000000e+30 : f32
    %97 = vector.broadcast %cst_32 : f32 to vector<104x104xf32>
    %98 = arith.select %33, %96, %97 : vector<104x104xi1>, vector<104x104xf32>
    %cst_33 = arith.constant dense<0xFF800000> : vector<104xf32>
    %99 = vector.multi_reduction <maximumf>, %98, %cst_33 [1] : vector<104x104xf32> to vector<104xf32>
    %100 = vector.shape_cast %99 : vector<104xf32> to vector<104x1xf32>
    %101 = vector.broadcast %100 : vector<104x1xf32> to vector<104x104xf32>
    %102 = arith.subf %98, %101 : vector<104x104xf32>
    %103 = math.exp %102 : vector<104x104xf32>
    %cst_34 = arith.constant dense<0.000000e+00> : vector<104xf32>
    %104 = vector.multi_reduction <add>, %103, %cst_34 [1] : vector<104x104xf32> to vector<104xf32>
    %105 = vector.shape_cast %104 : vector<104xf32> to vector<104x1xf32>
    %106 = tpu.reciprocal %105 {approx = true} : vector<104x1xf32> -> vector<104x1xf32>
    %107 = vector.broadcast %106 : vector<104x1xf32> to vector<104x104xf32>
    %108 = arith.mulf %103, %107 : vector<104x104xf32>
    %109 = arith.truncf %108 : vector<104x104xf32> to vector<104x104xbf16>
    %cst_35 = arith.constant dense<0.000000e+00> : vector<104x6xf32>
    %110 = tpu.matmul %109, %93, %cst_35 {dimension_numbers = #tpu.dot_dimension_numbers<[1], [0], [0], [1], [0, 0, 1, 1], [], []>} : vector<104x104xbf16>, vector<104x6xbf16>, vector<104x6xf32> -> vector<104x6xf32>
    %111 = arith.truncf %110 : vector<104x6xf32> to vector<104x6xbf16>
    %112 = arith.index_cast %35 : i32 to index
    %c12_36 = arith.constant 12 : index
    %113 = vector.load %arg14[%112, %c12_36] : memref<104x24xbf16, #tpu.memory_space<vmem>>, vector<104x6xbf16>
    tpu.vector_store %arg14[%112, %c12_36], %111 {strides = array<i32>} : memref<104x24xbf16, #tpu.memory_space<vmem>>, vector<104x6xbf16>,
    %114 = arith.index_cast %35 : i32 to index
    %c18 = arith.constant 18 : index
    %115 = vector.load %arg13[%114, %c18] : memref<104x72xbf16, #tpu.memory_space<vmem>>, vector<104x6xbf16>
    %116 = arith.index_cast %35 : i32 to index
    %c42 = arith.constant 42 : index
    %117 = vector.load %arg13[%116, %c42] : memref<104x72xbf16, #tpu.memory_space<vmem>>, vector<104x6xbf16>
    %118 = arith.index_cast %35 : i32 to index
    %c66 = arith.constant 66 : index
    %119 = vector.load %arg13[%118, %c66] : memref<104x72xbf16, #tpu.memory_space<vmem>>, vector<104x6xbf16>
    %cst_37 = arith.constant dense<0.000000e+00> : vector<104x104xf32>
    %120 = tpu.matmul %115, %117, %cst_37 {dimension_numbers = #tpu.dot_dimension_numbers<[1], [1], [0], [0], [0, 0, 1, 0], [], []>} : vector<104x6xbf16>, vector<104x6xbf16>, vector<104x104xf32> -> vector<104x104xf32>
    %cst_38 = arith.constant 0.408248305 : f32
    %121 = vector.broadcast %cst_38 : f32 to vector<104x104xf32>
    %122 = arith.mulf %120, %121 : vector<104x104xf32>
    %cst_39 = arith.constant -1.000000e+30 : f32
    %123 = vector.broadcast %cst_39 : f32 to vector<104x104xf32>
    %124 = arith.select %33, %122, %123 : vector<104x104xi1>, vector<104x104xf32>
    %cst_40 = arith.constant dense<0xFF800000> : vector<104xf32>
    %125 = vector.multi_reduction <maximumf>, %124, %cst_40 [1] : vector<104x104xf32> to vector<104xf32>
    %126 = vector.shape_cast %125 : vector<104xf32> to vector<104x1xf32>
    %127 = vector.broadcast %126 : vector<104x1xf32> to vector<104x104xf32>
    %128 = arith.subf %124, %127 : vector<104x104xf32>
    %129 = math.exp %128 : vector<104x104xf32>
    %cst_41 = arith.constant dense<0.000000e+00> : vector<104xf32>
    %130 = vector.multi_reduction <add>, %129, %cst_41 [1] : vector<104x104xf32> to vector<104xf32>
    %131 = vector.shape_cast %130 : vector<104xf32> to vector<104x1xf32>
    %132 = tpu.reciprocal %131 {approx = true} : vector<104x1xf32> -> vector<104x1xf32>
    %133 = vector.broadcast %132 : vector<104x1xf32> to vector<104x104xf32>
    %134 = arith.mulf %129, %133 : vector<104x104xf32>
    %135 = arith.truncf %134 : vector<104x104xf32> to vector<104x104xbf16>
    %cst_42 = arith.constant dense<0.000000e+00> : vector<104x6xf32>
    %136 = tpu.matmul %135, %119, %cst_42 {dimension_numbers = #tpu.dot_dimension_numbers<[1], [0], [0], [1], [0, 0, 1, 1], [], []>} : vector<104x104xbf16>, vector<104x6xbf16>, vector<104x6xf32> -> vector<104x6xf32>
    %137 = arith.truncf %136 : vector<104x6xf32> to vector<104x6xbf16>
    %138 = arith.index_cast %35 : i32 to index
    %c18_43 = arith.constant 18 : index
    %139 = vector.load %arg14[%138, %c18_43] : memref<104x24xbf16, #tpu.memory_space<vmem>>, vector<104x6xbf16>
    tpu.vector_store %arg14[%138, %c18_43], %137 {strides = array<i32>} : memref<104x24xbf16, #tpu.memory_space<vmem>>, vector<104x6xbf16>,
    %c1_i32 = arith.constant 1 : i32
    %c0_44 = arith.constant 0 : index
    %c0_45 = arith.constant 0 : index
    %140 = vector.load %arg14[%c0_44, %c0_45] : memref<104x24xbf16, #tpu.memory_space<vmem>>, vector<104x24xbf16>
    %c0_46 = arith.constant 0 : index
    %c0_47 = arith.constant 0 : index
    %141 = vector.load %arg5[%c0_46, %c0_47] : memref<24x24xbf16, #tpu.memory_space<vmem>>, vector<24x24xbf16>
    %cst_48 = arith.constant dense<0.000000e+00> : vector<104x24xf32>
    %142 = tpu.matmul %140, %141, %cst_48 {dimension_numbers = #tpu.dot_dimension_numbers<[1], [0], [0], [1], [0, 0, 1, 1], [], []>} : vector<104x24xbf16>, vector<24x24xbf16>, vector<104x24xf32> -> vector<104x24xf32>
    %143 = arith.addf %1, %142 : vector<104x24xf32>
    %c0_49 = arith.constant 0 : index
    %c0_50 = arith.constant 0 : index
    %144 = vector.load %arg6[%c0_49, %c0_50] : memref<1x24xf32, #tpu.memory_space<vmem>>, vector<1x24xf32>
    %c0_51 = arith.constant 0 : index
    %c0_52 = arith.constant 0 : index
    %145 = vector.load %arg7[%c0_51, %c0_52] : memref<1x24xf32, #tpu.memory_space<vmem>>, vector<1x24xf32>
    %cst_53 = arith.constant dense<0.000000e+00> : vector<104xf32>
    %146 = vector.multi_reduction <add>, %143, %cst_53 [1] : vector<104x24xf32> to vector<104xf32>
    %147 = vector.shape_cast %146 : vector<104xf32> to vector<104x1xf32>
    %cst_54 = arith.constant 2.400000e+01 : f32
    %148 = vector.broadcast %cst_54 : f32 to vector<104x1xf32>
    %149 = arith.divf %147, %148 : vector<104x1xf32>
    %150 = vector.broadcast %149 : vector<104x1xf32> to vector<104x24xf32>
    %151 = arith.subf %143, %150 : vector<104x24xf32>
    %152 = arith.mulf %151, %151 : vector<104x24xf32>
    %cst_55 = arith.constant dense<0.000000e+00> : vector<104xf32>
    %153 = vector.multi_reduction <add>, %152, %cst_55 [1] : vector<104x24xf32> to vector<104xf32>
    %154 = vector.shape_cast %153 : vector<104xf32> to vector<104x1xf32>
    %cst_56 = arith.constant 2.400000e+01 : f32
    %155 = vector.broadcast %cst_56 : f32 to vector<104x1xf32>
    %156 = arith.divf %154, %155 : vector<104x1xf32>
    %157 = vector.broadcast %149 : vector<104x1xf32> to vector<104x24xf32>
    %158 = arith.subf %143, %157 : vector<104x24xf32>
    %cst_57 = arith.constant 9.99999974E-6 : f32
    %159 = vector.broadcast %cst_57 : f32 to vector<104x1xf32>
    %160 = arith.addf %156, %159 : vector<104x1xf32>
    %161 = math.rsqrt %160 : vector<104x1xf32>
    %162 = vector.broadcast %161 : vector<104x1xf32> to vector<104x24xf32>
    %163 = arith.mulf %158, %162 : vector<104x24xf32>
    %164 = vector.broadcast %144 : vector<1x24xf32> to vector<104x24xf32>
    %165 = arith.mulf %163, %164 : vector<104x24xf32>
    %166 = vector.broadcast %145 : vector<1x24xf32> to vector<104x24xf32>
    %167 = arith.addf %165, %166 : vector<104x24xf32>
    %168 = arith.truncf %167 : vector<104x24xf32> to vector<104x24xbf16>
    %c0_58 = arith.constant 0 : index
    %c0_59 = arith.constant 0 : index
    %169 = vector.load %arg8[%c0_58, %c0_59] : memref<24x48xbf16, #tpu.memory_space<vmem>>, vector<24x48xbf16>
    %cst_60 = arith.constant dense<0.000000e+00> : vector<104x48xf32>
    %170 = tpu.matmul %168, %169, %cst_60 {dimension_numbers = #tpu.dot_dimension_numbers<[1], [0], [0], [1], [0, 0, 1, 1], [], []>} : vector<104x24xbf16>, vector<24x48xbf16>, vector<104x48xf32> -> vector<104x48xf32>
    %c0_61 = arith.constant 0 : index
    %c0_62 = arith.constant 0 : index
    %171 = vector.load %arg9[%c0_61, %c0_62] : memref<1x48xf32, #tpu.memory_space<vmem>>, vector<1x48xf32>
    %172 = vector.broadcast %171 : vector<1x48xf32> to vector<104x48xf32>
    %173 = arith.addf %170, %172 : vector<104x48xf32>
    %cst_63 = arith.constant 5.000000e-01 : f32
    %174 = vector.broadcast %cst_63 : f32 to vector<104x48xf32>
    %175 = arith.mulf %174, %173 : vector<104x48xf32>
    %cst_64 = arith.constant 0.707106769 : f32
    %176 = vector.broadcast %cst_64 : f32 to vector<104x48xf32>
    %177 = arith.mulf %173, %176 : vector<104x48xf32>
    %178 = math.erf %177 : vector<104x48xf32>
    %cst_65 = arith.constant 1.000000e+00 : f32
    %179 = vector.broadcast %cst_65 : f32 to vector<104x48xf32>
    %180 = arith.addf %179, %178 : vector<104x48xf32>
    %181 = arith.mulf %175, %180 : vector<104x48xf32>
    %182 = arith.truncf %181 : vector<104x48xf32> to vector<104x48xbf16>
    %c0_66 = arith.constant 0 : index
    %c0_67 = arith.constant 0 : index
    %183 = vector.load %arg10[%c0_66, %c0_67] : memref<48x24xbf16, #tpu.memory_space<vmem>>, vector<48x24xbf16>
    %cst_68 = arith.constant dense<0.000000e+00> : vector<104x24xf32>
    %184 = tpu.matmul %182, %183, %cst_68 {dimension_numbers = #tpu.dot_dimension_numbers<[1], [0], [0], [1], [0, 0, 1, 1], [], []>} : vector<104x48xbf16>, vector<48x24xbf16>, vector<104x24xf32> -> vector<104x24xf32>
    %c0_69 = arith.constant 0 : index
    %c0_70 = arith.constant 0 : index
    %185 = vector.load %arg11[%c0_69, %c0_70] : memref<1x24xf32, #tpu.memory_space<vmem>>, vector<1x24xf32>
    %186 = vector.broadcast %185 : vector<1x24xf32> to vector<104x24xf32>
    %187 = arith.addf %184, %186 : vector<104x24xf32>
    %188 = arith.addf %143, %187 : vector<104x24xf32>
    %189 = vector.shape_cast %188 : vector<104x24xf32> to vector<1x104x24xf32>
    %c0_71 = arith.constant 0 : index
    %c0_72 = arith.constant 0 : index
    %c0_73 = arith.constant 0 : index
    %190 = vector.load %arg12[%c0_71, %c0_72, %c0_73] : memref<1x104x24xf32, #tpu.memory_space<vmem>>, vector<1x104x24xf32>
    tpu.vector_store %arg12[%c0_71, %c0_72, %c0_73], %189 {strides = array<i32>} : memref<1x104x24xf32, #tpu.memory_space<vmem>>, vector<1x104x24xf32>,
    return
  }
  func.func @transform_0(%arg0: i32) -> (i32, i32, i32) {
    %c0_i32 = arith.constant 0 : i32
    %c0_i32_0 = arith.constant 0 : i32
    %c0_i32_1 = arith.constant 0 : i32
    return %arg0, %c0_i32, %c0_i32_0 : i32, i32, i32
  }
  func.func @transform_1(%arg0: i32) -> (i32, i32) {
    %c0_i32 = arith.constant 0 : i32
    %c0_i32_0 = arith.constant 0 : i32
    %c0_i32_1 = arith.constant 0 : i32
    return %c0_i32, %c0_i32_0 : i32, i32
  }
  func.func @transform_2(%arg0: i32) -> (i32, i32) {
    %c0_i32 = arith.constant 0 : i32
    %c0_i32_0 = arith.constant 0 : i32
    %c0_i32_1 = arith.constant 0 : i32
    return %c0_i32, %c0_i32_0 : i32, i32
  }
  func.func @transform_3(%arg0: i32) -> (i32, i32) {
    %c0_i32 = arith.constant 0 : i32
    %c0_i32_0 = arith.constant 0 : i32
    %c0_i32_1 = arith.constant 0 : i32
    return %c0_i32, %c0_i32_0 : i32, i32
  }
  func.func @transform_4(%arg0: i32) -> (i32, i32) {
    %c0_i32 = arith.constant 0 : i32
    %c0_i32_0 = arith.constant 0 : i32
    %c0_i32_1 = arith.constant 0 : i32
    return %c0_i32, %c0_i32_0 : i32, i32
  }
  func.func @transform_5(%arg0: i32) -> (i32, i32) {
    %c0_i32 = arith.constant 0 : i32
    %c0_i32_0 = arith.constant 0 : i32
    %c0_i32_1 = arith.constant 0 : i32
    return %c0_i32, %c0_i32_0 : i32, i32
  }
  func.func @transform_6(%arg0: i32) -> (i32, i32) {
    %c0_i32 = arith.constant 0 : i32
    %c0_i32_0 = arith.constant 0 : i32
    %c0_i32_1 = arith.constant 0 : i32
    return %c0_i32, %c0_i32_0 : i32, i32
  }
  func.func @transform_7(%arg0: i32) -> (i32, i32) {
    %c0_i32 = arith.constant 0 : i32
    %c0_i32_0 = arith.constant 0 : i32
    %c0_i32_1 = arith.constant 0 : i32
    return %c0_i32, %c0_i32_0 : i32, i32
  }
  func.func @transform_8(%arg0: i32) -> (i32, i32) {
    %c0_i32 = arith.constant 0 : i32
    %c0_i32_0 = arith.constant 0 : i32
    %c0_i32_1 = arith.constant 0 : i32
    return %c0_i32, %c0_i32_0 : i32, i32
  }
  func.func @transform_9(%arg0: i32) -> (i32, i32) {
    %c0_i32 = arith.constant 0 : i32
    %c0_i32_0 = arith.constant 0 : i32
    %c0_i32_1 = arith.constant 0 : i32
    return %c0_i32, %c0_i32_0 : i32, i32
  }
  func.func @transform_10(%arg0: i32) -> (i32, i32) {
    %c0_i32 = arith.constant 0 : i32
    %c0_i32_0 = arith.constant 0 : i32
    %c0_i32_1 = arith.constant 0 : i32
    return %c0_i32, %c0_i32_0 : i32, i32
  }
  func.func @transform_11(%arg0: i32) -> (i32, i32, i32) {
    %c0_i32 = arith.constant 0 : i32
    %c0_i32_0 = arith.constant 0 : i32
    %c0_i32_1 = arith.constant 0 : i32
    return %arg0, %c0_i32, %c0_i32_0 : i32, i32, i32
  }
}

</mosaic_0001>

<llo_original>
// kernel: tpu_custom_call.1
$region0: #{tpu_custom_call.1}
  #allocation0 [shape = 'u32[]', space=smem, size = 0x4, offset = 0x4, fixed_abs, tag = 'smem constant byte address 0x4 - core index']
  #allocation1 [shape = 'u32[144,128]{1,0:T(1,128)}', space=vmem, size = 0x12000, scoped, tag = 'internal scratch']
  #allocation2 [shape = 'bf16[104,72]{1,0:T(8,128)(2,1)}', space=vmem, size = 0x6800, scoped, tag = 'scratch operand']
  #allocation3 [shape = 'bf16[104,24]{1,0:T(8,128)(2,1)}', space=vmem, size = 0x6800, scoped, tag = 'scratch operand']
  %s0 = inlined_call_operand.vmem [shape: f32[2,104,24], index: 0, kind: input, shape index: {}]
  %s1 = inlined_call_operand.vmem [shape: f32[1,24], index: 1, kind: input, shape index: {}]
  %s2 = inlined_call_operand.vmem [shape: f32[1,24], index: 2, kind: input, shape index: {}]
  %s3 = inlined_call_operand.vmem [shape: bf16[24,72], index: 3, kind: input, shape index: {}]
  %s4 = inlined_call_operand.vmem [shape: bf16[24,24], index: 4, kind: input, shape index: {}]
  %s5 = inlined_call_operand.vmem [shape: f32[1,24], index: 5, kind: input, shape index: {}]
  %s6 = inlined_call_operand.vmem [shape: f32[1,24], index: 6, kind: input, shape index: {}]
  %s7 = inlined_call_operand.vmem [shape: bf16[24,48], index: 7, kind: input, shape index: {}]
  %s8 = inlined_call_operand.vmem [shape: f32[1,48], index: 8, kind: input, shape index: {}]
  %s9 = inlined_call_operand.vmem [shape: bf16[48,24], index: 9, kind: input, shape index: {}]
  %s10 = inlined_call_operand.vmem [shape: f32[1,24], index: 10, kind: input, shape index: {}]
  %s11 = inlined_call_operand.vmem [shape: f32[2,104,24], index: 11, kind: output, shape index: {}]
  %s12 = sld [smem:[#allocation0]]
  $region77: #{tpu_custom_call.1} parent=0
    _
  %s14 = ssub.s32 1, %s12
  %s15 = scalar_select 0, %s14, %s12
  loop: start=0, step=1, limit=4
  $region2: #{tpu_custom_call.1} parent=0 // loop_pre_header
    _
  $region3: #{tpu_custom_call.1} parent=0 // loop_header
    %s17 = sphi 0, %s21
    %p18 = scmp.ge.s32.totalorder %s17, 4
    %s27 = sphi 0, %s29
    %s30 = sphi 0, %s27
    %s31 = sphi 0, %s30
    %s47 = sphi 0, %s31
    %s51 = sphi 0, %s51
    %s53 = sphi 0, %s51
    %s54 = sphi 0, %s53
    %s68 = sphi 0, %s54
    %s72 = sphi 0, %s72
    %s74 = sphi 0, %s72
    %s75 = sphi 0, %s74
    %s89 = sphi 0, %s75
    %s93 = sphi 0, %s93
    %s95 = sphi 0, %s93
    %s96 = sphi 0, %s95
    %s110 = sphi 0, %s96
    %s114 = sphi 0, %s114
    %s116 = sphi 0, %s114
    %s117 = sphi 0, %s116
    %s131 = sphi 0, %s117
    %s135 = sphi 0, %s135
    %s137 = sphi 0, %s135
    %s138 = sphi 0, %s137
    %s152 = sphi 0, %s138
    %s156 = sphi 0, %s156
    %s158 = sphi 0, %s156
    %s159 = sphi 0, %s158
    %s173 = sphi 0, %s159
    %s177 = sphi 0, %s177
    %s179 = sphi 0, %s177
    %s180 = sphi 0, %s179
    %s194 = sphi 0, %s180
    %s198 = sphi 0, %s198
    %s200 = sphi 0, %s198
    %s201 = sphi 0, %s200
    %s215 = sphi 0, %s201
    %s219 = sphi 0, %s219
    %s221 = sphi 0, %s219
    %s222 = sphi 0, %s221
    %s236 = sphi 0, %s222
    %s240 = sphi 0, %s240
    %s242 = sphi 0, %s240
    %s243 = sphi 0, %s242
    %s257 = sphi 0, %s243
    %s263 = sphi 0, %s265
    %s266 = sphi 0, %s263
    %s267 = sphi 0, %s266
    %s283 = sphi 0, %s267
  $region4: #{tpu_custom_call.1} parent=0 // loop_header_branch
    %20 = sbr.rel (%p18) target = $region8
  $region5: #{tpu_custom_call.1} parent=0 // loop_body
    %s22 = ssub.s32 %s17, 1
    %s23 = ssub.s32 %s17, 2
    %s24 = sadd.s32 %s17, 1
    %s25 = ssub.s32 %s17, %s24
    %p26 = scmp.eq.s32.totalorder %s25, 0
    %s28 = sadd.s32 %s27, 1
    %s29 = scalar_select %p26, %s27, %s28
    %p32 = pneg %p26
    %p33 = scmp.eq.s32.totalorder %s17, 1
    %p34 = por %p32, %p33
    %p35 = scmp.ne.s32.totalorder %s27, %s30
    %p36 = scmp.eq.s32.totalorder %s17, 0
    %p37 = por %p35, %p36
    %p38 = scmp.ne.s32.totalorder %s27, %s30
    %p39 = scmp.eq.s32.totalorder %s22, 1
    %p40 = por %p38, %p39
    %p41 = scmp.ne.s32.totalorder %s30, %s31
    %p42 = scmp.eq.s32.totalorder %s22, 0
    %p43 = por %p41, %p42
    %p44 = scmp.ne.s32.totalorder %s30, %s31
    %p45 = scmp.eq.s32.totalorder %s23, 1
    %p46 = por %p44, %p45
    %p48 = scmp.ne.s32.totalorder %s31, %s47
    %p49 = scmp.eq.s32.totalorder %s23, 0
    %p50 = por %p48, %p49
    %s52 = sadd.s32 %s51, 1
    %p55 = scmp.eq.s32.totalorder %s17, 1
    %p56 = scmp.ne.s32.totalorder %s51, %s53
    %p57 = scmp.eq.s32.totalorder %s17, 0
    %p58 = por %p56, %p57
    %p59 = scmp.ne.s32.totalorder %s51, %s53
    %p60 = scmp.eq.s32.totalorder %s22, 1
    %p61 = por %p59, %p60
    %p62 = scmp.ne.s32.totalorder %s53, %s54
    %p63 = scmp.eq.s32.totalorder %s22, 0
    %p64 = por %p62, %p63
    %p65 = scmp.ne.s32.totalorder %s53, %s54
    %p66 = scmp.eq.s32.totalorder %s23, 1
    %p67 = por %p65, %p66
    %p69 = scmp.ne.s32.totalorder %s54, %s68
    %p70 = scmp.eq.s32.totalorder %s23, 0
    %p71 = por %p69, %p70
    %s73 = sadd.s32 %s72, 1
    %p76 = scmp.eq.s32.totalorder %s17, 1
    %p77 = scmp.ne.s32.totalorder %s72, %s74
    %p78 = scmp.eq.s32.totalorder %s17, 0
    %p79 = por %p77, %p78
    %p80 = scmp.ne.s32.totalorder %s72, %s74
    %p81 = scmp.eq.s32.totalorder %s22, 1
    %p82 = por %p80, %p81
    %p83 = scmp.ne.s32.totalorder %s74, %s75
    %p84 = scmp.eq.s32.totalorder %s22, 0
    %p85 = por %p83, %p84
    %p86 = scmp.ne.s32.totalorder %s74, %s75
    %p87 = scmp.eq.s32.totalorder %s23, 1
    %p88 = por %p86, %p87
    %p90 = scmp.ne.s32.totalorder %s75, %s89
    %p91 = scmp.eq.s32.totalorder %s23, 0
    %p92 = por %p90, %p91
    %s94 = sadd.s32 %s93, 1
    %p97 = scmp.eq.s32.totalorder %s17, 1
    %p98 = scmp.ne.s32.totalorder %s93, %s95
    %p99 = scmp.eq.s32.totalorder %s17, 0
    %p100 = por %p98, %p99
    %p101 = scmp.ne.s32.totalorder %s93, %s95
    %p102 = scmp.eq.s32.totalorder %s22, 1
    %p103 = por %p101, %p102
    %p104 = scmp.ne.s32.totalorder %s95, %s96
    %p105 = scmp.eq.s32.totalorder %s22, 0
    %p106 = por %p104, %p105
    %p107 = scmp.ne.s32.totalorder %s95, %s96
    %p108 = scmp.eq.s32.totalorder %s23, 1
    %p109 = por %p107, %p108
    %p111 = scmp.ne.s32.totalorder %s96, %s110
    %p112 = scmp.eq.s32.totalorder %s23, 0
    %p113 = por %p111, %p112
    %s115 = sadd.s32 %s114, 1
    %p118 = scmp.eq.s32.totalorder %s17, 1
    %p119 = scmp.ne.s32.totalorder %s114, %s116
    %p120 = scmp.eq.s32.totalorder %s17, 0
    %p121 = por %p119, %p120
    %p122 = scmp.ne.s32.totalorder %s114, %s116
    %p123 = scmp.eq.s32.totalorder %s22, 1
    %p124 = por %p122, %p123
    %p125 = scmp.ne.s32.totalorder %s116, %s117
    %p126 = scmp.eq.s32.totalorder %s22, 0
    %p127 = por %p125, %p126
    %p128 = scmp.ne.s32.totalorder %s116, %s117
    %p129 = scmp.eq.s32.totalorder %s23, 1
    %p130 = por %p128, %p129
    %p132 = scmp.ne.s32.totalorder %s117, %s131
    %p133 = scmp.eq.s32.totalorder %s23, 0
    %p134 = por %p132, %p133
    %s136 = sadd.s32 %s135, 1
    %p139 = scmp.eq.s32.totalorder %s17, 1
    %p140 = scmp.ne.s32.totalorder %s135, %s137
    %p141 = scmp.eq.s32.totalorder %s17, 0
    %p142 = por %p140, %p141
    %p143 = scmp.ne.s32.totalorder %s135, %s137
    %p144 = scmp.eq.s32.totalorder %s22, 1
    %p145 = por %p143, %p144
    %p146 = scmp.ne.s32.totalorder %s137, %s138
    %p147 = scmp.eq.s32.totalorder %s22, 0
    %p148 = por %p146, %p147
    %p149 = scmp.ne.s32.totalorder %s137, %s138
    %p150 = scmp.eq.s32.totalorder %s23, 1
    %p151 = por %p149, %p150
    %p153 = scmp.ne.s32.totalorder %s138, %s152
    %p154 = scmp.eq.s32.totalorder %s23, 0
    %p155 = por %p153, %p154
    %s157 = sadd.s32 %s156, 1
    %p160 = scmp.eq.s32.totalorder %s17, 1
    %p161 = scmp.ne.s32.totalorder %s156, %s158
    %p162 = scmp.eq.s32.totalorder %s17, 0
    %p163 = por %p161, %p162
    %p164 = scmp.ne.s32.totalorder %s156, %s158
    %p165 = scmp.eq.s32.totalorder %s22, 1
    %p166 = por %p164, %p165
    %p167 = scmp.ne.s32.totalorder %s158, %s159
    %p168 = scmp.eq.s32.totalorder %s22, 0
    %p169 = por %p167, %p168
    %p170 = scmp.ne.s32.totalorder %s158, %s159
    %p171 = scmp.eq.s32.totalorder %s23, 1
    %p172 = por %p170, %p171
    %p174 = scmp.ne.s32.totalorder %s159, %s173
    %p175 = scmp.eq.s32.totalorder %s23, 0
    %p176 = por %p174, %p175
    %s178 = sadd.s32 %s177, 1
    %p181 = scmp.eq.s32.totalorder %s17, 1
    %p182 = scmp.ne.s32.totalorder %s177, %s179
    %p183 = scmp.eq.s32.totalorder %s17, 0
    %p184 = por %p182, %p183
    %p185 = scmp.ne.s32.totalorder %s177, %s179
    %p186 = scmp.eq.s32.totalorder %s22, 1
    %p187 = por %p185, %p186
    %p188 = scmp.ne.s32.totalorder %s179, %s180
    %p189 = scmp.eq.s32.totalorder %s22, 0
    %p190 = por %p188, %p189
    %p191 = scmp.ne.s32.totalorder %s179, %s180
    %p192 = scmp.eq.s32.totalorder %s23, 1
    %p193 = por %p191, %p192
    %p195 = scmp.ne.s32.totalorder %s180, %s194
    %p196 = scmp.eq.s32.totalorder %s23, 0
    %p197 = por %p195, %p196
    %s199 = sadd.s32 %s198, 1
    %p202 = scmp.eq.s32.totalorder %s17, 1
    %p203 = scmp.ne.s32.totalorder %s198, %s200
    %p204 = scmp.eq.s32.totalorder %s17, 0
    %p205 = por %p203, %p204
    %p206 = scmp.ne.s32.totalorder %s198, %s200
    %p207 = scmp.eq.s32.totalorder %s22, 1
    %p208 = por %p206, %p207
    %p209 = scmp.ne.s32.totalorder %s200, %s201
    %p210 = scmp.eq.s32.totalorder %s22, 0
    %p211 = por %p209, %p210
    %p212 = scmp.ne.s32.totalorder %s200, %s201
    %p213 = scmp.eq.s32.totalorder %s23, 1
    %p214 = por %p212, %p213
    %p216 = scmp.ne.s32.totalorder %s201, %s215
    %p217 = scmp.eq.s32.totalorder %s23, 0
    %p218 = por %p216, %p217
    %s220 = sadd.s32 %s219, 1
    %p223 = scmp.eq.s32.totalorder %s17, 1
    %p224 = scmp.ne.s32.totalorder %s219, %s221
    %p225 = scmp.eq.s32.totalorder %s17, 0
    %p226 = por %p224, %p225
    %p227 = scmp.ne.s32.totalorder %s219, %s221
    %p228 = scmp.eq.s32.totalorder %s22, 1
    %p229 = por %p227, %p228
    %p230 = scmp.ne.s32.totalorder %s221, %s222
    %p231 = scmp.eq.s32.totalorder %s22, 0
    %p232 = por %p230, %p231
    %p233 = scmp.ne.s32.totalorder %s221, %s222
    %p234 = scmp.eq.s32.totalorder %s23, 1
    %p235 = por %p233, %p234
    %p237 = scmp.ne.s32.totalorder %s222, %s236
    %p238 = scmp.eq.s32.totalorder %s23, 0
    %p239 = por %p237, %p238
    %s241 = sadd.s32 %s240, 1
    %p244 = scmp.eq.s32.totalorder %s17, 1
    %p245 = scmp.ne.s32.totalorder %s240, %s242
    %p246 = scmp.eq.s32.totalorder %s17, 0
    %p247 = por %p245, %p246
    %p248 = scmp.ne.s32.totalorder %s240, %s242
    %p249 = scmp.eq.s32.totalorder %s22, 1
    %p250 = por %p248, %p249
    %p251 = scmp.ne.s32.totalorder %s242, %s243
    %p252 = scmp.eq.s32.totalorder %s22, 0
    %p253 = por %p251, %p252
    %p254 = scmp.ne.s32.totalorder %s242, %s243
    %p255 = scmp.eq.s32.totalorder %s23, 1
    %p256 = por %p254, %p255
    %p258 = scmp.ne.s32.totalorder %s243, %s257
    %p259 = scmp.eq.s32.totalorder %s23, 0
    %p260 = por %p258, %p259
    %s261 = ssub.s32 %s17, %s24
    %p262 = scmp.eq.s32.totalorder %s261, 0
    %s264 = sadd.s32 %s263, 1
    %s265 = scalar_select %p262, %s263, %s264
    %p268 = pneg %p262
    %p269 = scmp.eq.s32.totalorder %s17, 1
    %p270 = por %p268, %p269
    %p271 = scmp.ne.s32.totalorder %s263, %s266
    %p272 = scmp.eq.s32.totalorder %s17, 0
    %p273 = por %p271, %p272
    %p274 = scmp.ne.s32.totalorder %s263, %s266
    %p275 = scmp.eq.s32.totalorder %s22, 1
    %p276 = por %p274, %p275
    %p277 = scmp.ne.s32.totalorder %s266, %s267
    %p278 = scmp.eq.s32.totalorder %s22, 0
    %p279 = por %p277, %p278
    %p280 = scmp.ne.s32.totalorder %s266, %s267
    %p281 = scmp.eq.s32.totalorder %s23, 1
    %p282 = por %p280, %p281
    %p284 = scmp.ne.s32.totalorder %s267, %s283
    %p285 = scmp.eq.s32.totalorder %s23, 0
    %p286 = por %p284, %p285
    %p287 = scmp.le.s32.totalorder 1, %s17
    %p288 = scmp.lt.s32.totalorder %s17, 3
    %p289 = pnand %p287, %p288
    %p290 = pneg %p289
    // Predicated region
    $region9: #{tpu_custom_call.1} parent=5 // pred_check
      _
    $region10: #{tpu_custom_call.1} parent=5 // pred_check_branch
      %292 = sbr.rel (%p289) target = $region12
    $region11: #{tpu_custom_call.1} parent=5 // pred_region
      %s293 = ssub.s32 %s17, 1
      // Predicated region
      $region13: #{tpu_custom_call.1} parent=11 // pred_check
        %p294 = pneg %p64
      $region14: #{tpu_custom_call.1} parent=11 // pred_check_branch
        %296 = sbr.rel (%p294) target = $region16
      $region15: #{tpu_custom_call.1} parent=11 // pred_region
        _
      $region16: #{tpu_custom_call.1} parent=11 // pred_fallthru
        _
      // Predicated region
      $region17: #{tpu_custom_call.1} parent=11 // pred_check
        %p297 = pneg %p85
      $region18: #{tpu_custom_call.1} parent=11 // pred_check_branch
        %299 = sbr.rel (%p297) target = $region20
      $region19: #{tpu_custom_call.1} parent=11 // pred_region
        _
      $region20: #{tpu_custom_call.1} parent=11 // pred_fallthru
        _
      // Predicated region
      $region21: #{tpu_custom_call.1} parent=11 // pred_check
        %p300 = pneg %p106
      $region22: #{tpu_custom_call.1} parent=11 // pred_check_branch
        %302 = sbr.rel (%p300) target = $region24
      $region23: #{tpu_custom_call.1} parent=11 // pred_region
        _
      $region24: #{tpu_custom_call.1} parent=11 // pred_fallthru
        _
      // Predicated region
      $region25: #{tpu_custom_call.1} parent=11 // pred_check
        %p303 = pneg %p127
      $region26: #{tpu_custom_call.1} parent=11 // pred_check_branch
        %305 = sbr.rel (%p303) target = $region28
      $region27: #{tpu_custom_call.1} parent=11 // pred_region
        _
      $region28: #{tpu_custom_call.1} parent=11 // pred_fallthru
        _
      // Predicated region
      $region29: #{tpu_custom_call.1} parent=11 // pred_check
        %p306 = pneg %p148
      $region30: #{tpu_custom_call.1} parent=11 // pred_check_branch
        %308 = sbr.rel (%p306) target = $region32
      $region31: #{tpu_custom_call.1} parent=11 // pred_region
        _
      $region32: #{tpu_custom_call.1} parent=11 // pred_fallthru
        _
      // Predicated region
      $region33: #{tpu_custom_call.1} parent=11 // pred_check
        %p309 = pneg %p169
      $region34: #{tpu_custom_call.1} parent=11 // pred_check_branch
        %311 = sbr.rel (%p309) target = $region36
      $region35: #{tpu_custom_call.1} parent=11 // pred_region
        _
      $region36: #{tpu_custom_call.1} parent=11 // pred_fallthru
        _
      // Predicated region
      $region37: #{tpu_custom_call.1} parent=11 // pred_check
        %p312 = pneg %p190
      $region38: #{tpu_custom_call.1} parent=11 // pred_check_branch
        %314 = sbr.rel (%p312) target = $region40
      $region39: #{tpu_custom_call.1} parent=11 // pred_region
        _
      $region40: #{tpu_custom_call.1} parent=11 // pred_fallthru
        _
      // Predicated region
      $region41: #{tpu_custom_call.1} parent=11 // pred_check
        %p315 = pneg %p211
      $region42: #{tpu_custom_call.1} parent=11 // pred_check_branch
        %317 = sbr.rel (%p315) target = $region44
      $region43: #{tpu_custom_call.1} parent=11 // pred_region
        _
      $region44: #{tpu_custom_call.1} parent=11 // pred_fallthru
        _
      // Predicated region
      $region45: #{tpu_custom_call.1} parent=11 // pred_check
        %p318 = pneg %p232
      $region46: #{tpu_custom_call.1} parent=11 // pred_check_branch
        %320 = sbr.rel (%p318) target = $region48
      $region47: #{tpu_custom_call.1} parent=11 // pred_region
        _
      $region48: #{tpu_custom_call.1} parent=11 // pred_fallthru
        _
      // Predicated region
      $region49: #{tpu_custom_call.1} parent=11 // pred_check
        %p321 = pneg %p253
      $region50: #{tpu_custom_call.1} parent=11 // pred_check_branch
        %323 = sbr.rel (%p321) target = $region52
      $region51: #{tpu_custom_call.1} parent=11 // pred_region
        _
      $region52: #{tpu_custom_call.1} parent=11 // pred_fallthru
        _
    $region12: #{tpu_custom_call.1} parent=5 // pred_fallthru
      _
    %p324 = scmp.lt.s32.totalorder %s17, 2
    // Predicated region
    $region53: #{tpu_custom_call.1} parent=5 // pred_check
      %p325 = pneg %p324
    $region54: #{tpu_custom_call.1} parent=5 // pred_check_branch
      %327 = sbr.rel (%p325) target = $region56
    $region55: #{tpu_custom_call.1} parent=5 // pred_region
      // Predicated region
      $region57: #{tpu_custom_call.1} parent=55 // pred_check
        %p328 = pneg %p37
      $region58: #{tpu_custom_call.1} parent=55 // pred_check_branch
        %330 = sbr.rel (%p328) target = $region60
      $region59: #{tpu_custom_call.1} parent=55 // pred_region
        %p331 = scmp.lt.s32.totalorder %s17, 1
        %s332 = scalar_select %p331, %s17, 1
        %s333 = smul.addr %s332, 13
        %s334 = smul.addr %s333, 8
        %s335 = scalar_lea.vmem %s0, %s334
      $region60: #{tpu_custom_call.1} parent=55 // pred_fallthru
        _
    $region56: #{tpu_custom_call.1} parent=5 // pred_fallthru
      _
    %p336 = scmp.le.s32.totalorder 1, %s17
    %p337 = scmp.lt.s32.totalorder %s17, 3
    %p338 = pnand %p336, %p337
    %p339 = pneg %p338
    // Predicated region
    $region61: #{tpu_custom_call.1} parent=5 // pred_check
      _
    $region62: #{tpu_custom_call.1} parent=5 // pred_check_branch
      %341 = sbr.rel (%p338) target = $region64
    $region63: #{tpu_custom_call.1} parent=5 // pred_region
      %s342 = ssub.s32 %s17, 1
      %p343 = scmp.lt.s32.totalorder %s22, 1
      %s344 = scalar_select %p343, %s22, 1
      %s345 = smul.addr %s344, 13
      %s346 = smul.addr %s345, 8
      %s347 = scalar_lea.vmem %s0, %s346
      %p348 = pneg %p43
      %p349 = pneg %p40
      %p350 = pneg %p64
      %p351 = pneg %p61
      %p352 = pneg %p85
      %p353 = pneg %p82
      %p354 = pneg %p106
      %p355 = pneg %p103
      %p356 = pneg %p127
      %p357 = pneg %p124
      %p358 = pneg %p148
      %p359 = pneg %p145
      %p360 = pneg %p169
      %p361 = pneg %p166
      %p362 = pneg %p190
      %p363 = pneg %p187
      %p364 = pneg %p211
      %p365 = pneg %p208
      %p366 = pneg %p232
      %p367 = pneg %p229
      %p368 = pneg %p253
      %p369 = pneg %p250
      %p370 = pneg %p279
      %p371 = pneg %p276
      %p372 = scmp.lt.s32.totalorder %s22, 1
      %s373 = scalar_select %p372, %s22, 1
      %s374 = smul.addr %s373, 13
      %s375 = smul.addr %s374, 8
      %s376 = scalar_lea.vmem %s11, %s375
      %p377 = scmp.lt.s32.totalorder %s22, 1
      %s378 = scalar_select %p377, %s22, 1
      %s379 = smul.addr %s378, 13
      %s380 = smul.addr %s379, 8
      %s381 = scalar_lea.vmem %s0, %s380
      %p382 = scmp.lt.s32.totalorder %s22, 1
      %s383 = scalar_select %p382, %s22, 1
      %s384 = smul.addr %s383, 13
      %s385 = smul.addr %s384, 8
      %s386 = scalar_lea.vmem %s11, %s385
      %v388 = vld [vmem:[%s381] sm:$0xff]
      %v389 = vld [vmem:[%s381 + $0x8] sm:$0xff]
      %v390 = vld [vmem:[%s381 + $0x10] sm:$0xff]
      %v391 = vld [vmem:[%s381 + $0x18] sm:$0xff]
      %v392 = vld [vmem:[%s381 + $0x20] sm:$0xff]
      %v393 = vld [vmem:[%s381 + $0x28] sm:$0xff]
      %v394 = vld [vmem:[%s381 + $0x30] sm:$0xff]
      %v395 = vld [vmem:[%s381 + $0x38] sm:$0xff]
      %v396 = vld [vmem:[%s381 + $0x40] sm:$0xff]
      %v397 = vld [vmem:[%s381 + $0x48] sm:$0xff]
      %v398 = vld [vmem:[%s381 + $0x50] sm:$0xff]
      %v399 = vld [vmem:[%s381 + $0x58] sm:$0xff]
      %v400 = vld [vmem:[%s381 + $0x60] sm:$0xff]
      %v401 = vld [vmem:[%s1] sm:$0x1]
      %v402 = vld [vmem:[%s2] sm:$0x1]
      %vm403 = vcmask 195584
      %v404 = vsel %vm403, %v388, 0.0
      %405 = vadd.xlane.f32.xlu0 %v404
      %v406 = vpop.xlane.xlu0 %405
      %v407 = vsel %vm403, %v389, 0.0
      %408 = vadd.xlane.f32.xlu0 %v407
      %v409 = vpop.xlane.xlu0 %408
      %v410 = vsel %vm403, %v390, 0.0
      %411 = vadd.xlane.f32.xlu0 %v410
      %v412 = vpop.xlane.xlu0 %411
      %v413 = vsel %vm403, %v391, 0.0
      %414 = vadd.xlane.f32.xlu0 %v413
      %v415 = vpop.xlane.xlu0 %414
      %v416 = vsel %vm403, %v392, 0.0
      %417 = vadd.xlane.f32.xlu0 %v416
      %v418 = vpop.xlane.xlu0 %417
      %v419 = vsel %vm403, %v393, 0.0
      %420 = vadd.xlane.f32.xlu0 %v419
      %v421 = vpop.xlane.xlu0 %420
      %v422 = vsel %vm403, %v394, 0.0
      %423 = vadd.xlane.f32.xlu0 %v422
      %v424 = vpop.xlane.xlu0 %423
      %v425 = vsel %vm403, %v395, 0.0
      %426 = vadd.xlane.f32.xlu0 %v425
      %v427 = vpop.xlane.xlu0 %426
      %v428 = vsel %vm403, %v396, 0.0
      %429 = vadd.xlane.f32.xlu0 %v428
      %v430 = vpop.xlane.xlu0 %429
      %v431 = vsel %vm403, %v397, 0.0
      %432 = vadd.xlane.f32.xlu0 %v431
      %v433 = vpop.xlane.xlu0 %432
      %v434 = vsel %vm403, %v398, 0.0
      %435 = vadd.xlane.f32.xlu0 %v434
      %v436 = vpop.xlane.xlu0 %435
      %v437 = vsel %vm403, %v399, 0.0
      %438 = vadd.xlane.f32.xlu0 %v437
      %v439 = vpop.xlane.xlu0 %438
      %v440 = vsel %vm403, %v400, 0.0
      %441 = vadd.xlane.f32.xlu0 %v440
      %v442 = vpop.xlane.xlu0 %441
      %v443 = vrcp.pop 24.0
      %v444 = vmul.f32 %v406, %v443
      %v445 = vmul.f32 %v409, %v443
      %v446 = vmul.f32 %v412, %v443
      %v447 = vmul.f32 %v415, %v443
      %v448 = vmul.f32 %v418, %v443
      %v449 = vmul.f32 %v421, %v443
      %v450 = vmul.f32 %v424, %v443
      %v451 = vmul.f32 %v427, %v443
      %v452 = vmul.f32 %v430, %v443
      %v453 = vmul.f32 %v433, %v443
      %v454 = vmul.f32 %v436, %v443
      %v455 = vmul.f32 %v439, %v443
      %v456 = vmul.f32 %v442, %v443
      %v457 = vsub.f32 %v388, %v444
      %v458 = vsub.f32 %v389, %v445
      %v459 = vsub.f32 %v390, %v446
      %v460 = vsub.f32 %v391, %v447
      %v461 = vsub.f32 %v392, %v448
      %v462 = vsub.f32 %v393, %v449
      %v463 = vsub.f32 %v394, %v450
      %v464 = vsub.f32 %v395, %v451
      %v465 = vsub.f32 %v396, %v452
      %v466 = vsub.f32 %v397, %v453
      %v467 = vsub.f32 %v398, %v454
      %v468 = vsub.f32 %v399, %v455
      %v469 = vsub.f32 %v400, %v456
      %v470 = vmul.f32 %v457, %v457
      %v471 = vmul.f32 %v458, %v458
      %v472 = vmul.f32 %v459, %v459
      %v473 = vmul.f32 %v460, %v460
      %v474 = vmul.f32 %v461, %v461
      %v475 = vmul.f32 %v462, %v462
      %v476 = vmul.f32 %v463, %v463
      %v477 = vmul.f32 %v464, %v464
      %v478 = vmul.f32 %v465, %v465
      %v479 = vmul.f32 %v466, %v466
      %v480 = vmul.f32 %v467, %v467
      %v481 = vmul.f32 %v468, %v468
      %v482 = vmul.f32 %v469, %v469
      %v483 = vsel %vm403, %v470, 0.0
      %484 = vadd.xlane.f32.xlu0 %v483
      %v485 = vpop.xlane.xlu0 %484
      %v486 = vsel %vm403, %v471, 0.0
      %487 = vadd.xlane.f32.xlu0 %v486
      %v488 = vpop.xlane.xlu0 %487
      %v489 = vsel %vm403, %v472, 0.0
      %490 = vadd.xlane.f32.xlu0 %v489
      %v491 = vpop.xlane.xlu0 %490
      %v492 = vsel %vm403, %v473, 0.0
      %493 = vadd.xlane.f32.xlu0 %v492
      %v494 = vpop.xlane.xlu0 %493
      %v495 = vsel %vm403, %v474, 0.0
      %496 = vadd.xlane.f32.xlu0 %v495
      %v497 = vpop.xlane.xlu0 %496
      %v498 = vsel %vm403, %v475, 0.0
      %499 = vadd.xlane.f32.xlu0 %v498
      %v500 = vpop.xlane.xlu0 %499
      %v501 = vsel %vm403, %v476, 0.0
      %502 = vadd.xlane.f32.xlu0 %v501
      %v503 = vpop.xlane.xlu0 %502
      %v504 = vsel %vm403, %v477, 0.0
      %505 = vadd.xlane.f32.xlu0 %v504
      %v506 = vpop.xlane.xlu0 %505
      %v507 = vsel %vm403, %v478, 0.0
      %508 = vadd.xlane.f32.xlu0 %v507
      %v509 = vpop.xlane.xlu0 %508
      %v510 = vsel %vm403, %v479, 0.0
      %511 = vadd.xlane.f32.xlu0 %v510
      %v512 = vpop.xlane.xlu0 %511
      %v513 = vsel %vm403, %v480, 0.0
      %514 = vadd.xlane.f32.xlu0 %v513
      %v515 = vpop.xlane.xlu0 %514
      %v516 = vsel %vm403, %v481, 0.0
      %517 = vadd.xlane.f32.xlu0 %v516
      %v518 = vpop.xlane.xlu0 %517
      %v519 = vsel %vm403, %v482, 0.0
      %520 = vadd.xlane.f32.xlu0 %v519
      %v521 = vpop.xlane.xlu0 %520
      %v522 = vmul.f32 %v485, %v443
      %v523 = vmul.f32 %v488, %v443
      %v524 = vmul.f32 %v491, %v443
      %v525 = vmul.f32 %v494, %v443
      %v526 = vmul.f32 %v497, %v443
      %v527 = vmul.f32 %v500, %v443
      %v528 = vmul.f32 %v503, %v443
      %v529 = vmul.f32 %v506, %v443
      %v530 = vmul.f32 %v509, %v443
      %v531 = vmul.f32 %v512, %v443
      %v532 = vmul.f32 %v515, %v443
      %v533 = vmul.f32 %v518, %v443
      %v534 = vmul.f32 %v521, %v443
      %v535 = vadd.f32 %v522, 1e-05
      %v536 = vadd.f32 %v523, 1e-05
      %v537 = vadd.f32 %v524, 1e-05
      %v538 = vadd.f32 %v525, 1e-05
      %v539 = vadd.f32 %v526, 1e-05
      %v540 = vadd.f32 %v527, 1e-05
      %v541 = vadd.f32 %v528, 1e-05
      %v542 = vadd.f32 %v529, 1e-05
      %v543 = vadd.f32 %v530, 1e-05
      %v544 = vadd.f32 %v531, 1e-05
      %v545 = vadd.f32 %v532, 1e-05
      %v546 = vadd.f32 %v533, 1e-05
      %v547 = vadd.f32 %v534, 1e-05
      %v548 = vrsqrt.pop %v535
      %v549 = vrsqrt.pop %v536
      %v550 = vrsqrt.pop %v537
      %v551 = vrsqrt.pop %v538
      %v552 = vrsqrt.pop %v539
      %v553 = vrsqrt.pop %v540
      %v554 = vrsqrt.pop %v541
      %v555 = vrsqrt.pop %v542
      %v556 = vrsqrt.pop %v543
      %v557 = vrsqrt.pop %v544
      %v558 = vrsqrt.pop %v545
      %v559 = vrsqrt.pop %v546
      %v560 = vrsqrt.pop %v547
      %v561 = vmul.f32 %v457, %v548
      %v562 = vmul.f32 %v458, %v549
      %v563 = vmul.f32 %v459, %v550
      %v564 = vmul.f32 %v460, %v551
      %v565 = vmul.f32 %v461, %v552
      %v566 = vmul.f32 %v462, %v553
      %v567 = vmul.f32 %v463, %v554
      %v568 = vmul.f32 %v464, %v555
      %v569 = vmul.f32 %v465, %v556
      %v570 = vmul.f32 %v466, %v557
      %v571 = vmul.f32 %v467, %v558
      %v572 = vmul.f32 %v468, %v559
      %v573 = vmul.f32 %v469, %v560
      %v575 = vlaneseq
      %v576 = vshrl.u32 %v575, 7
      %v577 = vsub.s32 0, %v576
      %v578 = vrot.slane %v401, %v577
      %v580 = vmul.f32 %v561, %v578
      %v581 = vmul.f32 %v562, %v578
      %v582 = vmul.f32 %v563, %v578
      %v583 = vmul.f32 %v564, %v578
      %v584 = vmul.f32 %v565, %v578
      %v585 = vmul.f32 %v566, %v578
      %v586 = vmul.f32 %v567, %v578
      %v587 = vmul.f32 %v568, %v578
      %v588 = vmul.f32 %v569, %v578
      %v589 = vmul.f32 %v570, %v578
      %v590 = vmul.f32 %v571, %v578
      %v591 = vmul.f32 %v572, %v578
      %v592 = vmul.f32 %v573, %v578
      %v594 = vlaneseq
      %v595 = vshrl.u32 %v594, 7
      %v596 = vsub.s32 0, %v595
      %v597 = vrot.slane %v402, %v596
      %v599 = vadd.f32 %v580, %v597
      %v600 = vadd.f32 %v581, %v597
      %v601 = vadd.f32 %v582, %v597
      %v602 = vadd.f32 %v583, %v597
      %v603 = vadd.f32 %v584, %v597
      %v604 = vadd.f32 %v585, %v597
      %v605 = vadd.f32 %v586, %v597
      %v606 = vadd.f32 %v587, %v597
      %v607 = vadd.f32 %v588, %v597
      %v608 = vadd.f32 %v589, %v597
      %v609 = vadd.f32 %v590, %v597
      %v610 = vadd.f32 %v591, %v597
      %v611 = vadd.f32 %v592, %v597
      %v612 = vpack.c.bf16 %v600, %v599
      %v613 = vpack.c.bf16 %v602, %v601
      %v614 = vpack.c.bf16 %v604, %v603
      %v615 = vpack.c.bf16 %v606, %v605
      %v616 = vpack.c.bf16 %v608, %v607
      %v617 = vpack.c.bf16 %v610, %v609
      %v618 = vpack.c.bf16 %v611, %v611
      %v619 = vld [vmem:[%s3] sm:$0xf]
      %v620 = vld [vmem:[%s3 + $0x4] sm:$0xf]
      %v621 = vld [vmem:[%s3 + $0x8] sm:$0xf]
      %v625 = vunpack.c.l.b16 %v619
      %v626 = vunpack.c.l.b16 %v620
      %v627 = vunpack.c.l.b16 %v621
      %v628 = vpack.c.b16 %v626, %v625
      %v629 = vpack.c.b16 %v627, %v627
      %v632 = vsel %vm403, %v612, 0
      %v635 = vsel %vm403, %v613, 0
      %v638 = vsel %vm403, %v614, 0
      %v641 = vsel %vm403, %v615, 0
      %v644 = vsel %vm403, %v616, 0
      %v647 = vsel %vm403, %v617, 0
      %v650 = vsel %vm403, %v618, 0
      %vm652 = vcmask 1043456
      %v654 = vsel %vm652, %v629, 0
      %656 = vmatprep.subr.bf16.mxu0 0
      %657 = vmatpush1.bf16.msra.mxu0 %v628
      %658 = vmatprep.subr.bf16.mxu0 0
      %659 = vmatpush1.bf16.msra.mxu0 %v654
      %660 = vmatprep.subr.bf16.mxu0 0
      %661 = vmatpush1.bf16.msra.mxu0 0
      %662 = vmatprep.subr.bf16.mxu0 0
      %663 = vmatpush1.bf16.msra.mxu0 0
      %664 = vmatprep.subr.bf16.mxu0 0
      %665 = vmatpush1.bf16.msra.mxu0 0
      %666 = vmatprep.subr.bf16.mxu0 0
      %667 = vmatpush1.bf16.msra.mxu0 0
      %668 = vmatprep.subr.bf16.mxu0 0
      %669 = vmatpush1.bf16.msra.mxu0 0
      %670 = vmatprep.subr.bf16.mxu0 0
      %671 = vmatpush1.bf16.msra.mxu0 0
      %672 = vmatprep.subr.bf16.mxu0 0
      %673 = vmatpush1.bf16.msra.mxu0 0
      %674 = vmatprep.subr.bf16.mxu0 0
      %675 = vmatpush1.bf16.msra.mxu0 0
      %676 = vmatprep.subr.bf16.mxu0 0
      %677 = vmatpush1.bf16.msra.mxu0 0
      %678 = vmatprep.subr.bf16.mxu0 0
      %679 = vmatpush1.bf16.msra.mxu0 0
      %680 = vmatprep.subr.bf16.mxu0 0
      %681 = vmatpush1.bf16.msra.mxu0 0
      %682 = vmatprep.subr.bf16.mxu0 0
      %683 = vmatpush1.bf16.msra.mxu0 0
      %684 = vmatprep.subr.bf16.mxu0 0
      %685 = vmatpush1.bf16.msra.mxu0 0
      %686 = vmatprep.subr.bf16.mxu0 0
      %687 = vmatpush1.bf16.msra.mxu0 0
      %688 = vmatprep.mubr.bf16.mxu0 0
      %689 = vmatmul.mubr.bf16.gmra.mrb[0].mxu0 %v632
      %v690 = vpop.f32.mrb[0].mxu0
      %v691 = vadd.f32 0.0, %v690
      %v692 = vpop.f32.mrb[0].mxu0
      %v693 = vpop.f32.mrb[0].mxu0
      %v694 = vadd.f32 0.0, %v693
      %v695 = vpop.f32.mrb[0].mxu0
      %696 = vmatprep.mubr.bf16.mxu0 0
      %697 = vmatmul.mubr.bf16.gmra.mrb[0].mxu0 %v635
      %v698 = vpop.f32.mrb[0].mxu0
      %v699 = vadd.f32 0.0, %v698
      %v700 = vpop.f32.mrb[0].mxu0
      %v701 = vpop.f32.mrb[0].mxu0
      %v702 = vadd.f32 0.0, %v701
      %v703 = vpop.f32.mrb[0].mxu0
      %704 = vmatprep.mubr.bf16.mxu0 0
      %705 = vmatmul.mubr.bf16.gmra.mrb[0].mxu0 %v638
      %v706 = vpop.f32.mrb[0].mxu0
      %v707 = vadd.f32 0.0, %v706
      %v708 = vpop.f32.mrb[0].mxu0
      %v709 = vpop.f32.mrb[0].mxu0
      %v710 = vadd.f32 0.0, %v709
      %v711 = vpop.f32.mrb[0].mxu0
      %712 = vmatprep.mubr.bf16.mxu0 0
      %713 = vmatmul.mubr.bf16.gmra.mrb[0].mxu0 %v641
      %v714 = vpop.f32.mrb[0].mxu0
      %v715 = vadd.f32 0.0, %v714
      %v716 = vpop.f32.mrb[0].mxu0
      %v717 = vpop.f32.mrb[0].mxu0
      %v718 = vadd.f32 0.0, %v717
      %v719 = vpop.f32.mrb[0].mxu0
      %720 = vmatprep.mubr.bf16.mxu0 0
      %721 = vmatmul.mubr.bf16.gmra.mrb[0].mxu0 %v644
      %v722 = vpop.f32.mrb[0].mxu0
      %v723 = vadd.f32 0.0, %v722
      %v724 = vpop.f32.mrb[0].mxu0
      %v725 = vpop.f32.mrb[0].mxu0
      %v726 = vadd.f32 0.0, %v725
      %v727 = vpop.f32.mrb[0].mxu0
      %728 = vmatprep.mubr.bf16.mxu0 0
      %729 = vmatmul.mubr.bf16.gmra.mrb[0].mxu0 %v647
      %v730 = vpop.f32.mrb[0].mxu0
      %v731 = vadd.f32 0.0, %v730
      %v732 = vpop.f32.mrb[0].mxu0
      %v733 = vpop.f32.mrb[0].mxu0
      %v734 = vadd.f32 0.0, %v733
      %v735 = vpop.f32.mrb[0].mxu0
      %736 = vmatprep.mubr.bf16.mxu0 0
      %737 = vmatmul.mubr.bf16.gmra.mrb[0].mxu0 %v650
      %v738 = vpop.f32.mrb[0].mxu0
      %v739 = vadd.f32 0.0, %v738
      %v740 = vpop.f32.mrb[0].mxu0
      %v741 = vpop.f32.mrb[0].mxu0
      %v742 = vpop.f32.mrb[0].mxu0
      %743 = vdwg.mxu0
      %v744 = vpack.c.bf16 %v694, %v691
      %v745 = vpack.c.bf16 %v702, %v699
      %v746 = vpack.c.bf16 %v710, %v707
      %v747 = vpack.c.bf16 %v718, %v715
      %v748 = vpack.c.bf16 %v726, %v723
      %v749 = vpack.c.bf16 %v734, %v731
      %v750 = vpack.c.bf16 %v739, %v739
      %v758 = vunpack.c.l.b16 %v744
      %v759 = vunpack.c.h.b16 %v744
      %v760 = vunpack.c.l.b16 %v745
      %v761 = vunpack.c.h.b16 %v745
      %v762 = vunpack.c.l.b16 %v746
      %v763 = vunpack.c.h.b16 %v746
      %v764 = vunpack.c.l.b16 %v747
      %v765 = vunpack.c.h.b16 %v747
      %v766 = vunpack.c.l.b16 %v748
      %v767 = vunpack.c.h.b16 %v748
      %v768 = vunpack.c.l.b16 %v749
      %v769 = vunpack.c.h.b16 %v749
      %v770 = vunpack.c.l.b16 %v750
      %v771 = vpack.c.b16 %v758, %v758
      %v772 = vpack.c.b16 %v759, %v759
      %v773 = vpack.c.b16 %v760, %v760
      %v774 = vpack.c.b16 %v761, %v761
      %v775 = vpack.c.b16 %v762, %v762
      %v776 = vpack.c.b16 %v763, %v763
      %v777 = vpack.c.b16 %v764, %v764
      %v778 = vpack.c.b16 %v765, %v765
      %v779 = vpack.c.b16 %v766, %v766
      %v780 = vpack.c.b16 %v767, %v767
      %v781 = vpack.c.b16 %v768, %v768
      %v782 = vpack.c.b16 %v769, %v769
      %v783 = vpack.c.b16 %v770, %v770
      %vm797 = vcmask 584704
      %798 = vst.msk [vmem:[#allocation2] sm:$0xf] %vm797, %v771
      %799 = vst.msk [vmem:[#allocation2 + $0x4] sm:$0xf] %vm797, %v772
      %800 = vst.msk [vmem:[#allocation2 + $0x8] sm:$0xf] %vm797, %v773
      %801 = vst.msk [vmem:[#allocation2 + $0xc] sm:$0xf] %vm797, %v774
      %802 = vst.msk [vmem:[#allocation2 + $0x10] sm:$0xf] %vm797, %v775
      %803 = vst.msk [vmem:[#allocation2 + $0x14] sm:$0xf] %vm797, %v776
      %804 = vst.msk [vmem:[#allocation2 + $0x18] sm:$0xf] %vm797, %v777
      %805 = vst.msk [vmem:[#allocation2 + $0x1c] sm:$0xf] %vm797, %v778
      %806 = vst.msk [vmem:[#allocation2 + $0x20] sm:$0xf] %vm797, %v779
      %807 = vst.msk [vmem:[#allocation2 + $0x24] sm:$0xf] %vm797, %v780
      %808 = vst.msk [vmem:[#allocation2 + $0x28] sm:$0xf] %vm797, %v781
      %809 = vst.msk [vmem:[#allocation2 + $0x2c] sm:$0xf] %vm797, %v782
      %810 = vst.msk [vmem:[#allocation2 + $0x30] sm:$0xf] %vm797, %v783
      %v811 = vlaneseq
      %v812 = vand.u32 %v811, 127
      %vm813 = vcmp.lt.s32.totalorder %v812, 100
      %v814 = vld [vmem:[#allocation2] sm:$0xf]
      %v815 = vld [vmem:[#allocation2 + $0x4] sm:$0xf]
      %v816 = vld [vmem:[#allocation2 + $0x8] sm:$0xf]
      %v817 = vld [vmem:[#allocation2 + $0xc] sm:$0xf]
      %v818 = vld [vmem:[#allocation2 + $0x10] sm:$0xf]
      %v819 = vld [vmem:[#allocation2 + $0x14] sm:$0xf]
      %v820 = vld [vmem:[#allocation2 + $0x18] sm:$0xf]
      %v821 = vld [vmem:[#allocation2 + $0x1c] sm:$0xf]
      %v822 = vld [vmem:[#allocation2 + $0x20] sm:$0xf]
      %v823 = vld [vmem:[#allocation2 + $0x24] sm:$0xf]
      %v824 = vld [vmem:[#allocation2 + $0x28] sm:$0xf]
      %v825 = vld [vmem:[#allocation2 + $0x2c] sm:$0xf]
      %v826 = vld [vmem:[#allocation2 + $0x30] sm:$0xf]
      %v840 = vunpack.c.l.b16 %v814
      %v841 = vunpack.c.l.b16 %v815
      %v842 = vunpack.c.l.b16 %v816
      %v843 = vunpack.c.l.b16 %v817
      %v844 = vunpack.c.l.b16 %v818
      %v845 = vunpack.c.l.b16 %v819
      %v846 = vunpack.c.l.b16 %v820
      %v847 = vunpack.c.l.b16 %v821
      %v848 = vunpack.c.l.b16 %v822
      %v849 = vunpack.c.l.b16 %v823
      %v850 = vunpack.c.l.b16 %v824
      %v851 = vunpack.c.l.b16 %v825
      %v852 = vunpack.c.l.b16 %v826
      %v853 = vpack.c.b16 %v841, %v840
      %v854 = vpack.c.b16 %v843, %v842
      %v855 = vpack.c.b16 %v845, %v844
      %v856 = vpack.c.b16 %v847, %v846
      %v857 = vpack.c.b16 %v849, %v848
      %v858 = vpack.c.b16 %v851, %v850
      %v859 = vpack.c.b16 %v852, %v852
      %860 = vrot.lane.b32.xlu0 %v853, 104
      %v861 = vpop.permute.xlu0 %860
      %862 = vrot.lane.b32.xlu0 %v854, 104
      %v863 = vpop.permute.xlu0 %862
      %864 = vrot.lane.b32.xlu0 %v855, 104
      %v865 = vpop.permute.xlu0 %864
      %866 = vrot.lane.b32.xlu0 %v856, 104
      %v867 = vpop.permute.xlu0 %866
      %868 = vrot.lane.b32.xlu0 %v857, 104
      %v869 = vpop.permute.xlu0 %868
      %870 = vrot.lane.b32.xlu0 %v858, 104
      %v871 = vpop.permute.xlu0 %870
      %872 = vrot.lane.b32.xlu0 %v859, 104
      %v873 = vpop.permute.xlu0 %872
      %vm874 = vcmask 48128
      %v876 = vsel %vm874, %v853, 0
      %v879 = vsel %vm874, %v854, 0
      %v882 = vsel %vm874, %v855, 0
      %v885 = vsel %vm874, %v856, 0
      %v888 = vsel %vm874, %v857, 0
      %v891 = vsel %vm874, %v858, 0
      %v894 = vsel %vm874, %v859, 0
      %v897 = vsel %vm874, %v861, 0
      %v900 = vsel %vm874, %v863, 0
      %v903 = vsel %vm874, %v865, 0
      %v906 = vsel %vm874, %v867, 0
      %v909 = vsel %vm874, %v869, 0
      %v912 = vsel %vm874, %v871, 0
      %v915 = vsel %vm874, %v873, 0
      %917 = vmatprep.subr.bf16.mxu0 0
      %918 = vmatpush1.bf16.xpose.msra.mxu0 %v897
      %919 = vmatprep.subr.bf16.mxu0 0
      %920 = vmatpush1.bf16.xpose.msra.mxu0 %v900
      %921 = vmatprep.subr.bf16.mxu0 0
      %922 = vmatpush1.bf16.xpose.msra.mxu0 %v903
      %923 = vmatprep.subr.bf16.mxu0 0
      %924 = vmatpush1.bf16.xpose.msra.mxu0 %v906
      %925 = vmatprep.subr.bf16.mxu0 0
      %926 = vmatpush1.bf16.xpose.msra.mxu0 %v909
      %927 = vmatprep.subr.bf16.mxu0 0
      %928 = vmatpush1.bf16.xpose.msra.mxu0 %v912
      %929 = vmatprep.subr.bf16.mxu0 0
      %930 = vmatpush1.bf16.xpose.msra.mxu0 %v915
      %931 = vmatprep.subr.bf16.mxu0 0
      %932 = vmatpush1.bf16.xpose.msra.mxu0 0
      %933 = vmatprep.subr.bf16.mxu0 0
      %934 = vmatpush1.bf16.xpose.msra.mxu0 0
      %935 = vmatprep.subr.bf16.mxu0 0
      %936 = vmatpush1.bf16.xpose.msra.mxu0 0
      %937 = vmatprep.subr.bf16.mxu0 0
      %938 = vmatpush1.bf16.xpose.msra.mxu0 0
      %939 = vmatprep.subr.bf16.mxu0 0
      %940 = vmatpush1.bf16.xpose.msra.mxu0 0
      %941 = vmatprep.subr.bf16.mxu0 0
      %942 = vmatpush1.bf16.xpose.msra.mxu0 0
      %943 = vmatprep.subr.bf16.mxu0 0
      %944 = vmatpush1.bf16.xpose.msra.mxu0 0
      %945 = vmatprep.subr.bf16.mxu0 0
      %946 = vmatpush1.bf16.xpose.msra.mxu0 0
      %947 = vmatprep.subr.bf16.mxu0 0
      %948 = vmatpush1.bf16.xpose.msra.mxu0 0
      %949 = vmatprep.mubr.bf16.mxu0 0
      %950 = vmatmul.mubr.bf16.gmra.mrb[0].mxu0 %v876
      %v951 = vpop.f32.mrb[0].mxu0
      %v952 = vadd.f32 0.0, %v951
      %v953 = vpop.f32.mrb[0].mxu0
      %v954 = vpop.f32.mrb[0].mxu0
      %v955 = vadd.f32 0.0, %v954
      %v956 = vpop.f32.mrb[0].mxu0
      %957 = vmatprep.mubr.bf16.mxu0 0
      %958 = vmatmul.mubr.bf16.gmra.mrb[0].mxu0 %v879
      %v959 = vpop.f32.mrb[0].mxu0
      %v960 = vadd.f32 0.0, %v959
      %v961 = vpop.f32.mrb[0].mxu0
      %v962 = vpop.f32.mrb[0].mxu0
      %v963 = vadd.f32 0.0, %v962
      %v964 = vpop.f32.mrb[0].mxu0
      %965 = vmatprep.mubr.bf16.mxu0 0
      %966 = vmatmul.mubr.bf16.gmra.mrb[0].mxu0 %v882
      %v967 = vpop.f32.mrb[0].mxu0
      %v968 = vadd.f32 0.0, %v967
      %v969 = vpop.f32.mrb[0].mxu0
      %v970 = vpop.f32.mrb[0].mxu0
      %v971 = vadd.f32 0.0, %v970
      %v972 = vpop.f32.mrb[0].mxu0
      %973 = vmatprep.mubr.bf16.mxu0 0
      %974 = vmatmul.mubr.bf16.gmra.mrb[0].mxu0 %v885
      %v975 = vpop.f32.mrb[0].mxu0
      %v976 = vadd.f32 0.0, %v975
      %v977 = vpop.f32.mrb[0].mxu0
      %v978 = vpop.f32.mrb[0].mxu0
      %v979 = vadd.f32 0.0, %v978
      %v980 = vpop.f32.mrb[0].mxu0
      %981 = vmatprep.mubr.bf16.mxu0 0
      %982 = vmatmul.mubr.bf16.gmra.mrb[0].mxu0 %v888
      %v983 = vpop.f32.mrb[0].mxu0
      %v984 = vadd.f32 0.0, %v983
      %v985 = vpop.f32.mrb[0].mxu0
      %v986 = vpop.f32.mrb[0].mxu0
      %v987 = vadd.f32 0.0, %v986
      %v988 = vpop.f32.mrb[0].mxu0
      %989 = vmatprep.mubr.bf16.mxu0 0
      %990 = vmatmul.mubr.bf16.gmra.mrb[0].mxu0 %v891
      %v991 = vpop.f32.mrb[0].mxu0
      %v992 = vadd.f32 0.0, %v991
      %v993 = vpop.f32.mrb[0].mxu0
      %v994 = vpop.f32.mrb[0].mxu0
      %v995 = vadd.f32 0.0, %v994
      %v996 = vpop.f32.mrb[0].mxu0
      %997 = vmatprep.mubr.bf16.mxu0 0
      %998 = vmatmul.mubr.bf16.gmra.mrb[0].mxu0 %v894
      %v999 = vpop.f32.mrb[0].mxu0
      %v1000 = vadd.f32 0.0, %v999
      %v1001 = vpop.f32.mrb[0].mxu0
      %v1002 = vpop.f32.mrb[0].mxu0
      %v1003 = vpop.f32.mrb[0].mxu0
      %1004 = vdwg.mxu0
      %v1005 = vmul.f32 %v952, 0.4082483
      %v1006 = vmul.f32 %v955, 0.4082483
      %v1007 = vmul.f32 %v960, 0.4082483
      %v1008 = vmul.f32 %v963, 0.4082483
      %v1009 = vmul.f32 %v968, 0.4082483
      %v1010 = vmul.f32 %v971, 0.4082483
      %v1011 = vmul.f32 %v976, 0.4082483
      %v1012 = vmul.f32 %v979, 0.4082483
      %v1013 = vmul.f32 %v984, 0.4082483
      %v1014 = vmul.f32 %v987, 0.4082483
      %v1015 = vmul.f32 %v992, 0.4082483
      %v1016 = vmul.f32 %v995, 0.4082483
      %v1017 = vmul.f32 %v1000, 0.4082483
      %v1018 = vsel %vm813, %v1005, -1e+30
      %v1019 = vsel %vm813, %v1006, -1e+30
      %v1020 = vsel %vm813, %v1007, -1e+30
      %v1021 = vsel %vm813, %v1008, -1e+30
      %v1022 = vsel %vm813, %v1009, -1e+30
      %v1023 = vsel %vm813, %v1010, -1e+30
      %v1024 = vsel %vm813, %v1011, -1e+30
      %v1025 = vsel %vm813, %v1012, -1e+30
      %v1026 = vsel %vm813, %v1013, -1e+30
      %v1027 = vsel %vm813, %v1014, -1e+30
      %v1028 = vsel %vm813, %v1015, -1e+30
      %v1029 = vsel %vm813, %v1016, -1e+30
      %v1030 = vsel %vm813, %v1017, -1e+30
      %vm1031 = vcmask 850944
      %v1032 = vsel %vm1031, %v1018, -inf
      %1033 = vmax.xlane.f32.xlu0 %v1032
      %v1034 = vpop.xlane.xlu0 %1033
      %v1035 = vsel %vm1031, %v1019, -inf
      %1036 = vmax.xlane.f32.xlu0 %v1035
      %v1037 = vpop.xlane.xlu0 %1036
      %v1038 = vsel %vm1031, %v1020, -inf
      %1039 = vmax.xlane.f32.xlu0 %v1038
      %v1040 = vpop.xlane.xlu0 %1039
      %v1041 = vsel %vm1031, %v1021, -inf
      %1042 = vmax.xlane.f32.xlu0 %v1041
      %v1043 = vpop.xlane.xlu0 %1042
      %v1044 = vsel %vm1031, %v1022, -inf
      %1045 = vmax.xlane.f32.xlu0 %v1044
      %v1046 = vpop.xlane.xlu0 %1045
      %v1047 = vsel %vm1031, %v1023, -inf
      %1048 = vmax.xlane.f32.xlu0 %v1047
      %v1049 = vpop.xlane.xlu0 %1048
      %v1050 = vsel %vm1031, %v1024, -inf
      %1051 = vmax.xlane.f32.xlu0 %v1050
      %v1052 = vpop.xlane.xlu0 %1051
      %v1053 = vsel %vm1031, %v1025, -inf
      %1054 = vmax.xlane.f32.xlu0 %v1053
      %v1055 = vpop.xlane.xlu0 %1054
      %v1056 = vsel %vm1031, %v1026, -inf
      %1057 = vmax.xlane.f32.xlu0 %v1056
      %v1058 = vpop.xlane.xlu0 %1057
      %v1059 = vsel %vm1031, %v1027, -inf
      %1060 = vmax.xlane.f32.xlu0 %v1059
      %v1061 = vpop.xlane.xlu0 %1060
      %v1062 = vsel %vm1031, %v1028, -inf
      %1063 = vmax.xlane.f32.xlu0 %v1062
      %v1064 = vpop.xlane.xlu0 %1063
      %v1065 = vsel %vm1031, %v1029, -inf
      %1066 = vmax.xlane.f32.xlu0 %v1065
      %v1067 = vpop.xlane.xlu0 %1066
      %v1068 = vsel %vm1031, %v1030, -inf
      %1069 = vmax.xlane.f32.xlu0 %v1068
      %v1070 = vpop.xlane.xlu0 %1069
      %v1071 = vsub.f32 %v1018, %v1034
      %v1072 = vsub.f32 %v1019, %v1037
      %v1073 = vsub.f32 %v1020, %v1040
      %v1074 = vsub.f32 %v1021, %v1043
      %v1075 = vsub.f32 %v1022, %v1046
      %v1076 = vsub.f32 %v1023, %v1049
      %v1077 = vsub.f32 %v1024, %v1052
      %v1078 = vsub.f32 %v1025, %v1055
      %v1079 = vsub.f32 %v1026, %v1058
      %v1080 = vsub.f32 %v1027, %v1061
      %v1081 = vsub.f32 %v1028, %v1064
      %v1082 = vsub.f32 %v1029, %v1067
      %v1083 = vsub.f32 %v1030, %v1070
      %v1084 = vmul.f32 %v1071, 1.442695
      %v1085 = vpow.pop %v1084
      %v1086 = vmul.f32 %v1072, 1.442695
      %v1087 = vpow.pop %v1086
      %v1088 = vmul.f32 %v1073, 1.442695
      %v1089 = vpow.pop %v1088
      %v1090 = vmul.f32 %v1074, 1.442695
      %v1091 = vpow.pop %v1090
      %v1092 = vmul.f32 %v1075, 1.442695
      %v1093 = vpow.pop %v1092
      %v1094 = vmul.f32 %v1076, 1.442695
      %v1095 = vpow.pop %v1094
      %v1096 = vmul.f32 %v1077, 1.442695
      %v1097 = vpow.pop %v1096
      %v1098 = vmul.f32 %v1078, 1.442695
      %v1099 = vpow.pop %v1098
      %v1100 = vmul.f32 %v1079, 1.442695
      %v1101 = vpow.pop %v1100
      %v1102 = vmul.f32 %v1080, 1.442695
      %v1103 = vpow.pop %v1102
      %v1104 = vmul.f32 %v1081, 1.442695
      %v1105 = vpow.pop %v1104
      %v1106 = vmul.f32 %v1082, 1.442695
      %v1107 = vpow.pop %v1106
      %v1108 = vmul.f32 %v1083, 1.442695
      %v1109 = vpow.pop %v1108
      %v1110 = vsel %vm1031, %v1085, 0.0
      %1111 = vadd.xlane.f32.xlu0 %v1110
      %v1112 = vpop.xlane.xlu0 %1111
      %v1113 = vsel %vm1031, %v1087, 0.0
      %1114 = vadd.xlane.f32.xlu0 %v1113
      %v1115 = vpop.xlane.xlu0 %1114
      %v1116 = vsel %vm1031, %v1089, 0.0
      %1117 = vadd.xlane.f32.xlu0 %v1116
      %v1118 = vpop.xlane.xlu0 %1117
      %v1119 = vsel %vm1031, %v1091, 0.0
      %1120 = vadd.xlane.f32.xlu0 %v1119
      %v1121 = vpop.xlane.xlu0 %1120
      %v1122 = vsel %vm1031, %v1093, 0.0
      %1123 = vadd.xlane.f32.xlu0 %v1122
      %v1124 = vpop.xlane.xlu0 %1123
      %v1125 = vsel %vm1031, %v1095, 0.0
      %1126 = vadd.xlane.f32.xlu0 %v1125
      %v1127 = vpop.xlane.xlu0 %1126
      %v1128 = vsel %vm1031, %v1097, 0.0
      %1129 = vadd.xlane.f32.xlu0 %v1128
      %v1130 = vpop.xlane.xlu0 %1129
      %v1131 = vsel %vm1031, %v1099, 0.0
      %1132 = vadd.xlane.f32.xlu0 %v1131
      %v1133 = vpop.xlane.xlu0 %1132
      %v1134 = vsel %vm1031, %v1101, 0.0
      %1135 = vadd.xlane.f32.xlu0 %v1134
      %v1136 = vpop.xlane.xlu0 %1135
      %v1137 = vsel %vm1031, %v1103, 0.0
      %1138 = vadd.xlane.f32.xlu0 %v1137
      %v1139 = vpop.xlane.xlu0 %1138
      %v1140 = vsel %vm1031, %v1105, 0.0
      %1141 = vadd.xlane.f32.xlu0 %v1140
      %v1142 = vpop.xlane.xlu0 %1141
      %v1143 = vsel %vm1031, %v1107, 0.0
      %1144 = vadd.xlane.f32.xlu0 %v1143
      %v1145 = vpop.xlane.xlu0 %1144
      %v1146 = vsel %vm1031, %v1109, 0.0
      %1147 = vadd.xlane.f32.xlu0 %v1146
      %v1148 = vpop.xlane.xlu0 %1147
      %v1149 = vrcp.pop %v1112
      %v1150 = vrcp.pop %v1115
      %v1151 = vrcp.pop %v1118
      %v1152 = vrcp.pop %v1121
      %v1153 = vrcp.pop %v1124
      %v1154 = vrcp.pop %v1127
      %v1155 = vrcp.pop %v1130
      %v1156 = vrcp.pop %v1133
      %v1157 = vrcp.pop %v1136
      %v1158 = vrcp.pop %v1139
      %v1159 = vrcp.pop %v1142
      %v1160 = vrcp.pop %v1145
      %v1161 = vrcp.pop %v1148
      %v1162 = vmul.f32 %v1085, %v1149
      %v1163 = vmul.f32 %v1087, %v1150
      %v1164 = vmul.f32 %v1089, %v1151
      %v1165 = vmul.f32 %v1091, %v1152
      %v1166 = vmul.f32 %v1093, %v1153
      %v1167 = vmul.f32 %v1095, %v1154
      %v1168 = vmul.f32 %v1097, %v1155
      %v1169 = vmul.f32 %v1099, %v1156
      %v1170 = vmul.f32 %v1101, %v1157
      %v1171 = vmul.f32 %v1103, %v1158
      %v1172 = vmul.f32 %v1105, %v1159
      %v1173 = vmul.f32 %v1107, %v1160
      %v1174 = vmul.f32 %v1109, %v1161
      %v1175 = vpack.c.bf16 %v1163, %v1162
      %v1176 = vpack.c.bf16 %v1165, %v1164
      %v1177 = vpack.c.bf16 %v1167, %v1166
      %v1178 = vpack.c.bf16 %v1169, %v1168
      %v1179 = vpack.c.bf16 %v1171, %v1170
      %v1180 = vpack.c.bf16 %v1173, %v1172
      %v1181 = vpack.c.bf16 %v1174, %v1174
      %1182 = vrot.lane.b32.xlu0 %v853, 80
      %v1183 = vpop.permute.xlu0 %1182
      %1184 = vrot.lane.b32.xlu0 %v854, 80
      %v1185 = vpop.permute.xlu0 %1184
      %1186 = vrot.lane.b32.xlu0 %v855, 80
      %v1187 = vpop.permute.xlu0 %1186
      %1188 = vrot.lane.b32.xlu0 %v856, 80
      %v1189 = vpop.permute.xlu0 %1188
      %1190 = vrot.lane.b32.xlu0 %v857, 80
      %v1191 = vpop.permute.xlu0 %1190
      %1192 = vrot.lane.b32.xlu0 %v858, 80
      %v1193 = vpop.permute.xlu0 %1192
      %1194 = vrot.lane.b32.xlu0 %v859, 80
      %v1195 = vpop.permute.xlu0 %1194
      %v1203 = vsel %vm1031, %v1175, 0
      %v1206 = vsel %vm1031, %v1176, 0
      %v1209 = vsel %vm1031, %v1177, 0
      %v1212 = vsel %vm1031, %v1178, 0
      %v1215 = vsel %vm1031, %v1179, 0
      %v1218 = vsel %vm1031, %v1180, 0
      %v1221 = vsel %vm1031, %v1181, 0
      %v1224 = vsel %vm652, %v1195, 0
      %1226 = vmatprep.subr.bf16.mxu0 0
      %1227 = vmatpush1.bf16.msra.mxu0 %v1183
      %1228 = vmatprep.subr.bf16.mxu0 0
      %1229 = vmatpush1.bf16.msra.mxu0 %v1185
      %1230 = vmatprep.subr.bf16.mxu0 0
      %1231 = vmatpush1.bf16.msra.mxu0 %v1187
      %1232 = vmatprep.subr.bf16.mxu0 0
      %1233 = vmatpush1.bf16.msra.mxu0 %v1189
      %1234 = vmatprep.subr.bf16.mxu0 0
      %1235 = vmatpush1.bf16.msra.mxu0 %v1191
      %1236 = vmatprep.subr.bf16.mxu0 0
      %1237 = vmatpush1.bf16.msra.mxu0 %v1193
      %1238 = vmatprep.subr.bf16.mxu0 0
      %1239 = vmatpush1.bf16.msra.mxu0 %v1224
      %1240 = vmatprep.subr.bf16.mxu0 0
      %1241 = vmatpush1.bf16.msra.mxu0 0
      %1242 = vmatprep.subr.bf16.mxu0 0
      %1243 = vmatpush1.bf16.msra.mxu0 0
      %1244 = vmatprep.subr.bf16.mxu0 0
      %1245 = vmatpush1.bf16.msra.mxu0 0
      %1246 = vmatprep.subr.bf16.mxu0 0
      %1247 = vmatpush1.bf16.msra.mxu0 0
      %1248 = vmatprep.subr.bf16.mxu0 0
      %1249 = vmatpush1.bf16.msra.mxu0 0
      %1250 = vmatprep.subr.bf16.mxu0 0
      %1251 = vmatpush1.bf16.msra.mxu0 0
      %1252 = vmatprep.subr.bf16.mxu0 0
      %1253 = vmatpush1.bf16.msra.mxu0 0
      %1254 = vmatprep.subr.bf16.mxu0 0
      %1255 = vmatpush1.bf16.msra.mxu0 0
      %1256 = vmatprep.subr.bf16.mxu0 0
      %1257 = vmatpush1.bf16.msra.mxu0 0
      %1258 = vmatprep.mubr.bf16.mxu0 0
      %1259 = vmatmul.mubr.bf16.gmra.mrb[0].mxu0 %v1203
      %v1260 = vpop.f32.mrb[0].mxu0
      %v1261 = vadd.f32 0.0, %v1260
      %v1262 = vpop.f32.mrb[0].mxu0
      %v1263 = vpop.f32.mrb[0].mxu0
      %v1264 = vadd.f32 0.0, %v1263
      %v1265 = vpop.f32.mrb[0].mxu0
      %1266 = vmatprep.mubr.bf16.mxu0 0
      %1267 = vmatmul.mubr.bf16.gmra.mrb[0].mxu0 %v1206
      %v1268 = vpop.f32.mrb[0].mxu0
      %v1269 = vadd.f32 0.0, %v1268
      %v1270 = vpop.f32.mrb[0].mxu0
      %v1271 = vpop.f32.mrb[0].mxu0
      %v1272 = vadd.f32 0.0, %v1271
      %v1273 = vpop.f32.mrb[0].mxu0
      %1274 = vmatprep.mubr.bf16.mxu0 0
      %1275 = vmatmul.mubr.bf16.gmra.mrb[0].mxu0 %v1209
      %v1276 = vpop.f32.mrb[0].mxu0
      %v1277 = vadd.f32 0.0, %v1276
      %v1278 = vpop.f32.mrb[0].mxu0
      %v1279 = vpop.f32.mrb[0].mxu0
      %v1280 = vadd.f32 0.0, %v1279
      %v1281 = vpop.f32.mrb[0].mxu0
      %1282 = vmatprep.mubr.bf16.mxu0 0
      %1283 = vmatmul.mubr.bf16.gmra.mrb[0].mxu0 %v1212
      %v1284 = vpop.f32.mrb[0].mxu0
      %v1285 = vadd.f32 0.0, %v1284
      %v1286 = vpop.f32.mrb[0].mxu0
      %v1287 = vpop.f32.mrb[0].mxu0
      %v1288 = vadd.f32 0.0, %v1287
      %v1289 = vpop.f32.mrb[0].mxu0
      %1290 = vmatprep.mubr.bf16.mxu0 0
      %1291 = vmatmul.mubr.bf16.gmra.mrb[0].mxu0 %v1215
      %v1292 = vpop.f32.mrb[0].mxu0
      %v1293 = vadd.f32 0.0, %v1292
      %v1294 = vpop.f32.mrb[0].mxu0
      %v1295 = vpop.f32.mrb[0].mxu0
      %v1296 = vadd.f32 0.0, %v1295
      %v1297 = vpop.f32.mrb[0].mxu0
      %1298 = vmatprep.mubr.bf16.mxu0 0
      %1299 = vmatmul.mubr.bf16.gmra.mrb[0].mxu0 %v1218
      %v1300 = vpop.f32.mrb[0].mxu0
      %v1301 = vadd.f32 0.0, %v1300
      %v1302 = vpop.f32.mrb[0].mxu0
      %v1303 = vpop.f32.mrb[0].mxu0
      %v1304 = vadd.f32 0.0, %v1303
      %v1305 = vpop.f32.mrb[0].mxu0
      %1306 = vmatprep.mubr.bf16.mxu0 0
      %1307 = vmatmul.mubr.bf16.gmra.mrb[0].mxu0 %v1221
      %v1308 = vpop.f32.mrb[0].mxu0
      %v1309 = vadd.f32 0.0, %v1308
      %v1310 = vpop.f32.mrb[0].mxu0
      %v1311 = vpop.f32.mrb[0].mxu0
      %v1312 = vpop.f32.mrb[0].mxu0
      %1313 = vdwg.mxu0
      %v1314 = vpack.c.bf16 %v1264, %v1261
      %v1315 = vpack.c.bf16 %v1272, %v1269
      %v1316 = vpack.c.bf16 %v1280, %v1277
      %v1317 = vpack.c.bf16 %v1288, %v1285
      %v1318 = vpack.c.bf16 %v1296, %v1293
      %v1319 = vpack.c.bf16 %v1304, %v1301
      %v1320 = vpack.c.bf16 %v1309, %v1309
      %v1328 = vunpack.c.l.b16 %v1314
      %v1329 = vunpack.c.h.b16 %v1314
      %v1330 = vunpack.c.l.b16 %v1315
      %v1331 = vunpack.c.h.b16 %v1315
      %v1332 = vunpack.c.l.b16 %v1316
      %v1333 = vunpack.c.h.b16 %v1316
      %v1334 = vunpack.c.l.b16 %v1317
      %v1335 = vunpack.c.h.b16 %v1317
      %v1336 = vunpack.c.l.b16 %v1318
      %v1337 = vunpack.c.h.b16 %v1318
      %v1338 = vunpack.c.l.b16 %v1319
      %v1339 = vunpack.c.h.b16 %v1319
      %v1340 = vunpack.c.l.b16 %v1320
      %v1341 = vpack.c.b16 %v1328, %v1328
      %v1342 = vpack.c.b16 %v1329, %v1329
      %v1343 = vpack.c.b16 %v1330, %v1330
      %v1344 = vpack.c.b16 %v1331, %v1331
      %v1345 = vpack.c.b16 %v1332, %v1332
      %v1346 = vpack.c.b16 %v1333, %v1333
      %v1347 = vpack.c.b16 %v1334, %v1334
      %v1348 = vpack.c.b16 %v1335, %v1335
      %v1349 = vpack.c.b16 %v1336, %v1336
      %v1350 = vpack.c.b16 %v1337, %v1337
      %v1351 = vpack.c.b16 %v1338, %v1338
      %v1352 = vpack.c.b16 %v1339, %v1339
      %v1353 = vpack.c.b16 %v1340, %v1340
      %vm1367 = vcmask 44032
      %1368 = vst.msk [vmem:[#allocation3] sm:$0xf] %vm1367, %v1341
      %1369 = vst.msk [vmem:[#allocation3 + $0x4] sm:$0xf] %vm1367, %v1342
      %1370 = vst.msk [vmem:[#allocation3 + $0x8] sm:$0xf] %vm1367, %v1343
      %1371 = vst.msk [vmem:[#allocation3 + $0xc] sm:$0xf] %vm1367, %v1344
      %1372 = vst.msk [vmem:[#allocation3 + $0x10] sm:$0xf] %vm1367, %v1345
      %1373 = vst.msk [vmem:[#allocation3 + $0x14] sm:$0xf] %vm1367, %v1346
      %1374 = vst.msk [vmem:[#allocation3 + $0x18] sm:$0xf] %vm1367, %v1347
      %1375 = vst.msk [vmem:[#allocation3 + $0x1c] sm:$0xf] %vm1367, %v1348
      %1376 = vst.msk [vmem:[#allocation3 + $0x20] sm:$0xf] %vm1367, %v1349
      %1377 = vst.msk [vmem:[#allocation3 + $0x24] sm:$0xf] %vm1367, %v1350
      %1378 = vst.msk [vmem:[#allocation3 + $0x28] sm:$0xf] %vm1367, %v1351
      %1379 = vst.msk [vmem:[#allocation3 + $0x2c] sm:$0xf] %vm1367, %v1352
      %1380 = vst.msk [vmem:[#allocation3 + $0x30] sm:$0xf] %vm1367, %v1353
      %v1381 = vld [vmem:[#allocation2] sm:$0xf]
      %v1382 = vld [vmem:[#allocation2 + $0x4] sm:$0xf]
      %v1383 = vld [vmem:[#allocation2 + $0x8] sm:$0xf]
      %v1384 = vld [vmem:[#allocation2 + $0xc] sm:$0xf]
      %v1385 = vld [vmem:[#allocation2 + $0x10] sm:$0xf]
      %v1386 = vld [vmem:[#allocation2 + $0x14] sm:$0xf]
      %v1387 = vld [vmem:[#allocation2 + $0x18] sm:$0xf]
      %v1388 = vld [vmem:[#allocation2 + $0x1c] sm:$0xf]
      %v1389 = vld [vmem:[#allocation2 + $0x20] sm:$0xf]
      %v1390 = vld [vmem:[#allocation2 + $0x24] sm:$0xf]
      %v1391 = vld [vmem:[#allocation2 + $0x28] sm:$0xf]
      %v1392 = vld [vmem:[#allocation2 + $0x2c] sm:$0xf]
      %v1393 = vld [vmem:[#allocation2 + $0x30] sm:$0xf]
      %v1407 = vunpack.c.l.b16 %v1381
      %v1408 = vunpack.c.l.b16 %v1382
      %v1409 = vunpack.c.l.b16 %v1383
      %v1410 = vunpack.c.l.b16 %v1384
      %v1411 = vunpack.c.l.b16 %v1385
      %v1412 = vunpack.c.l.b16 %v1386
      %v1413 = vunpack.c.l.b16 %v1387
      %v1414 = vunpack.c.l.b16 %v1388
      %v1415 = vunpack.c.l.b16 %v1389
      %v1416 = vunpack.c.l.b16 %v1390
      %v1417 = vunpack.c.l.b16 %v1391
      %v1418 = vunpack.c.l.b16 %v1392
      %v1419 = vunpack.c.l.b16 %v1393
      %v1420 = vpack.c.b16 %v1408, %v1407
      %v1421 = vpack.c.b16 %v1410, %v1409
      %v1422 = vpack.c.b16 %v1412, %v1411
      %v1423 = vpack.c.b16 %v1414, %v1413
      %v1424 = vpack.c.b16 %v1416, %v1415
      %v1425 = vpack.c.b16 %v1418, %v1417
      %v1426 = vpack.c.b16 %v1419, %v1419
      %1427 = vrot.lane.b32.xlu0 %v1420, 122
      %v1428 = vpop.permute.xlu0 %1427
      %1429 = vrot.lane.b32.xlu0 %v1421, 122
      %v1430 = vpop.permute.xlu0 %1429
      %1431 = vrot.lane.b32.xlu0 %v1422, 122
      %v1432 = vpop.permute.xlu0 %1431
      %1433 = vrot.lane.b32.xlu0 %v1423, 122
      %v1434 = vpop.permute.xlu0 %1433
      %1435 = vrot.lane.b32.xlu0 %v1424, 122
      %v1436 = vpop.permute.xlu0 %1435
      %1437 = vrot.lane.b32.xlu0 %v1425, 122
      %v1438 = vpop.permute.xlu0 %1437
      %1439 = vrot.lane.b32.xlu0 %v1426, 122
      %v1440 = vpop.permute.xlu0 %1439
      %1441 = vrot.lane.b32.xlu0 %v1420, 98
      %v1442 = vpop.permute.xlu0 %1441
      %1443 = vrot.lane.b32.xlu0 %v1421, 98
      %v1444 = vpop.permute.xlu0 %1443
      %1445 = vrot.lane.b32.xlu0 %v1422, 98
      %v1446 = vpop.permute.xlu0 %1445
      %1447 = vrot.lane.b32.xlu0 %v1423, 98
      %v1448 = vpop.permute.xlu0 %1447
      %1449 = vrot.lane.b32.xlu0 %v1424, 98
      %v1450 = vpop.permute.xlu0 %1449
      %1451 = vrot.lane.b32.xlu0 %v1425, 98
      %v1452 = vpop.permute.xlu0 %1451
      %1453 = vrot.lane.b32.xlu0 %v1426, 98
      %v1454 = vpop.permute.xlu0 %1453
      %v1456 = vsel %vm874, %v1428, 0
      %v1459 = vsel %vm874, %v1430, 0
      %v1462 = vsel %vm874, %v1432, 0
      %v1465 = vsel %vm874, %v1434, 0
      %v1468 = vsel %vm874, %v1436, 0
      %v1471 = vsel %vm874, %v1438, 0
      %v1474 = vsel %vm874, %v1440, 0
      %v1477 = vsel %vm874, %v1442, 0
      %v1480 = vsel %vm874, %v1444, 0
      %v1483 = vsel %vm874, %v1446, 0
      %v1486 = vsel %vm874, %v1448, 0
      %v1489 = vsel %vm874, %v1450, 0
      %v1492 = vsel %vm874, %v1452, 0
      %v1495 = vsel %vm874, %v1454, 0
      %1497 = vmatprep.subr.bf16.mxu0 0
      %1498 = vmatpush1.bf16.xpose.msra.mxu0 %v1477
      %1499 = vmatprep.subr.bf16.mxu0 0
      %1500 = vmatpush1.bf16.xpose.msra.mxu0 %v1480
      %1501 = vmatprep.subr.bf16.mxu0 0
      %1502 = vmatpush1.bf16.xpose.msra.mxu0 %v1483
      %1503 = vmatprep.subr.bf16.mxu0 0
      %1504 = vmatpush1.bf16.xpose.msra.mxu0 %v1486
      %1505 = vmatprep.subr.bf16.mxu0 0
      %1506 = vmatpush1.bf16.xpose.msra.mxu0 %v1489
      %1507 = vmatprep.subr.bf16.mxu0 0
      %1508 = vmatpush1.bf16.xpose.msra.mxu0 %v1492
      %1509 = vmatprep.subr.bf16.mxu0 0
      %1510 = vmatpush1.bf16.xpose.msra.mxu0 %v1495
      %1511 = vmatprep.subr.bf16.mxu0 0
      %1512 = vmatpush1.bf16.xpose.msra.mxu0 0
      %1513 = vmatprep.subr.bf16.mxu0 0
      %1514 = vmatpush1.bf16.xpose.msra.mxu0 0
      %1515 = vmatprep.subr.bf16.mxu0 0
      %1516 = vmatpush1.bf16.xpose.msra.mxu0 0
      %1517 = vmatprep.subr.bf16.mxu0 0
      %1518 = vmatpush1.bf16.xpose.msra.mxu0 0
      %1519 = vmatprep.subr.bf16.mxu0 0
      %1520 = vmatpush1.bf16.xpose.msra.mxu0 0
      %1521 = vmatprep.subr.bf16.mxu0 0
      %1522 = vmatpush1.bf16.xpose.msra.mxu0 0
      %1523 = vmatprep.subr.bf16.mxu0 0
      %1524 = vmatpush1.bf16.xpose.msra.mxu0 0
      %1525 = vmatprep.subr.bf16.mxu0 0
      %1526 = vmatpush1.bf16.xpose.msra.mxu0 0
      %1527 = vmatprep.subr.bf16.mxu0 0
      %1528 = vmatpush1.bf16.xpose.msra.mxu0 0
      %1529 = vmatprep.mubr.bf16.mxu0 0
      %1530 = vmatmul.mubr.bf16.gmra.mrb[0].mxu0 %v1456
      %v1531 = vpop.f32.mrb[0].mxu0
      %v1532 = vadd.f32 0.0, %v1531
      %v1533 = vpop.f32.mrb[0].mxu0
      %v1534 = vpop.f32.mrb[0].mxu0
      %v1535 = vadd.f32 0.0, %v1534
      %v1536 = vpop.f32.mrb[0].mxu0
      %1537 = vmatprep.mubr.bf16.mxu0 0
      %1538 = vmatmul.mubr.bf16.gmra.mrb[0].mxu0 %v1459
      %v1539 = vpop.f32.mrb[0].mxu0
      %v1540 = vadd.f32 0.0, %v1539
      %v1541 = vpop.f32.mrb[0].mxu0
      %v1542 = vpop.f32.mrb[0].mxu0
      %v1543 = vadd.f32 0.0, %v1542
      %v1544 = vpop.f32.mrb[0].mxu0
      %1545 = vmatprep.mubr.bf16.mxu0 0
      %1546 = vmatmul.mubr.bf16.gmra.mrb[0].mxu0 %v1462
      %v1547 = vpop.f32.mrb[0].mxu0
      %v1548 = vadd.f32 0.0, %v1547
      %v1549 = vpop.f32.mrb[0].mxu0
      %v1550 = vpop.f32.mrb[0].mxu0
      %v1551 = vadd.f32 0.0, %v1550
      %v1552 = vpop.f32.mrb[0].mxu0
      %1553 = vmatprep.mubr.bf16.mxu0 0
      %1554 = vmatmul.mubr.bf16.gmra.mrb[0].mxu0 %v1465
      %v1555 = vpop.f32.mrb[0].mxu0
      %v1556 = vadd.f32 0.0, %v1555
      %v1557 = vpop.f32.mrb[0].mxu0
      %v1558 = vpop.f32.mrb[0].mxu0
      %v1559 = vadd.f32 0.0, %v1558
      %v1560 = vpop.f32.mrb[0].mxu0
      %1561 = vmatprep.mubr.bf16.mxu0 0
      %1562 = vmatmul.mubr.bf16.gmra.mrb[0].mxu0 %v1468
      %v1563 = vpop.f32.mrb[0].mxu0
      %v1564 = vadd.f32 0.0, %v1563
      %v1565 = vpop.f32.mrb[0].mxu0
      %v1566 = vpop.f32.mrb[0].mxu0
      %v1567 = vadd.f32 0.0, %v1566
      %v1568 = vpop.f32.mrb[0].mxu0
      %1569 = vmatprep.mubr.bf16.mxu0 0
      %1570 = vmatmul.mubr.bf16.gmra.mrb[0].mxu0 %v1471
      %v1571 = vpop.f32.mrb[0].mxu0
      %v1572 = vadd.f32 0.0, %v1571
      %v1573 = vpop.f32.mrb[0].mxu0
      %v1574 = vpop.f32.mrb[0].mxu0
      %v1575 = vadd.f32 0.0, %v1574
      %v1576 = vpop.f32.mrb[0].mxu0
      %1577 = vmatprep.mubr.bf16.mxu0 0
      %1578 = vmatmul.mubr.bf16.gmra.mrb[0].mxu0 %v1474
      %v1579 = vpop.f32.mrb[0].mxu0
      %v1580 = vadd.f32 0.0, %v1579
      %v1581 = vpop.f32.mrb[0].mxu0
      %v1582 = vpop.f32.mrb[0].mxu0
      %v1583 = vpop.f32.mrb[0].mxu0
      %1584 = vdwg.mxu0
      %v1585 = vmul.f32 %v1532, 0.4082483
      %v1586 = vmul.f32 %v1535, 0.4082483
      %v1587 = vmul.f32 %v1540, 0.4082483
      %v1588 = vmul.f32 %v1543, 0.4082483
      %v1589 = vmul.f32 %v1548, 0.4082483
      %v1590 = vmul.f32 %v1551, 0.4082483
      %v1591 = vmul.f32 %v1556, 0.4082483
      %v1592 = vmul.f32 %v1559, 0.4082483
      %v1593 = vmul.f32 %v1564, 0.4082483
      %v1594 = vmul.f32 %v1567, 0.4082483
      %v1595 = vmul.f32 %v1572, 0.4082483
      %v1596 = vmul.f32 %v1575, 0.4082483
      %v1597 = vmul.f32 %v1580, 0.4082483
      %v1598 = vsel %vm813, %v1585, -1e+30
      %v1599 = vsel %vm813, %v1586, -1e+30
      %v1600 = vsel %vm813, %v1587, -1e+30
      %v1601 = vsel %vm813, %v1588, -1e+30
      %v1602 = vsel %vm813, %v1589, -1e+30
      %v1603 = vsel %vm813, %v1590, -1e+30
      %v1604 = vsel %vm813, %v1591, -1e+30
      %v1605 = vsel %vm813, %v1592, -1e+30
      %v1606 = vsel %vm813, %v1593, -1e+30
      %v1607 = vsel %vm813, %v1594, -1e+30
      %v1608 = vsel %vm813, %v1595, -1e+30
      %v1609 = vsel %vm813, %v1596, -1e+30
      %v1610 = vsel %vm813, %v1597, -1e+30
      %v1611 = vsel %vm1031, %v1598, -inf
      %1612 = vmax.xlane.f32.xlu0 %v1611
      %v1613 = vpop.xlane.xlu0 %1612
      %v1614 = vsel %vm1031, %v1599, -inf
      %1615 = vmax.xlane.f32.xlu0 %v1614
      %v1616 = vpop.xlane.xlu0 %1615
      %v1617 = vsel %vm1031, %v1600, -inf
      %1618 = vmax.xlane.f32.xlu0 %v1617
      %v1619 = vpop.xlane.xlu0 %1618
      %v1620 = vsel %vm1031, %v1601, -inf
      %1621 = vmax.xlane.f32.xlu0 %v1620
      %v1622 = vpop.xlane.xlu0 %1621
      %v1623 = vsel %vm1031, %v1602, -inf
      %1624 = vmax.xlane.f32.xlu0 %v1623
      %v1625 = vpop.xlane.xlu0 %1624
      %v1626 = vsel %vm1031, %v1603, -inf
      %1627 = vmax.xlane.f32.xlu0 %v1626
      %v1628 = vpop.xlane.xlu0 %1627
      %v1629 = vsel %vm1031, %v1604, -inf
      %1630 = vmax.xlane.f32.xlu0 %v1629
      %v1631 = vpop.xlane.xlu0 %1630
      %v1632 = vsel %vm1031, %v1605, -inf
      %1633 = vmax.xlane.f32.xlu0 %v1632
      %v1634 = vpop.xlane.xlu0 %1633
      %v1635 = vsel %vm1031, %v1606, -inf
      %1636 = vmax.xlane.f32.xlu0 %v1635
      %v1637 = vpop.xlane.xlu0 %1636
      %v1638 = vsel %vm1031, %v1607, -inf
      %1639 = vmax.xlane.f32.xlu0 %v1638
      %v1640 = vpop.xlane.xlu0 %1639
      %v1641 = vsel %vm1031, %v1608, -inf
      %1642 = vmax.xlane.f32.xlu0 %v1641
      %v1643 = vpop.xlane.xlu0 %1642
      %v1644 = vsel %vm1031, %v1609, -inf
      %1645 = vmax.xlane.f32.xlu0 %v1644
      %v1646 = vpop.xlane.xlu0 %1645
      %v1647 = vsel %vm1031, %v1610, -inf
      %1648 = vmax.xlane.f32.xlu0 %v1647
      %v1649 = vpop.xlane.xlu0 %1648
      %v1650 = vsub.f32 %v1598, %v1613
      %v1651 = vsub.f32 %v1599, %v1616
      %v1652 = vsub.f32 %v1600, %v1619
      %v1653 = vsub.f32 %v1601, %v1622
      %v1654 = vsub.f32 %v1602, %v1625
      %v1655 = vsub.f32 %v1603, %v1628
      %v1656 = vsub.f32 %v1604, %v1631
      %v1657 = vsub.f32 %v1605, %v1634
      %v1658 = vsub.f32 %v1606, %v1637
      %v1659 = vsub.f32 %v1607, %v1640
      %v1660 = vsub.f32 %v1608, %v1643
      %v1661 = vsub.f32 %v1609, %v1646
      %v1662 = vsub.f32 %v1610, %v1649
      %v1663 = vmul.f32 %v1650, 1.442695
      %v1664 = vpow.pop %v1663
      %v1665 = vmul.f32 %v1651, 1.442695
      %v1666 = vpow.pop %v1665
      %v1667 = vmul.f32 %v1652, 1.442695
      %v1668 = vpow.pop %v1667
      %v1669 = vmul.f32 %v1653, 1.442695
      %v1670 = vpow.pop %v1669
      %v1671 = vmul.f32 %v1654, 1.442695
      %v1672 = vpow.pop %v1671
      %v1673 = vmul.f32 %v1655, 1.442695
      %v1674 = vpow.pop %v1673
      %v1675 = vmul.f32 %v1656, 1.442695
      %v1676 = vpow.pop %v1675
      %v1677 = vmul.f32 %v1657, 1.442695
      %v1678 = vpow.pop %v1677
      %v1679 = vmul.f32 %v1658, 1.442695
      %v1680 = vpow.pop %v1679
      %v1681 = vmul.f32 %v1659, 1.442695
      %v1682 = vpow.pop %v1681
      %v1683 = vmul.f32 %v1660, 1.442695
      %v1684 = vpow.pop %v1683
      %v1685 = vmul.f32 %v1661, 1.442695
      %v1686 = vpow.pop %v1685
      %v1687 = vmul.f32 %v1662, 1.442695
      %v1688 = vpow.pop %v1687
      %v1689 = vsel %vm1031, %v1664, 0.0
      %1690 = vadd.xlane.f32.xlu0 %v1689
      %v1691 = vpop.xlane.xlu0 %1690
      %v1692 = vsel %vm1031, %v1666, 0.0
      %1693 = vadd.xlane.f32.xlu0 %v1692
      %v1694 = vpop.xlane.xlu0 %1693
      %v1695 = vsel %vm1031, %v1668, 0.0
      %1696 = vadd.xlane.f32.xlu0 %v1695
      %v1697 = vpop.xlane.xlu0 %1696
      %v1698 = vsel %vm1031, %v1670, 0.0
      %1699 = vadd.xlane.f32.xlu0 %v1698
      %v1700 = vpop.xlane.xlu0 %1699
      %v1701 = vsel %vm1031, %v1672, 0.0
      %1702 = vadd.xlane.f32.xlu0 %v1701
      %v1703 = vpop.xlane.xlu0 %1702
      %v1704 = vsel %vm1031, %v1674, 0.0
      %1705 = vadd.xlane.f32.xlu0 %v1704
      %v1706 = vpop.xlane.xlu0 %1705
      %v1707 = vsel %vm1031, %v1676, 0.0
      %1708 = vadd.xlane.f32.xlu0 %v1707
      %v1709 = vpop.xlane.xlu0 %1708
      %v1710 = vsel %vm1031, %v1678, 0.0
      %1711 = vadd.xlane.f32.xlu0 %v1710
      %v1712 = vpop.xlane.xlu0 %1711
      %v1713 = vsel %vm1031, %v1680, 0.0
      %1714 = vadd.xlane.f32.xlu0 %v1713
      %v1715 = vpop.xlane.xlu0 %1714
      %v1716 = vsel %vm1031, %v1682, 0.0
      %1717 = vadd.xlane.f32.xlu0 %v1716
      %v1718 = vpop.xlane.xlu0 %1717
      %v1719 = vsel %vm1031, %v1684, 0.0
      %1720 = vadd.xlane.f32.xlu0 %v1719
      %v1721 = vpop.xlane.xlu0 %1720
      %v1722 = vsel %vm1031, %v1686, 0.0
      %1723 = vadd.xlane.f32.xlu0 %v1722
      %v1724 = vpop.xlane.xlu0 %1723
      %v1725 = vsel %vm1031, %v1688, 0.0
      %1726 = vadd.xlane.f32.xlu0 %v1725
      %v1727 = vpop.xlane.xlu0 %1726
      %v1728 = vrcp.pop %v1691
      %v1729 = vrcp.pop %v1694
      %v1730 = vrcp.pop %v1697
      %v1731 = vrcp.pop %v1700
      %v1732 = vrcp.pop %v1703
      %v1733 = vrcp.pop %v1706
      %v1734 = vrcp.pop %v1709
      %v1735 = vrcp.pop %v1712
      %v1736 = vrcp.pop %v1715
      %v1737 = vrcp.pop %v1718
      %v1738 = vrcp.pop %v1721
      %v1739 = vrcp.pop %v1724
      %v1740 = vrcp.pop %v1727
      %v1741 = vmul.f32 %v1664, %v1728
      %v1742 = vmul.f32 %v1666, %v1729
      %v1743 = vmul.f32 %v1668, %v1730
      %v1744 = vmul.f32 %v1670, %v1731
      %v1745 = vmul.f32 %v1672, %v1732
      %v1746 = vmul.f32 %v1674, %v1733
      %v1747 = vmul.f32 %v1676, %v1734
      %v1748 = vmul.f32 %v1678, %v1735
      %v1749 = vmul.f32 %v1680, %v1736
      %v1750 = vmul.f32 %v1682, %v1737
      %v1751 = vmul.f32 %v1684, %v1738
      %v1752 = vmul.f32 %v1686, %v1739
      %v1753 = vmul.f32 %v1688, %v1740
      %v1754 = vpack.c.bf16 %v1742, %v1741
      %v1755 = vpack.c.bf16 %v1744, %v1743
      %v1756 = vpack.c.bf16 %v1746, %v1745
      %v1757 = vpack.c.bf16 %v1748, %v1747
      %v1758 = vpack.c.bf16 %v1750, %v1749
      %v1759 = vpack.c.bf16 %v1752, %v1751
      %v1760 = vpack.c.bf16 %v1753, %v1753
      %1761 = vrot.lane.b32.xlu0 %v1420, 74
      %v1762 = vpop.permute.xlu0 %1761
      %1763 = vrot.lane.b32.xlu0 %v1421, 74
      %v1764 = vpop.permute.xlu0 %1763
      %1765 = vrot.lane.b32.xlu0 %v1422, 74
      %v1766 = vpop.permute.xlu0 %1765
      %1767 = vrot.lane.b32.xlu0 %v1423, 74
      %v1768 = vpop.permute.xlu0 %1767
      %1769 = vrot.lane.b32.xlu0 %v1424, 74
      %v1770 = vpop.permute.xlu0 %1769
      %1771 = vrot.lane.b32.xlu0 %v1425, 74
      %v1772 = vpop.permute.xlu0 %1771
      %1773 = vrot.lane.b32.xlu0 %v1426, 74
      %v1774 = vpop.permute.xlu0 %1773
      %v1782 = vsel %vm1031, %v1754, 0
      %v1785 = vsel %vm1031, %v1755, 0
      %v1788 = vsel %vm1031, %v1756, 0
      %v1791 = vsel %vm1031, %v1757, 0
      %v1794 = vsel %vm1031, %v1758, 0
      %v1797 = vsel %vm1031, %v1759, 0
      %v1800 = vsel %vm1031, %v1760, 0
      %v1803 = vsel %vm652, %v1774, 0
      %1805 = vmatprep.subr.bf16.mxu0 0
      %1806 = vmatpush1.bf16.msra.mxu0 %v1762
      %1807 = vmatprep.subr.bf16.mxu0 0
      %1808 = vmatpush1.bf16.msra.mxu0 %v1764
      %1809 = vmatprep.subr.bf16.mxu0 0
      %1810 = vmatpush1.bf16.msra.mxu0 %v1766
      %1811 = vmatprep.subr.bf16.mxu0 0
      %1812 = vmatpush1.bf16.msra.mxu0 %v1768
      %1813 = vmatprep.subr.bf16.mxu0 0
      %1814 = vmatpush1.bf16.msra.mxu0 %v1770
      %1815 = vmatprep.subr.bf16.mxu0 0
      %1816 = vmatpush1.bf16.msra.mxu0 %v1772
      %1817 = vmatprep.subr.bf16.mxu0 0
      %1818 = vmatpush1.bf16.msra.mxu0 %v1803
      %1819 = vmatprep.subr.bf16.mxu0 0
      %1820 = vmatpush1.bf16.msra.mxu0 0
      %1821 = vmatprep.subr.bf16.mxu0 0
      %1822 = vmatpush1.bf16.msra.mxu0 0
      %1823 = vmatprep.subr.bf16.mxu0 0
      %1824 = vmatpush1.bf16.msra.mxu0 0
      %1825 = vmatprep.subr.bf16.mxu0 0
      %1826 = vmatpush1.bf16.msra.mxu0 0
      %1827 = vmatprep.subr.bf16.mxu0 0
      %1828 = vmatpush1.bf16.msra.mxu0 0
      %1829 = vmatprep.subr.bf16.mxu0 0
      %1830 = vmatpush1.bf16.msra.mxu0 0
      %1831 = vmatprep.subr.bf16.mxu0 0
      %1832 = vmatpush1.bf16.msra.mxu0 0
      %1833 = vmatprep.subr.bf16.mxu0 0
      %1834 = vmatpush1.bf16.msra.mxu0 0
      %1835 = vmatprep.subr.bf16.mxu0 0
      %1836 = vmatpush1.bf16.msra.mxu0 0
      %1837 = vmatprep.mubr.bf16.mxu0 0
      %1838 = vmatmul.mubr.bf16.gmra.mrb[0].mxu0 %v1782
      %v1839 = vpop.f32.mrb[0].mxu0
      %v1840 = vadd.f32 0.0, %v1839
      %v1841 = vpop.f32.mrb[0].mxu0
      %v1842 = vpop.f32.mrb[0].mxu0
      %v1843 = vadd.f32 0.0, %v1842
      %v1844 = vpop.f32.mrb[0].mxu0
      %1845 = vmatprep.mubr.bf16.mxu0 0
      %1846 = vmatmul.mubr.bf16.gmra.mrb[0].mxu0 %v1785
      %v1847 = vpop.f32.mrb[0].mxu0
      %v1848 = vadd.f32 0.0, %v1847
      %v1849 = vpop.f32.mrb[0].mxu0
      %v1850 = vpop.f32.mrb[0].mxu0
      %v1851 = vadd.f32 0.0, %v1850
      %v1852 = vpop.f32.mrb[0].mxu0
      %1853 = vmatprep.mubr.bf16.mxu0 0
      %1854 = vmatmul.mubr.bf16.gmra.mrb[0].mxu0 %v1788
      %v1855 = vpop.f32.mrb[0].mxu0
      %v1856 = vadd.f32 0.0, %v1855
      %v1857 = vpop.f32.mrb[0].mxu0
      %v1858 = vpop.f32.mrb[0].mxu0
      %v1859 = vadd.f32 0.0, %v1858
      %v1860 = vpop.f32.mrb[0].mxu0
      %1861 = vmatprep.mubr.bf16.mxu0 0
      %1862 = vmatmul.mubr.bf16.gmra.mrb[0].mxu0 %v1791
      %v1863 = vpop.f32.mrb[0].mxu0
      %v1864 = vadd.f32 0.0, %v1863
      %v1865 = vpop.f32.mrb[0].mxu0
      %v1866 = vpop.f32.mrb[0].mxu0
      %v1867 = vadd.f32 0.0, %v1866
      %v1868 = vpop.f32.mrb[0].mxu0
      %1869 = vmatprep.mubr.bf16.mxu0 0
      %1870 = vmatmul.mubr.bf16.gmra.mrb[0].mxu0 %v1794
      %v1871 = vpop.f32.mrb[0].mxu0
      %v1872 = vadd.f32 0.0, %v1871
      %v1873 = vpop.f32.mrb[0].mxu0
      %v1874 = vpop.f32.mrb[0].mxu0
      %v1875 = vadd.f32 0.0, %v1874
      %v1876 = vpop.f32.mrb[0].mxu0
      %1877 = vmatprep.mubr.bf16.mxu0 0
      %1878 = vmatmul.mubr.bf16.gmra.mrb[0].mxu0 %v1797
      %v1879 = vpop.f32.mrb[0].mxu0
      %v1880 = vadd.f32 0.0, %v1879
      %v1881 = vpop.f32.mrb[0].mxu0
      %v1882 = vpop.f32.mrb[0].mxu0
      %v1883 = vadd.f32 0.0, %v1882
      %v1884 = vpop.f32.mrb[0].mxu0
      %1885 = vmatprep.mubr.bf16.mxu0 0
      %1886 = vmatmul.mubr.bf16.gmra.mrb[0].mxu0 %v1800
      %v1887 = vpop.f32.mrb[0].mxu0
      %v1888 = vadd.f32 0.0, %v1887
      %v1889 = vpop.f32.mrb[0].mxu0
      %v1890 = vpop.f32.mrb[0].mxu0
      %v1891 = vpop.f32.mrb[0].mxu0
      %1892 = vdwg.mxu0
      %v1893 = vpack.c.bf16 %v1843, %v1840
      %v1894 = vpack.c.bf16 %v1851, %v1848
      %v1895 = vpack.c.bf16 %v1859, %v1856
      %v1896 = vpack.c.bf16 %v1867, %v1864
      %v1897 = vpack.c.bf16 %v1875, %v1872
      %v1898 = vpack.c.bf16 %v1883, %v1880
      %v1899 = vpack.c.bf16 %v1888, %v1888
      %v1907 = vunpack.c.l.b16 %v1893
      %v1908 = vunpack.c.h.b16 %v1893
      %v1909 = vunpack.c.l.b16 %v1894
      %v1910 = vunpack.c.h.b16 %v1894
      %v1911 = vunpack.c.l.b16 %v1895
      %v1912 = vunpack.c.h.b16 %v1895
      %v1913 = vunpack.c.l.b16 %v1896
      %v1914 = vunpack.c.h.b16 %v1896
      %v1915 = vunpack.c.l.b16 %v1897
      %v1916 = vunpack.c.h.b16 %v1897
      %v1917 = vunpack.c.l.b16 %v1898
      %v1918 = vunpack.c.h.b16 %v1898
      %v1919 = vunpack.c.l.b16 %v1899
      %v1920 = vpack.c.b16 %v1907, %v1907
      %v1921 = vpack.c.b16 %v1908, %v1908
      %v1922 = vpack.c.b16 %v1909, %v1909
      %v1923 = vpack.c.b16 %v1910, %v1910
      %v1924 = vpack.c.b16 %v1911, %v1911
      %v1925 = vpack.c.b16 %v1912, %v1912
      %v1926 = vpack.c.b16 %v1913, %v1913
      %v1927 = vpack.c.b16 %v1914, %v1914
      %v1928 = vpack.c.b16 %v1915, %v1915
      %v1929 = vpack.c.b16 %v1916, %v1916
      %v1930 = vpack.c.b16 %v1917, %v1917
      %v1931 = vpack.c.b16 %v1918, %v1918
      %v1932 = vpack.c.b16 %v1919, %v1919
      %1933 = vrot.lane.b32.xlu0 %v1920, 6
      %v1934 = vpop.permute.xlu0 %1933
      %1935 = vrot.lane.b32.xlu0 %v1921, 6
      %v1936 = vpop.permute.xlu0 %1935
      %1937 = vrot.lane.b32.xlu0 %v1922, 6
      %v1938 = vpop.permute.xlu0 %1937
      %1939 = vrot.lane.b32.xlu0 %v1923, 6
      %v1940 = vpop.permute.xlu0 %1939
      %1941 = vrot.lane.b32.xlu0 %v1924, 6
      %v1942 = vpop.permute.xlu0 %1941
      %1943 = vrot.lane.b32.xlu0 %v1925, 6
      %v1944 = vpop.permute.xlu0 %1943
      %1945 = vrot.lane.b32.xlu0 %v1926, 6
      %v1946 = vpop.permute.xlu0 %1945
      %1947 = vrot.lane.b32.xlu0 %v1927, 6
      %v1948 = vpop.permute.xlu0 %1947
      %1949 = vrot.lane.b32.xlu0 %v1928, 6
      %v1950 = vpop.permute.xlu0 %1949
      %1951 = vrot.lane.b32.xlu0 %v1929, 6
      %v1952 = vpop.permute.xlu0 %1951
      %1953 = vrot.lane.b32.xlu0 %v1930, 6
      %v1954 = vpop.permute.xlu0 %1953
      %1955 = vrot.lane.b32.xlu0 %v1931, 6
      %v1956 = vpop.permute.xlu0 %1955
      %1957 = vrot.lane.b32.xlu0 %v1932, 6
      %v1958 = vpop.permute.xlu0 %1957
      %vm1972 = vcmask 93232
      %1973 = vst.msk [vmem:[#allocation3] sm:$0xf] %vm1972, %v1934
      %1974 = vst.msk [vmem:[#allocation3 + $0x4] sm:$0xf] %vm1972, %v1936
      %1975 = vst.msk [vmem:[#allocation3 + $0x8] sm:$0xf] %vm1972, %v1938
      %1976 = vst.msk [vmem:[#allocation3 + $0xc] sm:$0xf] %vm1972, %v1940
      %1977 = vst.msk [vmem:[#allocation3 + $0x10] sm:$0xf] %vm1972, %v1942
      %1978 = vst.msk [vmem:[#allocation3 + $0x14] sm:$0xf] %vm1972, %v1944
      %1979 = vst.msk [vmem:[#allocation3 + $0x18] sm:$0xf] %vm1972, %v1946
      %1980 = vst.msk [vmem:[#allocation3 + $0x1c] sm:$0xf] %vm1972, %v1948
      %1981 = vst.msk [vmem:[#allocation3 + $0x20] sm:$0xf] %vm1972, %v1950
      %1982 = vst.msk [vmem:[#allocation3 + $0x24] sm:$0xf] %vm1972, %v1952
      %1983 = vst.msk [vmem:[#allocation3 + $0x28] sm:$0xf] %vm1972, %v1954
      %1984 = vst.msk [vmem:[#allocation3 + $0x2c] sm:$0xf] %vm1972, %v1956
      %1985 = vst.msk [vmem:[#allocation3 + $0x30] sm:$0xf] %vm1972, %v1958
      %v1986 = vld [vmem:[#allocation2] sm:$0xf]
      %v1987 = vld [vmem:[#allocation2 + $0x4] sm:$0xf]
      %v1988 = vld [vmem:[#allocation2 + $0x8] sm:$0xf]
      %v1989 = vld [vmem:[#allocation2 + $0xc] sm:$0xf]
      %v1990 = vld [vmem:[#allocation2 + $0x10] sm:$0xf]
      %v1991 = vld [vmem:[#allocation2 + $0x14] sm:$0xf]
      %v1992 = vld [vmem:[#allocation2 + $0x18] sm:$0xf]
      %v1993 = vld [vmem:[#allocation2 + $0x1c] sm:$0xf]
      %v1994 = vld [vmem:[#allocation2 + $0x20] sm:$0xf]
      %v1995 = vld [vmem:[#allocation2 + $0x24] sm:$0xf]
      %v1996 = vld [vmem:[#allocation2 + $0x28] sm:$0xf]
      %v1997 = vld [vmem:[#allocation2 + $0x2c] sm:$0xf]
      %v1998 = vld [vmem:[#allocation2 + $0x30] sm:$0xf]
      %v2012 = vunpack.c.l.b16 %v1986
      %v2013 = vunpack.c.l.b16 %v1987
      %v2014 = vunpack.c.l.b16 %v1988
      %v2015 = vunpack.c.l.b16 %v1989
      %v2016 = vunpack.c.l.b16 %v1990
      %v2017 = vunpack.c.l.b16 %v1991
      %v2018 = vunpack.c.l.b16 %v1992
      %v2019 = vunpack.c.l.b16 %v1993
      %v2020 = vunpack.c.l.b16 %v1994
      %v2021 = vunpack.c.l.b16 %v1995
      %v2022 = vunpack.c.l.b16 %v1996
      %v2023 = vunpack.c.l.b16 %v1997
      %v2024 = vunpack.c.l.b16 %v1998
      %v2025 = vpack.c.b16 %v2013, %v2012
      %v2026 = vpack.c.b16 %v2015, %v2014
      %v2027 = vpack.c.b16 %v2017, %v2016
      %v2028 = vpack.c.b16 %v2019, %v2018
      %v2029 = vpack.c.b16 %v2021, %v2020
      %v2030 = vpack.c.b16 %v2023, %v2022
      %v2031 = vpack.c.b16 %v2024, %v2024
      %2032 = vrot.lane.b32.xlu0 %v2025, 116
      %v2033 = vpop.permute.xlu0 %2032
      %2034 = vrot.lane.b32.xlu0 %v2026, 116
      %v2035 = vpop.permute.xlu0 %2034
      %2036 = vrot.lane.b32.xlu0 %v2027, 116
      %v2037 = vpop.permute.xlu0 %2036
      %2038 = vrot.lane.b32.xlu0 %v2028, 116
      %v2039 = vpop.permute.xlu0 %2038
      %2040 = vrot.lane.b32.xlu0 %v2029, 116
      %v2041 = vpop.permute.xlu0 %2040
      %2042 = vrot.lane.b32.xlu0 %v2030, 116
      %v2043 = vpop.permute.xlu0 %2042
      %2044 = vrot.lane.b32.xlu0 %v2031, 116
      %v2045 = vpop.permute.xlu0 %2044
      %2046 = vrot.lane.b32.xlu0 %v2025, 92
      %v2047 = vpop.permute.xlu0 %2046
      %2048 = vrot.lane.b32.xlu0 %v2026, 92
      %v2049 = vpop.permute.xlu0 %2048
      %2050 = vrot.lane.b32.xlu0 %v2027, 92
      %v2051 = vpop.permute.xlu0 %2050
      %2052 = vrot.lane.b32.xlu0 %v2028, 92
      %v2053 = vpop.permute.xlu0 %2052
      %2054 = vrot.lane.b32.xlu0 %v2029, 92
      %v2055 = vpop.permute.xlu0 %2054
      %2056 = vrot.lane.b32.xlu0 %v2030, 92
      %v2057 = vpop.permute.xlu0 %2056
      %2058 = vrot.lane.b32.xlu0 %v2031, 92
      %v2059 = vpop.permute.xlu0 %2058
      %v2061 = vsel %vm874, %v2033, 0
      %v2064 = vsel %vm874, %v2035, 0
      %v2067 = vsel %vm874, %v2037, 0
      %v2070 = vsel %vm874, %v2039, 0
      %v2073 = vsel %vm874, %v2041, 0
      %v2076 = vsel %vm874, %v2043, 0
      %v2079 = vsel %vm874, %v2045, 0
      %v2082 = vsel %vm874, %v2047, 0
      %v2085 = vsel %vm874, %v2049, 0
      %v2088 = vsel %vm874, %v2051, 0
      %v2091 = vsel %vm874, %v2053, 0
      %v2094 = vsel %vm874, %v2055, 0
      %v2097 = vsel %vm874, %v2057, 0
      %v2100 = vsel %vm874, %v2059, 0
      %2102 = vmatprep.subr.bf16.mxu0 0
      %2103 = vmatpush1.bf16.xpose.msra.mxu0 %v2082
      %2104 = vmatprep.subr.bf16.mxu0 0
      %2105 = vmatpush1.bf16.xpose.msra.mxu0 %v2085
      %2106 = vmatprep.subr.bf16.mxu0 0
      %2107 = vmatpush1.bf16.xpose.msra.mxu0 %v2088
      %2108 = vmatprep.subr.bf16.mxu0 0
      %2109 = vmatpush1.bf16.xpose.msra.mxu0 %v2091
      %2110 = vmatprep.subr.bf16.mxu0 0
      %2111 = vmatpush1.bf16.xpose.msra.mxu0 %v2094
      %2112 = vmatprep.subr.bf16.mxu0 0
      %2113 = vmatpush1.bf16.xpose.msra.mxu0 %v2097
      %2114 = vmatprep.subr.bf16.mxu0 0
      %2115 = vmatpush1.bf16.xpose.msra.mxu0 %v2100
      %2116 = vmatprep.subr.bf16.mxu0 0
      %2117 = vmatpush1.bf16.xpose.msra.mxu0 0
      %2118 = vmatprep.subr.bf16.mxu0 0
      %2119 = vmatpush1.bf16.xpose.msra.mxu0 0
      %2120 = vmatprep.subr.bf16.mxu0 0
      %2121 = vmatpush1.bf16.xpose.msra.mxu0 0
      %2122 = vmatprep.subr.bf16.mxu0 0
      %2123 = vmatpush1.bf16.xpose.msra.mxu0 0
      %2124 = vmatprep.subr.bf16.mxu0 0
      %2125 = vmatpush1.bf16.xpose.msra.mxu0 0
      %2126 = vmatprep.subr.bf16.mxu0 0
      %2127 = vmatpush1.bf16.xpose.msra.mxu0 0
      %2128 = vmatprep.subr.bf16.mxu0 0
      %2129 = vmatpush1.bf16.xpose.msra.mxu0 0
      %2130 = vmatprep.subr.bf16.mxu0 0
      %2131 = vmatpush1.bf16.xpose.msra.mxu0 0
      %2132 = vmatprep.subr.bf16.mxu0 0
      %2133 = vmatpush1.bf16.xpose.msra.mxu0 0
      %2134 = vmatprep.mubr.bf16.mxu0 0
      %2135 = vmatmul.mubr.bf16.gmra.mrb[0].mxu0 %v2061
      %v2136 = vpop.f32.mrb[0].mxu0
      %v2137 = vadd.f32 0.0, %v2136
      %v2138 = vpop.f32.mrb[0].mxu0
      %v2139 = vpop.f32.mrb[0].mxu0
      %v2140 = vadd.f32 0.0, %v2139
      %v2141 = vpop.f32.mrb[0].mxu0
      %2142 = vmatprep.mubr.bf16.mxu0 0
      %2143 = vmatmul.mubr.bf16.gmra.mrb[0].mxu0 %v2064
      %v2144 = vpop.f32.mrb[0].mxu0
      %v2145 = vadd.f32 0.0, %v2144
      %v2146 = vpop.f32.mrb[0].mxu0
      %v2147 = vpop.f32.mrb[0].mxu0
      %v2148 = vadd.f32 0.0, %v2147
      %v2149 = vpop.f32.mrb[0].mxu0
      %2150 = vmatprep.mubr.bf16.mxu0 0
      %2151 = vmatmul.mubr.bf16.gmra.mrb[0].mxu0 %v2067
      %v2152 = vpop.f32.mrb[0].mxu0
      %v2153 = vadd.f32 0.0, %v2152
      %v2154 = vpop.f32.mrb[0].mxu0
      %v2155 = vpop.f32.mrb[0].mxu0
      %v2156 = vadd.f32 0.0, %v2155
      %v2157 = vpop.f32.mrb[0].mxu0
      %2158 = vmatprep.mubr.bf16.mxu0 0
      %2159 = vmatmul.mubr.bf16.gmra.mrb[0].mxu0 %v2070
      %v2160 = vpop.f32.mrb[0].mxu0
      %v2161 = vadd.f32 0.0, %v2160
      %v2162 = vpop.f32.mrb[0].mxu0
      %v2163 = vpop.f32.mrb[0].mxu0
      %v2164 = vadd.f32 0.0, %v2163
      %v2165 = vpop.f32.mrb[0].mxu0
      %2166 = vmatprep.mubr.bf16.mxu0 0
      %2167 = vmatmul.mubr.bf16.gmra.mrb[0].mxu0 %v2073
      %v2168 = vpop.f32.mrb[0].mxu0
      %v2169 = vadd.f32 0.0, %v2168
      %v2170 = vpop.f32.mrb[0].mxu0
      %v2171 = vpop.f32.mrb[0].mxu0
      %v2172 = vadd.f32 0.0, %v2171
      %v2173 = vpop.f32.mrb[0].mxu0
      %2174 = vmatprep.mubr.bf16.mxu0 0
      %2175 = vmatmul.mubr.bf16.gmra.mrb[0].mxu0 %v2076
      %v2176 = vpop.f32.mrb[0].mxu0
      %v2177 = vadd.f32 0.0, %v2176
      %v2178 = vpop.f32.mrb[0].mxu0
      %v2179 = vpop.f32.mrb[0].mxu0
      %v2180 = vadd.f32 0.0, %v2179
      %v2181 = vpop.f32.mrb[0].mxu0
      %2182 = vmatprep.mubr.bf16.mxu0 0
      %2183 = vmatmul.mubr.bf16.gmra.mrb[0].mxu0 %v2079
      %v2184 = vpop.f32.mrb[0].mxu0
      %v2185 = vadd.f32 0.0, %v2184
      %v2186 = vpop.f32.mrb[0].mxu0
      %v2187 = vpop.f32.mrb[0].mxu0
      %v2188 = vpop.f32.mrb[0].mxu0
      %2189 = vdwg.mxu0
      %v2190 = vmul.f32 %v2137, 0.4082483
      %v2191 = vmul.f32 %v2140, 0.4082483
      %v2192 = vmul.f32 %v2145, 0.4082483
      %v2193 = vmul.f32 %v2148, 0.4082483
      %v2194 = vmul.f32 %v2153, 0.4082483
      %v2195 = vmul.f32 %v2156, 0.4082483
      %v2196 = vmul.f32 %v2161, 0.4082483
      %v2197 = vmul.f32 %v2164, 0.4082483
      %v2198 = vmul.f32 %v2169, 0.4082483
      %v2199 = vmul.f32 %v2172, 0.4082483
      %v2200 = vmul.f32 %v2177, 0.4082483
      %v2201 = vmul.f32 %v2180, 0.4082483
      %v2202 = vmul.f32 %v2185, 0.4082483
      %v2203 = vsel %vm813, %v2190, -1e+30
      %v2204 = vsel %vm813, %v2191, -1e+30
      %v2205 = vsel %vm813, %v2192, -1e+30
      %v2206 = vsel %vm813, %v2193, -1e+30
      %v2207 = vsel %vm813, %v2194, -1e+30
      %v2208 = vsel %vm813, %v2195, -1e+30
      %v2209 = vsel %vm813, %v2196, -1e+30
      %v2210 = vsel %vm813, %v2197, -1e+30
      %v2211 = vsel %vm813, %v2198, -1e+30
      %v2212 = vsel %vm813, %v2199, -1e+30
      %v2213 = vsel %vm813, %v2200, -1e+30
      %v2214 = vsel %vm813, %v2201, -1e+30
      %v2215 = vsel %vm813, %v2202, -1e+30
      %v2216 = vsel %vm1031, %v2203, -inf
      %2217 = vmax.xlane.f32.xlu0 %v2216
      %v2218 = vpop.xlane.xlu0 %2217
      %v2219 = vsel %vm1031, %v2204, -inf
      %2220 = vmax.xlane.f32.xlu0 %v2219
      %v2221 = vpop.xlane.xlu0 %2220
      %v2222 = vsel %vm1031, %v2205, -inf
      %2223 = vmax.xlane.f32.xlu0 %v2222
      %v2224 = vpop.xlane.xlu0 %2223
      %v2225 = vsel %vm1031, %v2206, -inf
      %2226 = vmax.xlane.f32.xlu0 %v2225
      %v2227 = vpop.xlane.xlu0 %2226
      %v2228 = vsel %vm1031, %v2207, -inf
      %2229 = vmax.xlane.f32.xlu0 %v2228
      %v2230 = vpop.xlane.xlu0 %2229
      %v2231 = vsel %vm1031, %v2208, -inf
      %2232 = vmax.xlane.f32.xlu0 %v2231
      %v2233 = vpop.xlane.xlu0 %2232
      %v2234 = vsel %vm1031, %v2209, -inf
      %2235 = vmax.xlane.f32.xlu0 %v2234
      %v2236 = vpop.xlane.xlu0 %2235
      %v2237 = vsel %vm1031, %v2210, -inf
      %2238 = vmax.xlane.f32.xlu0 %v2237
      %v2239 = vpop.xlane.xlu0 %2238
      %v2240 = vsel %vm1031, %v2211, -inf
      %2241 = vmax.xlane.f32.xlu0 %v2240
      %v2242 = vpop.xlane.xlu0 %2241
      %v2243 = vsel %vm1031, %v2212, -inf
      %2244 = vmax.xlane.f32.xlu0 %v2243
      %v2245 = vpop.xlane.xlu0 %2244
      %v2246 = vsel %vm1031, %v2213, -inf
      %2247 = vmax.xlane.f32.xlu0 %v2246
      %v2248 = vpop.xlane.xlu0 %2247
      %v2249 = vsel %vm1031, %v2214, -inf
      %2250 = vmax.xlane.f32.xlu0 %v2249
      %v2251 = vpop.xlane.xlu0 %2250
      %v2252 = vsel %vm1031, %v2215, -inf
      %2253 = vmax.xlane.f32.xlu0 %v2252
      %v2254 = vpop.xlane.xlu0 %2253
      %v2255 = vsub.f32 %v2203, %v2218
      %v2256 = vsub.f32 %v2204, %v2221
      %v2257 = vsub.f32 %v2205, %v2224
      %v2258 = vsub.f32 %v2206, %v2227
      %v2259 = vsub.f32 %v2207, %v2230
      %v2260 = vsub.f32 %v2208, %v2233
      %v2261 = vsub.f32 %v2209, %v2236
      %v2262 = vsub.f32 %v2210, %v2239
      %v2263 = vsub.f32 %v2211, %v2242
      %v2264 = vsub.f32 %v2212, %v2245
      %v2265 = vsub.f32 %v2213, %v2248
      %v2266 = vsub.f32 %v2214, %v2251
      %v2267 = vsub.f32 %v2215, %v2254
      %v2268 = vmul.f32 %v2255, 1.442695
      %v2269 = vpow.pop %v2268
      %v2270 = vmul.f32 %v2256, 1.442695
      %v2271 = vpow.pop %v2270
      %v2272 = vmul.f32 %v2257, 1.442695
      %v2273 = vpow.pop %v2272
      %v2274 = vmul.f32 %v2258, 1.442695
      %v2275 = vpow.pop %v2274
      %v2276 = vmul.f32 %v2259, 1.442695
      %v2277 = vpow.pop %v2276
      %v2278 = vmul.f32 %v2260, 1.442695
      %v2279 = vpow.pop %v2278
      %v2280 = vmul.f32 %v2261, 1.442695
      %v2281 = vpow.pop %v2280
      %v2282 = vmul.f32 %v2262, 1.442695
      %v2283 = vpow.pop %v2282
      %v2284 = vmul.f32 %v2263, 1.442695
      %v2285 = vpow.pop %v2284
      %v2286 = vmul.f32 %v2264, 1.442695
      %v2287 = vpow.pop %v2286
      %v2288 = vmul.f32 %v2265, 1.442695
      %v2289 = vpow.pop %v2288
      %v2290 = vmul.f32 %v2266, 1.442695
      %v2291 = vpow.pop %v2290
      %v2292 = vmul.f32 %v2267, 1.442695
      %v2293 = vpow.pop %v2292
      %v2294 = vsel %vm1031, %v2269, 0.0
      %2295 = vadd.xlane.f32.xlu0 %v2294
      %v2296 = vpop.xlane.xlu0 %2295
      %v2297 = vsel %vm1031, %v2271, 0.0
      %2298 = vadd.xlane.f32.xlu0 %v2297
      %v2299 = vpop.xlane.xlu0 %2298
      %v2300 = vsel %vm1031, %v2273, 0.0
      %2301 = vadd.xlane.f32.xlu0 %v2300
      %v2302 = vpop.xlane.xlu0 %2301
      %v2303 = vsel %vm1031, %v2275, 0.0
      %2304 = vadd.xlane.f32.xlu0 %v2303
      %v2305 = vpop.xlane.xlu0 %2304
      %v2306 = vsel %vm1031, %v2277, 0.0
      %2307 = vadd.xlane.f32.xlu0 %v2306
      %v2308 = vpop.xlane.xlu0 %2307
      %v2309 = vsel %vm1031, %v2279, 0.0
      %2310 = vadd.xlane.f32.xlu0 %v2309
      %v2311 = vpop.xlane.xlu0 %2310
      %v2312 = vsel %vm1031, %v2281, 0.0
      %2313 = vadd.xlane.f32.xlu0 %v2312
      %v2314 = vpop.xlane.xlu0 %2313
      %v2315 = vsel %vm1031, %v2283, 0.0
      %2316 = vadd.xlane.f32.xlu0 %v2315
      %v2317 = vpop.xlane.xlu0 %2316
      %v2318 = vsel %vm1031, %v2285, 0.0
      %2319 = vadd.xlane.f32.xlu0 %v2318
      %v2320 = vpop.xlane.xlu0 %2319
      %v2321 = vsel %vm1031, %v2287, 0.0
      %2322 = vadd.xlane.f32.xlu0 %v2321
      %v2323 = vpop.xlane.xlu0 %2322
      %v2324 = vsel %vm1031, %v2289, 0.0
      %2325 = vadd.xlane.f32.xlu0 %v2324
      %v2326 = vpop.xlane.xlu0 %2325
      %v2327 = vsel %vm1031, %v2291, 0.0
      %2328 = vadd.xlane.f32.xlu0 %v2327
      %v2329 = vpop.xlane.xlu0 %2328
      %v2330 = vsel %vm1031, %v2293, 0.0
      %2331 = vadd.xlane.f32.xlu0 %v2330
      %v2332 = vpop.xlane.xlu0 %2331
      %v2333 = vrcp.pop %v2296
      %v2334 = vrcp.pop %v2299
      %v2335 = vrcp.pop %v2302
      %v2336 = vrcp.pop %v2305
      %v2337 = vrcp.pop %v2308
      %v2338 = vrcp.pop %v2311
      %v2339 = vrcp.pop %v2314
      %v2340 = vrcp.pop %v2317
      %v2341 = vrcp.pop %v2320
      %v2342 = vrcp.pop %v2323
      %v2343 = vrcp.pop %v2326
      %v2344 = vrcp.pop %v2329
      %v2345 = vrcp.pop %v2332
      %v2346 = vmul.f32 %v2269, %v2333
      %v2347 = vmul.f32 %v2271, %v2334
      %v2348 = vmul.f32 %v2273, %v2335
      %v2349 = vmul.f32 %v2275, %v2336
      %v2350 = vmul.f32 %v2277, %v2337
      %v2351 = vmul.f32 %v2279, %v2338
      %v2352 = vmul.f32 %v2281, %v2339
      %v2353 = vmul.f32 %v2283, %v2340
      %v2354 = vmul.f32 %v2285, %v2341
      %v2355 = vmul.f32 %v2287, %v2342
      %v2356 = vmul.f32 %v2289, %v2343
      %v2357 = vmul.f32 %v2291, %v2344
      %v2358 = vmul.f32 %v2293, %v2345
      %v2359 = vpack.c.bf16 %v2347, %v2346
      %v2360 = vpack.c.bf16 %v2349, %v2348
      %v2361 = vpack.c.bf16 %v2351, %v2350
      %v2362 = vpack.c.bf16 %v2353, %v2352
      %v2363 = vpack.c.bf16 %v2355, %v2354
      %v2364 = vpack.c.bf16 %v2357, %v2356
      %v2365 = vpack.c.bf16 %v2358, %v2358
      %2366 = vrot.lane.b32.xlu0 %v2025, 68
      %v2367 = vpop.permute.xlu0 %2366
      %2368 = vrot.lane.b32.xlu0 %v2026, 68
      %v2369 = vpop.permute.xlu0 %2368
      %2370 = vrot.lane.b32.xlu0 %v2027, 68
      %v2371 = vpop.permute.xlu0 %2370
      %2372 = vrot.lane.b32.xlu0 %v2028, 68
      %v2373 = vpop.permute.xlu0 %2372
      %2374 = vrot.lane.b32.xlu0 %v2029, 68
      %v2375 = vpop.permute.xlu0 %2374
      %2376 = vrot.lane.b32.xlu0 %v2030, 68
      %v2377 = vpop.permute.xlu0 %2376
      %2378 = vrot.lane.b32.xlu0 %v2031, 68
      %v2379 = vpop.permute.xlu0 %2378
      %v2387 = vsel %vm1031, %v2359, 0
      %v2390 = vsel %vm1031, %v2360, 0
      %v2393 = vsel %vm1031, %v2361, 0
      %v2396 = vsel %vm1031, %v2362, 0
      %v2399 = vsel %vm1031, %v2363, 0
      %v2402 = vsel %vm1031, %v2364, 0
      %v2405 = vsel %vm1031, %v2365, 0
      %v2408 = vsel %vm652, %v2379, 0
      %2410 = vmatprep.subr.bf16.mxu0 0
      %2411 = vmatpush1.bf16.msra.mxu0 %v2367
      %2412 = vmatprep.subr.bf16.mxu0 0
      %2413 = vmatpush1.bf16.msra.mxu0 %v2369
      %2414 = vmatprep.subr.bf16.mxu0 0
      %2415 = vmatpush1.bf16.msra.mxu0 %v2371
      %2416 = vmatprep.subr.bf16.mxu0 0
      %2417 = vmatpush1.bf16.msra.mxu0 %v2373
      %2418 = vmatprep.subr.bf16.mxu0 0
      %2419 = vmatpush1.bf16.msra.mxu0 %v2375
      %2420 = vmatprep.subr.bf16.mxu0 0
      %2421 = vmatpush1.bf16.msra.mxu0 %v2377
      %2422 = vmatprep.subr.bf16.mxu0 0
      %2423 = vmatpush1.bf16.msra.mxu0 %v2408
      %2424 = vmatprep.subr.bf16.mxu0 0
      %2425 = vmatpush1.bf16.msra.mxu0 0
      %2426 = vmatprep.subr.bf16.mxu0 0
      %2427 = vmatpush1.bf16.msra.mxu0 0
      %2428 = vmatprep.subr.bf16.mxu0 0
      %2429 = vmatpush1.bf16.msra.mxu0 0
      %2430 = vmatprep.subr.bf16.mxu0 0
      %2431 = vmatpush1.bf16.msra.mxu0 0
      %2432 = vmatprep.subr.bf16.mxu0 0
      %2433 = vmatpush1.bf16.msra.mxu0 0
      %2434 = vmatprep.subr.bf16.mxu0 0
      %2435 = vmatpush1.bf16.msra.mxu0 0
      %2436 = vmatprep.subr.bf16.mxu0 0
      %2437 = vmatpush1.bf16.msra.mxu0 0
      %2438 = vmatprep.subr.bf16.mxu0 0
      %2439 = vmatpush1.bf16.msra.mxu0 0
      %2440 = vmatprep.subr.bf16.mxu0 0
      %2441 = vmatpush1.bf16.msra.mxu0 0
      %2442 = vmatprep.mubr.bf16.mxu0 0
      %2443 = vmatmul.mubr.bf16.gmra.mrb[0].mxu0 %v2387
      %v2444 = vpop.f32.mrb[0].mxu0
      %v2445 = vadd.f32 0.0, %v2444
      %v2446 = vpop.f32.mrb[0].mxu0
      %v2447 = vpop.f32.mrb[0].mxu0
      %v2448 = vadd.f32 0.0, %v2447
      %v2449 = vpop.f32.mrb[0].mxu0
      %2450 = vmatprep.mubr.bf16.mxu0 0
      %2451 = vmatmul.mubr.bf16.gmra.mrb[0].mxu0 %v2390
      %v2452 = vpop.f32.mrb[0].mxu0
      %v2453 = vadd.f32 0.0, %v2452
      %v2454 = vpop.f32.mrb[0].mxu0
      %v2455 = vpop.f32.mrb[0].mxu0
      %v2456 = vadd.f32 0.0, %v2455
      %v2457 = vpop.f32.mrb[0].mxu0
      %2458 = vmatprep.mubr.bf16.mxu0 0
      %2459 = vmatmul.mubr.bf16.gmra.mrb[0].mxu0 %v2393
      %v2460 = vpop.f32.mrb[0].mxu0
      %v2461 = vadd.f32 0.0, %v2460
      %v2462 = vpop.f32.mrb[0].mxu0
      %v2463 = vpop.f32.mrb[0].mxu0
      %v2464 = vadd.f32 0.0, %v2463
      %v2465 = vpop.f32.mrb[0].mxu0
      %2466 = vmatprep.mubr.bf16.mxu0 0
      %2467 = vmatmul.mubr.bf16.gmra.mrb[0].mxu0 %v2396
      %v2468 = vpop.f32.mrb[0].mxu0
      %v2469 = vadd.f32 0.0, %v2468
      %v2470 = vpop.f32.mrb[0].mxu0
      %v2471 = vpop.f32.mrb[0].mxu0
      %v2472 = vadd.f32 0.0, %v2471
      %v2473 = vpop.f32.mrb[0].mxu0
      %2474 = vmatprep.mubr.bf16.mxu0 0
      %2475 = vmatmul.mubr.bf16.gmra.mrb[0].mxu0 %v2399
      %v2476 = vpop.f32.mrb[0].mxu0
      %v2477 = vadd.f32 0.0, %v2476
      %v2478 = vpop.f32.mrb[0].mxu0
      %v2479 = vpop.f32.mrb[0].mxu0
      %v2480 = vadd.f32 0.0, %v2479
      %v2481 = vpop.f32.mrb[0].mxu0
      %2482 = vmatprep.mubr.bf16.mxu0 0
      %2483 = vmatmul.mubr.bf16.gmra.mrb[0].mxu0 %v2402
      %v2484 = vpop.f32.mrb[0].mxu0
      %v2485 = vadd.f32 0.0, %v2484
      %v2486 = vpop.f32.mrb[0].mxu0
      %v2487 = vpop.f32.mrb[0].mxu0
      %v2488 = vadd.f32 0.0, %v2487
      %v2489 = vpop.f32.mrb[0].mxu0
      %2490 = vmatprep.mubr.bf16.mxu0 0
      %2491 = vmatmul.mubr.bf16.gmra.mrb[0].mxu0 %v2405
      %v2492 = vpop.f32.mrb[0].mxu0
      %v2493 = vadd.f32 0.0, %v2492
      %v2494 = vpop.f32.mrb[0].mxu0
      %v2495 = vpop.f32.mrb[0].mxu0
      %v2496 = vpop.f32.mrb[0].mxu0
      %2497 = vdwg.mxu0
      %v2498 = vpack.c.bf16 %v2448, %v2445
      %v2499 = vpack.c.bf16 %v2456, %v2453
      %v2500 = vpack.c.bf16 %v2464, %v2461
      %v2501 = vpack.c.bf16 %v2472, %v2469
      %v2502 = vpack.c.bf16 %v2480, %v2477
      %v2503 = vpack.c.bf16 %v2488, %v2485
      %v2504 = vpack.c.bf16 %v2493, %v2493
      %v2512 = vunpack.c.l.b16 %v2498
      %v2513 = vunpack.c.h.b16 %v2498
      %v2514 = vunpack.c.l.b16 %v2499
      %v2515 = vunpack.c.h.b16 %v2499
      %v2516 = vunpack.c.l.b16 %v2500
      %v2517 = vunpack.c.h.b16 %v2500
      %v2518 = vunpack.c.l.b16 %v2501
      %v2519 = vunpack.c.h.b16 %v2501
      %v2520 = vunpack.c.l.b16 %v2502
      %v2521 = vunpack.c.h.b16 %v2502
      %v2522 = vunpack.c.l.b16 %v2503
      %v2523 = vunpack.c.h.b16 %v2503
      %v2524 = vunpack.c.l.b16 %v2504
      %v2525 = vpack.c.b16 %v2512, %v2512
      %v2526 = vpack.c.b16 %v2513, %v2513
      %v2527 = vpack.c.b16 %v2514, %v2514
      %v2528 = vpack.c.b16 %v2515, %v2515
      %v2529 = vpack.c.b16 %v2516, %v2516
      %v2530 = vpack.c.b16 %v2517, %v2517
      %v2531 = vpack.c.b16 %v2518, %v2518
      %v2532 = vpack.c.b16 %v2519, %v2519
      %v2533 = vpack.c.b16 %v2520, %v2520
      %v2534 = vpack.c.b16 %v2521, %v2521
      %v2535 = vpack.c.b16 %v2522, %v2522
      %v2536 = vpack.c.b16 %v2523, %v2523
      %v2537 = vpack.c.b16 %v2524, %v2524
      %2538 = vrot.lane.b32.xlu0 %v2525, 12
      %v2539 = vpop.permute.xlu0 %2538
      %2540 = vrot.lane.b32.xlu0 %v2526, 12
      %v2541 = vpop.permute.xlu0 %2540
      %2542 = vrot.lane.b32.xlu0 %v2527, 12
      %v2543 = vpop.permute.xlu0 %2542
      %2544 = vrot.lane.b32.xlu0 %v2528, 12
      %v2545 = vpop.permute.xlu0 %2544
      %2546 = vrot.lane.b32.xlu0 %v2529, 12
      %v2547 = vpop.permute.xlu0 %2546
      %2548 = vrot.lane.b32.xlu0 %v2530, 12
      %v2549 = vpop.permute.xlu0 %2548
      %2550 = vrot.lane.b32.xlu0 %v2531, 12
      %v2551 = vpop.permute.xlu0 %2550
      %2552 = vrot.lane.b32.xlu0 %v2532, 12
      %v2553 = vpop.permute.xlu0 %2552
      %2554 = vrot.lane.b32.xlu0 %v2533, 12
      %v2555 = vpop.permute.xlu0 %2554
      %2556 = vrot.lane.b32.xlu0 %v2534, 12
      %v2557 = vpop.permute.xlu0 %2556
      %2558 = vrot.lane.b32.xlu0 %v2535, 12
      %v2559 = vpop.permute.xlu0 %2558
      %2560 = vrot.lane.b32.xlu0 %v2536, 12
      %v2561 = vpop.permute.xlu0 %2560
      %2562 = vrot.lane.b32.xlu0 %v2537, 12
      %v2563 = vpop.permute.xlu0 %2562
      %vm2577 = vcmask 142432
      %2578 = vst.msk [vmem:[#allocation3] sm:$0xf] %vm2577, %v2539
      %2579 = vst.msk [vmem:[#allocation3 + $0x4] sm:$0xf] %vm2577, %v2541
      %2580 = vst.msk [vmem:[#allocation3 + $0x8] sm:$0xf] %vm2577, %v2543
      %2581 = vst.msk [vmem:[#allocation3 + $0xc] sm:$0xf] %vm2577, %v2545
      %2582 = vst.msk [vmem:[#allocation3 + $0x10] sm:$0xf] %vm2577, %v2547
      %2583 = vst.msk [vmem:[#allocation3 + $0x14] sm:$0xf] %vm2577, %v2549
      %2584 = vst.msk [vmem:[#allocation3 + $0x18] sm:$0xf] %vm2577, %v2551
      %2585 = vst.msk [vmem:[#allocation3 + $0x1c] sm:$0xf] %vm2577, %v2553
      %2586 = vst.msk [vmem:[#allocation3 + $0x20] sm:$0xf] %vm2577, %v2555
      %2587 = vst.msk [vmem:[#allocation3 + $0x24] sm:$0xf] %vm2577, %v2557
      %2588 = vst.msk [vmem:[#allocation3 + $0x28] sm:$0xf] %vm2577, %v2559
      %2589 = vst.msk [vmem:[#allocation3 + $0x2c] sm:$0xf] %vm2577, %v2561
      %2590 = vst.msk [vmem:[#allocation3 + $0x30] sm:$0xf] %vm2577, %v2563
      %v2591 = vld [vmem:[#allocation2] sm:$0xf]
      %v2592 = vld [vmem:[#allocation2 + $0x4] sm:$0xf]
      %v2593 = vld [vmem:[#allocation2 + $0x8] sm:$0xf]
      %v2594 = vld [vmem:[#allocation2 + $0xc] sm:$0xf]
      %v2595 = vld [vmem:[#allocation2 + $0x10] sm:$0xf]
      %v2596 = vld [vmem:[#allocation2 + $0x14] sm:$0xf]
      %v2597 = vld [vmem:[#allocation2 + $0x18] sm:$0xf]
      %v2598 = vld [vmem:[#allocation2 + $0x1c] sm:$0xf]
      %v2599 = vld [vmem:[#allocation2 + $0x20] sm:$0xf]
      %v2600 = vld [vmem:[#allocation2 + $0x24] sm:$0xf]
      %v2601 = vld [vmem:[#allocation2 + $0x28] sm:$0xf]
      %v2602 = vld [vmem:[#allocation2 + $0x2c] sm:$0xf]
      %v2603 = vld [vmem:[#allocation2 + $0x30] sm:$0xf]
      %v2617 = vunpack.c.l.b16 %v2591
      %v2618 = vunpack.c.l.b16 %v2592
      %v2619 = vunpack.c.l.b16 %v2593
      %v2620 = vunpack.c.l.b16 %v2594
      %v2621 = vunpack.c.l.b16 %v2595
      %v2622 = vunpack.c.l.b16 %v2596
      %v2623 = vunpack.c.l.b16 %v2597
      %v2624 = vunpack.c.l.b16 %v2598
      %v2625 = vunpack.c.l.b16 %v2599
      %v2626 = vunpack.c.l.b16 %v2600
      %v2627 = vunpack.c.l.b16 %v2601
      %v2628 = vunpack.c.l.b16 %v2602
      %v2629 = vunpack.c.l.b16 %v2603
      %v2630 = vpack.c.b16 %v2618, %v2617
      %v2631 = vpack.c.b16 %v2620, %v2619
      %v2632 = vpack.c.b16 %v2622, %v2621
      %v2633 = vpack.c.b16 %v2624, %v2623
      %v2634 = vpack.c.b16 %v2626, %v2625
      %v2635 = vpack.c.b16 %v2628, %v2627
      %v2636 = vpack.c.b16 %v2629, %v2629
      %2637 = vrot.lane.b32.xlu0 %v2630, 110
      %v2638 = vpop.permute.xlu0 %2637
      %2639 = vrot.lane.b32.xlu0 %v2631, 110
      %v2640 = vpop.permute.xlu0 %2639
      %2641 = vrot.lane.b32.xlu0 %v2632, 110
      %v2642 = vpop.permute.xlu0 %2641
      %2643 = vrot.lane.b32.xlu0 %v2633, 110
      %v2644 = vpop.permute.xlu0 %2643
      %2645 = vrot.lane.b32.xlu0 %v2634, 110
      %v2646 = vpop.permute.xlu0 %2645
      %2647 = vrot.lane.b32.xlu0 %v2635, 110
      %v2648 = vpop.permute.xlu0 %2647
      %2649 = vrot.lane.b32.xlu0 %v2636, 110
      %v2650 = vpop.permute.xlu0 %2649
      %2651 = vrot.lane.b32.xlu0 %v2630, 86
      %v2652 = vpop.permute.xlu0 %2651
      %2653 = vrot.lane.b32.xlu0 %v2631, 86
      %v2654 = vpop.permute.xlu0 %2653
      %2655 = vrot.lane.b32.xlu0 %v2632, 86
      %v2656 = vpop.permute.xlu0 %2655
      %2657 = vrot.lane.b32.xlu0 %v2633, 86
      %v2658 = vpop.permute.xlu0 %2657
      %2659 = vrot.lane.b32.xlu0 %v2634, 86
      %v2660 = vpop.permute.xlu0 %2659
      %2661 = vrot.lane.b32.xlu0 %v2635, 86
      %v2662 = vpop.permute.xlu0 %2661
      %2663 = vrot.lane.b32.xlu0 %v2636, 86
      %v2664 = vpop.permute.xlu0 %2663
      %v2666 = vsel %vm874, %v2638, 0
      %v2669 = vsel %vm874, %v2640, 0
      %v2672 = vsel %vm874, %v2642, 0
      %v2675 = vsel %vm874, %v2644, 0
      %v2678 = vsel %vm874, %v2646, 0
      %v2681 = vsel %vm874, %v2648, 0
      %v2684 = vsel %vm874, %v2650, 0
      %v2687 = vsel %vm874, %v2652, 0
      %v2690 = vsel %vm874, %v2654, 0
      %v2693 = vsel %vm874, %v2656, 0
      %v2696 = vsel %vm874, %v2658, 0
      %v2699 = vsel %vm874, %v2660, 0
      %v2702 = vsel %vm874, %v2662, 0
      %v2705 = vsel %vm874, %v2664, 0
      %2707 = vmatprep.subr.bf16.mxu0 0
      %2708 = vmatpush1.bf16.xpose.msra.mxu0 %v2687
      %2709 = vmatprep.subr.bf16.mxu0 0
      %2710 = vmatpush1.bf16.xpose.msra.mxu0 %v2690
      %2711 = vmatprep.subr.bf16.mxu0 0
      %2712 = vmatpush1.bf16.xpose.msra.mxu0 %v2693
      %2713 = vmatprep.subr.bf16.mxu0 0
      %2714 = vmatpush1.bf16.xpose.msra.mxu0 %v2696
      %2715 = vmatprep.subr.bf16.mxu0 0
      %2716 = vmatpush1.bf16.xpose.msra.mxu0 %v2699
      %2717 = vmatprep.subr.bf16.mxu0 0
      %2718 = vmatpush1.bf16.xpose.msra.mxu0 %v2702
      %2719 = vmatprep.subr.bf16.mxu0 0
      %2720 = vmatpush1.bf16.xpose.msra.mxu0 %v2705
      %2721 = vmatprep.subr.bf16.mxu0 0
      %2722 = vmatpush1.bf16.xpose.msra.mxu0 0
      %2723 = vmatprep.subr.bf16.mxu0 0
      %2724 = vmatpush1.bf16.xpose.msra.mxu0 0
      %2725 = vmatprep.subr.bf16.mxu0 0
      %2726 = vmatpush1.bf16.xpose.msra.mxu0 0
      %2727 = vmatprep.subr.bf16.mxu0 0
      %2728 = vmatpush1.bf16.xpose.msra.mxu0 0
      %2729 = vmatprep.subr.bf16.mxu0 0
      %2730 = vmatpush1.bf16.xpose.msra.mxu0 0
      %2731 = vmatprep.subr.bf16.mxu0 0
      %2732 = vmatpush1.bf16.xpose.msra.mxu0 0
      %2733 = vmatprep.subr.bf16.mxu0 0
      %2734 = vmatpush1.bf16.xpose.msra.mxu0 0
      %2735 = vmatprep.subr.bf16.mxu0 0
      %2736 = vmatpush1.bf16.xpose.msra.mxu0 0
      %2737 = vmatprep.subr.bf16.mxu0 0
      %2738 = vmatpush1.bf16.xpose.msra.mxu0 0
      %2739 = vmatprep.mubr.bf16.mxu0 0
      %2740 = vmatmul.mubr.bf16.gmra.mrb[0].mxu0 %v2666
      %v2741 = vpop.f32.mrb[0].mxu0
      %v2742 = vadd.f32 0.0, %v2741
      %v2743 = vpop.f32.mrb[0].mxu0
      %v2744 = vpop.f32.mrb[0].mxu0
      %v2745 = vadd.f32 0.0, %v2744
      %v2746 = vpop.f32.mrb[0].mxu0
      %2747 = vmatprep.mubr.bf16.mxu0 0
      %2748 = vmatmul.mubr.bf16.gmra.mrb[0].mxu0 %v2669
      %v2749 = vpop.f32.mrb[0].mxu0
      %v2750 = vadd.f32 0.0, %v2749
      %v2751 = vpop.f32.mrb[0].mxu0
      %v2752 = vpop.f32.mrb[0].mxu0
      %v2753 = vadd.f32 0.0, %v2752
      %v2754 = vpop.f32.mrb[0].mxu0
      %2755 = vmatprep.mubr.bf16.mxu0 0
      %2756 = vmatmul.mubr.bf16.gmra.mrb[0].mxu0 %v2672
      %v2757 = vpop.f32.mrb[0].mxu0
      %v2758 = vadd.f32 0.0, %v2757
      %v2759 = vpop.f32.mrb[0].mxu0
      %v2760 = vpop.f32.mrb[0].mxu0
      %v2761 = vadd.f32 0.0, %v2760
      %v2762 = vpop.f32.mrb[0].mxu0
      %2763 = vmatprep.mubr.bf16.mxu0 0
      %2764 = vmatmul.mubr.bf16.gmra.mrb[0].mxu0 %v2675
      %v2765 = vpop.f32.mrb[0].mxu0
      %v2766 = vadd.f32 0.0, %v2765
      %v2767 = vpop.f32.mrb[0].mxu0
      %v2768 = vpop.f32.mrb[0].mxu0
      %v2769 = vadd.f32 0.0, %v2768
      %v2770 = vpop.f32.mrb[0].mxu0
      %2771 = vmatprep.mubr.bf16.mxu0 0
      %2772 = vmatmul.mubr.bf16.gmra.mrb[0].mxu0 %v2678
      %v2773 = vpop.f32.mrb[0].mxu0
      %v2774 = vadd.f32 0.0, %v2773
      %v2775 = vpop.f32.mrb[0].mxu0
      %v2776 = vpop.f32.mrb[0].mxu0
      %v2777 = vadd.f32 0.0, %v2776
      %v2778 = vpop.f32.mrb[0].mxu0
      %2779 = vmatprep.mubr.bf16.mxu0 0
      %2780 = vmatmul.mubr.bf16.gmra.mrb[0].mxu0 %v2681
      %v2781 = vpop.f32.mrb[0].mxu0
      %v2782 = vadd.f32 0.0, %v2781
      %v2783 = vpop.f32.mrb[0].mxu0
      %v2784 = vpop.f32.mrb[0].mxu0
      %v2785 = vadd.f32 0.0, %v2784
      %v2786 = vpop.f32.mrb[0].mxu0
      %2787 = vmatprep.mubr.bf16.mxu0 0
      %2788 = vmatmul.mubr.bf16.gmra.mrb[0].mxu0 %v2684
      %v2789 = vpop.f32.mrb[0].mxu0
      %v2790 = vadd.f32 0.0, %v2789
      %v2791 = vpop.f32.mrb[0].mxu0
      %v2792 = vpop.f32.mrb[0].mxu0
      %v2793 = vpop.f32.mrb[0].mxu0
      %2794 = vdwg.mxu0
      %v2795 = vmul.f32 %v2742, 0.4082483
      %v2796 = vmul.f32 %v2745, 0.4082483
      %v2797 = vmul.f32 %v2750, 0.4082483
      %v2798 = vmul.f32 %v2753, 0.4082483
      %v2799 = vmul.f32 %v2758, 0.4082483
      %v2800 = vmul.f32 %v2761, 0.4082483
      %v2801 = vmul.f32 %v2766, 0.4082483
      %v2802 = vmul.f32 %v2769, 0.4082483
      %v2803 = vmul.f32 %v2774, 0.4082483
      %v2804 = vmul.f32 %v2777, 0.4082483
      %v2805 = vmul.f32 %v2782, 0.4082483
      %v2806 = vmul.f32 %v2785, 0.4082483
      %v2807 = vmul.f32 %v2790, 0.4082483
      %v2808 = vsel %vm813, %v2795, -1e+30
      %v2809 = vsel %vm813, %v2796, -1e+30
      %v2810 = vsel %vm813, %v2797, -1e+30
      %v2811 = vsel %vm813, %v2798, -1e+30
      %v2812 = vsel %vm813, %v2799, -1e+30
      %v2813 = vsel %vm813, %v2800, -1e+30
      %v2814 = vsel %vm813, %v2801, -1e+30
      %v2815 = vsel %vm813, %v2802, -1e+30
      %v2816 = vsel %vm813, %v2803, -1e+30
      %v2817 = vsel %vm813, %v2804, -1e+30
      %v2818 = vsel %vm813, %v2805, -1e+30
      %v2819 = vsel %vm813, %v2806, -1e+30
      %v2820 = vsel %vm813, %v2807, -1e+30
      %v2821 = vsel %vm1031, %v2808, -inf
      %2822 = vmax.xlane.f32.xlu0 %v2821
      %v2823 = vpop.xlane.xlu0 %2822
      %v2824 = vsel %vm1031, %v2809, -inf
      %2825 = vmax.xlane.f32.xlu0 %v2824
      %v2826 = vpop.xlane.xlu0 %2825
      %v2827 = vsel %vm1031, %v2810, -inf
      %2828 = vmax.xlane.f32.xlu0 %v2827
      %v2829 = vpop.xlane.xlu0 %2828
      %v2830 = vsel %vm1031, %v2811, -inf
      %2831 = vmax.xlane.f32.xlu0 %v2830
      %v2832 = vpop.xlane.xlu0 %2831
      %v2833 = vsel %vm1031, %v2812, -inf
      %2834 = vmax.xlane.f32.xlu0 %v2833
      %v2835 = vpop.xlane.xlu0 %2834
      %v2836 = vsel %vm1031, %v2813, -inf
      %2837 = vmax.xlane.f32.xlu0 %v2836
      %v2838 = vpop.xlane.xlu0 %2837
      %v2839 = vsel %vm1031, %v2814, -inf
      %2840 = vmax.xlane.f32.xlu0 %v2839
      %v2841 = vpop.xlane.xlu0 %2840
      %v2842 = vsel %vm1031, %v2815, -inf
      %2843 = vmax.xlane.f32.xlu0 %v2842
      %v2844 = vpop.xlane.xlu0 %2843
      %v2845 = vsel %vm1031, %v2816, -inf
      %2846 = vmax.xlane.f32.xlu0 %v2845
      %v2847 = vpop.xlane.xlu0 %2846
      %v2848 = vsel %vm1031, %v2817, -inf
      %2849 = vmax.xlane.f32.xlu0 %v2848
      %v2850 = vpop.xlane.xlu0 %2849
      %v2851 = vsel %vm1031, %v2818, -inf
      %2852 = vmax.xlane.f32.xlu0 %v2851
      %v2853 = vpop.xlane.xlu0 %2852
      %v2854 = vsel %vm1031, %v2819, -inf
      %2855 = vmax.xlane.f32.xlu0 %v2854
      %v2856 = vpop.xlane.xlu0 %2855
      %v2857 = vsel %vm1031, %v2820, -inf
      %2858 = vmax.xlane.f32.xlu0 %v2857
      %v2859 = vpop.xlane.xlu0 %2858
      %v2860 = vsub.f32 %v2808, %v2823
      %v2861 = vsub.f32 %v2809, %v2826
      %v2862 = vsub.f32 %v2810, %v2829
      %v2863 = vsub.f32 %v2811, %v2832
      %v2864 = vsub.f32 %v2812, %v2835
      %v2865 = vsub.f32 %v2813, %v2838
      %v2866 = vsub.f32 %v2814, %v2841
      %v2867 = vsub.f32 %v2815, %v2844
      %v2868 = vsub.f32 %v2816, %v2847
      %v2869 = vsub.f32 %v2817, %v2850
      %v2870 = vsub.f32 %v2818, %v2853
      %v2871 = vsub.f32 %v2819, %v2856
      %v2872 = vsub.f32 %v2820, %v2859
      %v2873 = vmul.f32 %v2860, 1.442695
      %v2874 = vpow.pop %v2873
      %v2875 = vmul.f32 %v2861, 1.442695
      %v2876 = vpow.pop %v2875
      %v2877 = vmul.f32 %v2862, 1.442695
      %v2878 = vpow.pop %v2877
      %v2879 = vmul.f32 %v2863, 1.442695
      %v2880 = vpow.pop %v2879
      %v2881 = vmul.f32 %v2864, 1.442695
      %v2882 = vpow.pop %v2881
      %v2883 = vmul.f32 %v2865, 1.442695
      %v2884 = vpow.pop %v2883
      %v2885 = vmul.f32 %v2866, 1.442695
      %v2886 = vpow.pop %v2885
      %v2887 = vmul.f32 %v2867, 1.442695
      %v2888 = vpow.pop %v2887
      %v2889 = vmul.f32 %v2868, 1.442695
      %v2890 = vpow.pop %v2889
      %v2891 = vmul.f32 %v2869, 1.442695
      %v2892 = vpow.pop %v2891
      %v2893 = vmul.f32 %v2870, 1.442695
      %v2894 = vpow.pop %v2893
      %v2895 = vmul.f32 %v2871, 1.442695
      %v2896 = vpow.pop %v2895
      %v2897 = vmul.f32 %v2872, 1.442695
      %v2898 = vpow.pop %v2897
      %v2899 = vsel %vm1031, %v2874, 0.0
      %2900 = vadd.xlane.f32.xlu0 %v2899
      %v2901 = vpop.xlane.xlu0 %2900
      %v2902 = vsel %vm1031, %v2876, 0.0
      %2903 = vadd.xlane.f32.xlu0 %v2902
      %v2904 = vpop.xlane.xlu0 %2903
      %v2905 = vsel %vm1031, %v2878, 0.0
      %2906 = vadd.xlane.f32.xlu0 %v2905
      %v2907 = vpop.xlane.xlu0 %2906
      %v2908 = vsel %vm1031, %v2880, 0.0
      %2909 = vadd.xlane.f32.xlu0 %v2908
      %v2910 = vpop.xlane.xlu0 %2909
      %v2911 = vsel %vm1031, %v2882, 0.0
      %2912 = vadd.xlane.f32.xlu0 %v2911
      %v2913 = vpop.xlane.xlu0 %2912
      %v2914 = vsel %vm1031, %v2884, 0.0
      %2915 = vadd.xlane.f32.xlu0 %v2914
      %v2916 = vpop.xlane.xlu0 %2915
      %v2917 = vsel %vm1031, %v2886, 0.0
      %2918 = vadd.xlane.f32.xlu0 %v2917
      %v2919 = vpop.xlane.xlu0 %2918
      %v2920 = vsel %vm1031, %v2888, 0.0
      %2921 = vadd.xlane.f32.xlu0 %v2920
      %v2922 = vpop.xlane.xlu0 %2921
      %v2923 = vsel %vm1031, %v2890, 0.0
      %2924 = vadd.xlane.f32.xlu0 %v2923
      %v2925 = vpop.xlane.xlu0 %2924
      %v2926 = vsel %vm1031, %v2892, 0.0
      %2927 = vadd.xlane.f32.xlu0 %v2926
      %v2928 = vpop.xlane.xlu0 %2927
      %v2929 = vsel %vm1031, %v2894, 0.0
      %2930 = vadd.xlane.f32.xlu0 %v2929
      %v2931 = vpop.xlane.xlu0 %2930
      %v2932 = vsel %vm1031, %v2896, 0.0
      %2933 = vadd.xlane.f32.xlu0 %v2932
      %v2934 = vpop.xlane.xlu0 %2933
      %v2935 = vsel %vm1031, %v2898, 0.0
      %2936 = vadd.xlane.f32.xlu0 %v2935
      %v2937 = vpop.xlane.xlu0 %2936
      %v2938 = vrcp.pop %v2901
      %v2939 = vrcp.pop %v2904
      %v2940 = vrcp.pop %v2907
      %v2941 = vrcp.pop %v2910
      %v2942 = vrcp.pop %v2913
      %v2943 = vrcp.pop %v2916
      %v2944 = vrcp.pop %v2919
      %v2945 = vrcp.pop %v2922
      %v2946 = vrcp.pop %v2925
      %v2947 = vrcp.pop %v2928
      %v2948 = vrcp.pop %v2931
      %v2949 = vrcp.pop %v2934
      %v2950 = vrcp.pop %v2937
      %v2951 = vmul.f32 %v2874, %v2938
      %v2952 = vmul.f32 %v2876, %v2939
      %v2953 = vmul.f32 %v2878, %v2940
      %v2954 = vmul.f32 %v2880, %v2941
      %v2955 = vmul.f32 %v2882, %v2942
      %v2956 = vmul.f32 %v2884, %v2943
      %v2957 = vmul.f32 %v2886, %v2944
      %v2958 = vmul.f32 %v2888, %v2945
      %v2959 = vmul.f32 %v2890, %v2946
      %v2960 = vmul.f32 %v2892, %v2947
      %v2961 = vmul.f32 %v2894, %v2948
      %v2962 = vmul.f32 %v2896, %v2949
      %v2963 = vmul.f32 %v2898, %v2950
      %v2964 = vpack.c.bf16 %v2952, %v2951
      %v2965 = vpack.c.bf16 %v2954, %v2953
      %v2966 = vpack.c.bf16 %v2956, %v2955
      %v2967 = vpack.c.bf16 %v2958, %v2957
      %v2968 = vpack.c.bf16 %v2960, %v2959
      %v2969 = vpack.c.bf16 %v2962, %v2961
      %v2970 = vpack.c.bf16 %v2963, %v2963
      %2971 = vrot.lane.b32.xlu0 %v2630, 62
      %v2972 = vpop.permute.xlu0 %2971
      %2973 = vrot.lane.b32.xlu0 %v2631, 62
      %v2974 = vpop.permute.xlu0 %2973
      %2975 = vrot.lane.b32.xlu0 %v2632, 62
      %v2976 = vpop.permute.xlu0 %2975
      %2977 = vrot.lane.b32.xlu0 %v2633, 62
      %v2978 = vpop.permute.xlu0 %2977
      %2979 = vrot.lane.b32.xlu0 %v2634, 62
      %v2980 = vpop.permute.xlu0 %2979
      %2981 = vrot.lane.b32.xlu0 %v2635, 62
      %v2982 = vpop.permute.xlu0 %2981
      %2983 = vrot.lane.b32.xlu0 %v2636, 62
      %v2984 = vpop.permute.xlu0 %2983
      %v2992 = vsel %vm1031, %v2964, 0
      %v2995 = vsel %vm1031, %v2965, 0
      %v2998 = vsel %vm1031, %v2966, 0
      %v3001 = vsel %vm1031, %v2967, 0
      %v3004 = vsel %vm1031, %v2968, 0
      %v3007 = vsel %vm1031, %v2969, 0
      %v3010 = vsel %vm1031, %v2970, 0
      %v3013 = vsel %vm652, %v2984, 0
      %3015 = vmatprep.subr.bf16.mxu0 0
      %3016 = vmatpush1.bf16.msra.mxu0 %v2972
      %3017 = vmatprep.subr.bf16.mxu0 0
      %3018 = vmatpush1.bf16.msra.mxu0 %v2974
      %3019 = vmatprep.subr.bf16.mxu0 0
      %3020 = vmatpush1.bf16.msra.mxu0 %v2976
      %3021 = vmatprep.subr.bf16.mxu0 0
      %3022 = vmatpush1.bf16.msra.mxu0 %v2978
      %3023 = vmatprep.subr.bf16.mxu0 0
      %3024 = vmatpush1.bf16.msra.mxu0 %v2980
      %3025 = vmatprep.subr.bf16.mxu0 0
      %3026 = vmatpush1.bf16.msra.mxu0 %v2982
      %3027 = vmatprep.subr.bf16.mxu0 0
      %3028 = vmatpush1.bf16.msra.mxu0 %v3013
      %3029 = vmatprep.subr.bf16.mxu0 0
      %3030 = vmatpush1.bf16.msra.mxu0 0
      %3031 = vmatprep.subr.bf16.mxu0 0
      %3032 = vmatpush1.bf16.msra.mxu0 0
      %3033 = vmatprep.subr.bf16.mxu0 0
      %3034 = vmatpush1.bf16.msra.mxu0 0
      %3035 = vmatprep.subr.bf16.mxu0 0
      %3036 = vmatpush1.bf16.msra.mxu0 0
      %3037 = vmatprep.subr.bf16.mxu0 0
      %3038 = vmatpush1.bf16.msra.mxu0 0
      %3039 = vmatprep.subr.bf16.mxu0 0
      %3040 = vmatpush1.bf16.msra.mxu0 0
      %3041 = vmatprep.subr.bf16.mxu0 0
      %3042 = vmatpush1.bf16.msra.mxu0 0
      %3043 = vmatprep.subr.bf16.mxu0 0
      %3044 = vmatpush1.bf16.msra.mxu0 0
      %3045 = vmatprep.subr.bf16.mxu0 0
      %3046 = vmatpush1.bf16.msra.mxu0 0
      %3047 = vmatprep.mubr.bf16.mxu0 0
      %3048 = vmatmul.mubr.bf16.gmra.mrb[0].mxu0 %v2992
      %v3049 = vpop.f32.mrb[0].mxu0
      %v3050 = vadd.f32 0.0, %v3049
      %v3051 = vpop.f32.mrb[0].mxu0
      %v3052 = vpop.f32.mrb[0].mxu0
      %v3053 = vadd.f32 0.0, %v3052
      %v3054 = vpop.f32.mrb[0].mxu0
      %3055 = vmatprep.mubr.bf16.mxu0 0
      %3056 = vmatmul.mubr.bf16.gmra.mrb[0].mxu0 %v2995
      %v3057 = vpop.f32.mrb[0].mxu0
      %v3058 = vadd.f32 0.0, %v3057
      %v3059 = vpop.f32.mrb[0].mxu0
      %v3060 = vpop.f32.mrb[0].mxu0
      %v3061 = vadd.f32 0.0, %v3060
      %v3062 = vpop.f32.mrb[0].mxu0
      %3063 = vmatprep.mubr.bf16.mxu0 0
      %3064 = vmatmul.mubr.bf16.gmra.mrb[0].mxu0 %v2998
      %v3065 = vpop.f32.mrb[0].mxu0
      %v3066 = vadd.f32 0.0, %v3065
      %v3067 = vpop.f32.mrb[0].mxu0
      %v3068 = vpop.f32.mrb[0].mxu0
      %v3069 = vadd.f32 0.0, %v3068
      %v3070 = vpop.f32.mrb[0].mxu0
      %3071 = vmatprep.mubr.bf16.mxu0 0
      %3072 = vmatmul.mubr.bf16.gmra.mrb[0].mxu0 %v3001
      %v3073 = vpop.f32.mrb[0].mxu0
      %v3074 = vadd.f32 0.0, %v3073
      %v3075 = vpop.f32.mrb[0].mxu0
      %v3076 = vpop.f32.mrb[0].mxu0
      %v3077 = vadd.f32 0.0, %v3076
      %v3078 = vpop.f32.mrb[0].mxu0
      %3079 = vmatprep.mubr.bf16.mxu0 0
      %3080 = vmatmul.mubr.bf16.gmra.mrb[0].mxu0 %v3004
      %v3081 = vpop.f32.mrb[0].mxu0
      %v3082 = vadd.f32 0.0, %v3081
      %v3083 = vpop.f32.mrb[0].mxu0
      %v3084 = vpop.f32.mrb[0].mxu0
      %v3085 = vadd.f32 0.0, %v3084
      %v3086 = vpop.f32.mrb[0].mxu0
      %3087 = vmatprep.mubr.bf16.mxu0 0
      %3088 = vmatmul.mubr.bf16.gmra.mrb[0].mxu0 %v3007
      %v3089 = vpop.f32.mrb[0].mxu0
      %v3090 = vadd.f32 0.0, %v3089
      %v3091 = vpop.f32.mrb[0].mxu0
      %v3092 = vpop.f32.mrb[0].mxu0
      %v3093 = vadd.f32 0.0, %v3092
      %v3094 = vpop.f32.mrb[0].mxu0
      %3095 = vmatprep.mubr.bf16.mxu0 0
      %3096 = vmatmul.mubr.bf16.gmra.mrb[0].mxu0 %v3010
      %v3097 = vpop.f32.mrb[0].mxu0
      %v3098 = vadd.f32 0.0, %v3097
      %v3099 = vpop.f32.mrb[0].mxu0
      %v3100 = vpop.f32.mrb[0].mxu0
      %v3101 = vpop.f32.mrb[0].mxu0
      %3102 = vdwg.mxu0
      %v3103 = vpack.c.bf16 %v3053, %v3050
      %v3104 = vpack.c.bf16 %v3061, %v3058
      %v3105 = vpack.c.bf16 %v3069, %v3066
      %v3106 = vpack.c.bf16 %v3077, %v3074
      %v3107 = vpack.c.bf16 %v3085, %v3082
      %v3108 = vpack.c.bf16 %v3093, %v3090
      %v3109 = vpack.c.bf16 %v3098, %v3098
      %v3117 = vunpack.c.l.b16 %v3103
      %v3118 = vunpack.c.h.b16 %v3103
      %v3119 = vunpack.c.l.b16 %v3104
      %v3120 = vunpack.c.h.b16 %v3104
      %v3121 = vunpack.c.l.b16 %v3105
      %v3122 = vunpack.c.h.b16 %v3105
      %v3123 = vunpack.c.l.b16 %v3106
      %v3124 = vunpack.c.h.b16 %v3106
      %v3125 = vunpack.c.l.b16 %v3107
      %v3126 = vunpack.c.h.b16 %v3107
      %v3127 = vunpack.c.l.b16 %v3108
      %v3128 = vunpack.c.h.b16 %v3108
      %v3129 = vunpack.c.l.b16 %v3109
      %v3130 = vpack.c.b16 %v3117, %v3117
      %v3131 = vpack.c.b16 %v3118, %v3118
      %v3132 = vpack.c.b16 %v3119, %v3119
      %v3133 = vpack.c.b16 %v3120, %v3120
      %v3134 = vpack.c.b16 %v3121, %v3121
      %v3135 = vpack.c.b16 %v3122, %v3122
      %v3136 = vpack.c.b16 %v3123, %v3123
      %v3137 = vpack.c.b16 %v3124, %v3124
      %v3138 = vpack.c.b16 %v3125, %v3125
      %v3139 = vpack.c.b16 %v3126, %v3126
      %v3140 = vpack.c.b16 %v3127, %v3127
      %v3141 = vpack.c.b16 %v3128, %v3128
      %v3142 = vpack.c.b16 %v3129, %v3129
      %3143 = vrot.lane.b32.xlu0 %v3130, 18
      %v3144 = vpop.permute.xlu0 %3143
      %3145 = vrot.lane.b32.xlu0 %v3131, 18
      %v3146 = vpop.permute.xlu0 %3145
      %3147 = vrot.lane.b32.xlu0 %v3132, 18
      %v3148 = vpop.permute.xlu0 %3147
      %3149 = vrot.lane.b32.xlu0 %v3133, 18
      %v3150 = vpop.permute.xlu0 %3149
      %3151 = vrot.lane.b32.xlu0 %v3134, 18
      %v3152 = vpop.permute.xlu0 %3151
      %3153 = vrot.lane.b32.xlu0 %v3135, 18
      %v3154 = vpop.permute.xlu0 %3153
      %3155 = vrot.lane.b32.xlu0 %v3136, 18
      %v3156 = vpop.permute.xlu0 %3155
      %3157 = vrot.lane.b32.xlu0 %v3137, 18
      %v3158 = vpop.permute.xlu0 %3157
      %3159 = vrot.lane.b32.xlu0 %v3138, 18
      %v3160 = vpop.permute.xlu0 %3159
      %3161 = vrot.lane.b32.xlu0 %v3139, 18
      %v3162 = vpop.permute.xlu0 %3161
      %3163 = vrot.lane.b32.xlu0 %v3140, 18
      %v3164 = vpop.permute.xlu0 %3163
      %3165 = vrot.lane.b32.xlu0 %v3141, 18
      %v3166 = vpop.permute.xlu0 %3165
      %3167 = vrot.lane.b32.xlu0 %v3142, 18
      %v3168 = vpop.permute.xlu0 %3167
      %vm3182 = vcmask 191632
      %3183 = vst.msk [vmem:[#allocation3] sm:$0xf] %vm3182, %v3144
      %3184 = vst.msk [vmem:[#allocation3 + $0x4] sm:$0xf] %vm3182, %v3146
      %3185 = vst.msk [vmem:[#allocation3 + $0x8] sm:$0xf] %vm3182, %v3148
      %3186 = vst.msk [vmem:[#allocation3 + $0xc] sm:$0xf] %vm3182, %v3150
      %3187 = vst.msk [vmem:[#allocation3 + $0x10] sm:$0xf] %vm3182, %v3152
      %3188 = vst.msk [vmem:[#allocation3 + $0x14] sm:$0xf] %vm3182, %v3154
      %3189 = vst.msk [vmem:[#allocation3 + $0x18] sm:$0xf] %vm3182, %v3156
      %3190 = vst.msk [vmem:[#allocation3 + $0x1c] sm:$0xf] %vm3182, %v3158
      %3191 = vst.msk [vmem:[#allocation3 + $0x20] sm:$0xf] %vm3182, %v3160
      %3192 = vst.msk [vmem:[#allocation3 + $0x24] sm:$0xf] %vm3182, %v3162
      %3193 = vst.msk [vmem:[#allocation3 + $0x28] sm:$0xf] %vm3182, %v3164
      %3194 = vst.msk [vmem:[#allocation3 + $0x2c] sm:$0xf] %vm3182, %v3166
      %3195 = vst.msk [vmem:[#allocation3 + $0x30] sm:$0xf] %vm3182, %v3168
      %v3196 = vld [vmem:[#allocation3] sm:$0xf]
      %v3197 = vld [vmem:[#allocation3 + $0x4] sm:$0xf]
      %v3198 = vld [vmem:[#allocation3 + $0x8] sm:$0xf]
      %v3199 = vld [vmem:[#allocation3 + $0xc] sm:$0xf]
      %v3200 = vld [vmem:[#allocation3 + $0x10] sm:$0xf]
      %v3201 = vld [vmem:[#allocation3 + $0x14] sm:$0xf]
      %v3202 = vld [vmem:[#allocation3 + $0x18] sm:$0xf]
      %v3203 = vld [vmem:[#allocation3 + $0x1c] sm:$0xf]
      %v3204 = vld [vmem:[#allocation3 + $0x20] sm:$0xf]
      %v3205 = vld [vmem:[#allocation3 + $0x24] sm:$0xf]
      %v3206 = vld [vmem:[#allocation3 + $0x28] sm:$0xf]
      %v3207 = vld [vmem:[#allocation3 + $0x2c] sm:$0xf]
      %v3208 = vld [vmem:[#allocation3 + $0x30] sm:$0xf]
      %v3209 = vld [vmem:[%s4] sm:$0xf]
      %v3210 = vld [vmem:[%s4 + $0x4] sm:$0xf]
      %v3211 = vld [vmem:[%s4 + $0x8] sm:$0xf]
      %v3225 = vunpack.c.l.b16 %v3196
      %v3226 = vunpack.c.l.b16 %v3197
      %v3227 = vunpack.c.l.b16 %v3198
      %v3228 = vunpack.c.l.b16 %v3199
      %v3229 = vunpack.c.l.b16 %v3200
      %v3230 = vunpack.c.l.b16 %v3201
      %v3231 = vunpack.c.l.b16 %v3202
      %v3232 = vunpack.c.l.b16 %v3203
      %v3233 = vunpack.c.l.b16 %v3204
      %v3234 = vunpack.c.l.b16 %v3205
      %v3235 = vunpack.c.l.b16 %v3206
      %v3236 = vunpack.c.l.b16 %v3207
      %v3237 = vunpack.c.l.b16 %v3208
      %v3238 = vpack.c.b16 %v3226, %v3225
      %v3239 = vpack.c.b16 %v3228, %v3227
      %v3240 = vpack.c.b16 %v3230, %v3229
      %v3241 = vpack.c.b16 %v3232, %v3231
      %v3242 = vpack.c.b16 %v3234, %v3233
      %v3243 = vpack.c.b16 %v3236, %v3235
      %v3244 = vpack.c.b16 %v3237, %v3237
      %v3248 = vunpack.c.l.b16 %v3209
      %v3249 = vunpack.c.l.b16 %v3210
      %v3250 = vunpack.c.l.b16 %v3211
      %v3251 = vpack.c.b16 %v3249, %v3248
      %v3252 = vpack.c.b16 %v3250, %v3250
      %v3255 = vsel %vm403, %v3238, 0
      %v3258 = vsel %vm403, %v3239, 0
      %v3261 = vsel %vm403, %v3240, 0
      %v3264 = vsel %vm403, %v3241, 0
      %v3267 = vsel %vm403, %v3242, 0
      %v3270 = vsel %vm403, %v3243, 0
      %v3273 = vsel %vm403, %v3244, 0
      %v3276 = vsel %vm652, %v3252, 0
      %3278 = vmatprep.subr.bf16.mxu0 0
      %3279 = vmatpush1.bf16.msra.mxu0 %v3251
      %3280 = vmatprep.subr.bf16.mxu0 0
      %3281 = vmatpush1.bf16.msra.mxu0 %v3276
      %3282 = vmatprep.subr.bf16.mxu0 0
      %3283 = vmatpush1.bf16.msra.mxu0 0
      %3284 = vmatprep.subr.bf16.mxu0 0
      %3285 = vmatpush1.bf16.msra.mxu0 0
      %3286 = vmatprep.subr.bf16.mxu0 0
      %3287 = vmatpush1.bf16.msra.mxu0 0
      %3288 = vmatprep.subr.bf16.mxu0 0
      %3289 = vmatpush1.bf16.msra.mxu0 0
      %3290 = vmatprep.subr.bf16.mxu0 0
      %3291 = vmatpush1.bf16.msra.mxu0 0
      %3292 = vmatprep.subr.bf16.mxu0 0
      %3293 = vmatpush1.bf16.msra.mxu0 0
      %3294 = vmatprep.subr.bf16.mxu0 0
      %3295 = vmatpush1.bf16.msra.mxu0 0
      %3296 = vmatprep.subr.bf16.mxu0 0
      %3297 = vmatpush1.bf16.msra.mxu0 0
      %3298 = vmatprep.subr.bf16.mxu0 0
      %3299 = vmatpush1.bf16.msra.mxu0 0
      %3300 = vmatprep.subr.bf16.mxu0 0
      %3301 = vmatpush1.bf16.msra.mxu0 0
      %3302 = vmatprep.subr.bf16.mxu0 0
      %3303 = vmatpush1.bf16.msra.mxu0 0
      %3304 = vmatprep.subr.bf16.mxu0 0
      %3305 = vmatpush1.bf16.msra.mxu0 0
      %3306 = vmatprep.subr.bf16.mxu0 0
      %3307 = vmatpush1.bf16.msra.mxu0 0
      %3308 = vmatprep.subr.bf16.mxu0 0
      %3309 = vmatpush1.bf16.msra.mxu0 0
      %3310 = vmatprep.mubr.bf16.mxu0 0
      %3311 = vmatmul.mubr.bf16.gmra.mrb[0].mxu0 %v3255
      %v3312 = vpop.f32.mrb[0].mxu0
      %v3313 = vadd.f32 0.0, %v3312
      %v3314 = vpop.f32.mrb[0].mxu0
      %v3315 = vpop.f32.mrb[0].mxu0
      %v3316 = vadd.f32 0.0, %v3315
      %v3317 = vpop.f32.mrb[0].mxu0
      %3318 = vmatprep.mubr.bf16.mxu0 0
      %3319 = vmatmul.mubr.bf16.gmra.mrb[0].mxu0 %v3258
      %v3320 = vpop.f32.mrb[0].mxu0
      %v3321 = vadd.f32 0.0, %v3320
      %v3322 = vpop.f32.mrb[0].mxu0
      %v3323 = vpop.f32.mrb[0].mxu0
      %v3324 = vadd.f32 0.0, %v3323
      %v3325 = vpop.f32.mrb[0].mxu0
      %3326 = vmatprep.mubr.bf16.mxu0 0
      %3327 = vmatmul.mubr.bf16.gmra.mrb[0].mxu0 %v3261
      %v3328 = vpop.f32.mrb[0].mxu0
      %v3329 = vadd.f32 0.0, %v3328
      %v3330 = vpop.f32.mrb[0].mxu0
      %v3331 = vpop.f32.mrb[0].mxu0
      %v3332 = vadd.f32 0.0, %v3331
      %v3333 = vpop.f32.mrb[0].mxu0
      %3334 = vmatprep.mubr.bf16.mxu0 0
      %3335 = vmatmul.mubr.bf16.gmra.mrb[0].mxu0 %v3264
      %v3336 = vpop.f32.mrb[0].mxu0
      %v3337 = vadd.f32 0.0, %v3336
      %v3338 = vpop.f32.mrb[0].mxu0
      %v3339 = vpop.f32.mrb[0].mxu0
      %v3340 = vadd.f32 0.0, %v3339
      %v3341 = vpop.f32.mrb[0].mxu0
      %3342 = vmatprep.mubr.bf16.mxu0 0
      %3343 = vmatmul.mubr.bf16.gmra.mrb[0].mxu0 %v3267
      %v3344 = vpop.f32.mrb[0].mxu0
      %v3345 = vadd.f32 0.0, %v3344
      %v3346 = vpop.f32.mrb[0].mxu0
      %v3347 = vpop.f32.mrb[0].mxu0
      %v3348 = vadd.f32 0.0, %v3347
      %v3349 = vpop.f32.mrb[0].mxu0
      %3350 = vmatprep.mubr.bf16.mxu0 0
      %3351 = vmatmul.mubr.bf16.gmra.mrb[0].mxu0 %v3270
      %v3352 = vpop.f32.mrb[0].mxu0
      %v3353 = vadd.f32 0.0, %v3352
      %v3354 = vpop.f32.mrb[0].mxu0
      %v3355 = vpop.f32.mrb[0].mxu0
      %v3356 = vadd.f32 0.0, %v3355
      %v3357 = vpop.f32.mrb[0].mxu0
      %3358 = vmatprep.mubr.bf16.mxu0 0
      %3359 = vmatmul.mubr.bf16.gmra.mrb[0].mxu0 %v3273
      %v3360 = vpop.f32.mrb[0].mxu0
      %v3361 = vadd.f32 0.0, %v3360
      %v3362 = vpop.f32.mrb[0].mxu0
      %v3363 = vpop.f32.mrb[0].mxu0
      %v3364 = vpop.f32.mrb[0].mxu0
      %3365 = vdwg.mxu0
      %v3366 = vadd.f32 %v388, %v3313
      %v3367 = vadd.f32 %v389, %v3316
      %v3368 = vadd.f32 %v390, %v3321
      %v3369 = vadd.f32 %v391, %v3324
      %v3370 = vadd.f32 %v392, %v3329
      %v3371 = vadd.f32 %v393, %v3332
      %v3372 = vadd.f32 %v394, %v3337
      %v3373 = vadd.f32 %v395, %v3340
      %v3374 = vadd.f32 %v396, %v3345
      %v3375 = vadd.f32 %v397, %v3348
      %v3376 = vadd.f32 %v398, %v3353
      %v3377 = vadd.f32 %v399, %v3356
      %v3378 = vadd.f32 %v400, %v3361
      %v3379 = vld [vmem:[%s5] sm:$0x1]
      %v3380 = vld [vmem:[%s6] sm:$0x1]
      %v3381 = vsel %vm403, %v3366, 0.0
      %3382 = vadd.xlane.f32.xlu0 %v3381
      %v3383 = vpop.xlane.xlu0 %3382
      %v3384 = vsel %vm403, %v3367, 0.0
      %3385 = vadd.xlane.f32.xlu0 %v3384
      %v3386 = vpop.xlane.xlu0 %3385
      %v3387 = vsel %vm403, %v3368, 0.0
      %3388 = vadd.xlane.f32.xlu0 %v3387
      %v3389 = vpop.xlane.xlu0 %3388
      %v3390 = vsel %vm403, %v3369, 0.0
      %3391 = vadd.xlane.f32.xlu0 %v3390
      %v3392 = vpop.xlane.xlu0 %3391
      %v3393 = vsel %vm403, %v3370, 0.0
      %3394 = vadd.xlane.f32.xlu0 %v3393
      %v3395 = vpop.xlane.xlu0 %3394
      %v3396 = vsel %vm403, %v3371, 0.0
      %3397 = vadd.xlane.f32.xlu0 %v3396
      %v3398 = vpop.xlane.xlu0 %3397
      %v3399 = vsel %vm403, %v3372, 0.0
      %3400 = vadd.xlane.f32.xlu0 %v3399
      %v3401 = vpop.xlane.xlu0 %3400
      %v3402 = vsel %vm403, %v3373, 0.0
      %3403 = vadd.xlane.f32.xlu0 %v3402
      %v3404 = vpop.xlane.xlu0 %3403
      %v3405 = vsel %vm403, %v3374, 0.0
      %3406 = vadd.xlane.f32.xlu0 %v3405
      %v3407 = vpop.xlane.xlu0 %3406
      %v3408 = vsel %vm403, %v3375, 0.0
      %3409 = vadd.xlane.f32.xlu0 %v3408
      %v3410 = vpop.xlane.xlu0 %3409
      %v3411 = vsel %vm403, %v3376, 0.0
      %3412 = vadd.xlane.f32.xlu0 %v3411
      %v3413 = vpop.xlane.xlu0 %3412
      %v3414 = vsel %vm403, %v3377, 0.0
      %3415 = vadd.xlane.f32.xlu0 %v3414
      %v3416 = vpop.xlane.xlu0 %3415
      %v3417 = vsel %vm403, %v3378, 0.0
      %3418 = vadd.xlane.f32.xlu0 %v3417
      %v3419 = vpop.xlane.xlu0 %3418
      %v3420 = vmul.f32 %v3383, %v443
      %v3421 = vmul.f32 %v3386, %v443
      %v3422 = vmul.f32 %v3389, %v443
      %v3423 = vmul.f32 %v3392, %v443
      %v3424 = vmul.f32 %v3395, %v443
      %v3425 = vmul.f32 %v3398, %v443
      %v3426 = vmul.f32 %v3401, %v443
      %v3427 = vmul.f32 %v3404, %v443
      %v3428 = vmul.f32 %v3407, %v443
      %v3429 = vmul.f32 %v3410, %v443
      %v3430 = vmul.f32 %v3413, %v443
      %v3431 = vmul.f32 %v3416, %v443
      %v3432 = vmul.f32 %v3419, %v443
      %v3433 = vsub.f32 %v3366, %v3420
      %v3434 = vsub.f32 %v3367, %v3421
      %v3435 = vsub.f32 %v3368, %v3422
      %v3436 = vsub.f32 %v3369, %v3423
      %v3437 = vsub.f32 %v3370, %v3424
      %v3438 = vsub.f32 %v3371, %v3425
      %v3439 = vsub.f32 %v3372, %v3426
      %v3440 = vsub.f32 %v3373, %v3427
      %v3441 = vsub.f32 %v3374, %v3428
      %v3442 = vsub.f32 %v3375, %v3429
      %v3443 = vsub.f32 %v3376, %v3430
      %v3444 = vsub.f32 %v3377, %v3431
      %v3445 = vsub.f32 %v3378, %v3432
      %v3446 = vmul.f32 %v3433, %v3433
      %v3447 = vmul.f32 %v3434, %v3434
      %v3448 = vmul.f32 %v3435, %v3435
      %v3449 = vmul.f32 %v3436, %v3436
      %v3450 = vmul.f32 %v3437, %v3437
      %v3451 = vmul.f32 %v3438, %v3438
      %v3452 = vmul.f32 %v3439, %v3439
      %v3453 = vmul.f32 %v3440, %v3440
      %v3454 = vmul.f32 %v3441, %v3441
      %v3455 = vmul.f32 %v3442, %v3442
      %v3456 = vmul.f32 %v3443, %v3443
      %v3457 = vmul.f32 %v3444, %v3444
      %v3458 = vmul.f32 %v3445, %v3445
      %v3459 = vsel %vm403, %v3446, 0.0
      %3460 = vadd.xlane.f32.xlu0 %v3459
      %v3461 = vpop.xlane.xlu0 %3460
      %v3462 = vsel %vm403, %v3447, 0.0
      %3463 = vadd.xlane.f32.xlu0 %v3462
      %v3464 = vpop.xlane.xlu0 %3463
      %v3465 = vsel %vm403, %v3448, 0.0
      %3466 = vadd.xlane.f32.xlu0 %v3465
      %v3467 = vpop.xlane.xlu0 %3466
      %v3468 = vsel %vm403, %v3449, 0.0
      %3469 = vadd.xlane.f32.xlu0 %v3468
      %v3470 = vpop.xlane.xlu0 %3469
      %v3471 = vsel %vm403, %v3450, 0.0
      %3472 = vadd.xlane.f32.xlu0 %v3471
      %v3473 = vpop.xlane.xlu0 %3472
      %v3474 = vsel %vm403, %v3451, 0.0
      %3475 = vadd.xlane.f32.xlu0 %v3474
      %v3476 = vpop.xlane.xlu0 %3475
      %v3477 = vsel %vm403, %v3452, 0.0
      %3478 = vadd.xlane.f32.xlu0 %v3477
      %v3479 = vpop.xlane.xlu0 %3478
      %v3480 = vsel %vm403, %v3453, 0.0
      %3481 = vadd.xlane.f32.xlu0 %v3480
      %v3482 = vpop.xlane.xlu0 %3481
      %v3483 = vsel %vm403, %v3454, 0.0
      %3484 = vadd.xlane.f32.xlu0 %v3483
      %v3485 = vpop.xlane.xlu0 %3484
      %v3486 = vsel %vm403, %v3455, 0.0
      %3487 = vadd.xlane.f32.xlu0 %v3486
      %v3488 = vpop.xlane.xlu0 %3487
      %v3489 = vsel %vm403, %v3456, 0.0
      %3490 = vadd.xlane.f32.xlu0 %v3489
      %v3491 = vpop.xlane.xlu0 %3490
      %v3492 = vsel %vm403, %v3457, 0.0
      %3493 = vadd.xlane.f32.xlu0 %v3492
      %v3494 = vpop.xlane.xlu0 %3493
      %v3495 = vsel %vm403, %v3458, 0.0
      %3496 = vadd.xlane.f32.xlu0 %v3495
      %v3497 = vpop.xlane.xlu0 %3496
      %v3498 = vmul.f32 %v3461, %v443
      %v3499 = vmul.f32 %v3464, %v443
      %v3500 = vmul.f32 %v3467, %v443
      %v3501 = vmul.f32 %v3470, %v443
      %v3502 = vmul.f32 %v3473, %v443
      %v3503 = vmul.f32 %v3476, %v443
      %v3504 = vmul.f32 %v3479, %v443
      %v3505 = vmul.f32 %v3482, %v443
      %v3506 = vmul.f32 %v3485, %v443
      %v3507 = vmul.f32 %v3488, %v443
      %v3508 = vmul.f32 %v3491, %v443
      %v3509 = vmul.f32 %v3494, %v443
      %v3510 = vmul.f32 %v3497, %v443
      %v3511 = vadd.f32 %v3498, 1e-05
      %v3512 = vadd.f32 %v3499, 1e-05
      %v3513 = vadd.f32 %v3500, 1e-05
      %v3514 = vadd.f32 %v3501, 1e-05
      %v3515 = vadd.f32 %v3502, 1e-05
      %v3516 = vadd.f32 %v3503, 1e-05
      %v3517 = vadd.f32 %v3504, 1e-05
      %v3518 = vadd.f32 %v3505, 1e-05
      %v3519 = vadd.f32 %v3506, 1e-05
      %v3520 = vadd.f32 %v3507, 1e-05
      %v3521 = vadd.f32 %v3508, 1e-05
      %v3522 = vadd.f32 %v3509, 1e-05
      %v3523 = vadd.f32 %v3510, 1e-05
      %v3524 = vrsqrt.pop %v3511
      %v3525 = vrsqrt.pop %v3512
      %v3526 = vrsqrt.pop %v3513
      %v3527 = vrsqrt.pop %v3514
      %v3528 = vrsqrt.pop %v3515
      %v3529 = vrsqrt.pop %v3516
      %v3530 = vrsqrt.pop %v3517
      %v3531 = vrsqrt.pop %v3518
      %v3532 = vrsqrt.pop %v3519
      %v3533 = vrsqrt.pop %v3520
      %v3534 = vrsqrt.pop %v3521
      %v3535 = vrsqrt.pop %v3522
      %v3536 = vrsqrt.pop %v3523
      %v3537 = vmul.f32 %v3433, %v3524
      %v3538 = vmul.f32 %v3434, %v3525
      %v3539 = vmul.f32 %v3435, %v3526
      %v3540 = vmul.f32 %v3436, %v3527
      %v3541 = vmul.f32 %v3437, %v3528
      %v3542 = vmul.f32 %v3438, %v3529
      %v3543 = vmul.f32 %v3439, %v3530
      %v3544 = vmul.f32 %v3440, %v3531
      %v3545 = vmul.f32 %v3441, %v3532
      %v3546 = vmul.f32 %v3442, %v3533
      %v3547 = vmul.f32 %v3443, %v3534
      %v3548 = vmul.f32 %v3444, %v3535
      %v3549 = vmul.f32 %v3445, %v3536
      %v3551 = vlaneseq
      %v3552 = vshrl.u32 %v3551, 7
      %v3553 = vsub.s32 0, %v3552
      %v3554 = vrot.slane %v3379, %v3553
      %v3556 = vmul.f32 %v3537, %v3554
      %v3557 = vmul.f32 %v3538, %v3554
      %v3558 = vmul.f32 %v3539, %v3554
      %v3559 = vmul.f32 %v3540, %v3554
      %v3560 = vmul.f32 %v3541, %v3554
      %v3561 = vmul.f32 %v3542, %v3554
      %v3562 = vmul.f32 %v3543, %v3554
      %v3563 = vmul.f32 %v3544, %v3554
      %v3564 = vmul.f32 %v3545, %v3554
      %v3565 = vmul.f32 %v3546, %v3554
      %v3566 = vmul.f32 %v3547, %v3554
      %v3567 = vmul.f32 %v3548, %v3554
      %v3568 = vmul.f32 %v3549, %v3554
      %v3570 = vlaneseq
      %v3571 = vshrl.u32 %v3570, 7
      %v3572 = vsub.s32 0, %v3571
      %v3573 = vrot.slane %v3380, %v3572
      %v3575 = vadd.f32 %v3556, %v3573
      %v3576 = vadd.f32 %v3557, %v3573
      %v3577 = vadd.f32 %v3558, %v3573
      %v3578 = vadd.f32 %v3559, %v3573
      %v3579 = vadd.f32 %v3560, %v3573
      %v3580 = vadd.f32 %v3561, %v3573
      %v3581 = vadd.f32 %v3562, %v3573
      %v3582 = vadd.f32 %v3563, %v3573
      %v3583 = vadd.f32 %v3564, %v3573
      %v3584 = vadd.f32 %v3565, %v3573
      %v3585 = vadd.f32 %v3566, %v3573
      %v3586 = vadd.f32 %v3567, %v3573
      %v3587 = vadd.f32 %v3568, %v3573
      %v3588 = vpack.c.bf16 %v3576, %v3575
      %v3589 = vpack.c.bf16 %v3578, %v3577
      %v3590 = vpack.c.bf16 %v3580, %v3579
      %v3591 = vpack.c.bf16 %v3582, %v3581
      %v3592 = vpack.c.bf16 %v3584, %v3583
      %v3593 = vpack.c.bf16 %v3586, %v3585
      %v3594 = vpack.c.bf16 %v3587, %v3587
      %v3595 = vld [vmem:[%s7] sm:$0xf]
      %v3596 = vld [vmem:[%s7 + $0x4] sm:$0xf]
      %v3597 = vld [vmem:[%s7 + $0x8] sm:$0xf]
      %v3598 = vld [vmem:[%s8] sm:$0x1]
      %v3600 = vlaneseq
      %v3601 = vshrl.u32 %v3600, 7
      %v3602 = vsub.s32 0, %v3601
      %v3603 = vrot.slane %v3598, %v3602
      %v3608 = vunpack.c.l.b16 %v3595
      %v3609 = vunpack.c.l.b16 %v3596
      %v3610 = vunpack.c.l.b16 %v3597
      %v3611 = vpack.c.b16 %v3609, %v3608
      %v3612 = vpack.c.b16 %v3610, %v3610
      %v3615 = vsel %vm403, %v3588, 0
      %v3618 = vsel %vm403, %v3589, 0
      %v3621 = vsel %vm403, %v3590, 0
      %v3624 = vsel %vm403, %v3591, 0
      %v3627 = vsel %vm403, %v3592, 0
      %v3630 = vsel %vm403, %v3593, 0
      %v3633 = vsel %vm403, %v3594, 0
      %v3636 = vsel %vm652, %v3612, 0
      %3638 = vmatprep.subr.bf16.mxu0 0
      %3639 = vmatpush1.bf16.msra.mxu0 %v3611
      %3640 = vmatprep.subr.bf16.mxu0 0
      %3641 = vmatpush1.bf16.msra.mxu0 %v3636
      %3642 = vmatprep.subr.bf16.mxu0 0
      %3643 = vmatpush1.bf16.msra.mxu0 0
      %3644 = vmatprep.subr.bf16.mxu0 0
      %3645 = vmatpush1.bf16.msra.mxu0 0
      %3646 = vmatprep.subr.bf16.mxu0 0
      %3647 = vmatpush1.bf16.msra.mxu0 0
      %3648 = vmatprep.subr.bf16.mxu0 0
      %3649 = vmatpush1.bf16.msra.mxu0 0
      %3650 = vmatprep.subr.bf16.mxu0 0
      %3651 = vmatpush1.bf16.msra.mxu0 0
      %3652 = vmatprep.subr.bf16.mxu0 0
      %3653 = vmatpush1.bf16.msra.mxu0 0
      %3654 = vmatprep.subr.bf16.mxu0 0
      %3655 = vmatpush1.bf16.msra.mxu0 0
      %3656 = vmatprep.subr.bf16.mxu0 0
      %3657 = vmatpush1.bf16.msra.mxu0 0
      %3658 = vmatprep.subr.bf16.mxu0 0
      %3659 = vmatpush1.bf16.msra.mxu0 0
      %3660 = vmatprep.subr.bf16.mxu0 0
      %3661 = vmatpush1.bf16.msra.mxu0 0
      %3662 = vmatprep.subr.bf16.mxu0 0
      %3663 = vmatpush1.bf16.msra.mxu0 0
      %3664 = vmatprep.subr.bf16.mxu0 0
      %3665 = vmatpush1.bf16.msra.mxu0 0
      %3666 = vmatprep.subr.bf16.mxu0 0
      %3667 = vmatpush1.bf16.msra.mxu0 0
      %3668 = vmatprep.subr.bf16.mxu0 0
      %3669 = vmatpush1.bf16.msra.mxu0 0
      %3670 = vmatprep.mubr.bf16.mxu0 0
      %3671 = vmatmul.mubr.bf16.gmra.mrb[0].mxu0 %v3615
      %v3672 = vpop.f32.mrb[0].mxu0
      %v3673 = vadd.f32 %v3603, %v3672
      %v3674 = vpop.f32.mrb[0].mxu0
      %v3675 = vpop.f32.mrb[0].mxu0
      %v3676 = vadd.f32 %v3603, %v3675
      %v3677 = vpop.f32.mrb[0].mxu0
      %3678 = vmatprep.mubr.bf16.mxu0 0
      %3679 = vmatmul.mubr.bf16.gmra.mrb[0].mxu0 %v3618
      %v3680 = vpop.f32.mrb[0].mxu0
      %v3681 = vadd.f32 %v3603, %v3680
      %v3682 = vpop.f32.mrb[0].mxu0
      %v3683 = vpop.f32.mrb[0].mxu0
      %v3684 = vadd.f32 %v3603, %v3683
      %v3685 = vpop.f32.mrb[0].mxu0
      %3686 = vmatprep.mubr.bf16.mxu0 0
      %3687 = vmatmul.mubr.bf16.gmra.mrb[0].mxu0 %v3621
      %v3688 = vpop.f32.mrb[0].mxu0
      %v3689 = vadd.f32 %v3603, %v3688
      %v3690 = vpop.f32.mrb[0].mxu0
      %v3691 = vpop.f32.mrb[0].mxu0
      %v3692 = vadd.f32 %v3603, %v3691
      %v3693 = vpop.f32.mrb[0].mxu0
      %3694 = vmatprep.mubr.bf16.mxu0 0
      %3695 = vmatmul.mubr.bf16.gmra.mrb[0].mxu0 %v3624
      %v3696 = vpop.f32.mrb[0].mxu0
      %v3697 = vadd.f32 %v3603, %v3696
      %v3698 = vpop.f32.mrb[0].mxu0
      %v3699 = vpop.f32.mrb[0].mxu0
      %v3700 = vadd.f32 %v3603, %v3699
      %v3701 = vpop.f32.mrb[0].mxu0
      %3702 = vmatprep.mubr.bf16.mxu0 0
      %3703 = vmatmul.mubr.bf16.gmra.mrb[0].mxu0 %v3627
      %v3704 = vpop.f32.mrb[0].mxu0
      %v3705 = vadd.f32 %v3603, %v3704
      %v3706 = vpop.f32.mrb[0].mxu0
      %v3707 = vpop.f32.mrb[0].mxu0
      %v3708 = vadd.f32 %v3603, %v3707
      %v3709 = vpop.f32.mrb[0].mxu0
      %3710 = vmatprep.mubr.bf16.mxu0 0
      %3711 = vmatmul.mubr.bf16.gmra.mrb[0].mxu0 %v3630
      %v3712 = vpop.f32.mrb[0].mxu0
      %v3713 = vadd.f32 %v3603, %v3712
      %v3714 = vpop.f32.mrb[0].mxu0
      %v3715 = vpop.f32.mrb[0].mxu0
      %v3716 = vadd.f32 %v3603, %v3715
      %v3717 = vpop.f32.mrb[0].mxu0
      %3718 = vmatprep.mubr.bf16.mxu0 0
      %3719 = vmatmul.mubr.bf16.gmra.mrb[0].mxu0 %v3633
      %v3720 = vpop.f32.mrb[0].mxu0
      %v3721 = vadd.f32 %v3603, %v3720
      %v3722 = vpop.f32.mrb[0].mxu0
      %v3723 = vpop.f32.mrb[0].mxu0
      %v3724 = vpop.f32.mrb[0].mxu0
      %3725 = vdwg.mxu0
      %v3726 = vmul.f32 %v3673, 0.5
      %v3727 = vmul.f32 %v3676, 0.5
      %v3728 = vmul.f32 %v3681, 0.5
      %v3729 = vmul.f32 %v3684, 0.5
      %v3730 = vmul.f32 %v3689, 0.5
      %v3731 = vmul.f32 %v3692, 0.5
      %v3732 = vmul.f32 %v3697, 0.5
      %v3733 = vmul.f32 %v3700, 0.5
      %v3734 = vmul.f32 %v3705, 0.5
      %v3735 = vmul.f32 %v3708, 0.5
      %v3736 = vmul.f32 %v3713, 0.5
      %v3737 = vmul.f32 %v3716, 0.5
      %v3738 = vmul.f32 %v3721, 0.5
      %v3739 = vmul.f32 %v3673, 0.70710677
      %v3740 = vmul.f32 %v3676, 0.70710677
      %v3741 = vmul.f32 %v3681, 0.70710677
      %v3742 = vmul.f32 %v3684, 0.70710677
      %v3743 = vmul.f32 %v3689, 0.70710677
      %v3744 = vmul.f32 %v3692, 0.70710677
      %v3745 = vmul.f32 %v3697, 0.70710677
      %v3746 = vmul.f32 %v3700, 0.70710677
      %v3747 = vmul.f32 %v3705, 0.70710677
      %v3748 = vmul.f32 %v3708, 0.70710677
      %v3749 = vmul.f32 %v3713, 0.70710677
      %v3750 = vmul.f32 %v3716, 0.70710677
      %v3751 = vmul.f32 %v3721, 0.70710677
      %v3752 = verf.f32.pop %v3739
      %v3753 = verf.f32.pop %v3740
      %v3754 = verf.f32.pop %v3741
      %v3755 = verf.f32.pop %v3742
      %v3756 = verf.f32.pop %v3743
      %v3757 = verf.f32.pop %v3744
      %v3758 = verf.f32.pop %v3745
      %v3759 = verf.f32.pop %v3746
      %v3760 = verf.f32.pop %v3747
      %v3761 = verf.f32.pop %v3748
      %v3762 = verf.f32.pop %v3749
      %v3763 = verf.f32.pop %v3750
      %v3764 = verf.f32.pop %v3751
      %v3765 = vadd.f32 %v3752, 1.0
      %v3766 = vadd.f32 %v3753, 1.0
      %v3767 = vadd.f32 %v3754, 1.0
      %v3768 = vadd.f32 %v3755, 1.0
      %v3769 = vadd.f32 %v3756, 1.0
      %v3770 = vadd.f32 %v3757, 1.0
      %v3771 = vadd.f32 %v3758, 1.0
      %v3772 = vadd.f32 %v3759, 1.0
      %v3773 = vadd.f32 %v3760, 1.0
      %v3774 = vadd.f32 %v3761, 1.0
      %v3775 = vadd.f32 %v3762, 1.0
      %v3776 = vadd.f32 %v3763, 1.0
      %v3777 = vadd.f32 %v3764, 1.0
      %v3778 = vmul.f32 %v3726, %v3765
      %v3779 = vmul.f32 %v3727, %v3766
      %v3780 = vmul.f32 %v3728, %v3767
      %v3781 = vmul.f32 %v3729, %v3768
      %v3782 = vmul.f32 %v3730, %v3769
      %v3783 = vmul.f32 %v3731, %v3770
      %v3784 = vmul.f32 %v3732, %v3771
      %v3785 = vmul.f32 %v3733, %v3772
      %v3786 = vmul.f32 %v3734, %v3773
      %v3787 = vmul.f32 %v3735, %v3774
      %v3788 = vmul.f32 %v3736, %v3775
      %v3789 = vmul.f32 %v3737, %v3776
      %v3790 = vmul.f32 %v3738, %v3777
      %v3791 = vpack.c.bf16 %v3779, %v3778
      %v3792 = vpack.c.bf16 %v3781, %v3780
      %v3793 = vpack.c.bf16 %v3783, %v3782
      %v3794 = vpack.c.bf16 %v3785, %v3784
      %v3795 = vpack.c.bf16 %v3787, %v3786
      %v3796 = vpack.c.bf16 %v3789, %v3788
      %v3797 = vpack.c.bf16 %v3790, %v3790
      %v3798 = vld [vmem:[%s9] sm:$0xf]
      %v3799 = vld [vmem:[%s9 + $0x4] sm:$0xf]
      %v3800 = vld [vmem:[%s9 + $0x8] sm:$0xf]
      %v3801 = vld [vmem:[%s9 + $0xc] sm:$0xf]
      %v3802 = vld [vmem:[%s9 + $0x10] sm:$0xf]
      %v3803 = vld [vmem:[%s9 + $0x14] sm:$0xf]
      %v3804 = vld [vmem:[%s10] sm:$0x1]
      %v3806 = vlaneseq
      %v3807 = vshrl.u32 %v3806, 7
      %v3808 = vsub.s32 0, %v3807
      %v3809 = vrot.slane %v3804, %v3808
      %v3817 = vunpack.c.l.b16 %v3798
      %v3818 = vunpack.c.l.b16 %v3799
      %v3819 = vunpack.c.l.b16 %v3800
      %v3820 = vunpack.c.l.b16 %v3801
      %v3821 = vunpack.c.l.b16 %v3802
      %v3822 = vunpack.c.l.b16 %v3803
      %v3823 = vpack.c.b16 %v3818, %v3817
      %v3824 = vpack.c.b16 %v3820, %v3819
      %v3825 = vpack.c.b16 %v3822, %v3821
      %vm3829 = vcmask 392192
      %v3831 = vsel %vm3829, %v3791, 0
      %v3834 = vsel %vm3829, %v3792, 0
      %v3837 = vsel %vm3829, %v3793, 0
      %v3840 = vsel %vm3829, %v3794, 0
      %v3843 = vsel %vm3829, %v3795, 0
      %v3846 = vsel %vm3829, %v3796, 0
      %v3849 = vsel %vm3829, %v3797, 0
      %3851 = vmatprep.subr.bf16.mxu0 0
      %3852 = vmatpush1.bf16.msra.mxu0 %v3823
      %3853 = vmatprep.subr.bf16.mxu0 0
      %3854 = vmatpush1.bf16.msra.mxu0 %v3824
      %3855 = vmatprep.subr.bf16.mxu0 0
      %3856 = vmatpush1.bf16.msra.mxu0 %v3825
      %3857 = vmatprep.subr.bf16.mxu0 0
      %3858 = vmatpush1.bf16.msra.mxu0 0
      %3859 = vmatprep.subr.bf16.mxu0 0
      %3860 = vmatpush1.bf16.msra.mxu0 0
      %3861 = vmatprep.subr.bf16.mxu0 0
      %3862 = vmatpush1.bf16.msra.mxu0 0
      %3863 = vmatprep.subr.bf16.mxu0 0
      %3864 = vmatpush1.bf16.msra.mxu0 0
      %3865 = vmatprep.subr.bf16.mxu0 0
      %3866 = vmatpush1.bf16.msra.mxu0 0
      %3867 = vmatprep.subr.bf16.mxu0 0
      %3868 = vmatpush1.bf16.msra.mxu0 0
      %3869 = vmatprep.subr.bf16.mxu0 0
      %3870 = vmatpush1.bf16.msra.mxu0 0
      %3871 = vmatprep.subr.bf16.mxu0 0
      %3872 = vmatpush1.bf16.msra.mxu0 0
      %3873 = vmatprep.subr.bf16.mxu0 0
      %3874 = vmatpush1.bf16.msra.mxu0 0
      %3875 = vmatprep.subr.bf16.mxu0 0
      %3876 = vmatpush1.bf16.msra.mxu0 0
      %3877 = vmatprep.subr.bf16.mxu0 0
      %3878 = vmatpush1.bf16.msra.mxu0 0
      %3879 = vmatprep.subr.bf16.mxu0 0
      %3880 = vmatpush1.bf16.msra.mxu0 0
      %3881 = vmatprep.subr.bf16.mxu0 0
      %3882 = vmatpush1.bf16.msra.mxu0 0
      %3883 = vmatprep.mubr.bf16.mxu0 0
      %3884 = vmatmul.mubr.bf16.gmra.mrb[0].mxu0 %v3831
      %v3885 = vpop.f32.mrb[0].mxu0
      %v3886 = vadd.f32 %v3809, %v3885
      %v3887 = vpop.f32.mrb[0].mxu0
      %v3888 = vpop.f32.mrb[0].mxu0
      %v3889 = vadd.f32 %v3809, %v3888
      %v3890 = vpop.f32.mrb[0].mxu0
      %3891 = vmatprep.mubr.bf16.mxu0 0
      %3892 = vmatmul.mubr.bf16.gmra.mrb[0].mxu0 %v3834
      %v3893 = vpop.f32.mrb[0].mxu0
      %v3894 = vadd.f32 %v3809, %v3893
      %v3895 = vpop.f32.mrb[0].mxu0
      %v3896 = vpop.f32.mrb[0].mxu0
      %v3897 = vadd.f32 %v3809, %v3896
      %v3898 = vpop.f32.mrb[0].mxu0
      %3899 = vmatprep.mubr.bf16.mxu0 0
      %3900 = vmatmul.mubr.bf16.gmra.mrb[0].mxu0 %v3837
      %v3901 = vpop.f32.mrb[0].mxu0
      %v3902 = vadd.f32 %v3809, %v3901
      %v3903 = vpop.f32.mrb[0].mxu0
      %v3904 = vpop.f32.mrb[0].mxu0
      %v3905 = vadd.f32 %v3809, %v3904
      %v3906 = vpop.f32.mrb[0].mxu0
      %3907 = vmatprep.mubr.bf16.mxu0 0
      %3908 = vmatmul.mubr.bf16.gmra.mrb[0].mxu0 %v3840
      %v3909 = vpop.f32.mrb[0].mxu0
      %v3910 = vadd.f32 %v3809, %v3909
      %v3911 = vpop.f32.mrb[0].mxu0
      %v3912 = vpop.f32.mrb[0].mxu0
      %v3913 = vadd.f32 %v3809, %v3912
      %v3914 = vpop.f32.mrb[0].mxu0
      %3915 = vmatprep.mubr.bf16.mxu0 0
      %3916 = vmatmul.mubr.bf16.gmra.mrb[0].mxu0 %v3843
      %v3917 = vpop.f32.mrb[0].mxu0
      %v3918 = vadd.f32 %v3809, %v3917
      %v3919 = vpop.f32.mrb[0].mxu0
      %v3920 = vpop.f32.mrb[0].mxu0
      %v3921 = vadd.f32 %v3809, %v3920
      %v3922 = vpop.f32.mrb[0].mxu0
      %3923 = vmatprep.mubr.bf16.mxu0 0
      %3924 = vmatmul.mubr.bf16.gmra.mrb[0].mxu0 %v3846
      %v3925 = vpop.f32.mrb[0].mxu0
      %v3926 = vadd.f32 %v3809, %v3925
      %v3927 = vpop.f32.mrb[0].mxu0
      %v3928 = vpop.f32.mrb[0].mxu0
      %v3929 = vadd.f32 %v3809, %v3928
      %v3930 = vpop.f32.mrb[0].mxu0
      %3931 = vmatprep.mubr.bf16.mxu0 0
      %3932 = vmatmul.mubr.bf16.gmra.mrb[0].mxu0 %v3849
      %v3933 = vpop.f32.mrb[0].mxu0
      %v3934 = vadd.f32 %v3809, %v3933
      %v3935 = vpop.f32.mrb[0].mxu0
      %v3936 = vpop.f32.mrb[0].mxu0
      %v3937 = vpop.f32.mrb[0].mxu0
      %3938 = vdwg.mxu0
      %v3939 = vadd.f32 %v3366, %v3886
      %v3940 = vadd.f32 %v3367, %v3889
      %v3941 = vadd.f32 %v3368, %v3894
      %v3942 = vadd.f32 %v3369, %v3897
      %v3943 = vadd.f32 %v3370, %v3902
      %v3944 = vadd.f32 %v3371, %v3905
      %v3945 = vadd.f32 %v3372, %v3910
      %v3946 = vadd.f32 %v3373, %v3913
      %v3947 = vadd.f32 %v3374, %v3918
      %v3948 = vadd.f32 %v3375, %v3921
      %v3949 = vadd.f32 %v3376, %v3926
      %v3950 = vadd.f32 %v3377, %v3929
      %v3951 = vadd.f32 %v3378, %v3934
      %3952 = vst.msk [vmem:[%s386] sm:$0xff] %vm403, %v3939
      %3953 = vst.msk [vmem:[%s386 + $0x8] sm:$0xff] %vm403, %v3940
      %3954 = vst.msk [vmem:[%s386 + $0x10] sm:$0xff] %vm403, %v3941
      %3955 = vst.msk [vmem:[%s386 + $0x18] sm:$0xff] %vm403, %v3942
      %3956 = vst.msk [vmem:[%s386 + $0x20] sm:$0xff] %vm403, %v3943
      %3957 = vst.msk [vmem:[%s386 + $0x28] sm:$0xff] %vm403, %v3944
      %3958 = vst.msk [vmem:[%s386 + $0x30] sm:$0xff] %vm403, %v3945
      %3959 = vst.msk [vmem:[%s386 + $0x38] sm:$0xff] %vm403, %v3946
      %3960 = vst.msk [vmem:[%s386 + $0x40] sm:$0xff] %vm403, %v3947
      %3961 = vst.msk [vmem:[%s386 + $0x48] sm:$0xff] %vm403, %v3948
      %3962 = vst.msk [vmem:[%s386 + $0x50] sm:$0xff] %vm403, %v3949
      %3963 = vst.msk [vmem:[%s386 + $0x58] sm:$0xff] %vm403, %v3950
      %3964 = vst.msk [vmem:[%s386 + $0x60] sm:$0xff] %vm403, %v3951
      %p3965 = scmp.lt.s32.totalorder %s22, 1
      %s3966 = scalar_select %p3965, %s22, 1
      %s3967 = smul.addr %s3966, 13
      %s3968 = smul.addr %s3967, 8
      %s3969 = scalar_lea.vmem %s11, %s3968
      // Predicated region
      $region65: #{tpu_custom_call.1} parent=63 // pred_check
        %p3970 = pneg %p276
      $region66: #{tpu_custom_call.1} parent=63 // pred_check_branch
        %3972 = sbr.rel (%p3970) target = $region68
      $region67: #{tpu_custom_call.1} parent=63 // pred_region
        _
      $region68: #{tpu_custom_call.1} parent=63 // pred_fallthru
        _
    $region64: #{tpu_custom_call.1} parent=5 // pred_fallthru
      _
    %p3973 = scmp.le.s32.totalorder 2, %s17
    // Predicated region
    $region69: #{tpu_custom_call.1} parent=5 // pred_check
      %p3974 = pneg %p3973
    $region70: #{tpu_custom_call.1} parent=5 // pred_check_branch
      %3976 = sbr.rel (%p3974) target = $region72
    $region71: #{tpu_custom_call.1} parent=5 // pred_region
      %s3977 = ssub.s32 %s17, 2
      // Predicated region
      $region73: #{tpu_custom_call.1} parent=71 // pred_check
        %p3978 = pneg %p282
      $region74: #{tpu_custom_call.1} parent=71 // pred_check_branch
        %3980 = sbr.rel (%p3978) target = $region76
      $region75: #{tpu_custom_call.1} parent=71 // pred_region
        %p3981 = scmp.lt.s32.totalorder %s23, 1
        %s3982 = scalar_select %p3981, %s23, 1
        %s3983 = smul.addr %s3982, 13
        %s3984 = smul.addr %s3983, 8
        %s3985 = scalar_lea.vmem %s11, %s3984
      $region76: #{tpu_custom_call.1} parent=71 // pred_fallthru
        _
    $region72: #{tpu_custom_call.1} parent=5 // pred_fallthru
      _
  $region6: #{tpu_custom_call.1} parent=0 // loop_footer
    %s21 = sadd.s32 1, %s17
  $region7: #{tpu_custom_call.1} parent=0 // loop_footer_branch
    %16 = sbr.rel target = $region3
  $region8: #{tpu_custom_call.1} parent=0 // loop_exit
    _

// kernel: tpu_custom_call.1
$region0: #{tpu_custom_call.1}
  #allocation0 [shape = 'u32[]', space=smem, size = 0x4, offset = 0x4, fixed_abs, tag = 'smem constant byte address 0x4 - core index']
  #allocation1 [shape = 'u32[144,128]{1,0:T(1,128)}', space=vmem, size = 0x12000, scoped, tag = 'internal scratch']
  #allocation2 [shape = 'bf16[104,72]{1,0:T(8,128)(2,1)}', space=vmem, size = 0x6800, scoped, tag = 'scratch operand']
  #allocation3 [shape = 'bf16[104,24]{1,0:T(8,128)(2,1)}', space=vmem, size = 0x6800, scoped, tag = 'scratch operand']
  %s0 = inlined_call_operand.vmem [shape: f32[2,104,24], index: 0, kind: input, shape index: {}]
  %s1 = inlined_call_operand.vmem [shape: f32[1,24], index: 1, kind: input, shape index: {}]
  %s2 = inlined_call_operand.vmem [shape: f32[1,24], index: 2, kind: input, shape index: {}]
  %s3 = inlined_call_operand.vmem [shape: bf16[24,72], index: 3, kind: input, shape index: {}]
  %s4 = inlined_call_operand.vmem [shape: bf16[24,24], index: 4, kind: input, shape index: {}]
  %s5 = inlined_call_operand.vmem [shape: f32[1,24], index: 5, kind: input, shape index: {}]
  %s6 = inlined_call_operand.vmem [shape: f32[1,24], index: 6, kind: input, shape index: {}]
  %s7 = inlined_call_operand.vmem [shape: bf16[24,48], index: 7, kind: input, shape index: {}]
  %s8 = inlined_call_operand.vmem [shape: f32[1,48], index: 8, kind: input, shape index: {}]
  %s9 = inlined_call_operand.vmem [shape: bf16[48,24], index: 9, kind: input, shape index: {}]
  %s10 = inlined_call_operand.vmem [shape: f32[1,24], index: 10, kind: input, shape index: {}]
  %s11 = inlined_call_operand.vmem [shape: f32[2,104,24], index: 11, kind: output, shape index: {}]
  %s12 = sld [smem:[#allocation0]]
  $region77: #{tpu_custom_call.1} parent=0
    _
  %s14 = ssub.s32 1, %s12
  %s15 = scalar_select 0, %s14, %s12
  loop: start=0, step=1, limit=4
  $region2: #{tpu_custom_call.1} parent=0 // loop_pre_header
    _
  $region3: #{tpu_custom_call.1} parent=0 // loop_header
    %s17 = sphi 0, %s21
    %p18 = scmp.ge.s32.totalorder %s17, 4
    %s27 = sphi 0, %s29
    %s30 = sphi 0, %s27
    %s31 = sphi 0, %s30
    %s47 = sphi 0, %s31
    %s51 = sphi 0, %s51
    %s53 = sphi 0, %s51
    %s54 = sphi 0, %s53
    %s68 = sphi 0, %s54
    %s72 = sphi 0, %s72
    %s74 = sphi 0, %s72
    %s75 = sphi 0, %s74
    %s89 = sphi 0, %s75
    %s93 = sphi 0, %s93
    %s95 = sphi 0, %s93
    %s96 = sphi 0, %s95
    %s110 = sphi 0, %s96
    %s114 = sphi 0, %s114
    %s116 = sphi 0, %s114
    %s117 = sphi 0, %s116
    %s131 = sphi 0, %s117
    %s135 = sphi 0, %s135
    %s137 = sphi 0, %s135
    %s138 = sphi 0, %s137
    %s152 = sphi 0, %s138
    %s156 = sphi 0, %s156
    %s158 = sphi 0, %s156
    %s159 = sphi 0, %s158
    %s173 = sphi 0, %s159
    %s177 = sphi 0, %s177
    %s179 = sphi 0, %s177
    %s180 = sphi 0, %s179
    %s194 = sphi 0, %s180
    %s198 = sphi 0, %s198
    %s200 = sphi 0, %s198
    %s201 = sphi 0, %s200
    %s215 = sphi 0, %s201
    %s219 = sphi 0, %s219
    %s221 = sphi 0, %s219
    %s222 = sphi 0, %s221
    %s236 = sphi 0, %s222
    %s240 = sphi 0, %s240
    %s242 = sphi 0, %s240
    %s243 = sphi 0, %s242
    %s257 = sphi 0, %s243
    %s263 = sphi 0, %s265
    %s266 = sphi 0, %s263
    %s267 = sphi 0, %s266
    %s283 = sphi 0, %s267
  $region4: #{tpu_custom_call.1} parent=0 // loop_header_branch
    %20 = sbr.rel (%p18) target = $region8
  $region5: #{tpu_custom_call.1} parent=0 // loop_body
    %s22 = ssub.s32 %s17, 1
    %s23 = ssub.s32 %s17, 2
    %s24 = sadd.s32 %s17, 1
    %s25 = ssub.s32 %s17, %s24
    %p26 = scmp.eq.s32.totalorder %s25, 0
    %s28 = sadd.s32 %s27, 1
    %s29 = scalar_select %p26, %s27, %s28
    %p32 = pneg %p26
    %p33 = scmp.eq.s32.totalorder %s17, 1
    %p34 = por %p32, %p33
    %p35 = scmp.ne.s32.totalorder %s27, %s30
    %p36 = scmp.eq.s32.totalorder %s17, 0
    %p37 = por %p35, %p36
    %p38 = scmp.ne.s32.totalorder %s27, %s30
    %p39 = scmp.eq.s32.totalorder %s22, 1
    %p40 = por %p38, %p39
    %p41 = scmp.ne.s32.totalorder %s30, %s31
    %p42 = scmp.eq.s32.totalorder %s22, 0
    %p43 = por %p41, %p42
    %p44 = scmp.ne.s32.totalorder %s30, %s31
    %p45 = scmp.eq.s32.totalorder %s23, 1
    %p46 = por %p44, %p45
    %p48 = scmp.ne.s32.totalorder %s31, %s47
    %p49 = scmp.eq.s32.totalorder %s23, 0
    %p50 = por %p48, %p49
    %s52 = sadd.s32 %s51, 1
    %p55 = scmp.eq.s32.totalorder %s17, 1
    %p56 = scmp.ne.s32.totalorder %s51, %s53
    %p57 = scmp.eq.s32.totalorder %s17, 0
    %p58 = por %p56, %p57
    %p59 = scmp.ne.s32.totalorder %s51, %s53
    %p60 = scmp.eq.s32.totalorder %s22, 1
    %p61 = por %p59, %p60
    %p62 = scmp.ne.s32.totalorder %s53, %s54
    %p63 = scmp.eq.s32.totalorder %s22, 0
    %p64 = por %p62, %p63
    %p65 = scmp.ne.s32.totalorder %s53, %s54
    %p66 = scmp.eq.s32.totalorder %s23, 1
    %p67 = por %p65, %p66
    %p69 = scmp.ne.s32.totalorder %s54, %s68
    %p70 = scmp.eq.s32.totalorder %s23, 0
    %p71 = por %p69, %p70
    %s73 = sadd.s32 %s72, 1
    %p76 = scmp.eq.s32.totalorder %s17, 1
    %p77 = scmp.ne.s32.totalorder %s72, %s74
    %p78 = scmp.eq.s32.totalorder %s17, 0
    %p79 = por %p77, %p78
    %p80 = scmp.ne.s32.totalorder %s72, %s74
    %p81 = scmp.eq.s32.totalorder %s22, 1
    %p82 = por %p80, %p81
    %p83 = scmp.ne.s32.totalorder %s74, %s75
    %p84 = scmp.eq.s32.totalorder %s22, 0
    %p85 = por %p83, %p84
    %p86 = scmp.ne.s32.totalorder %s74, %s75
    %p87 = scmp.eq.s32.totalorder %s23, 1
    %p88 = por %p86, %p87
    %p90 = scmp.ne.s32.totalorder %s75, %s89
    %p91 = scmp.eq.s32.totalorder %s23, 0
    %p92 = por %p90, %p91
    %s94 = sadd.s32 %s93, 1
    %p97 = scmp.eq.s32.totalorder %s17, 1
    %p98 = scmp.ne.s32.totalorder %s93, %s95
    %p99 = scmp.eq.s32.totalorder %s17, 0
    %p100 = por %p98, %p99
    %p101 = scmp.ne.s32.totalorder %s93, %s95
    %p102 = scmp.eq.s32.totalorder %s22, 1
    %p103 = por %p101, %p102
    %p104 = scmp.ne.s32.totalorder %s95, %s96
    %p105 = scmp.eq.s32.totalorder %s22, 0
    %p106 = por %p104, %p105
    %p107 = scmp.ne.s32.totalorder %s95, %s96
    %p108 = scmp.eq.s32.totalorder %s23, 1
    %p109 = por %p107, %p108
    %p111 = scmp.ne.s32.totalorder %s96, %s110
    %p112 = scmp.eq.s32.totalorder %s23, 0
    %p113 = por %p111, %p112
    %s115 = sadd.s32 %s114, 1
    %p118 = scmp.eq.s32.totalorder %s17, 1
    %p119 = scmp.ne.s32.totalorder %s114, %s116
    %p120 = scmp.eq.s32.totalorder %s17, 0
    %p121 = por %p119, %p120
    %p122 = scmp.ne.s32.totalorder %s114, %s116
    %p123 = scmp.eq.s32.totalorder %s22, 1
    %p124 = por %p122, %p123
    %p125 = scmp.ne.s32.totalorder %s116, %s117
    %p126 = scmp.eq.s32.totalorder %s22, 0
    %p127 = por %p125, %p126
    %p128 = scmp.ne.s32.totalorder %s116, %s117
    %p129 = scmp.eq.s32.totalorder %s23, 1
    %p130 = por %p128, %p129
    %p132 = scmp.ne.s32.totalorder %s117, %s131
    %p133 = scmp.eq.s32.totalorder %s23, 0
    %p134 = por %p132, %p133
    %s136 = sadd.s32 %s135, 1
    %p139 = scmp.eq.s32.totalorder %s17, 1
    %p140 = scmp.ne.s32.totalorder %s135, %s137
    %p141 = scmp.eq.s32.totalorder %s17, 0
    %p142 = por %p140, %p141
    %p143 = scmp.ne.s32.totalorder %s135, %s137
    %p144 = scmp.eq.s32.totalorder %s22, 1
    %p145 = por %p143, %p144
    %p146 = scmp.ne.s32.totalorder %s137, %s138
    %p147 = scmp.eq.s32.totalorder %s22, 0
    %p148 = por %p146, %p147
    %p149 = scmp.ne.s32.totalorder %s137, %s138
    %p150 = scmp.eq.s32.totalorder %s23, 1
    %p151 = por %p149, %p150
    %p153 = scmp.ne.s32.totalorder %s138, %s152
    %p154 = scmp.eq.s32.totalorder %s23, 0
    %p155 = por %p153, %p154
    %s157 = sadd.s32 %s156, 1
    %p160 = scmp.eq.s32.totalorder %s17, 1
    %p161 = scmp.ne.s32.totalorder %s156, %s158
    %p162 = scmp.eq.s32.totalorder %s17, 0
    %p163 = por %p161, %p162
    %p164 = scmp.ne.s32.totalorder %s156, %s158
    %p165 = scmp.eq.s32.totalorder %s22, 1
    %p166 = por %p164, %p165
    %p167 = scmp.ne.s32.totalorder %s158, %s159
    %p168 = scmp.eq.s32.totalorder %s22, 0
    %p169 = por %p167, %p168
    %p170 = scmp.ne.s32.totalorder %s158, %s159
    %p171 = scmp.eq.s32.totalorder %s23, 1
    %p172 = por %p170, %p171
    %p174 = scmp.ne.s32.totalorder %s159, %s173
    %p175 = scmp.eq.s32.totalorder %s23, 0
    %p176 = por %p174, %p175
    %s178 = sadd.s32 %s177, 1
    %p181 = scmp.eq.s32.totalorder %s17, 1
    %p182 = scmp.ne.s32.totalorder %s177, %s179
    %p183 = scmp.eq.s32.totalorder %s17, 0
    %p184 = por %p182, %p183
    %p185 = scmp.ne.s32.totalorder %s177, %s179
    %p186 = scmp.eq.s32.totalorder %s22, 1
    %p187 = por %p185, %p186
    %p188 = scmp.ne.s32.totalorder %s179, %s180
    %p189 = scmp.eq.s32.totalorder %s22, 0
    %p190 = por %p188, %p189
    %p191 = scmp.ne.s32.totalorder %s179, %s180
    %p192 = scmp.eq.s32.totalorder %s23, 1
    %p193 = por %p191, %p192
    %p195 = scmp.ne.s32.totalorder %s180, %s194
    %p196 = scmp.eq.s32.totalorder %s23, 0
    %p197 = por %p195, %p196
    %s199 = sadd.s32 %s198, 1
    %p202 = scmp.eq.s32.totalorder %s17, 1
    %p203 = scmp.ne.s32.totalorder %s198, %s200
    %p204 = scmp.eq.s32.totalorder %s17, 0
    %p205 = por %p203, %p204
    %p206 = scmp.ne.s32.totalorder %s198, %s200
    %p207 = scmp.eq.s32.totalorder %s22, 1
    %p208 = por %p206, %p207
    %p209 = scmp.ne.s32.totalorder %s200, %s201
    %p210 = scmp.eq.s32.totalorder %s22, 0
    %p211 = por %p209, %p210
    %p212 = scmp.ne.s32.totalorder %s200, %s201
    %p213 = scmp.eq.s32.totalorder %s23, 1
    %p214 = por %p212, %p213
    %p216 = scmp.ne.s32.totalorder %s201, %s215
    %p217 = scmp.eq.s32.totalorder %s23, 0
    %p218 = por %p216, %p217
    %s220 = sadd.s32 %s219, 1
    %p223 = scmp.eq.s32.totalorder %s17, 1
    %p224 = scmp.ne.s32.totalorder %s219, %s221
    %p225 = scmp.eq.s32.totalorder %s17, 0
    %p226 = por %p224, %p225
    %p227 = scmp.ne.s32.totalorder %s219, %s221
    %p228 = scmp.eq.s32.totalorder %s22, 1
    %p229 = por %p227, %p228
    %p230 = scmp.ne.s32.totalorder %s221, %s222
    %p231 = scmp.eq.s32.totalorder %s22, 0
    %p232 = por %p230, %p231
    %p233 = scmp.ne.s32.totalorder %s221, %s222
    %p234 = scmp.eq.s32.totalorder %s23, 1
    %p235 = por %p233, %p234
    %p237 = scmp.ne.s32.totalorder %s222, %s236
    %p238 = scmp.eq.s32.totalorder %s23, 0
    %p239 = por %p237, %p238
    %s241 = sadd.s32 %s240, 1
    %p244 = scmp.eq.s32.totalorder %s17, 1
    %p245 = scmp.ne.s32.totalorder %s240, %s242
    %p246 = scmp.eq.s32.totalorder %s17, 0
    %p247 = por %p245, %p246
    %p248 = scmp.ne.s32.totalorder %s240, %s242
    %p249 = scmp.eq.s32.totalorder %s22, 1
    %p250 = por %p248, %p249
    %p251 = scmp.ne.s32.totalorder %s242, %s243
    %p252 = scmp.eq.s32.totalorder %s22, 0
    %p253 = por %p251, %p252
    %p254 = scmp.ne.s32.totalorder %s242, %s243
    %p255 = scmp.eq.s32.totalorder %s23, 1
    %p256 = por %p254, %p255
    %p258 = scmp.ne.s32.totalorder %s243, %s257
    %p259 = scmp.eq.s32.totalorder %s23, 0
    %p260 = por %p258, %p259
    %s261 = ssub.s32 %s17, %s24
    %p262 = scmp.eq.s32.totalorder %s261, 0
    %s264 = sadd.s32 %s263, 1
    %s265 = scalar_select %p262, %s263, %s264
    %p268 = pneg %p262
    %p269 = scmp.eq.s32.totalorder %s17, 1
    %p270 = por %p268, %p269
    %p271 = scmp.ne.s32.totalorder %s263, %s266
    %p272 = scmp.eq.s32.totalorder %s17, 0
    %p273 = por %p271, %p272
    %p274 = scmp.ne.s32.totalorder %s263, %s266
    %p275 = scmp.eq.s32.totalorder %s22, 1
    %p276 = por %p274, %p275
    %p277 = scmp.ne.s32.totalorder %s266, %s267
    %p278 = scmp.eq.s32.totalorder %s22, 0
    %p279 = por %p277, %p278
    %p280 = scmp.ne.s32.totalorder %s266, %s267
    %p281 = scmp.eq.s32.totalorder %s23, 1
    %p282 = por %p280, %p281
    %p284 = scmp.ne.s32.totalorder %s267, %s283
    %p285 = scmp.eq.s32.totalorder %s23, 0
    %p286 = por %p284, %p285
    %p287 = scmp.le.s32.totalorder 1, %s17
    %p288 = scmp.lt.s32.totalorder %s17, 3
    %p289 = pnand %p287, %p288
    %p290 = pneg %p289
    // Predicated region
    $region9: #{tpu_custom_call.1} parent=5 // pred_check
      _
    $region10: #{tpu_custom_call.1} parent=5 // pred_check_branch
      %292 = sbr.rel (%p289) target = $region12
    $region11: #{tpu_custom_call.1} parent=5 // pred_region
      %s293 = ssub.s32 %s17, 1
      // Predicated region
      $region13: #{tpu_custom_call.1} parent=11 // pred_check
        %p294 = pneg %p64
      $region14: #{tpu_custom_call.1} parent=11 // pred_check_branch
        %296 = sbr.rel (%p294) target = $region16
      $region15: #{tpu_custom_call.1} parent=11 // pred_region
        _
      $region16: #{tpu_custom_call.1} parent=11 // pred_fallthru
        _
      // Predicated region
      $region17: #{tpu_custom_call.1} parent=11 // pred_check
        %p297 = pneg %p85
      $region18: #{tpu_custom_call.1} parent=11 // pred_check_branch
        %299 = sbr.rel (%p297) target = $region20
      $region19: #{tpu_custom_call.1} parent=11 // pred_region
        _
      $region20: #{tpu_custom_call.1} parent=11 // pred_fallthru
        _
      // Predicated region
      $region21: #{tpu_custom_call.1} parent=11 // pred_check
        %p300 = pneg %p106
      $region22: #{tpu_custom_call.1} parent=11 // pred_check_branch
        %302 = sbr.rel (%p300) target = $region24
      $region23: #{tpu_custom_call.1} parent=11 // pred_region
        _
      $region24: #{tpu_custom_call.1} parent=11 // pred_fallthru
        _
      // Predicated region
      $region25: #{tpu_custom_call.1} parent=11 // pred_check
        %p303 = pneg %p127
      $region26: #{tpu_custom_call.1} parent=11 // pred_check_branch
        %305 = sbr.rel (%p303) target = $region28
      $region27: #{tpu_custom_call.1} parent=11 // pred_region
        _
      $region28: #{tpu_custom_call.1} parent=11 // pred_fallthru
        _
      // Predicated region
      $region29: #{tpu_custom_call.1} parent=11 // pred_check
        %p306 = pneg %p148
      $region30: #{tpu_custom_call.1} parent=11 // pred_check_branch
        %308 = sbr.rel (%p306) target = $region32
      $region31: #{tpu_custom_call.1} parent=11 // pred_region
        _
      $region32: #{tpu_custom_call.1} parent=11 // pred_fallthru
        _
      // Predicated region
      $region33: #{tpu_custom_call.1} parent=11 // pred_check
        %p309 = pneg %p169
      $region34: #{tpu_custom_call.1} parent=11 // pred_check_branch
        %311 = sbr.rel (%p309) target = $region36
      $region35: #{tpu_custom_call.1} parent=11 // pred_region
        _
      $region36: #{tpu_custom_call.1} parent=11 // pred_fallthru
        _
      // Predicated region
      $region37: #{tpu_custom_call.1} parent=11 // pred_check
        %p312 = pneg %p190
      $region38: #{tpu_custom_call.1} parent=11 // pred_check_branch
        %314 = sbr.rel (%p312) target = $region40
      $region39: #{tpu_custom_call.1} parent=11 // pred_region
        _
      $region40: #{tpu_custom_call.1} parent=11 // pred_fallthru
        _
      // Predicated region
      $region41: #{tpu_custom_call.1} parent=11 // pred_check
        %p315 = pneg %p211
      $region42: #{tpu_custom_call.1} parent=11 // pred_check_branch
        %317 = sbr.rel (%p315) target = $region44
      $region43: #{tpu_custom_call.1} parent=11 // pred_region
        _
      $region44: #{tpu_custom_call.1} parent=11 // pred_fallthru
        _
      // Predicated region
      $region45: #{tpu_custom_call.1} parent=11 // pred_check
        %p318 = pneg %p232
      $region46: #{tpu_custom_call.1} parent=11 // pred_check_branch
        %320 = sbr.rel (%p318) target = $region48
      $region47: #{tpu_custom_call.1} parent=11 // pred_region
        _
      $region48: #{tpu_custom_call.1} parent=11 // pred_fallthru
        _
      // Predicated region
      $region49: #{tpu_custom_call.1} parent=11 // pred_check
        %p321 = pneg %p253
      $region50: #{tpu_custom_call.1} parent=11 // pred_check_branch
        %323 = sbr.rel (%p321) target = $region52
      $region51: #{tpu_custom_call.1} parent=11 // pred_region
        _
      $region52: #{tpu_custom_call.1} parent=11 // pred_fallthru
        _
    $region12: #{tpu_custom_call.1} parent=5 // pred_fallthru
      _
    %p324 = scmp.lt.s32.totalorder %s17, 2
    // Predicated region
    $region53: #{tpu_custom_call.1} parent=5 // pred_check
      %p325 = pneg %p324
    $region54: #{tpu_custom_call.1} parent=5 // pred_check_branch
      %327 = sbr.rel (%p325) target = $region56
    $region55: #{tpu_custom_call.1} parent=5 // pred_region
      // Predicated region
      $region57: #{tpu_custom_call.1} parent=55 // pred_check
        %p328 = pneg %p37
      $region58: #{tpu_custom_call.1} parent=55 // pred_check_branch
        %330 = sbr.rel (%p328) target = $region60
      $region59: #{tpu_custom_call.1} parent=55 // pred_region
        %p331 = scmp.lt.s32.totalorder %s17, 1
        %s332 = scalar_select %p331, %s17, 1
        %s333 = smul.addr %s332, 13
        %s334 = smul.addr %s333, 8
        %s335 = scalar_lea.vmem %s0, %s334
      $region60: #{tpu_custom_call.1} parent=55 // pred_fallthru
        _
    $region56: #{tpu_custom_call.1} parent=5 // pred_fallthru
      _
    %p336 = scmp.le.s32.totalorder 1, %s17
    %p337 = scmp.lt.s32.totalorder %s17, 3
    %p338 = pnand %p336, %p337
    %p339 = pneg %p338
    // Predicated region
    $region61: #{tpu_custom_call.1} parent=5 // pred_check
      _
    $region62: #{tpu_custom_call.1} parent=5 // pred_check_branch
      %341 = sbr.rel (%p338) target = $region64
    $region63: #{tpu_custom_call.1} parent=5 // pred_region
      %s342 = ssub.s32 %s17, 1
      %p343 = scmp.lt.s32.totalorder %s22, 1
      %s344 = scalar_select %p343, %s22, 1
      %s345 = smul.addr %s344, 13
      %s346 = smul.addr %s345, 8
      %s347 = scalar_lea.vmem %s0, %s346
      %p348 = pneg %p43
      %p349 = pneg %p40
      %p350 = pneg %p64
      %p351 = pneg %p61
      %p352 = pneg %p85
      %p353 = pneg %p82
      %p354 = pneg %p106
      %p355 = pneg %p103
      %p356 = pneg %p127
      %p357 = pneg %p124
      %p358 = pneg %p148
      %p359 = pneg %p145
      %p360 = pneg %p169
      %p361 = pneg %p166
      %p362 = pneg %p190
      %p363 = pneg %p187
      %p364 = pneg %p211
      %p365 = pneg %p208
      %p366 = pneg %p232
      %p367 = pneg %p229
      %p368 = pneg %p253
      %p369 = pneg %p250
      %p370 = pneg %p279
      %p371 = pneg %p276
      %p372 = scmp.lt.s32.totalorder %s22, 1
      %s373 = scalar_select %p372, %s22, 1
      %s374 = smul.addr %s373, 13
      %s375 = smul.addr %s374, 8
      %s376 = scalar_lea.vmem %s11, %s375
      %p377 = scmp.lt.s32.totalorder %s22, 1
      %s378 = scalar_select %p377, %s22, 1
      %s379 = smul.addr %s378, 13
      %s380 = smul.addr %s379, 8
      %s381 = scalar_lea.vmem %s0, %s380
      %p382 = scmp.lt.s32.totalorder %s22, 1
      %s383 = scalar_select %p382, %s22, 1
      %s384 = smul.addr %s383, 13
      %s385 = smul.addr %s384, 8
      %s386 = scalar_lea.vmem %s11, %s385
      %v388 = vld [vmem:[%s381] sm:$0xff]
      %v389 = vld [vmem:[%s381 + $0x8] sm:$0xff]
      %v390 = vld [vmem:[%s381 + $0x10] sm:$0xff]
      %v391 = vld [vmem:[%s381 + $0x18] sm:$0xff]
      %v392 = vld [vmem:[%s381 + $0x20] sm:$0xff]
      %v393 = vld [vmem:[%s381 + $0x28] sm:$0xff]
      %v394 = vld [vmem:[%s381 + $0x30] sm:$0xff]
      %v395 = vld [vmem:[%s381 + $0x38] sm:$0xff]
      %v396 = vld [vmem:[%s381 + $0x40] sm:$0xff]
      %v397 = vld [vmem:[%s381 + $0x48] sm:$0xff]
      %v398 = vld [vmem:[%s381 + $0x50] sm:$0xff]
      %v399 = vld [vmem:[%s381 + $0x58] sm:$0xff]
      %v400 = vld [vmem:[%s381 + $0x60] sm:$0xff]
      %v401 = vld [vmem:[%s1] sm:$0x1]
      %v402 = vld [vmem:[%s2] sm:$0x1]
      %vm403 = vcmask 195584
      %v404 = vsel %vm403, %v388, 0.0
      %405 = vadd.xlane.f32.xlu0 %v404
      %v406 = vpop.xlane.xlu0 %405
      %v407 = vsel %vm403, %v389, 0.0
      %408 = vadd.xlane.f32.xlu0 %v407
      %v409 = vpop.xlane.xlu0 %408
      %v410 = vsel %vm403, %v390, 0.0
      %411 = vadd.xlane.f32.xlu0 %v410
      %v412 = vpop.xlane.xlu0 %411
      %v413 = vsel %vm403, %v391, 0.0
      %414 = vadd.xlane.f32.xlu0 %v413
      %v415 = vpop.xlane.xlu0 %414
      %v416 = vsel %vm403, %v392, 0.0
      %417 = vadd.xlane.f32.xlu0 %v416
      %v418 = vpop.xlane.xlu0 %417
      %v419 = vsel %vm403, %v393, 0.0
      %420 = vadd.xlane.f32.xlu0 %v419
      %v421 = vpop.xlane.xlu0 %420
      %v422 = vsel %vm403, %v394, 0.0
      %423 = vadd.xlane.f32.xlu0 %v422
      %v424 = vpop.xlane.xlu0 %423
      %v425 = vsel %vm403, %v395, 0.0
      %426 = vadd.xlane.f32.xlu0 %v425
      %v427 = vpop.xlane.xlu0 %426
      %v428 = vsel %vm403, %v396, 0.0
      %429 = vadd.xlane.f32.xlu0 %v428
      %v430 = vpop.xlane.xlu0 %429
      %v431 = vsel %vm403, %v397, 0.0
      %432 = vadd.xlane.f32.xlu0 %v431
      %v433 = vpop.xlane.xlu0 %432
      %v434 = vsel %vm403, %v398, 0.0
      %435 = vadd.xlane.f32.xlu0 %v434
      %v436 = vpop.xlane.xlu0 %435
      %v437 = vsel %vm403, %v399, 0.0
      %438 = vadd.xlane.f32.xlu0 %v437
      %v439 = vpop.xlane.xlu0 %438
      %v440 = vsel %vm403, %v400, 0.0
      %441 = vadd.xlane.f32.xlu0 %v440
      %v442 = vpop.xlane.xlu0 %441
      %v443 = vrcp.pop 24.0
      %v444 = vmul.f32 %v406, %v443
      %v445 = vmul.f32 %v409, %v443
      %v446 = vmul.f32 %v412, %v443
      %v447 = vmul.f32 %v415, %v443
      %v448 = vmul.f32 %v418, %v443
      %v449 = vmul.f32 %v421, %v443
      %v450 = vmul.f32 %v424, %v443
      %v451 = vmul.f32 %v427, %v443
      %v452 = vmul.f32 %v430, %v443
      %v453 = vmul.f32 %v433, %v443
      %v454 = vmul.f32 %v436, %v443
      %v455 = vmul.f32 %v439, %v443
      %v456 = vmul.f32 %v442, %v443
      %v457 = vsub.f32 %v388, %v444
      %v458 = vsub.f32 %v389, %v445
      %v459 = vsub.f32 %v390, %v446
      %v460 = vsub.f32 %v391, %v447
      %v461 = vsub.f32 %v392, %v448
      %v462 = vsub.f32 %v393, %v449
      %v463 = vsub.f32 %v394, %v450
      %v464 = vsub.f32 %v395, %v451
      %v465 = vsub.f32 %v396, %v452
      %v466 = vsub.f32 %v397, %v453
      %v467 = vsub.f32 %v398, %v454
      %v468 = vsub.f32 %v399, %v455
      %v469 = vsub.f32 %v400, %v456
      %v470 = vmul.f32 %v457, %v457
      %v471 = vmul.f32 %v458, %v458
      %v472 = vmul.f32 %v459, %v459
      %v473 = vmul.f32 %v460, %v460
      %v474 = vmul.f32 %v461, %v461
      %v475 = vmul.f32 %v462, %v462
      %v476 = vmul.f32 %v463, %v463
      %v477 = vmul.f32 %v464, %v464
      %v478 = vmul.f32 %v465, %v465
      %v479 = vmul.f32 %v466, %v466
      %v480 = vmul.f32 %v467, %v467
      %v481 = vmul.f32 %v468, %v468
      %v482 = vmul.f32 %v469, %v469
      %v483 = vsel %vm403, %v470, 0.0
      %484 = vadd.xlane.f32.xlu0 %v483
      %v485 = vpop.xlane.xlu0 %484
      %v486 = vsel %vm403, %v471, 0.0
      %487 = vadd.xlane.f32.xlu0 %v486
      %v488 = vpop.xlane.xlu0 %487
      %v489 = vsel %vm403, %v472, 0.0
      %490 = vadd.xlane.f32.xlu0 %v489
      %v491 = vpop.xlane.xlu0 %490
      %v492 = vsel %vm403, %v473, 0.0
      %493 = vadd.xlane.f32.xlu0 %v492
      %v494 = vpop.xlane.xlu0 %493
      %v495 = vsel %vm403, %v474, 0.0
      %496 = vadd.xlane.f32.xlu0 %v495
      %v497 = vpop.xlane.xlu0 %496
      %v498 = vsel %vm403, %v475, 0.0
      %499 = vadd.xlane.f32.xlu0 %v498
      %v500 = vpop.xlane.xlu0 %499
      %v501 = vsel %vm403, %v476, 0.0
      %502 = vadd.xlane.f32.xlu0 %v501
      %v503 = vpop.xlane.xlu0 %502
      %v504 = vsel %vm403, %v477, 0.0
      %505 = vadd.xlane.f32.xlu0 %v504
      %v506 = vpop.xlane.xlu0 %505
      %v507 = vsel %vm403, %v478, 0.0
      %508 = vadd.xlane.f32.xlu0 %v507
      %v509 = vpop.xlane.xlu0 %508
      %v510 = vsel %vm403, %v479, 0.0
      %511 = vadd.xlane.f32.xlu0 %v510
      %v512 = vpop.xlane.xlu0 %511
      %v513 = vsel %vm403, %v480, 0.0
      %514 = vadd.xlane.f32.xlu0 %v513
      %v515 = vpop.xlane.xlu0 %514
      %v516 = vsel %vm403, %v481, 0.0
      %517 = vadd.xlane.f32.xlu0 %v516
      %v518 = vpop.xlane.xlu0 %517
      %v519 = vsel %vm403, %v482, 0.0
      %520 = vadd.xlane.f32.xlu0 %v519
      %v521 = vpop.xlane.xlu0 %520
      %v522 = vmul.f32 %v485, %v443
      %v523 = vmul.f32 %v488, %v443
      %v524 = vmul.f32 %v491, %v443
      %v525 = vmul.f32 %v494, %v443
      %v526 = vmul.f32 %v497, %v443
      %v527 = vmul.f32 %v500, %v443
      %v528 = vmul.f32 %v503, %v443
      %v529 = vmul.f32 %v506, %v443
      %v530 = vmul.f32 %v509, %v443
      %v531 = vmul.f32 %v512, %v443
      %v532 = vmul.f32 %v515, %v443
      %v533 = vmul.f32 %v518, %v443
      %v534 = vmul.f32 %v521, %v443
      %v535 = vadd.f32 %v522, 1e-05
      %v536 = vadd.f32 %v523, 1e-05
      %v537 = vadd.f32 %v524, 1e-05
      %v538 = vadd.f32 %v525, 1e-05
      %v539 = vadd.f32 %v526, 1e-05
      %v540 = vadd.f32 %v527, 1e-05
      %v541 = vadd.f32 %v528, 1e-05
      %v542 = vadd.f32 %v529, 1e-05
      %v543 = vadd.f32 %v530, 1e-05
      %v544 = vadd.f32 %v531, 1e-05
      %v545 = vadd.f32 %v532, 1e-05
      %v546 = vadd.f32 %v533, 1e-05
      %v547 = vadd.f32 %v534, 1e-05
      %v548 = vrsqrt.pop %v535
      %v549 = vrsqrt.pop %v536
      %v550 = vrsqrt.pop %v537
      %v551 = vrsqrt.pop %v538
      %v552 = vrsqrt.pop %v539
      %v553 = vrsqrt.pop %v540
      %v554 = vrsqrt.pop %v541
      %v555 = vrsqrt.pop %v542
      %v556 = vrsqrt.pop %v543
      %v557 = vrsqrt.pop %v544
      %v558 = vrsqrt.pop %v545
      %v559 = vrsqrt.pop %v546
      %v560 = vrsqrt.pop %v547
      %v561 = vmul.f32 %v457, %v548
      %v562 = vmul.f32 %v458, %v549
      %v563 = vmul.f32 %v459, %v550
      %v564 = vmul.f32 %v460, %v551
      %v565 = vmul.f32 %v461, %v552
      %v566 = vmul.f32 %v462, %v553
      %v567 = vmul.f32 %v463, %v554
      %v568 = vmul.f32 %v464, %v555
      %v569 = vmul.f32 %v465, %v556
      %v570 = vmul.f32 %v466, %v557
      %v571 = vmul.f32 %v467, %v558
      %v572 = vmul.f32 %v468, %v559
      %v573 = vmul.f32 %v469, %v560
      %v575 = vlaneseq
      %v576 = vshrl.u32 %v575, 7
      %v577 = vsub.s32 0, %v576
      %v578 = vrot.slane %v401, %v577
      %v580 = vmul.f32 %v561, %v578
      %v581 = vmul.f32 %v562, %v578
      %v582 = vmul.f32 %v563, %v578
      %v583 = vmul.f32 %v564, %v578
      %v584 = vmul.f32 %v565, %v578
      %v585 = vmul.f32 %v566, %v578
      %v586 = vmul.f32 %v567, %v578
      %v587 = vmul.f32 %v568, %v578
      %v588 = vmul.f32 %v569, %v578
      %v589 = vmul.f32 %v570, %v578
      %v590 = vmul.f32 %v571, %v578
      %v591 = vmul.f32 %v572, %v578
      %v592 = vmul.f32 %v573, %v578
      %v594 = vlaneseq
      %v595 = vshrl.u32 %v594, 7
      %v596 = vsub.s32 0, %v595
      %v597 = vrot.slane %v402, %v596
      %v599 = vadd.f32 %v580, %v597
      %v600 = vadd.f32 %v581, %v597
      %v601 = vadd.f32 %v582, %v597
      %v602 = vadd.f32 %v583, %v597
      %v603 = vadd.f32 %v584, %v597
      %v604 = vadd.f32 %v585, %v597
      %v605 = vadd.f32 %v586, %v597
      %v606 = vadd.f32 %v587, %v597
      %v607 = vadd.f32 %v588, %v597
      %v608 = vadd.f32 %v589, %v597
      %v609 = vadd.f32 %v590, %v597
      %v610 = vadd.f32 %v591, %v597
      %v611 = vadd.f32 %v592, %v597
      %v612 = vpack.c.bf16 %v600, %v599
      %v613 = vpack.c.bf16 %v602, %v601
      %v614 = vpack.c.bf16 %v604, %v603
      %v615 = vpack.c.bf16 %v606, %v605
      %v616 = vpack.c.bf16 %v608, %v607
      %v617 = vpack.c.bf16 %v610, %v609
      %v618 = vpack.c.bf16 %v611, %v611
      %v619 = vld [vmem:[%s3] sm:$0xf]
      %v620 = vld [vmem:[%s3 + $0x4] sm:$0xf]
      %v621 = vld [vmem:[%s3 + $0x8] sm:$0xf]
      %v625 = vunpack.c.l.b16 %v619
      %v626 = vunpack.c.l.b16 %v620
      %v627 = vunpack.c.l.b16 %v621
      %v628 = vpack.c.b16 %v626, %v625
      %v629 = vpack.c.b16 %v627, %v627
      %v632 = vsel %vm403, %v612, 0
      %v635 = vsel %vm403, %v613, 0
      %v638 = vsel %vm403, %v614, 0
      %v641 = vsel %vm403, %v615, 0
      %v644 = vsel %vm403, %v616, 0
      %v647 = vsel %vm403, %v617, 0
      %v650 = vsel %vm403, %v618, 0
      %vm652 = vcmask 1043456
      %v654 = vsel %vm652, %v629, 0
      %656 = vmatprep.subr.bf16.mxu0 0
      %657 = vmatpush1.bf16.msra.mxu0 %v628
      %658 = vmatprep.subr.bf16.mxu0 0
      %659 = vmatpush1.bf16.msra.mxu0 %v654
      %660 = vmatprep.subr.bf16.mxu0 0
      %661 = vmatpush1.bf16.msra.mxu0 0
      %662 = vmatprep.subr.bf16.mxu0 0
      %663 = vmatpush1.bf16.msra.mxu0 0
      %664 = vmatprep.subr.bf16.mxu0 0
      %665 = vmatpush1.bf16.msra.mxu0 0
      %666 = vmatprep.subr.bf16.mxu0 0
      %667 = vmatpush1.bf16.msra.mxu0 0
      %668 = vmatprep.subr.bf16.mxu0 0
      %669 = vmatpush1.bf16.msra.mxu0 0
      %670 = vmatprep.subr.bf16.mxu0 0
      %671 = vmatpush1.bf16.msra.mxu0 0
      %672 = vmatprep.subr.bf16.mxu0 0
      %673 = vmatpush1.bf16.msra.mxu0 0
      %674 = vmatprep.subr.bf16.mxu0 0
      %675 = vmatpush1.bf16.msra.mxu0 0
      %676 = vmatprep.subr.bf16.mxu0 0
      %677 = vmatpush1.bf16.msra.mxu0 0
      %678 = vmatprep.subr.bf16.mxu0 0
      %679 = vmatpush1.bf16.msra.mxu0 0
      %680 = vmatprep.subr.bf16.mxu0 0
      %681 = vmatpush1.bf16.msra.mxu0 0
      %682 = vmatprep.subr.bf16.mxu0 0
      %683 = vmatpush1.bf16.msra.mxu0 0
      %684 = vmatprep.subr.bf16.mxu0 0
      %685 = vmatpush1.bf16.msra.mxu0 0
      %686 = vmatprep.subr.bf16.mxu0 0
      %687 = vmatpush1.bf16.msra.mxu0 0
      %688 = vmatprep.mubr.bf16.mxu0 0
      %689 = vmatmul.mubr.bf16.gmra.mrb[0].mxu0 %v632
      %v690 = vpop.f32.mrb[0].mxu0
      %v691 = vadd.f32 0.0, %v690
      %v692 = vpop.f32.mrb[0].mxu0
      %v693 = vpop.f32.mrb[0].mxu0
      %v694 = vadd.f32 0.0, %v693
      %v695 = vpop.f32.mrb[0].mxu0
      %696 = vmatprep.mubr.bf16.mxu0 0
      %697 = vmatmul.mubr.bf16.gmra.mrb[0].mxu0 %v635
      %v698 = vpop.f32.mrb[0].mxu0
      %v699 = vadd.f32 0.0, %v698
      %v700 = vpop.f32.mrb[0].mxu0
      %v701 = vpop.f32.mrb[0].mxu0
      %v702 = vadd.f32 0.0, %v701
      %v703 = vpop.f32.mrb[0].mxu0
      %704 = vmatprep.mubr.bf16.mxu0 0
      %705 = vmatmul.mubr.bf16.gmra.mrb[0].mxu0 %v638
      %v706 = vpop.f32.mrb[0].mxu0
      %v707 = vadd.f32 0.0, %v706
      %v708 = vpop.f32.mrb[0].mxu0
      %v709 = vpop.f32.mrb[0].mxu0
      %v710 = vadd.f32 0.0, %v709
      %v711 = vpop.f32.mrb[0].mxu0
      %712 = vmatprep.mubr.bf16.mxu0 0
      %713 = vmatmul.mubr.bf16.gmra.mrb[0].mxu0 %v641
      %v714 = vpop.f32.mrb[0].mxu0
      %v715 = vadd.f32 0.0, %v714
      %v716 = vpop.f32.mrb[0].mxu0
      %v717 = vpop.f32.mrb[0].mxu0
      %v718 = vadd.f32 0.0, %v717
      %v719 = vpop.f32.mrb[0].mxu0
      %720 = vmatprep.mubr.bf16.mxu0 0
      %721 = vmatmul.mubr.bf16.gmra.mrb[0].mxu0 %v644
      %v722 = vpop.f32.mrb[0].mxu0
      %v723 = vadd.f32 0.0, %v722
      %v724 = vpop.f32.mrb[0].mxu0
      %v725 = vpop.f32.mrb[0].mxu0
      %v726 = vadd.f32 0.0, %v725
      %v727 = vpop.f32.mrb[0].mxu0
      %728 = vmatprep.mubr.bf16.mxu0 0
      %729 = vmatmul.mubr.bf16.gmra.mrb[0].mxu0 %v647
      %v730 = vpop.f32.mrb[0].mxu0
      %v731 = vadd.f32 0.0, %v730
      %v732 = vpop.f32.mrb[0].mxu0
      %v733 = vpop.f32.mrb[0].mxu0
      %v734 = vadd.f32 0.0, %v733
      %v735 = vpop.f32.mrb[0].mxu0
      %736 = vmatprep.mubr.bf16.mxu0 0
      %737 = vmatmul.mubr.bf16.gmra.mrb[0].mxu0 %v650
      %v738 = vpop.f32.mrb[0].mxu0
      %v739 = vadd.f32 0.0, %v738
      %v740 = vpop.f32.mrb[0].mxu0
      %v741 = vpop.f32.mrb[0].mxu0
      %v742 = vpop.f32.mrb[0].mxu0
      %743 = vdwg.mxu0
      %v744 = vpack.c.bf16 %v694, %v691
      %v745 = vpack.c.bf16 %v702, %v699
      %v746 = vpack.c.bf16 %v710, %v707
      %v747 = vpack.c.bf16 %v718, %v715
      %v748 = vpack.c.bf16 %v726, %v723
      %v749 = vpack.c.bf16 %v734, %v731
      %v750 = vpack.c.bf16 %v739, %v739
      %v758 = vunpack.c.l.b16 %v744
      %v759 = vunpack.c.h.b16 %v744
      %v760 = vunpack.c.l.b16 %v745
      %v761 = vunpack.c.h.b16 %v745
      %v762 = vunpack.c.l.b16 %v746
      %v763 = vunpack.c.h.b16 %v746
      %v764 = vunpack.c.l.b16 %v747
      %v765 = vunpack.c.h.b16 %v747
      %v766 = vunpack.c.l.b16 %v748
      %v767 = vunpack.c.h.b16 %v748
      %v768 = vunpack.c.l.b16 %v749
      %v769 = vunpack.c.h.b16 %v749
      %v770 = vunpack.c.l.b16 %v750
      %v771 = vpack.c.b16 %v758, %v758
      %v772 = vpack.c.b16 %v759, %v759
      %v773 = vpack.c.b16 %v760, %v760
      %v774 = vpack.c.b16 %v761, %v761
      %v775 = vpack.c.b16 %v762, %v762
      %v776 = vpack.c.b16 %v763, %v763
      %v777 = vpack.c.b16 %v764, %v764
      %v778 = vpack.c.b16 %v765, %v765
      %v779 = vpack.c.b16 %v766, %v766
      %v780 = vpack.c.b16 %v767, %v767
      %v781 = vpack.c.b16 %v768, %v768
      %v782 = vpack.c.b16 %v769, %v769
      %v783 = vpack.c.b16 %v770, %v770
      %vm797 = vcmask 584704
      %798 = vst.msk [vmem:[#allocation2] sm:$0xf] %vm797, %v771
      %799 = vst.msk [vmem:[#allocation2 + $0x4] sm:$0xf] %vm797, %v772
      %800 = vst.msk [vmem:[#allocation2 + $0x8] sm:$0xf] %vm797, %v773
      %801 = vst.msk [vmem:[#allocation2 + $0xc] sm:$0xf] %vm797, %v774
      %802 = vst.msk [vmem:[#allocation2 + $0x10] sm:$0xf] %vm797, %v775
      %803 = vst.msk [vmem:[#allocation2 + $0x14] sm:$0xf] %vm797, %v776
      %804 = vst.msk [vmem:[#allocation2 + $0x18] sm:$0xf] %vm797, %v777
      %805 = vst.msk [vmem:[#allocation2 + $0x1c] sm:$0xf] %vm797, %v778
      %806 = vst.msk [vmem:[#allocation2 + $0x20] sm:$0xf] %vm797, %v779
      %807 = vst.msk [vmem:[#allocation2 + $0x24] sm:$0xf] %vm797, %v780
      %808 = vst.msk [vmem:[#allocation2 + $0x28] sm:$0xf] %vm797, %v781
      %809 = vst.msk [vmem:[#allocation2 + $0x2c] sm:$0xf] %vm797, %v782
      %810 = vst.msk [vmem:[#allocation2 + $0x30] sm:$0xf] %vm797, %v783
      %v811 = vlaneseq
      %v812 = vand.u32 %v811, 127
      %vm813 = vcmp.lt.s32.totalorder %v812, 100
      %v814 = vld [vmem:[#allocation2] sm:$0xf]
      %v815 = vld [vmem:[#allocation2 + $0x4] sm:$0xf]
      %v816 = vld [vmem:[#allocation2 + $0x8] sm:$0xf]
      %v817 = vld [vmem:[#allocation2 + $0xc] sm:$0xf]
      %v818 = vld [vmem:[#allocation2 + $0x10] sm:$0xf]
      %v819 = vld [vmem:[#allocation2 + $0x14] sm:$0xf]
      %v820 = vld [vmem:[#allocation2 + $0x18] sm:$0xf]
      %v821 = vld [vmem:[#allocation2 + $0x1c] sm:$0xf]
      %v822 = vld [vmem:[#allocation2 + $0x20] sm:$0xf]
      %v823 = vld [vmem:[#allocation2 + $0x24] sm:$0xf]
      %v824 = vld [vmem:[#allocation2 + $0x28] sm:$0xf]
      %v825 = vld [vmem:[#allocation2 + $0x2c] sm:$0xf]
      %v826 = vld [vmem:[#allocation2 + $0x30] sm:$0xf]
      %v840 = vunpack.c.l.b16 %v814
      %v841 = vunpack.c.l.b16 %v815
      %v842 = vunpack.c.l.b16 %v816
      %v843 = vunpack.c.l.b16 %v817
      %v844 = vunpack.c.l.b16 %v818
      %v845 = vunpack.c.l.b16 %v819
      %v846 = vunpack.c.l.b16 %v820
      %v847 = vunpack.c.l.b16 %v821
      %v848 = vunpack.c.l.b16 %v822
      %v849 = vunpack.c.l.b16 %v823
      %v850 = vunpack.c.l.b16 %v824
      %v851 = vunpack.c.l.b16 %v825
      %v852 = vunpack.c.l.b16 %v826
      %v853 = vpack.c.b16 %v841, %v840
      %v854 = vpack.c.b16 %v843, %v842
      %v855 = vpack.c.b16 %v845, %v844
      %v856 = vpack.c.b16 %v847, %v846
      %v857 = vpack.c.b16 %v849, %v848
      %v858 = vpack.c.b16 %v851, %v850
      %v859 = vpack.c.b16 %v852, %v852
      %860 = vrot.lane.b32.xlu0 %v853, 104
      %v861 = vpop.permute.xlu0 %860
      %862 = vrot.lane.b32.xlu0 %v854, 104
      %v863 = vpop.permute.xlu0 %862
      %864 = vrot.lane.b32.xlu0 %v855, 104
      %v865 = vpop.permute.xlu0 %864
      %866 = vrot.lane.b32.xlu0 %v856, 104
      %v867 = vpop.permute.xlu0 %866
      %868 = vrot.lane.b32.xlu0 %v857, 104
      %v869 = vpop.permute.xlu0 %868
      %870 = vrot.lane.b32.xlu0 %v858, 104
      %v871 = vpop.permute.xlu0 %870
      %872 = vrot.lane.b32.xlu0 %v859, 104
      %v873 = vpop.permute.xlu0 %872
      %vm874 = vcmask 48128
      %v876 = vsel %vm874, %v853, 0
      %v879 = vsel %vm874, %v854, 0
      %v882 = vsel %vm874, %v855, 0
      %v885 = vsel %vm874, %v856, 0
      %v888 = vsel %vm874, %v857, 0
      %v891 = vsel %vm874, %v858, 0
      %v894 = vsel %vm874, %v859, 0
      %v897 = vsel %vm874, %v861, 0
      %v900 = vsel %vm874, %v863, 0
      %v903 = vsel %vm874, %v865, 0
      %v906 = vsel %vm874, %v867, 0
      %v909 = vsel %vm874, %v869, 0
      %v912 = vsel %vm874, %v871, 0
      %v915 = vsel %vm874, %v873, 0
      %917 = vmatprep.subr.bf16.mxu0 0
      %918 = vmatpush1.bf16.xpose.msra.mxu0 %v897
      %919 = vmatprep.subr.bf16.mxu0 0
      %920 = vmatpush1.bf16.xpose.msra.mxu0 %v900
      %921 = vmatprep.subr.bf16.mxu0 0
      %922 = vmatpush1.bf16.xpose.msra.mxu0 %v903
      %923 = vmatprep.subr.bf16.mxu0 0
      %924 = vmatpush1.bf16.xpose.msra.mxu0 %v906
      %925 = vmatprep.subr.bf16.mxu0 0
      %926 = vmatpush1.bf16.xpose.msra.mxu0 %v909
      %927 = vmatprep.subr.bf16.mxu0 0
      %928 = vmatpush1.bf16.xpose.msra.mxu0 %v912
      %929 = vmatprep.subr.bf16.mxu0 0
      %930 = vmatpush1.bf16.xpose.msra.mxu0 %v915
      %931 = vmatprep.subr.bf16.mxu0 0
      %932 = vmatpush1.bf16.xpose.msra.mxu0 0
      %933 = vmatprep.subr.bf16.mxu0 0
      %934 = vmatpush1.bf16.xpose.msra.mxu0 0
      %935 = vmatprep.subr.bf16.mxu0 0
      %936 = vmatpush1.bf16.xpose.msra.mxu0 0
      %937 = vmatprep.subr.bf16.mxu0 0
      %938 = vmatpush1.bf16.xpose.msra.mxu0 0
      %939 = vmatprep.subr.bf16.mxu0 0
      %940 = vmatpush1.bf16.xpose.msra.mxu0 0
      %941 = vmatprep.subr.bf16.mxu0 0
      %942 = vmatpush1.bf16.xpose.msra.mxu0 0
      %943 = vmatprep.subr.bf16.mxu0 0
      %944 = vmatpush1.bf16.xpose.msra.mxu0 0
      %945 = vmatprep.subr.bf16.mxu0 0
      %946 = vmatpush1.bf16.xpose.msra.mxu0 0
      %947 = vmatprep.subr.bf16.mxu0 0
      %948 = vmatpush1.bf16.xpose.msra.mxu0 0
      %949 = vmatprep.mubr.bf16.mxu0 0
      %950 = vmatmul.mubr.bf16.gmra.mrb[0].mxu0 %v876
      %v951 = vpop.f32.mrb[0].mxu0
      %v952 = vadd.f32 0.0, %v951
      %v953 = vpop.f32.mrb[0].mxu0
      %v954 = vpop.f32.mrb[0].mxu0
      %v955 = vadd.f32 0.0, %v954
      %v956 = vpop.f32.mrb[0].mxu0
      %957 = vmatprep.mubr.bf16.mxu0 0
      %958 = vmatmul.mubr.bf16.gmra.mrb[0].mxu0 %v879
      %v959 = vpop.f32.mrb[0].mxu0
      %v960 = vadd.f32 0.0, %v959
      %v961 = vpop.f32.mrb[0].mxu0
      %v962 = vpop.f32.mrb[0].mxu0
      %v963 = vadd.f32 0.0, %v962
      %v964 = vpop.f32.mrb[0].mxu0
      %965 = vmatprep.mubr.bf16.mxu0 0
      %966 = vmatmul.mubr.bf16.gmra.mrb[0].mxu0 %v882
      %v967 = vpop.f32.mrb[0].mxu0
      %v968 = vadd.f32 0.0, %v967
      %v969 = vpop.f32.mrb[0].mxu0
      %v970 = vpop.f32.mrb[0].mxu0
      %v971 = vadd.f32 0.0, %v970
      %v972 = vpop.f32.mrb[0].mxu0
      %973 = vmatprep.mubr.bf16.mxu0 0
      %974 = vmatmul.mubr.bf16.gmra.mrb[0].mxu0 %v885
      %v975 = vpop.f32.mrb[0].mxu0
      %v976 = vadd.f32 0.0, %v975
      %v977 = vpop.f32.mrb[0].mxu0
      %v978 = vpop.f32.mrb[0].mxu0
      %v979 = vadd.f32 0.0, %v978
      %v980 = vpop.f32.mrb[0].mxu0
      %981 = vmatprep.mubr.bf16.mxu0 0
      %982 = vmatmul.mubr.bf16.gmra.mrb[0].mxu0 %v888
      %v983 = vpop.f32.mrb[0].mxu0
      %v984 = vadd.f32 0.0, %v983
      %v985 = vpop.f32.mrb[0].mxu0
      %v986 = vpop.f32.mrb[0].mxu0
      %v987 = vadd.f32 0.0, %v986
      %v988 = vpop.f32.mrb[0].mxu0
      %989 = vmatprep.mubr.bf16.mxu0 0
      %990 = vmatmul.mubr.bf16.gmra.mrb[0].mxu0 %v891
      %v991 = vpop.f32.mrb[0].mxu0
      %v992 = vadd.f32 0.0, %v991
      %v993 = vpop.f32.mrb[0].mxu0
      %v994 = vpop.f32.mrb[0].mxu0
      %v995 = vadd.f32 0.0, %v994
      %v996 = vpop.f32.mrb[0].mxu0
      %997 = vmatprep.mubr.bf16.mxu0 0
      %998 = vmatmul.mubr.bf16.gmra.mrb[0].mxu0 %v894
      %v999 = vpop.f32.mrb[0].mxu0
      %v1000 = vadd.f32 0.0, %v999
      %v1001 = vpop.f32.mrb[0].mxu0
      %v1002 = vpop.f32.mrb[0].mxu0
      %v1003 = vpop.f32.mrb[0].mxu0
      %1004 = vdwg.mxu0
      %v1005 = vmul.f32 %v952, 0.4082483
      %v1006 = vmul.f32 %v955, 0.4082483
      %v1007 = vmul.f32 %v960, 0.4082483
      %v1008 = vmul.f32 %v963, 0.4082483
      %v1009 = vmul.f32 %v968, 0.4082483
      %v1010 = vmul.f32 %v971, 0.4082483
      %v1011 = vmul.f32 %v976, 0.4082483
      %v1012 = vmul.f32 %v979, 0.4082483
      %v1013 = vmul.f32 %v984, 0.4082483
      %v1014 = vmul.f32 %v987, 0.4082483
      %v1015 = vmul.f32 %v992, 0.4082483
      %v1016 = vmul.f32 %v995, 0.4082483
      %v1017 = vmul.f32 %v1000, 0.4082483
      %v1018 = vsel %vm813, %v1005, -1e+30
      %v1019 = vsel %vm813, %v1006, -1e+30
      %v1020 = vsel %vm813, %v1007, -1e+30
      %v1021 = vsel %vm813, %v1008, -1e+30
      %v1022 = vsel %vm813, %v1009, -1e+30
      %v1023 = vsel %vm813, %v1010, -1e+30
      %v1024 = vsel %vm813, %v1011, -1e+30
      %v1025 = vsel %vm813, %v1012, -1e+30
      %v1026 = vsel %vm813, %v1013, -1e+30
      %v1027 = vsel %vm813, %v1014, -1e+30
      %v1028 = vsel %vm813, %v1015, -1e+30
      %v1029 = vsel %vm813, %v1016, -1e+30
      %v1030 = vsel %vm813, %v1017, -1e+30
      %vm1031 = vcmask 850944
      %v1032 = vsel %vm1031, %v1018, -inf
      %1033 = vmax.xlane.f32.xlu0 %v1032
      %v1034 = vpop.xlane.xlu0 %1033
      %v1035 = vsel %vm1031, %v1019, -inf
      %1036 = vmax.xlane.f32.xlu0 %v1035
      %v1037 = vpop.xlane.xlu0 %1036
      %v1038 = vsel %vm1031, %v1020, -inf
      %1039 = vmax.xlane.f32.xlu0 %v1038
      %v1040 = vpop.xlane.xlu0 %1039
      %v1041 = vsel %vm1031, %v1021, -inf
      %1042 = vmax.xlane.f32.xlu0 %v1041
      %v1043 = vpop.xlane.xlu0 %1042
      %v1044 = vsel %vm1031, %v1022, -inf
      %1045 = vmax.xlane.f32.xlu0 %v1044
      %v1046 = vpop.xlane.xlu0 %1045
      %v1047 = vsel %vm1031, %v1023, -inf
      %1048 = vmax.xlane.f32.xlu0 %v1047
      %v1049 = vpop.xlane.xlu0 %1048
      %v1050 = vsel %vm1031, %v1024, -inf
      %1051 = vmax.xlane.f32.xlu0 %v1050
      %v1052 = vpop.xlane.xlu0 %1051
      %v1053 = vsel %vm1031, %v1025, -inf
      %1054 = vmax.xlane.f32.xlu0 %v1053
      %v1055 = vpop.xlane.xlu0 %1054
      %v1056 = vsel %vm1031, %v1026, -inf
      %1057 = vmax.xlane.f32.xlu0 %v1056
      %v1058 = vpop.xlane.xlu0 %1057
      %v1059 = vsel %vm1031, %v1027, -inf
      %1060 = vmax.xlane.f32.xlu0 %v1059
      %v1061 = vpop.xlane.xlu0 %1060
      %v1062 = vsel %vm1031, %v1028, -inf
      %1063 = vmax.xlane.f32.xlu0 %v1062
      %v1064 = vpop.xlane.xlu0 %1063
      %v1065 = vsel %vm1031, %v1029, -inf
      %1066 = vmax.xlane.f32.xlu0 %v1065
      %v1067 = vpop.xlane.xlu0 %1066
      %v1068 = vsel %vm1031, %v1030, -inf
      %1069 = vmax.xlane.f32.xlu0 %v1068
      %v1070 = vpop.xlane.xlu0 %1069
      %v1071 = vsub.f32 %v1018, %v1034
      %v1072 = vsub.f32 %v1019, %v1037
      %v1073 = vsub.f32 %v1020, %v1040
      %v1074 = vsub.f32 %v1021, %v1043
      %v1075 = vsub.f32 %v1022, %v1046
      %v1076 = vsub.f32 %v1023, %v1049
      %v1077 = vsub.f32 %v1024, %v1052
      %v1078 = vsub.f32 %v1025, %v1055
      %v1079 = vsub.f32 %v1026, %v1058
      %v1080 = vsub.f32 %v1027, %v1061
      %v1081 = vsub.f32 %v1028, %v1064
      %v1082 = vsub.f32 %v1029, %v1067
      %v1083 = vsub.f32 %v1030, %v1070
      %v1084 = vmul.f32 %v1071, 1.442695
      %v1085 = vpow.pop %v1084
      %v1086 = vmul.f32 %v1072, 1.442695
      %v1087 = vpow.pop %v1086
      %v1088 = vmul.f32 %v1073, 1.442695
      %v1089 = vpow.pop %v1088
      %v1090 = vmul.f32 %v1074, 1.442695
      %v1091 = vpow.pop %v1090
      %v1092 = vmul.f32 %v1075, 1.442695
      %v1093 = vpow.pop %v1092
      %v1094 = vmul.f32 %v1076, 1.442695
      %v1095 = vpow.pop %v1094
      %v1096 = vmul.f32 %v1077, 1.442695
      %v1097 = vpow.pop %v1096
      %v1098 = vmul.f32 %v1078, 1.442695
      %v1099 = vpow.pop %v1098
      %v1100 = vmul.f32 %v1079, 1.442695
      %v1101 = vpow.pop %v1100
      %v1102 = vmul.f32 %v1080, 1.442695
      %v1103 = vpow.pop %v1102
      %v1104 = vmul.f32 %v1081, 1.442695
      %v1105 = vpow.pop %v1104
      %v1106 = vmul.f32 %v1082, 1.442695
      %v1107 = vpow.pop %v1106
      %v1108 = vmul.f32 %v1083, 1.442695
      %v1109 = vpow.pop %v1108
      %v1110 = vsel %vm1031, %v1085, 0.0
      %1111 = vadd.xlane.f32.xlu0 %v1110
      %v1112 = vpop.xlane.xlu0 %1111
      %v1113 = vsel %vm1031, %v1087, 0.0
      %1114 = vadd.xlane.f32.xlu0 %v1113
      %v1115 = vpop.xlane.xlu0 %1114
      %v1116 = vsel %vm1031, %v1089, 0.0
      %1117 = vadd.xlane.f32.xlu0 %v1116
      %v1118 = vpop.xlane.xlu0 %1117
      %v1119 = vsel %vm1031, %v1091, 0.0
      %1120 = vadd.xlane.f32.xlu0 %v1119
      %v1121 = vpop.xlane.xlu0 %1120
      %v1122 = vsel %vm1031, %v1093, 0.0
      %1123 = vadd.xlane.f32.xlu0 %v1122
      %v1124 = vpop.xlane.xlu0 %1123
      %v1125 = vsel %vm1031, %v1095, 0.0
      %1126 = vadd.xlane.f32.xlu0 %v1125
      %v1127 = vpop.xlane.xlu0 %1126
      %v1128 = vsel %vm1031, %v1097, 0.0
      %1129 = vadd.xlane.f32.xlu0 %v1128
      %v1130 = vpop.xlane.xlu0 %1129
      %v1131 = vsel %vm1031, %v1099, 0.0
      %1132 = vadd.xlane.f32.xlu0 %v1131
      %v1133 = vpop.xlane.xlu0 %1132
      %v1134 = vsel %vm1031, %v1101, 0.0
      %1135 = vadd.xlane.f32.xlu0 %v1134
      %v1136 = vpop.xlane.xlu0 %1135
      %v1137 = vsel %vm1031, %v1103, 0.0
      %1138 = vadd.xlane.f32.xlu0 %v1137
      %v1139 = vpop.xlane.xlu0 %1138
      %v1140 = vsel %vm1031, %v1105, 0.0
      %1141 = vadd.xlane.f32.xlu0 %v1140
      %v1142 = vpop.xlane.xlu0 %1141
      %v1143 = vsel %vm1031, %v1107, 0.0
      %1144 = vadd.xlane.f32.xlu0 %v1143
      %v1145 = vpop.xlane.xlu0 %1144
      %v1146 = vsel %vm1031, %v1109, 0.0
      %1147 = vadd.xlane.f32.xlu0 %v1146
      %v1148 = vpop.xlane.xlu0 %1147
      %v1149 = vrcp.pop %v1112
      %v1150 = vrcp.pop %v1115
      %v1151 = vrcp.pop %v1118
      %v1152 = vrcp.pop %v1121
      %v1153 = vrcp.pop %v1124
      %v1154 = vrcp.pop %v1127
      %v1155 = vrcp.pop %v1130
      %v1156 = vrcp.pop %v1133
      %v1157 = vrcp.pop %v1136
      %v1158 = vrcp.pop %v1139
      %v1159 = vrcp.pop %v1142
      %v1160 = vrcp.pop %v1145
      %v1161 = vrcp.pop %v1148
      %v1162 = vmul.f32 %v1085, %v1149
      %v1163 = vmul.f32 %v1087, %v1150
      %v1164 = vmul.f32 %v1089, %v1151
      %v1165 = vmul.f32 %v1091, %v1152
      %v1166 = vmul.f32 %v1093, %v1153
      %v1167 = vmul.f32 %v1095, %v1154
      %v1168 = vmul.f32 %v1097, %v1155
      %v1169 = vmul.f32 %v1099, %v1156
      %v1170 = vmul.f32 %v1101, %v1157
      %v1171 = vmul.f32 %v1103, %v1158
      %v1172 = vmul.f32 %v1105, %v1159
      %v1173 = vmul.f32 %v1107, %v1160
      %v1174 = vmul.f32 %v1109, %v1161
      %v1175 = vpack.c.bf16 %v1163, %v1162
      %v1176 = vpack.c.bf16 %v1165, %v1164
      %v1177 = vpack.c.bf16 %v1167, %v1166
      %v1178 = vpack.c.bf16 %v1169, %v1168
      %v1179 = vpack.c.bf16 %v1171, %v1170
      %v1180 = vpack.c.bf16 %v1173, %v1172
      %v1181 = vpack.c.bf16 %v1174, %v1174
      %1182 = vrot.lane.b32.xlu0 %v853, 80
      %v1183 = vpop.permute.xlu0 %1182
      %1184 = vrot.lane.b32.xlu0 %v854, 80
      %v1185 = vpop.permute.xlu0 %1184
      %1186 = vrot.lane.b32.xlu0 %v855, 80
      %v1187 = vpop.permute.xlu0 %1186
      %1188 = vrot.lane.b32.xlu0 %v856, 80
      %v1189 = vpop.permute.xlu0 %1188
      %1190 = vrot.lane.b32.xlu0 %v857, 80
      %v1191 = vpop.permute.xlu0 %1190
      %1192 = vrot.lane.b32.xlu0 %v858, 80
      %v1193 = vpop.permute.xlu0 %1192
      %1194 = vrot.lane.b32.xlu0 %v859, 80
      %v1195 = vpop.permute.xlu0 %1194
      %v1203 = vsel %vm1031, %v1175, 0
      %v1206 = vsel %vm1031, %v1176, 0
      %v1209 = vsel %vm1031, %v1177, 0
      %v1212 = vsel %vm1031, %v1178, 0
      %v1215 = vsel %vm1031, %v1179, 0
      %v1218 = vsel %vm1031, %v1180, 0
      %v1221 = vsel %vm1031, %v1181, 0
      %v1224 = vsel %vm652, %v1195, 0
      %1226 = vmatprep.subr.bf16.mxu0 0
      %1227 = vmatpush1.bf16.msra.mxu0 %v1183
      %1228 = vmatprep.subr.bf16.mxu0 0
      %1229 = vmatpush1.bf16.msra.mxu0 %v1185
      %1230 = vmatprep.subr.bf16.mxu0 0
      %1231 = vmatpush1.bf16.msra.mxu0 %v1187
      %1232 = vmatprep.subr.bf16.mxu0 0
      %1233 = vmatpush1.bf16.msra.mxu0 %v1189
      %1234 = vmatprep.subr.bf16.mxu0 0
      %1235 = vmatpush1.bf16.msra.mxu0 %v1191
      %1236 = vmatprep.subr.bf16.mxu0 0
      %1237 = vmatpush1.bf16.msra.mxu0 %v1193
      %1238 = vmatprep.subr.bf16.mxu0 0
      %1239 = vmatpush1.bf16.msra.mxu0 %v1224
      %1240 = vmatprep.subr.bf16.mxu0 0
      %1241 = vmatpush1.bf16.msra.mxu0 0
      %1242 = vmatprep.subr.bf16.mxu0 0
      %1243 = vmatpush1.bf16.msra.mxu0 0
      %1244 = vmatprep.subr.bf16.mxu0 0
      %1245 = vmatpush1.bf16.msra.mxu0 0
      %1246 = vmatprep.subr.bf16.mxu0 0
      %1247 = vmatpush1.bf16.msra.mxu0 0
      %1248 = vmatprep.subr.bf16.mxu0 0
      %1249 = vmatpush1.bf16.msra.mxu0 0
      %1250 = vmatprep.subr.bf16.mxu0 0
      %1251 = vmatpush1.bf16.msra.mxu0 0
      %1252 = vmatprep.subr.bf16.mxu0 0
      %1253 = vmatpush1.bf16.msra.mxu0 0
      %1254 = vmatprep.subr.bf16.mxu0 0
      %1255 = vmatpush1.bf16.msra.mxu0 0
      %1256 = vmatprep.subr.bf16.mxu0 0
      %1257 = vmatpush1.bf16.msra.mxu0 0
      %1258 = vmatprep.mubr.bf16.mxu0 0
      %1259 = vmatmul.mubr.bf16.gmra.mrb[0].mxu0 %v1203
      %v1260 = vpop.f32.mrb[0].mxu0
      %v1261 = vadd.f32 0.0, %v1260
      %v1262 = vpop.f32.mrb[0].mxu0
      %v1263 = vpop.f32.mrb[0].mxu0
      %v1264 = vadd.f32 0.0, %v1263
      %v1265 = vpop.f32.mrb[0].mxu0
      %1266 = vmatprep.mubr.bf16.mxu0 0
      %1267 = vmatmul.mubr.bf16.gmra.mrb[0].mxu0 %v1206
      %v1268 = vpop.f32.mrb[0].mxu0
      %v1269 = vadd.f32 0.0, %v1268
      %v1270 = vpop.f32.mrb[0].mxu0
      %v1271 = vpop.f32.mrb[0].mxu0
      %v1272 = vadd.f32 0.0, %v1271
      %v1273 = vpop.f32.mrb[0].mxu0
      %1274 = vmatprep.mubr.bf16.mxu0 0
      %1275 = vmatmul.mubr.bf16.gmra.mrb[0].mxu0 %v1209
      %v1276 = vpop.f32.mrb[0].mxu0
      %v1277 = vadd.f32 0.0, %v1276
      %v1278 = vpop.f32.mrb[0].mxu0
      %v1279 = vpop.f32.mrb[0].mxu0
      %v1280 = vadd.f32 0.0, %v1279
      %v1281 = vpop.f32.mrb[0].mxu0
      %1282 = vmatprep.mubr.bf16.mxu0 0
      %1283 = vmatmul.mubr.bf16.gmra.mrb[0].mxu0 %v1212
      %v1284 = vpop.f32.mrb[0].mxu0
      %v1285 = vadd.f32 0.0, %v1284
      %v1286 = vpop.f32.mrb[0].mxu0
      %v1287 = vpop.f32.mrb[0].mxu0
      %v1288 = vadd.f32 0.0, %v1287
      %v1289 = vpop.f32.mrb[0].mxu0
      %1290 = vmatprep.mubr.bf16.mxu0 0
      %1291 = vmatmul.mubr.bf16.gmra.mrb[0].mxu0 %v1215
      %v1292 = vpop.f32.mrb[0].mxu0
      %v1293 = vadd.f32 0.0, %v1292
      %v1294 = vpop.f32.mrb[0].mxu0
      %v1295 = vpop.f32.mrb[0].mxu0
      %v1296 = vadd.f32 0.0, %v1295
      %v1297 = vpop.f32.mrb[0].mxu0
      %1298 = vmatprep.mubr.bf16.mxu0 0
      %1299 = vmatmul.mubr.bf16.gmra.mrb[0].mxu0 %v1218
      %v1300 = vpop.f32.mrb[0].mxu0
      %v1301 = vadd.f32 0.0, %v1300
      %v1302 = vpop.f32.mrb[0].mxu0
      %v1303 = vpop.f32.mrb[0].mxu0
      %v1304 = vadd.f32 0.0, %v1303
      %v1305 = vpop.f32.mrb[0].mxu0
      %1306 = vmatprep.mubr.bf16.mxu0 0
      %1307 = vmatmul.mubr.bf16.gmra.mrb[0].mxu0 %v1221
      %v1308 = vpop.f32.mrb[0].mxu0
      %v1309 = vadd.f32 0.0, %v1308
      %v1310 = vpop.f32.mrb[0].mxu0
      %v1311 = vpop.f32.mrb[0].mxu0
      %v1312 = vpop.f32.mrb[0].mxu0
      %1313 = vdwg.mxu0
      %v1314 = vpack.c.bf16 %v1264, %v1261
      %v1315 = vpack.c.bf16 %v1272, %v1269
      %v1316 = vpack.c.bf16 %v1280, %v1277
      %v1317 = vpack.c.bf16 %v1288, %v1285
      %v1318 = vpack.c.bf16 %v1296, %v1293
      %v1319 = vpack.c.bf16 %v1304, %v1301
      %v1320 = vpack.c.bf16 %v1309, %v1309
      %v1328 = vunpack.c.l.b16 %v1314
      %v1329 = vunpack.c.h.b16 %v1314
      %v1330 = vunpack.c.l.b16 %v1315
      %v1331 = vunpack.c.h.b16 %v1315
      %v1332 = vunpack.c.l.b16 %v1316
      %v1333 = vunpack.c.h.b16 %v1316
      %v1334 = vunpack.c.l.b16 %v1317
      %v1335 = vunpack.c.h.b16 %v1317
      %v1336 = vunpack.c.l.b16 %v1318
      %v1337 = vunpack.c.h.b16 %v1318
      %v1338 = vunpack.c.l.b16 %v1319
      %v1339 = vunpack.c.h.b16 %v1319
      %v1340 = vunpack.c.l.b16 %v1320
      %v1341 = vpack.c.b16 %v1328, %v1328
      %v1342 = vpack.c.b16 %v1329, %v1329
      %v1343 = vpack.c.b16 %v1330, %v1330
      %v1344 = vpack.c.b16 %v1331, %v1331
      %v1345 = vpack.c.b16 %v1332, %v1332
      %v1346 = vpack.c.b16 %v1333, %v1333
      %v1347 = vpack.c.b16 %v1334, %v1334
      %v1348 = vpack.c.b16 %v1335, %v1335
      %v1349 = vpack.c.b16 %v1336, %v1336
      %v1350 = vpack.c.b16 %v1337, %v1337
      %v1351 = vpack.c.b16 %v1338, %v1338
      %v1352 = vpack.c.b16 %v1339, %v1339
      %v1353 = vpack.c.b16 %v1340, %v1340
      %vm1367 = vcmask 44032
      %1368 = vst.msk [vmem:[#allocation3] sm:$0xf] %vm1367, %v1341
      %1369 = vst.msk [vmem:[#allocation3 + $0x4] sm:$0xf] %vm1367, %v1342
      %1370 = vst.msk [vmem:[#allocation3 + $0x8] sm:$0xf] %vm1367, %v1343
      %1371 = vst.msk [vmem:[#allocation3 + $0xc] sm:$0xf] %vm1367, %v1344
      %1372 = vst.msk [vmem:[#allocation3 + $0x10] sm:$0xf] %vm1367, %v1345
      %1373 = vst.msk [vmem:[#allocation3 + $0x14] sm:$0xf] %vm1367, %v1346
      %1374 = vst.msk [vmem:[#allocation3 + $0x18] sm:$0xf] %vm1367, %v1347
      %1375 = vst.msk [vmem:[#allocation3 + $0x1c] sm:$0xf] %vm1367, %v1348
      %1376 = vst.msk [vmem:[#allocation3 + $0x20] sm:$0xf] %vm1367, %v1349
      %1377 = vst.msk [vmem:[#allocation3 + $0x24] sm:$0xf] %vm1367, %v1350
      %1378 = vst.msk [vmem:[#allocation3 + $0x28] sm:$0xf] %vm1367, %v1351
      %1379 = vst.msk [vmem:[#allocation3 + $0x2c] sm:$0xf] %vm1367, %v1352
      %1380 = vst.msk [vmem:[#allocation3 + $0x30] sm:$0xf] %vm1367, %v1353
      %v1381 = vld [vmem:[#allocation2] sm:$0xf]
      %v1382 = vld [vmem:[#allocation2 + $0x4] sm:$0xf]
      %v1383 = vld [vmem:[#allocation2 + $0x8] sm:$0xf]
      %v1384 = vld [vmem:[#allocation2 + $0xc] sm:$0xf]
      %v1385 = vld [vmem:[#allocation2 + $0x10] sm:$0xf]
      %v1386 = vld [vmem:[#allocation2 + $0x14] sm:$0xf]
      %v1387 = vld [vmem:[#allocation2 + $0x18] sm:$0xf]
      %v1388 = vld [vmem:[#allocation2 + $0x1c] sm:$0xf]
      %v1389 = vld [vmem:[#allocation2 + $0x20] sm:$0xf]
      %v1390 = vld [vmem:[#allocation2 + $0x24] sm:$0xf]
      %v1391 = vld [vmem:[#allocation2 + $0x28] sm:$0xf]
      %v1392 = vld [vmem:[#allocation2 + $0x2c] sm:$0xf]
      %v1393 = vld [vmem:[#allocation2 + $0x30] sm:$0xf]
      %v1407 = vunpack.c.l.b16 %v1381
      %v1408 = vunpack.c.l.b16 %v1382
      %v1409 = vunpack.c.l.b16 %v1383
      %v1410 = vunpack.c.l.b16 %v1384
      %v1411 = vunpack.c.l.b16 %v1385
      %v1412 = vunpack.c.l.b16 %v1386
      %v1413 = vunpack.c.l.b16 %v1387
      %v1414 = vunpack.c.l.b16 %v1388
      %v1415 = vunpack.c.l.b16 %v1389
      %v1416 = vunpack.c.l.b16 %v1390
      %v1417 = vunpack.c.l.b16 %v1391
      %v1418 = vunpack.c.l.b16 %v1392
      %v1419 = vunpack.c.l.b16 %v1393
      %v1420 = vpack.c.b16 %v1408, %v1407
      %v1421 = vpack.c.b16 %v1410, %v1409
      %v1422 = vpack.c.b16 %v1412, %v1411
      %v1423 = vpack.c.b16 %v1414, %v1413
      %v1424 = vpack.c.b16 %v1416, %v1415
      %v1425 = vpack.c.b16 %v1418, %v1417
      %v1426 = vpack.c.b16 %v1419, %v1419
      %1427 = vrot.lane.b32.xlu0 %v1420, 122
      %v1428 = vpop.permute.xlu0 %1427
      %1429 = vrot.lane.b32.xlu0 %v1421, 122
      %v1430 = vpop.permute.xlu0 %1429
      %1431 = vrot.lane.b32.xlu0 %v1422, 122
      %v1432 = vpop.permute.xlu0 %1431
      %1433 = vrot.lane.b32.xlu0 %v1423, 122
      %v1434 = vpop.permute.xlu0 %1433
      %1435 = vrot.lane.b32.xlu0 %v1424, 122
      %v1436 = vpop.permute.xlu0 %1435
      %1437 = vrot.lane.b32.xlu0 %v1425, 122
      %v1438 = vpop.permute.xlu0 %1437
      %1439 = vrot.lane.b32.xlu0 %v1426, 122
      %v1440 = vpop.permute.xlu0 %1439
      %1441 = vrot.lane.b32.xlu0 %v1420, 98
      %v1442 = vpop.permute.xlu0 %1441
      %1443 = vrot.lane.b32.xlu0 %v1421, 98
      %v1444 = vpop.permute.xlu0 %1443
      %1445 = vrot.lane.b32.xlu0 %v1422, 98
      %v1446 = vpop.permute.xlu0 %1445
      %1447 = vrot.lane.b32.xlu0 %v1423, 98
      %v1448 = vpop.permute.xlu0 %1447
      %1449 = vrot.lane.b32.xlu0 %v1424, 98
      %v1450 = vpop.permute.xlu0 %1449
      %1451 = vrot.lane.b32.xlu0 %v1425, 98
      %v1452 = vpop.permute.xlu0 %1451
      %1453 = vrot.lane.b32.xlu0 %v1426, 98
      %v1454 = vpop.permute.xlu0 %1453
      %v1456 = vsel %vm874, %v1428, 0
      %v1459 = vsel %vm874, %v1430, 0
      %v1462 = vsel %vm874, %v1432, 0
      %v1465 = vsel %vm874, %v1434, 0
      %v1468 = vsel %vm874, %v1436, 0
      %v1471 = vsel %vm874, %v1438, 0
      %v1474 = vsel %vm874, %v1440, 0
      %v1477 = vsel %vm874, %v1442, 0
      %v1480 = vsel %vm874, %v1444, 0
      %v1483 = vsel %vm874, %v1446, 0
      %v1486 = vsel %vm874, %v1448, 0
      %v1489 = vsel %vm874, %v1450, 0
      %v1492 = vsel %vm874, %v1452, 0
      %v1495 = vsel %vm874, %v1454, 0
      %1497 = vmatprep.subr.bf16.mxu0 0
      %1498 = vmatpush1.bf16.xpose.msra.mxu0 %v1477
      %1499 = vmatprep.subr.bf16.mxu0 0
      %1500 = vmatpush1.bf16.xpose.msra.mxu0 %v1480
      %1501 = vmatprep.subr.bf16.mxu0 0
      %1502 = vmatpush1.bf16.xpose.msra.mxu0 %v1483
      %1503 = vmatprep.subr.bf16.mxu0 0
      %1504 = vmatpush1.bf16.xpose.msra.mxu0 %v1486
      %1505 = vmatprep.subr.bf16.mxu0 0
      %1506 = vmatpush1.bf16.xpose.msra.mxu0 %v1489
      %1507 = vmatprep.subr.bf16.mxu0 0
      %1508 = vmatpush1.bf16.xpose.msra.mxu0 %v1492
      %1509 = vmatprep.subr.bf16.mxu0 0
      %1510 = vmatpush1.bf16.xpose.msra.mxu0 %v1495
      %1511 = vmatprep.subr.bf16.mxu0 0
      %1512 = vmatpush1.bf16.xpose.msra.mxu0 0
      %1513 = vmatprep.subr.bf16.mxu0 0
      %1514 = vmatpush1.bf16.xpose.msra.mxu0 0
      %1515 = vmatprep.subr.bf16.mxu0 0
      %1516 = vmatpush1.bf16.xpose.msra.mxu0 0
      %1517 = vmatprep.subr.bf16.mxu0 0
      %1518 = vmatpush1.bf16.xpose.msra.mxu0 0
      %1519 = vmatprep.subr.bf16.mxu0 0
      %1520 = vmatpush1.bf16.xpose.msra.mxu0 0
      %1521 = vmatprep.subr.bf16.mxu0 0
      %1522 = vmatpush1.bf16.xpose.msra.mxu0 0
      %1523 = vmatprep.subr.bf16.mxu0 0
      %1524 = vmatpush1.bf16.xpose.msra.mxu0 0
      %1525 = vmatprep.subr.bf16.mxu0 0
      %1526 = vmatpush1.bf16.xpose.msra.mxu0 0
      %1527 = vmatprep.subr.bf16.mxu0 0
      %1528 = vmatpush1.bf16.xpose.msra.mxu0 0
      %1529 = vmatprep.mubr.bf16.mxu0 0
      %1530 = vmatmul.mubr.bf16.gmra.mrb[0].mxu0 %v1456
      %v1531 = vpop.f32.mrb[0].mxu0
      %v1532 = vadd.f32 0.0, %v1531
      %v1533 = vpop.f32.mrb[0].mxu0
      %v1534 = vpop.f32.mrb[0].mxu0
      %v1535 = vadd.f32 0.0, %v1534
      %v1536 = vpop.f32.mrb[0].mxu0
      %1537 = vmatprep.mubr.bf16.mxu0 0
      %1538 = vmatmul.mubr.bf16.gmra.mrb[0].mxu0 %v1459
      %v1539 = vpop.f32.mrb[0].mxu0
      %v1540 = vadd.f32 0.0, %v1539
      %v1541 = vpop.f32.mrb[0].mxu0
      %v1542 = vpop.f32.mrb[0].mxu0
      %v1543 = vadd.f32 0.0, %v1542
      %v1544 = vpop.f32.mrb[0].mxu0
      %1545 = vmatprep.mubr.bf16.mxu0 0
      %1546 = vmatmul.mubr.bf16.gmra.mrb[0].mxu0 %v1462
      %v1547 = vpop.f32.mrb[0].mxu0
      %v1548 = vadd.f32 0.0, %v1547
      %v1549 = vpop.f32.mrb[0].mxu0
      %v1550 = vpop.f32.mrb[0].mxu0
      %v1551 = vadd.f32 0.0, %v1550
      %v1552 = vpop.f32.mrb[0].mxu0
      %1553 = vmatprep.mubr.bf16.mxu0 0
      %1554 = vmatmul.mubr.bf16.gmra.mrb[0].mxu0 %v1465
      %v1555 = vpop.f32.mrb[0].mxu0
      %v1556 = vadd.f32 0.0, %v1555
      %v1557 = vpop.f32.mrb[0].mxu0
      %v1558 = vpop.f32.mrb[0].mxu0
      %v1559 = vadd.f32 0.0, %v1558
      %v1560 = vpop.f32.mrb[0].mxu0
      %1561 = vmatprep.mubr.bf16.mxu0 0
      %1562 = vmatmul.mubr.bf16.gmra.mrb[0].mxu0 %v1468
      %v1563 = vpop.f32.mrb[0].mxu0
      %v1564 = vadd.f32 0.0, %v1563
      %v1565 = vpop.f32.mrb[0].mxu0
      %v1566 = vpop.f32.mrb[0].mxu0
      %v1567 = vadd.f32 0.0, %v1566
      %v1568 = vpop.f32.mrb[0].mxu0
      %1569 = vmatprep.mubr.bf16.mxu0 0
      %1570 = vmatmul.mubr.bf16.gmra.mrb[0].mxu0 %v1471
      %v1571 = vpop.f32.mrb[0].mxu0
      %v1572 = vadd.f32 0.0, %v1571
      %v1573 = vpop.f32.mrb[0].mxu0
      %v1574 = vpop.f32.mrb[0].mxu0
      %v1575 = vadd.f32 0.0, %v1574
      %v1576 = vpop.f32.mrb[0].mxu0
      %1577 = vmatprep.mubr.bf16.mxu0 0
      %1578 = vmatmul.mubr.bf16.gmra.mrb[0].mxu0 %v1474
      %v1579 = vpop.f32.mrb[0].mxu0
      %v1580 = vadd.f32 0.0, %v1579
      %v1581 = vpop.f32.mrb[0].mxu0
      %v1582 = vpop.f32.mrb[0].mxu0
      %v1583 = vpop.f32.mrb[0].mxu0
      %1584 = vdwg.mxu0
      %v1585 = vmul.f32 %v1532, 0.4082483
      %v1586 = vmul.f32 %v1535, 0.4082483
      %v1587 = vmul.f32 %v1540, 0.4082483
      %v1588 = vmul.f32 %v1543, 0.4082483
      %v1589 = vmul.f32 %v1548, 0.4082483
      %v1590 = vmul.f32 %v1551, 0.4082483
      %v1591 = vmul.f32 %v1556, 0.4082483
      %v1592 = vmul.f32 %v1559, 0.4082483
      %v1593 = vmul.f32 %v1564, 0.4082483
      %v1594 = vmul.f32 %v1567, 0.4082483
      %v1595 = vmul.f32 %v1572, 0.4082483
      %v1596 = vmul.f32 %v1575, 0.4082483
      %v1597 = vmul.f32 %v1580, 0.4082483
      %v1598 = vsel %vm813, %v1585, -1e+30
      %v1599 = vsel %vm813, %v1586, -1e+30
      %v1600 = vsel %vm813, %v1587, -1e+30
      %v1601 = vsel %vm813, %v1588, -1e+30
      %v1602 = vsel %vm813, %v1589, -1e+30
      %v1603 = vsel %vm813, %v1590, -1e+30
      %v1604 = vsel %vm813, %v1591, -1e+30
      %v1605 = vsel %vm813, %v1592, -1e+30
      %v1606 = vsel %vm813, %v1593, -1e+30
      %v1607 = vsel %vm813, %v1594, -1e+30
      %v1608 = vsel %vm813, %v1595, -1e+30
      %v1609 = vsel %vm813, %v1596, -1e+30
      %v1610 = vsel %vm813, %v1597, -1e+30
      %v1611 = vsel %vm1031, %v1598, -inf
      %1612 = vmax.xlane.f32.xlu0 %v1611
      %v1613 = vpop.xlane.xlu0 %1612
      %v1614 = vsel %vm1031, %v1599, -inf
      %1615 = vmax.xlane.f32.xlu0 %v1614
      %v1616 = vpop.xlane.xlu0 %1615
      %v1617 = vsel %vm1031, %v1600, -inf
      %1618 = vmax.xlane.f32.xlu0 %v1617
      %v1619 = vpop.xlane.xlu0 %1618
      %v1620 = vsel %vm1031, %v1601, -inf
      %1621 = vmax.xlane.f32.xlu0 %v1620
      %v1622 = vpop.xlane.xlu0 %1621
      %v1623 = vsel %vm1031, %v1602, -inf
      %1624 = vmax.xlane.f32.xlu0 %v1623
      %v1625 = vpop.xlane.xlu0 %1624
      %v1626 = vsel %vm1031, %v1603, -inf
      %1627 = vmax.xlane.f32.xlu0 %v1626
      %v1628 = vpop.xlane.xlu0 %1627
      %v1629 = vsel %vm1031, %v1604, -inf
      %1630 = vmax.xlane.f32.xlu0 %v1629
      %v1631 = vpop.xlane.xlu0 %1630
      %v1632 = vsel %vm1031, %v1605, -inf
      %1633 = vmax.xlane.f32.xlu0 %v1632
      %v1634 = vpop.xlane.xlu0 %1633
      %v1635 = vsel %vm1031, %v1606, -inf
      %1636 = vmax.xlane.f32.xlu0 %v1635
      %v1637 = vpop.xlane.xlu0 %1636
      %v1638 = vsel %vm1031, %v1607, -inf
      %1639 = vmax.xlane.f32.xlu0 %v1638
      %v1640 = vpop.xlane.xlu0 %1639
      %v1641 = vsel %vm1031, %v1608, -inf
      %1642 = vmax.xlane.f32.xlu0 %v1641
      %v1643 = vpop.xlane.xlu0 %1642
      %v1644 = vsel %vm1031, %v1609, -inf
      %1645 = vmax.xlane.f32.xlu0 %v1644
      %v1646 = vpop.xlane.xlu0 %1645
      %v1647 = vsel %vm1031, %v1610, -inf
      %1648 = vmax.xlane.f32.xlu0 %v1647
      %v1649 = vpop.xlane.xlu0 %1648
      %v1650 = vsub.f32 %v1598, %v1613
      %v1651 = vsub.f32 %v1599, %v1616
      %v1652 = vsub.f32 %v1600, %v1619
      %v1653 = vsub.f32 %v1601, %v1622
      %v1654 = vsub.f32 %v1602, %v1625
      %v1655 = vsub.f32 %v1603, %v1628
      %v1656 = vsub.f32 %v1604, %v1631
      %v1657 = vsub.f32 %v1605, %v1634
      %v1658 = vsub.f32 %v1606, %v1637
      %v1659 = vsub.f32 %v1607, %v1640
      %v1660 = vsub.f32 %v1608, %v1643
      %v1661 = vsub.f32 %v1609, %v1646
      %v1662 = vsub.f32 %v1610, %v1649
      %v1663 = vmul.f32 %v1650, 1.442695
      %v1664 = vpow.pop %v1663
      %v1665 = vmul.f32 %v1651, 1.442695
      %v1666 = vpow.pop %v1665
      %v1667 = vmul.f32 %v1652, 1.442695
      %v1668 = vpow.pop %v1667
      %v1669 = vmul.f32 %v1653, 1.442695
      %v1670 = vpow.pop %v1669
      %v1671 = vmul.f32 %v1654, 1.442695
      %v1672 = vpow.pop %v1671
      %v1673 = vmul.f32 %v1655, 1.442695
      %v1674 = vpow.pop %v1673
      %v1675 = vmul.f32 %v1656, 1.442695
      %v1676 = vpow.pop %v1675
      %v1677 = vmul.f32 %v1657, 1.442695
      %v1678 = vpow.pop %v1677
      %v1679 = vmul.f32 %v1658, 1.442695
      %v1680 = vpow.pop %v1679
      %v1681 = vmul.f32 %v1659, 1.442695
      %v1682 = vpow.pop %v1681
      %v1683 = vmul.f32 %v1660, 1.442695
      %v1684 = vpow.pop %v1683
      %v1685 = vmul.f32 %v1661, 1.442695
      %v1686 = vpow.pop %v1685
      %v1687 = vmul.f32 %v1662, 1.442695
      %v1688 = vpow.pop %v1687
      %v1689 = vsel %vm1031, %v1664, 0.0
      %1690 = vadd.xlane.f32.xlu0 %v1689
      %v1691 = vpop.xlane.xlu0 %1690
      %v1692 = vsel %vm1031, %v1666, 0.0
      %1693 = vadd.xlane.f32.xlu0 %v1692
      %v1694 = vpop.xlane.xlu0 %1693
      %v1695 = vsel %vm1031, %v1668, 0.0
      %1696 = vadd.xlane.f32.xlu0 %v1695
      %v1697 = vpop.xlane.xlu0 %1696
      %v1698 = vsel %vm1031, %v1670, 0.0
      %1699 = vadd.xlane.f32.xlu0 %v1698
      %v1700 = vpop.xlane.xlu0 %1699
      %v1701 = vsel %vm1031, %v1672, 0.0
      %1702 = vadd.xlane.f32.xlu0 %v1701
      %v1703 = vpop.xlane.xlu0 %1702
      %v1704 = vsel %vm1031, %v1674, 0.0
      %1705 = vadd.xlane.f32.xlu0 %v1704
      %v1706 = vpop.xlane.xlu0 %1705
      %v1707 = vsel %vm1031, %v1676, 0.0
      %1708 = vadd.xlane.f32.xlu0 %v1707
      %v1709 = vpop.xlane.xlu0 %1708
      %v1710 = vsel %vm1031, %v1678, 0.0
      %1711 = vadd.xlane.f32.xlu0 %v1710
      %v1712 = vpop.xlane.xlu0 %1711
      %v1713 = vsel %vm1031, %v1680, 0.0
      %1714 = vadd.xlane.f32.xlu0 %v1713
      %v1715 = vpop.xlane.xlu0 %1714
      %v1716 = vsel %vm1031, %v1682, 0.0
      %1717 = vadd.xlane.f32.xlu0 %v1716
      %v1718 = vpop.xlane.xlu0 %1717
      %v1719 = vsel %vm1031, %v1684, 0.0
      %1720 = vadd.xlane.f32.xlu0 %v1719
      %v1721 = vpop.xlane.xlu0 %1720
      %v1722 = vsel %vm1031, %v1686, 0.0
      %1723 = vadd.xlane.f32.xlu0 %v1722
      %v1724 = vpop.xlane.xlu0 %1723
      %v1725 = vsel %vm1031, %v1688, 0.0
      %1726 = vadd.xlane.f32.xlu0 %v1725
      %v1727 = vpop.xlane.xlu0 %1726
      %v1728 = vrcp.pop %v1691
      %v1729 = vrcp.pop %v1694
      %v1730 = vrcp.pop %v1697
      %v1731 = vrcp.pop %v1700
      %v1732 = vrcp.pop %v1703
      %v1733 = vrcp.pop %v1706
      %v1734 = vrcp.pop %v1709
      %v1735 = vrcp.pop %v1712
      %v1736 = vrcp.pop %v1715
      %v1737 = vrcp.pop %v1718
      %v1738 = vrcp.pop %v1721
      %v1739 = vrcp.pop %v1724
      %v1740 = vrcp.pop %v1727
      %v1741 = vmul.f32 %v1664, %v1728
      %v1742 = vmul.f32 %v1666, %v1729
      %v1743 = vmul.f32 %v1668, %v1730
      %v1744 = vmul.f32 %v1670, %v1731
      %v1745 = vmul.f32 %v1672, %v1732
      %v1746 = vmul.f32 %v1674, %v1733
      %v1747 = vmul.f32 %v1676, %v1734
      %v1748 = vmul.f32 %v1678, %v1735
      %v1749 = vmul.f32 %v1680, %v1736
      %v1750 = vmul.f32 %v1682, %v1737
      %v1751 = vmul.f32 %v1684, %v1738
      %v1752 = vmul.f32 %v1686, %v1739
      %v1753 = vmul.f32 %v1688, %v1740
      %v1754 = vpack.c.bf16 %v1742, %v1741
      %v1755 = vpack.c.bf16 %v1744, %v1743
      %v1756 = vpack.c.bf16 %v1746, %v1745
      %v1757 = vpack.c.bf16 %v1748, %v1747
      %v1758 = vpack.c.bf16 %v1750, %v1749
      %v1759 = vpack.c.bf16 %v1752, %v1751
      %v1760 = vpack.c.bf16 %v1753, %v1753
      %1761 = vrot.lane.b32.xlu0 %v1420, 74
      %v1762 = vpop.permute.xlu0 %1761
      %1763 = vrot.lane.b32.xlu0 %v1421, 74
      %v1764 = vpop.permute.xlu0 %1763
      %1765 = vrot.lane.b32.xlu0 %v1422, 74
      %v1766 = vpop.permute.xlu0 %1765
      %1767 = vrot.lane.b32.xlu0 %v1423, 74
      %v1768 = vpop.permute.xlu0 %1767
      %1769 = vrot.lane.b32.xlu0 %v1424, 74
      %v1770 = vpop.permute.xlu0 %1769
      %1771 = vrot.lane.b32.xlu0 %v1425, 74
      %v1772 = vpop.permute.xlu0 %1771
      %1773 = vrot.lane.b32.xlu0 %v1426, 74
      %v1774 = vpop.permute.xlu0 %1773
      %v1782 = vsel %vm1031, %v1754, 0
      %v1785 = vsel %vm1031, %v1755, 0
      %v1788 = vsel %vm1031, %v1756, 0
      %v1791 = vsel %vm1031, %v1757, 0
      %v1794 = vsel %vm1031, %v1758, 0
      %v1797 = vsel %vm1031, %v1759, 0
      %v1800 = vsel %vm1031, %v1760, 0
      %v1803 = vsel %vm652, %v1774, 0
      %1805 = vmatprep.subr.bf16.mxu0 0
      %1806 = vmatpush1.bf16.msra.mxu0 %v1762
      %1807 = vmatprep.subr.bf16.mxu0 0
      %1808 = vmatpush1.bf16.msra.mxu0 %v1764
      %1809 = vmatprep.subr.bf16.mxu0 0
      %1810 = vmatpush1.bf16.msra.mxu0 %v1766
      %1811 = vmatprep.subr.bf16.mxu0 0
      %1812 = vmatpush1.bf16.msra.mxu0 %v1768
      %1813 = vmatprep.subr.bf16.mxu0 0
      %1814 = vmatpush1.bf16.msra.mxu0 %v1770
      %1815 = vmatprep.subr.bf16.mxu0 0
      %1816 = vmatpush1.bf16.msra.mxu0 %v1772
      %1817 = vmatprep.subr.bf16.mxu0 0
      %1818 = vmatpush1.bf16.msra.mxu0 %v1803
      %1819 = vmatprep.subr.bf16.mxu0 0
      %1820 = vmatpush1.bf16.msra.mxu0 0
      %1821 = vmatprep.subr.bf16.mxu0 0
      %1822 = vmatpush1.bf16.msra.mxu0 0
      %1823 = vmatprep.subr.bf16.mxu0 0
      %1824 = vmatpush1.bf16.msra.mxu0 0
      %1825 = vmatprep.subr.bf16.mxu0 0
      %1826 = vmatpush1.bf16.msra.mxu0 0
      %1827 = vmatprep.subr.bf16.mxu0 0
      %1828 = vmatpush1.bf16.msra.mxu0 0
      %1829 = vmatprep.subr.bf16.mxu0 0
      %1830 = vmatpush1.bf16.msra.mxu0 0
      %1831 = vmatprep.subr.bf16.mxu0 0
      %1832 = vmatpush1.bf16.msra.mxu0 0
      %1833 = vmatprep.subr.bf16.mxu0 0
      %1834 = vmatpush1.bf16.msra.mxu0 0
      %1835 = vmatprep.subr.bf16.mxu0 0
      %1836 = vmatpush1.bf16.msra.mxu0 0
      %1837 = vmatprep.mubr.bf16.mxu0 0
      %1838 = vmatmul.mubr.bf16.gmra.mrb[0].mxu0 %v1782
      %v1839 = vpop.f32.mrb[0].mxu0
      %v1840 = vadd.f32 0.0, %v1839
      %v1841 = vpop.f32.mrb[0].mxu0
      %v1842 = vpop.f32.mrb[0].mxu0
      %v1843 = vadd.f32 0.0, %v1842
      %v1844 = vpop.f32.mrb[0].mxu0
      %1845 = vmatprep.mubr.bf16.mxu0 0
      %1846 = vmatmul.mubr.bf16.gmra.mrb[0].mxu0 %v1785
      %v1847 = vpop.f32.mrb[0].mxu0
      %v1848 = vadd.f32 0.0, %v1847
      %v1849 = vpop.f32.mrb[0].mxu0
      %v1850 = vpop.f32.mrb[0].mxu0
      %v1851 = vadd.f32 0.0, %v1850
      %v1852 = vpop.f32.mrb[0].mxu0
      %1853 = vmatprep.mubr.bf16.mxu0 0
      %1854 = vmatmul.mubr.bf16.gmra.mrb[0].mxu0 %v1788
      %v1855 = vpop.f32.mrb[0].mxu0
      %v1856 = vadd.f32 0.0, %v1855
      %v1857 = vpop.f32.mrb[0].mxu0
      %v1858 = vpop.f32.mrb[0].mxu0
      %v1859 = vadd.f32 0.0, %v1858
      %v1860 = vpop.f32.mrb[0].mxu0
      %1861 = vmatprep.mubr.bf16.mxu0 0
      %1862 = vmatmul.mubr.bf16.gmra.mrb[0].mxu0 %v1791
      %v1863 = vpop.f32.mrb[0].mxu0
      %v1864 = vadd.f32 0.0, %v1863
      %v1865 = vpop.f32.mrb[0].mxu0
      %v1866 = vpop.f32.mrb[0].mxu0
      %v1867 = vadd.f32 0.0, %v1866
      %v1868 = vpop.f32.mrb[0].mxu0
      %1869 = vmatprep.mubr.bf16.mxu0 0
      %1870 = vmatmul.mubr.bf16.gmra.mrb[0].mxu0 %v1794
      %v1871 = vpop.f32.mrb[0].mxu0
      %v1872 = vadd.f32 0.0, %v1871
      %v1873 = vpop.f32.mrb[0].mxu0
      %v1874 = vpop.f32.mrb[0].mxu0
      %v1875 = vadd.f32 0.0, %v1874
      %v1876 = vpop.f32.mrb[0].mxu0
      %1877 = vmatprep.mubr.bf16.mxu0 0
      %1878 = vmatmul.mubr.bf16.gmra.mrb[0].mxu0 %v1797
      %v1879 = vpop.f32.mrb[0].mxu0
      %v1880 = vadd.f32 0.0, %v1879
      %v1881 = vpop.f32.mrb[0].mxu0
      %v1882 = vpop.f32.mrb[0].mxu0
      %v1883 = vadd.f32 0.0, %v1882
      %v1884 = vpop.f32.mrb[0].mxu0
      %1885 = vmatprep.mubr.bf16.mxu0 0
      %1886 = vmatmul.mubr.bf16.gmra.mrb[0].mxu0 %v1800
      %v1887 = vpop.f32.mrb[0].mxu0
      %v1888 = vadd.f32 0.0, %v1887
      %v1889 = vpop.f32.mrb[0].mxu0
      %v1890 = vpop.f32.mrb[0].mxu0
      %v1891 = vpop.f32.mrb[0].mxu0
      %1892 = vdwg.mxu0
      %v1893 = vpack.c.bf16 %v1843, %v1840
      %v1894 = vpack.c.bf16 %v1851, %v1848
      %v1895 = vpack.c.bf16 %v1859, %v1856
      %v1896 = vpack.c.bf16 %v1867, %v1864
      %v1897 = vpack.c.bf16 %v1875, %v1872
      %v1898 = vpack.c.bf16 %v1883, %v1880
      %v1899 = vpack.c.bf16 %v1888, %v1888
      %v1907 = vunpack.c.l.b16 %v1893
      %v1908 = vunpack.c.h.b16 %v1893
      %v1909 = vunpack.c.l.b16 %v1894
      %v1910 = vunpack.c.h.b16 %v1894
      %v1911 = vunpack.c.l.b16 %v1895
      %v1912 = vunpack.c.h.b16 %v1895
      %v1913 = vunpack.c.l.b16 %v1896
      %v1914 = vunpack.c.h.b16 %v1896
      %v1915 = vunpack.c.l.b16 %v1897
      %v1916 = vunpack.c.h.b16 %v1897
      %v1917 = vunpack.c.l.b16 %v1898
      %v1918 = vunpack.c.h.b16 %v1898
      %v1919 = vunpack.c.l.b16 %v1899
      %v1920 = vpack.c.b16 %v1907, %v1907
      %v1921 = vpack.c.b16 %v1908, %v1908
      %v1922 = vpack.c.b16 %v1909, %v1909
      %v1923 = vpack.c.b16 %v1910, %v1910
      %v1924 = vpack.c.b16 %v1911, %v1911
      %v1925 = vpack.c.b16 %v1912, %v1912
      %v1926 = vpack.c.b16 %v1913, %v1913
      %v1927 = vpack.c.b16 %v1914, %v1914
      %v1928 = vpack.c.b16 %v1915, %v1915
      %v1929 = vpack.c.b16 %v1916, %v1916
      %v1930 = vpack.c.b16 %v1917, %v1917
      %v1931 = vpack.c.b16 %v1918, %v1918
      %v1932 = vpack.c.b16 %v1919, %v1919
      %1933 = vrot.lane.b32.xlu0 %v1920, 6
      %v1934 = vpop.permute.xlu0 %1933
      %1935 = vrot.lane.b32.xlu0 %v1921, 6
      %v1936 = vpop.permute.xlu0 %1935
      %1937 = vrot.lane.b32.xlu0 %v1922, 6
      %v1938 = vpop.permute.xlu0 %1937
      %1939 = vrot.lane.b32.xlu0 %v1923, 6
      %v1940 = vpop.permute.xlu0 %1939
      %1941 = vrot.lane.b32.xlu0 %v1924, 6
      %v1942 = vpop.permute.xlu0 %1941
      %1943 = vrot.lane.b32.xlu0 %v1925, 6
      %v1944 = vpop.permute.xlu0 %1943
      %1945 = vrot.lane.b32.xlu0 %v1926, 6
      %v1946 = vpop.permute.xlu0 %1945
      %1947 = vrot.lane.b32.xlu0 %v1927, 6
      %v1948 = vpop.permute.xlu0 %1947
      %1949 = vrot.lane.b32.xlu0 %v1928, 6
      %v1950 = vpop.permute.xlu0 %1949
      %1951 = vrot.lane.b32.xlu0 %v1929, 6
      %v1952 = vpop.permute.xlu0 %1951
      %1953 = vrot.lane.b32.xlu0 %v1930, 6
      %v1954 = vpop.permute.xlu0 %1953
      %1955 = vrot.lane.b32.xlu0 %v1931, 6
      %v1956 = vpop.permute.xlu0 %1955
      %1957 = vrot.lane.b32.xlu0 %v1932, 6
      %v1958 = vpop.permute.xlu0 %1957
      %vm1972 = vcmask 93232
      %1973 = vst.msk [vmem:[#allocation3] sm:$0xf] %vm1972, %v1934
      %1974 = vst.msk [vmem:[#allocation3 + $0x4] sm:$0xf] %vm1972, %v1936
      %1975 = vst.msk [vmem:[#allocation3 + $0x8] sm:$0xf] %vm1972, %v1938
      %1976 = vst.msk [vmem:[#allocation3 + $0xc] sm:$0xf] %vm1972, %v1940
      %1977 = vst.msk [vmem:[#allocation3 + $0x10] sm:$0xf] %vm1972, %v1942
      %1978 = vst.msk [vmem:[#allocation3 + $0x14] sm:$0xf] %vm1972, %v1944
      %1979 = vst.msk [vmem:[#allocation3 + $0x18] sm:$0xf] %vm1972, %v1946
      %1980 = vst.msk [vmem:[#allocation3 + $0x1c] sm:$0xf] %vm1972, %v1948
      %1981 = vst.msk [vmem:[#allocation3 + $0x20] sm:$0xf] %vm1972, %v1950
      %1982 = vst.msk [vmem:[#allocation3 + $0x24] sm:$0xf] %vm1972, %v1952
      %1983 = vst.msk [vmem:[#allocation3 + $0x28] sm:$0xf] %vm1972, %v1954
      %1984 = vst.msk [vmem:[#allocation3 + $0x2c] sm:$0xf] %vm1972, %v1956
      %1985 = vst.msk [vmem:[#allocation3 + $0x30] sm:$0xf] %vm1972, %v1958
      %v1986 = vld [vmem:[#allocation2] sm:$0xf]
      %v1987 = vld [vmem:[#allocation2 + $0x4] sm:$0xf]
      %v1988 = vld [vmem:[#allocation2 + $0x8] sm:$0xf]
      %v1989 = vld [vmem:[#allocation2 + $0xc] sm:$0xf]
      %v1990 = vld [vmem:[#allocation2 + $0x10] sm:$0xf]
      %v1991 = vld [vmem:[#allocation2 + $0x14] sm:$0xf]
      %v1992 = vld [vmem:[#allocation2 + $0x18] sm:$0xf]
      %v1993 = vld [vmem:[#allocation2 + $0x1c] sm:$0xf]
      %v1994 = vld [vmem:[#allocation2 + $0x20] sm:$0xf]
      %v1995 = vld [vmem:[#allocation2 + $0x24] sm:$0xf]
      %v1996 = vld [vmem:[#allocation2 + $0x28] sm:$0xf]
      %v1997 = vld [vmem:[#allocation2 + $0x2c] sm:$0xf]
      %v1998 = vld [vmem:[#allocation2 + $0x30] sm:$0xf]
      %v2012 = vunpack.c.l.b16 %v1986
      %v2013 = vunpack.c.l.b16 %v1987
      %v2014 = vunpack.c.l.b16 %v1988
      %v2015 = vunpack.c.l.b16 %v1989
      %v2016 = vunpack.c.l.b16 %v1990
      %v2017 = vunpack.c.l.b16 %v1991
      %v2018 = vunpack.c.l.b16 %v1992
      %v2019 = vunpack.c.l.b16 %v1993
      %v2020 = vunpack.c.l.b16 %v1994
      %v2021 = vunpack.c.l.b16 %v1995
      %v2022 = vunpack.c.l.b16 %v1996
      %v2023 = vunpack.c.l.b16 %v1997
      %v2024 = vunpack.c.l.b16 %v1998
      %v2025 = vpack.c.b16 %v2013, %v2012
      %v2026 = vpack.c.b16 %v2015, %v2014
      %v2027 = vpack.c.b16 %v2017, %v2016
      %v2028 = vpack.c.b16 %v2019, %v2018
      %v2029 = vpack.c.b16 %v2021, %v2020
      %v2030 = vpack.c.b16 %v2023, %v2022
      %v2031 = vpack.c.b16 %v2024, %v2024
      %2032 = vrot.lane.b32.xlu0 %v2025, 116
      %v2033 = vpop.permute.xlu0 %2032
      %2034 = vrot.lane.b32.xlu0 %v2026, 116
      %v2035 = vpop.permute.xlu0 %2034
      %2036 = vrot.lane.b32.xlu0 %v2027, 116
      %v2037 = vpop.permute.xlu0 %2036
      %2038 = vrot.lane.b32.xlu0 %v2028, 116
      %v2039 = vpop.permute.xlu0 %2038
      %2040 = vrot.lane.b32.xlu0 %v2029, 116
      %v2041 = vpop.permute.xlu0 %2040
      %2042 = vrot.lane.b32.xlu0 %v2030, 116
      %v2043 = vpop.permute.xlu0 %2042
      %2044 = vrot.lane.b32.xlu0 %v2031, 116
      %v2045 = vpop.permute.xlu0 %2044
      %2046 = vrot.lane.b32.xlu0 %v2025, 92
      %v2047 = vpop.permute.xlu0 %2046
      %2048 = vrot.lane.b32.xlu0 %v2026, 92
      %v2049 = vpop.permute.xlu0 %2048
      %2050 = vrot.lane.b32.xlu0 %v2027, 92
      %v2051 = vpop.permute.xlu0 %2050
      %2052 = vrot.lane.b32.xlu0 %v2028, 92
      %v2053 = vpop.permute.xlu0 %2052
      %2054 = vrot.lane.b32.xlu0 %v2029, 92
      %v2055 = vpop.permute.xlu0 %2054
      %2056 = vrot.lane.b32.xlu0 %v2030, 92
      %v2057 = vpop.permute.xlu0 %2056
      %2058 = vrot.lane.b32.xlu0 %v2031, 92
      %v2059 = vpop.permute.xlu0 %2058
      %v2061 = vsel %vm874, %v2033, 0
      %v2064 = vsel %vm874, %v2035, 0
      %v2067 = vsel %vm874, %v2037, 0
      %v2070 = vsel %vm874, %v2039, 0
      %v2073 = vsel %vm874, %v2041, 0
      %v2076 = vsel %vm874, %v2043, 0
      %v2079 = vsel %vm874, %v2045, 0
      %v2082 = vsel %vm874, %v2047, 0
      %v2085 = vsel %vm874, %v2049, 0
      %v2088 = vsel %vm874, %v2051, 0
      %v2091 = vsel %vm874, %v2053, 0
      %v2094 = vsel %vm874, %v2055, 0
      %v2097 = vsel %vm874, %v2057, 0
      %v2100 = vsel %vm874, %v2059, 0
      %2102 = vmatprep.subr.bf16.mxu0 0
      %2103 = vmatpush1.bf16.xpose.msra.mxu0 %v2082
      %2104 = vmatprep.subr.bf16.mxu0 0
      %2105 = vmatpush1.bf16.xpose.msra.mxu0 %v2085
      %2106 = vmatprep.subr.bf16.mxu0 0
      %2107 = vmatpush1.bf16.xpose.msra.mxu0 %v2088
      %2108 = vmatprep.subr.bf16.mxu0 0
      %2109 = vmatpush1.bf16.xpose.msra.mxu0 %v2091
      %2110 = vmatprep.subr.bf16.mxu0 0
      %2111 = vmatpush1.bf16.xpose.msra.mxu0 %v2094
      %2112 = vmatprep.subr.bf16.mxu0 0
      %2113 = vmatpush1.bf16.xpose.msra.mxu0 %v2097
      %2114 = vmatprep.subr.bf16.mxu0 0
      %2115 = vmatpush1.bf16.xpose.msra.mxu0 %v2100
      %2116 = vmatprep.subr.bf16.mxu0 0
      %2117 = vmatpush1.bf16.xpose.msra.mxu0 0
      %2118 = vmatprep.subr.bf16.mxu0 0
      %2119 = vmatpush1.bf16.xpose.msra.mxu0 0
      %2120 = vmatprep.subr.bf16.mxu0 0
      %2121 = vmatpush1.bf16.xpose.msra.mxu0 0
      %2122 = vmatprep.subr.bf16.mxu0 0
      %2123 = vmatpush1.bf16.xpose.msra.mxu0 0
      %2124 = vmatprep.subr.bf16.mxu0 0
      %2125 = vmatpush1.bf16.xpose.msra.mxu0 0
      %2126 = vmatprep.subr.bf16.mxu0 0
      %2127 = vmatpush1.bf16.xpose.msra.mxu0 0
      %2128 = vmatprep.subr.bf16.mxu0 0
      %2129 = vmatpush1.bf16.xpose.msra.mxu0 0
      %2130 = vmatprep.subr.bf16.mxu0 0
      %2131 = vmatpush1.bf16.xpose.msra.mxu0 0
      %2132 = vmatprep.subr.bf16.mxu0 0
      %2133 = vmatpush1.bf16.xpose.msra.mxu0 0
      %2134 = vmatprep.mubr.bf16.mxu0 0
      %2135 = vmatmul.mubr.bf16.gmra.mrb[0].mxu0 %v2061
      %v2136 = vpop.f32.mrb[0].mxu0
      %v2137 = vadd.f32 0.0, %v2136
      %v2138 = vpop.f32.mrb[0].mxu0
      %v2139 = vpop.f32.mrb[0].mxu0
      %v2140 = vadd.f32 0.0, %v2139
      %v2141 = vpop.f32.mrb[0].mxu0
      %2142 = vmatprep.mubr.bf16.mxu0 0
      %2143 = vmatmul.mubr.bf16.gmra.mrb[0].mxu0 %v2064
      %v2144 = vpop.f32.mrb[0].mxu0
      %v2145 = vadd.f32 0.0, %v2144
      %v2146 = vpop.f32.mrb[0].mxu0
      %v2147 = vpop.f32.mrb[0].mxu0
      %v2148 = vadd.f32 0.0, %v2147
      %v2149 = vpop.f32.mrb[0].mxu0
      %2150 = vmatprep.mubr.bf16.mxu0 0
      %2151 = vmatmul.mubr.bf16.gmra.mrb[0].mxu0 %v2067
      %v2152 = vpop.f32.mrb[0].mxu0
      %v2153 = vadd.f32 0.0, %v2152
      %v2154 = vpop.f32.mrb[0].mxu0
      %v2155 = vpop.f32.mrb[0].mxu0
      %v2156 = vadd.f32 0.0, %v2155
      %v2157 = vpop.f32.mrb[0].mxu0
      %2158 = vmatprep.mubr.bf16.mxu0 0
      %2159 = vmatmul.mubr.bf16.gmra.mrb[0].mxu0 %v2070
      %v2160 = vpop.f32.mrb[0].mxu0
      %v2161 = vadd.f32 0.0, %v2160
      %v2162 = vpop.f32.mrb[0].mxu0
      %v2163 = vpop.f32.mrb[0].mxu0
      %v2164 = vadd.f32 0.0, %v2163
      %v2165 = vpop.f32.mrb[0].mxu0
      %2166 = vmatprep.mubr.bf16.mxu0 0
      %2167 = vmatmul.mubr.bf16.gmra.mrb[0].mxu0 %v2073
      %v2168 = vpop.f32.mrb[0].mxu0
      %v2169 = vadd.f32 0.0, %v2168
      %v2170 = vpop.f32.mrb[0].mxu0
      %v2171 = vpop.f32.mrb[0].mxu0
      %v2172 = vadd.f32 0.0, %v2171
      %v2173 = vpop.f32.mrb[0].mxu0
      %2174 = vmatprep.mubr.bf16.mxu0 0
      %2175 = vmatmul.mubr.bf16.gmra.mrb[0].mxu0 %v2076
      %v2176 = vpop.f32.mrb[0].mxu0
      %v2177 = vadd.f32 0.0, %v2176
      %v2178 = vpop.f32.mrb[0].mxu0
      %v2179 = vpop.f32.mrb[0].mxu0
      %v2180 = vadd.f32 0.0, %v2179
      %v2181 = vpop.f32.mrb[0].mxu0
      %2182 = vmatprep.mubr.bf16.mxu0 0
      %2183 = vmatmul.mubr.bf16.gmra.mrb[0].mxu0 %v2079
      %v2184 = vpop.f32.mrb[0].mxu0
      %v2185 = vadd.f32 0.0, %v2184
      %v2186 = vpop.f32.mrb[0].mxu0
      %v2187 = vpop.f32.mrb[0].mxu0
      %v2188 = vpop.f32.mrb[0].mxu0
      %2189 = vdwg.mxu0
      %v2190 = vmul.f32 %v2137, 0.4082483
      %v2191 = vmul.f32 %v2140, 0.4082483
      %v2192 = vmul.f32 %v2145, 0.4082483
      %v2193 = vmul.f32 %v2148, 0.4082483
      %v2194 = vmul.f32 %v2153, 0.4082483
      %v2195 = vmul.f32 %v2156, 0.4082483
      %v2196 = vmul.f32 %v2161, 0.4082483
      %v2197 = vmul.f32 %v2164, 0.4082483
      %v2198 = vmul.f32 %v2169, 0.4082483
      %v2199 = vmul.f32 %v2172, 0.4082483
      %v2200 = vmul.f32 %v2177, 0.4082483
      %v2201 = vmul.f32 %v2180, 0.4082483
      %v2202 = vmul.f32 %v2185, 0.4082483
      %v2203 = vsel %vm813, %v2190, -1e+30
      %v2204 = vsel %vm813, %v2191, -1e+30
      %v2205 = vsel %vm813, %v2192, -1e+30
      %v2206 = vsel %vm813, %v2193, -1e+30
      %v2207 = vsel %vm813, %v2194, -1e+30
      %v2208 = vsel %vm813, %v2195, -1e+30
      %v2209 = vsel %vm813, %v2196, -1e+30
      %v2210 = vsel %vm813, %v2197, -1e+30
      %v2211 = vsel %vm813, %v2198, -1e+30
      %v2212 = vsel %vm813, %v2199, -1e+30
      %v2213 = vsel %vm813, %v2200, -1e+30
      %v2214 = vsel %vm813, %v2201, -1e+30
      %v2215 = vsel %vm813, %v2202, -1e+30
      %v2216 = vsel %vm1031, %v2203, -inf
      %2217 = vmax.xlane.f32.xlu0 %v2216
      %v2218 = vpop.xlane.xlu0 %2217
      %v2219 = vsel %vm1031, %v2204, -inf
      %2220 = vmax.xlane.f32.xlu0 %v2219
      %v2221 = vpop.xlane.xlu0 %2220
      %v2222 = vsel %vm1031, %v2205, -inf
      %2223 = vmax.xlane.f32.xlu0 %v2222
      %v2224 = vpop.xlane.xlu0 %2223
      %v2225 = vsel %vm1031, %v2206, -inf
      %2226 = vmax.xlane.f32.xlu0 %v2225
      %v2227 = vpop.xlane.xlu0 %2226
      %v2228 = vsel %vm1031, %v2207, -inf
      %2229 = vmax.xlane.f32.xlu0 %v2228
      %v2230 = vpop.xlane.xlu0 %2229
      %v2231 = vsel %vm1031, %v2208, -inf
      %2232 = vmax.xlane.f32.xlu0 %v2231
      %v2233 = vpop.xlane.xlu0 %2232
      %v2234 = vsel %vm1031, %v2209, -inf
      %2235 = vmax.xlane.f32.xlu0 %v2234
      %v2236 = vpop.xlane.xlu0 %2235
      %v2237 = vsel %vm1031, %v2210, -inf
      %2238 = vmax.xlane.f32.xlu0 %v2237
      %v2239 = vpop.xlane.xlu0 %2238
      %v2240 = vsel %vm1031, %v2211, -inf
      %2241 = vmax.xlane.f32.xlu0 %v2240
      %v2242 = vpop.xlane.xlu0 %2241
      %v2243 = vsel %vm1031, %v2212, -inf
      %2244 = vmax.xlane.f32.xlu0 %v2243
      %v2245 = vpop.xlane.xlu0 %2244
      %v2246 = vsel %vm1031, %v2213, -inf
      %2247 = vmax.xlane.f32.xlu0 %v2246
      %v2248 = vpop.xlane.xlu0 %2247
      %v2249 = vsel %vm1031, %v2214, -inf
      %2250 = vmax.xlane.f32.xlu0 %v2249
      %v2251 = vpop.xlane.xlu0 %2250
      %v2252 = vsel %vm1031, %v2215, -inf
      %2253 = vmax.xlane.f32.xlu0 %v2252
      %v2254 = vpop.xlane.xlu0 %2253
      %v2255 = vsub.f32 %v2203, %v2218
      %v2256 = vsub.f32 %v2204, %v2221
      %v2257 = vsub.f32 %v2205, %v2224
      %v2258 = vsub.f32 %v2206, %v2227
      %v2259 = vsub.f32 %v2207, %v2230
      %v2260 = vsub.f32 %v2208, %v2233
      %v2261 = vsub.f32 %v2209, %v2236
      %v2262 = vsub.f32 %v2210, %v2239
      %v2263 = vsub.f32 %v2211, %v2242
      %v2264 = vsub.f32 %v2212, %v2245
      %v2265 = vsub.f32 %v2213, %v2248
      %v2266 = vsub.f32 %v2214, %v2251
      %v2267 = vsub.f32 %v2215, %v2254
      %v2268 = vmul.f32 %v2255, 1.442695
      %v2269 = vpow.pop %v2268
      %v2270 = vmul.f32 %v2256, 1.442695
      %v2271 = vpow.pop %v2270
      %v2272 = vmul.f32 %v2257, 1.442695
      %v2273 = vpow.pop %v2272
      %v2274 = vmul.f32 %v2258, 1.442695
      %v2275 = vpow.pop %v2274
      %v2276 = vmul.f32 %v2259, 1.442695
      %v2277 = vpow.pop %v2276
      %v2278 = vmul.f32 %v2260, 1.442695
      %v2279 = vpow.pop %v2278
      %v2280 = vmul.f32 %v2261, 1.442695
      %v2281 = vpow.pop %v2280
      %v2282 = vmul.f32 %v2262, 1.442695
      %v2283 = vpow.pop %v2282
      %v2284 = vmul.f32 %v2263, 1.442695
      %v2285 = vpow.pop %v2284
      %v2286 = vmul.f32 %v2264, 1.442695
      %v2287 = vpow.pop %v2286
      %v2288 = vmul.f32 %v2265, 1.442695
      %v2289 = vpow.pop %v2288
      %v2290 = vmul.f32 %v2266, 1.442695
      %v2291 = vpow.pop %v2290
      %v2292 = vmul.f32 %v2267, 1.442695
      %v2293 = vpow.pop %v2292
      %v2294 = vsel %vm1031, %v2269, 0.0
      %2295 = vadd.xlane.f32.xlu0 %v2294
      %v2296 = vpop.xlane.xlu0 %2295
      %v2297 = vsel %vm1031, %v2271, 0.0
      %2298 = vadd.xlane.f32.xlu0 %v2297
      %v2299 = vpop.xlane.xlu0 %2298
      %v2300 = vsel %vm1031, %v2273, 0.0
      %2301 = vadd.xlane.f32.xlu0 %v2300
      %v2302 = vpop.xlane.xlu0 %2301
      %v2303 = vsel %vm1031, %v2275, 0.0
      %2304 = vadd.xlane.f32.xlu0 %v2303
      %v2305 = vpop.xlane.xlu0 %2304
      %v2306 = vsel %vm1031, %v2277, 0.0
      %2307 = vadd.xlane.f32.xlu0 %v2306
      %v2308 = vpop.xlane.xlu0 %2307
      %v2309 = vsel %vm1031, %v2279, 0.0
      %2310 = vadd.xlane.f32.xlu0 %v2309
      %v2311 = vpop.xlane.xlu0 %2310
      %v2312 = vsel %vm1031, %v2281, 0.0
      %2313 = vadd.xlane.f32.xlu0 %v2312
      %v2314 = vpop.xlane.xlu0 %2313
      %v2315 = vsel %vm1031, %v2283, 0.0
      %2316 = vadd.xlane.f32.xlu0 %v2315
      %v2317 = vpop.xlane.xlu0 %2316
      %v2318 = vsel %vm1031, %v2285, 0.0
      %2319 = vadd.xlane.f32.xlu0 %v2318
      %v2320 = vpop.xlane.xlu0 %2319
      %v2321 = vsel %vm1031, %v2287, 0.0
      %2322 = vadd.xlane.f32.xlu0 %v2321
      %v2323 = vpop.xlane.xlu0 %2322
      %v2324 = vsel %vm1031, %v2289, 0.0
      %2325 = vadd.xlane.f32.xlu0 %v2324
      %v2326 = vpop.xlane.xlu0 %2325
      %v2327 = vsel %vm1031, %v2291, 0.0
      %2328 = vadd.xlane.f32.xlu0 %v2327
      %v2329 = vpop.xlane.xlu0 %2328
      %v2330 = vsel %vm1031, %v2293, 0.0
      %2331 = vadd.xlane.f32.xlu0 %v2330
      %v2332 = vpop.xlane.xlu0 %2331
      %v2333 = vrcp.pop %v2296
      %v2334 = vrcp.pop %v2299
      %v2335 = vrcp.pop %v2302
      %v2336 = vrcp.pop %v2305
      %v2337 = vrcp.pop %v2308
      %v2338 = vrcp.pop %v2311
      %v2339 = vrcp.pop %v2314
      %v2340 = vrcp.pop %v2317
      %v2341 = vrcp.pop %v2320
      %v2342 = vrcp.pop %v2323
      %v2343 = vrcp.pop %v2326
      %v2344 = vrcp.pop %v2329
      %v2345 = vrcp.pop %v2332
      %v2346 = vmul.f32 %v2269, %v2333
      %v2347 = vmul.f32 %v2271, %v2334
      %v2348 = vmul.f32 %v2273, %v2335
      %v2349 = vmul.f32 %v2275, %v2336
      %v2350 = vmul.f32 %v2277, %v2337
      %v2351 = vmul.f32 %v2279, %v2338
      %v2352 = vmul.f32 %v2281, %v2339
      %v2353 = vmul.f32 %v2283, %v2340
      %v2354 = vmul.f32 %v2285, %v2341
      %v2355 = vmul.f32 %v2287, %v2342
      %v2356 = vmul.f32 %v2289, %v2343
      %v2357 = vmul.f32 %v2291, %v2344
      %v2358 = vmul.f32 %v2293, %v2345
      %v2359 = vpack.c.bf16 %v2347, %v2346
      %v2360 = vpack.c.bf16 %v2349, %v2348
      %v2361 = vpack.c.bf16 %v2351, %v2350
      %v2362 = vpack.c.bf16 %v2353, %v2352
      %v2363 = vpack.c.bf16 %v2355, %v2354
      %v2364 = vpack.c.bf16 %v2357, %v2356
      %v2365 = vpack.c.bf16 %v2358, %v2358
      %2366 = vrot.lane.b32.xlu0 %v2025, 68
      %v2367 = vpop.permute.xlu0 %2366
      %2368 = vrot.lane.b32.xlu0 %v2026, 68
      %v2369 = vpop.permute.xlu0 %2368
      %2370 = vrot.lane.b32.xlu0 %v2027, 68
      %v2371 = vpop.permute.xlu0 %2370
      %2372 = vrot.lane.b32.xlu0 %v2028, 68
      %v2373 = vpop.permute.xlu0 %2372
      %2374 = vrot.lane.b32.xlu0 %v2029, 68
      %v2375 = vpop.permute.xlu0 %2374
      %2376 = vrot.lane.b32.xlu0 %v2030, 68
      %v2377 = vpop.permute.xlu0 %2376
      %2378 = vrot.lane.b32.xlu0 %v2031, 68
      %v2379 = vpop.permute.xlu0 %2378
      %v2387 = vsel %vm1031, %v2359, 0
      %v2390 = vsel %vm1031, %v2360, 0
      %v2393 = vsel %vm1031, %v2361, 0
      %v2396 = vsel %vm1031, %v2362, 0
      %v2399 = vsel %vm1031, %v2363, 0
      %v2402 = vsel %vm1031, %v2364, 0
      %v2405 = vsel %vm1031, %v2365, 0
      %v2408 = vsel %vm652, %v2379, 0
      %2410 = vmatprep.subr.bf16.mxu0 0
      %2411 = vmatpush1.bf16.msra.mxu0 %v2367
      %2412 = vmatprep.subr.bf16.mxu0 0
      %2413 = vmatpush1.bf16.msra.mxu0 %v2369
      %2414 = vmatprep.subr.bf16.mxu0 0
      %2415 = vmatpush1.bf16.msra.mxu0 %v2371
      %2416 = vmatprep.subr.bf16.mxu0 0
      %2417 = vmatpush1.bf16.msra.mxu0 %v2373
      %2418 = vmatprep.subr.bf16.mxu0 0
      %2419 = vmatpush1.bf16.msra.mxu0 %v2375
      %2420 = vmatprep.subr.bf16.mxu0 0
      %2421 = vmatpush1.bf16.msra.mxu0 %v2377
      %2422 = vmatprep.subr.bf16.mxu0 0
      %2423 = vmatpush1.bf16.msra.mxu0 %v2408
      %2424 = vmatprep.subr.bf16.mxu0 0
      %2425 = vmatpush1.bf16.msra.mxu0 0
      %2426 = vmatprep.subr.bf16.mxu0 0
      %2427 = vmatpush1.bf16.msra.mxu0 0
      %2428 = vmatprep.subr.bf16.mxu0 0
      %2429 = vmatpush1.bf16.msra.mxu0 0
      %2430 = vmatprep.subr.bf16.mxu0 0
      %2431 = vmatpush1.bf16.msra.mxu0 0
      %2432 = vmatprep.subr.bf16.mxu0 0
      %2433 = vmatpush1.bf16.msra.mxu0 0
      %2434 = vmatprep.subr.bf16.mxu0 0
      %2435 = vmatpush1.bf16.msra.mxu0 0
      %2436 = vmatprep.subr.bf16.mxu0 0
      %2437 = vmatpush1.bf16.msra.mxu0 0
      %2438 = vmatprep.subr.bf16.mxu0 0
      %2439 = vmatpush1.bf16.msra.mxu0 0
      %2440 = vmatprep.subr.bf16.mxu0 0
      %2441 = vmatpush1.bf16.msra.mxu0 0
      %2442 = vmatprep.mubr.bf16.mxu0 0
      %2443 = vmatmul.mubr.bf16.gmra.mrb[0].mxu0 %v2387
      %v2444 = vpop.f32.mrb[0].mxu0
      %v2445 = vadd.f32 0.0, %v2444
      %v2446 = vpop.f32.mrb[0].mxu0
      %v2447 = vpop.f32.mrb[0].mxu0
      %v2448 = vadd.f32 0.0, %v2447
      %v2449 = vpop.f32.mrb[0].mxu0
      %2450 = vmatprep.mubr.bf16.mxu0 0
      %2451 = vmatmul.mubr.bf16.gmra.mrb[0].mxu0 %v2390
      %v2452 = vpop.f32.mrb[0].mxu0
      %v2453 = vadd.f32 0.0, %v2452
      %v2454 = vpop.f32.mrb[0].mxu0
      %v2455 = vpop.f32.mrb[0].mxu0
      %v2456 = vadd.f32 0.0, %v2455
      %v2457 = vpop.f32.mrb[0].mxu0
      %2458 = vmatprep.mubr.bf16.mxu0 0
      %2459 = vmatmul.mubr.bf16.gmra.mrb[0].mxu0 %v2393
      %v2460 = vpop.f32.mrb[0].mxu0
      %v2461 = vadd.f32 0.0, %v2460
      %v2462 = vpop.f32.mrb[0].mxu0
      %v2463 = vpop.f32.mrb[0].mxu0
      %v2464 = vadd.f32 0.0, %v2463
      %v2465 = vpop.f32.mrb[0].mxu0
      %2466 = vmatprep.mubr.bf16.mxu0 0
      %2467 = vmatmul.mubr.bf16.gmra.mrb[0].mxu0 %v2396
      %v2468 = vpop.f32.mrb[0].mxu0
      %v2469 = vadd.f32 0.0, %v2468
      %v2470 = vpop.f32.mrb[0].mxu0
      %v2471 = vpop.f32.mrb[0].mxu0
      %v2472 = vadd.f32 0.0, %v2471
      %v2473 = vpop.f32.mrb[0].mxu0
      %2474 = vmatprep.mubr.bf16.mxu0 0
      %2475 = vmatmul.mubr.bf16.gmra.mrb[0].mxu0 %v2399
      %v2476 = vpop.f32.mrb[0].mxu0
      %v2477 = vadd.f32 0.0, %v2476
      %v2478 = vpop.f32.mrb[0].mxu0
      %v2479 = vpop.f32.mrb[0].mxu0
      %v2480 = vadd.f32 0.0, %v2479
      %v2481 = vpop.f32.mrb[0].mxu0
      %2482 = vmatprep.mubr.bf16.mxu0 0
      %2483 = vmatmul.mubr.bf16.gmra.mrb[0].mxu0 %v2402
      %v2484 = vpop.f32.mrb[0].mxu0
      %v2485 = vadd.f32 0.0, %v2484
      %v2486 = vpop.f32.mrb[0].mxu0
      %v2487 = vpop.f32.mrb[0].mxu0
      %v2488 = vadd.f32 0.0, %v2487
      %v2489 = vpop.f32.mrb[0].mxu0
      %2490 = vmatprep.mubr.bf16.mxu0 0
      %2491 = vmatmul.mubr.bf16.gmra.mrb[0].mxu0 %v2405
      %v2492 = vpop.f32.mrb[0].mxu0
      %v2493 = vadd.f32 0.0, %v2492
      %v2494 = vpop.f32.mrb[0].mxu0
      %v2495 = vpop.f32.mrb[0].mxu0
      %v2496 = vpop.f32.mrb[0].mxu0
      %2497 = vdwg.mxu0
      %v2498 = vpack.c.bf16 %v2448, %v2445
      %v2499 = vpack.c.bf16 %v2456, %v2453
      %v2500 = vpack.c.bf16 %v2464, %v2461
      %v2501 = vpack.c.bf16 %v2472, %v2469
      %v2502 = vpack.c.bf16 %v2480, %v2477
      %v2503 = vpack.c.bf16 %v2488, %v2485
      %v2504 = vpack.c.bf16 %v2493, %v2493
      %v2512 = vunpack.c.l.b16 %v2498
      %v2513 = vunpack.c.h.b16 %v2498
      %v2514 = vunpack.c.l.b16 %v2499
      %v2515 = vunpack.c.h.b16 %v2499
      %v2516 = vunpack.c.l.b16 %v2500
      %v2517 = vunpack.c.h.b16 %v2500
      %v2518 = vunpack.c.l.b16 %v2501
      %v2519 = vunpack.c.h.b16 %v2501
      %v2520 = vunpack.c.l.b16 %v2502
      %v2521 = vunpack.c.h.b16 %v2502
      %v2522 = vunpack.c.l.b16 %v2503
      %v2523 = vunpack.c.h.b16 %v2503
      %v2524 = vunpack.c.l.b16 %v2504
      %v2525 = vpack.c.b16 %v2512, %v2512
      %v2526 = vpack.c.b16 %v2513, %v2513
      %v2527 = vpack.c.b16 %v2514, %v2514
      %v2528 = vpack.c.b16 %v2515, %v2515
      %v2529 = vpack.c.b16 %v2516, %v2516
      %v2530 = vpack.c.b16 %v2517, %v2517
      %v2531 = vpack.c.b16 %v2518, %v2518
      %v2532 = vpack.c.b16 %v2519, %v2519
      %v2533 = vpack.c.b16 %v2520, %v2520
      %v2534 = vpack.c.b16 %v2521, %v2521
      %v2535 = vpack.c.b16 %v2522, %v2522
      %v2536 = vpack.c.b16 %v2523, %v2523
      %v2537 = vpack.c.b16 %v2524, %v2524
      %2538 = vrot.lane.b32.xlu0 %v2525, 12
      %v2539 = vpop.permute.xlu0 %2538
      %2540 = vrot.lane.b32.xlu0 %v2526, 12
      %v2541 = vpop.permute.xlu0 %2540
      %2542 = vrot.lane.b32.xlu0 %v2527, 12
      %v2543 = vpop.permute.xlu0 %2542
      %2544 = vrot.lane.b32.xlu0 %v2528, 12
      %v2545 = vpop.permute.xlu0 %2544
      %2546 = vrot.lane.b32.xlu0 %v2529, 12
      %v2547 = vpop.permute.xlu0 %2546
      %2548 = vrot.lane.b32.xlu0 %v2530, 12
      %v2549 = vpop.permute.xlu0 %2548
      %2550 = vrot.lane.b32.xlu0 %v2531, 12
      %v2551 = vpop.permute.xlu0 %2550
      %2552 = vrot.lane.b32.xlu0 %v2532, 12
      %v2553 = vpop.permute.xlu0 %2552
      %2554 = vrot.lane.b32.xlu0 %v2533, 12
      %v2555 = vpop.permute.xlu0 %2554
      %2556 = vrot.lane.b32.xlu0 %v2534, 12
      %v2557 = vpop.permute.xlu0 %2556
      %2558 = vrot.lane.b32.xlu0 %v2535, 12
      %v2559 = vpop.permute.xlu0 %2558
      %2560 = vrot.lane.b32.xlu0 %v2536, 12
      %v2561 = vpop.permute.xlu0 %2560
      %2562 = vrot.lane.b32.xlu0 %v2537, 12
      %v2563 = vpop.permute.xlu0 %2562
      %vm2577 = vcmask 142432
      %2578 = vst.msk [vmem:[#allocation3] sm:$0xf] %vm2577, %v2539
      %2579 = vst.msk [vmem:[#allocation3 + $0x4] sm:$0xf] %vm2577, %v2541
      %2580 = vst.msk [vmem:[#allocation3 + $0x8] sm:$0xf] %vm2577, %v2543
      %2581 = vst.msk [vmem:[#allocation3 + $0xc] sm:$0xf] %vm2577, %v2545
      %2582 = vst.msk [vmem:[#allocation3 + $0x10] sm:$0xf] %vm2577, %v2547
      %2583 = vst.msk [vmem:[#allocation3 + $0x14] sm:$0xf] %vm2577, %v2549
      %2584 = vst.msk [vmem:[#allocation3 + $0x18] sm:$0xf] %vm2577, %v2551
      %2585 = vst.msk [vmem:[#allocation3 + $0x1c] sm:$0xf] %vm2577, %v2553
      %2586 = vst.msk [vmem:[#allocation3 + $0x20] sm:$0xf] %vm2577, %v2555
      %2587 = vst.msk [vmem:[#allocation3 + $0x24] sm:$0xf] %vm2577, %v2557
      %2588 = vst.msk [vmem:[#allocation3 + $0x28] sm:$0xf] %vm2577, %v2559
      %2589 = vst.msk [vmem:[#allocation3 + $0x2c] sm:$0xf] %vm2577, %v2561
      %2590 = vst.msk [vmem:[#allocation3 + $0x30] sm:$0xf] %vm2577, %v2563
      %v2591 = vld [vmem:[#allocation2] sm:$0xf]
      %v2592 = vld [vmem:[#allocation2 + $0x4] sm:$0xf]
      %v2593 = vld [vmem:[#allocation2 + $0x8] sm:$0xf]
      %v2594 = vld [vmem:[#allocation2 + $0xc] sm:$0xf]
      %v2595 = vld [vmem:[#allocation2 + $0x10] sm:$0xf]
      %v2596 = vld [vmem:[#allocation2 + $0x14] sm:$0xf]
      %v2597 = vld [vmem:[#allocation2 + $0x18] sm:$0xf]
      %v2598 = vld [vmem:[#allocation2 + $0x1c] sm:$0xf]
      %v2599 = vld [vmem:[#allocation2 + $0x20] sm:$0xf]
      %v2600 = vld [vmem:[#allocation2 + $0x24] sm:$0xf]
      %v2601 = vld [vmem:[#allocation2 + $0x28] sm:$0xf]
      %v2602 = vld [vmem:[#allocation2 + $0x2c] sm:$0xf]
      %v2603 = vld [vmem:[#allocation2 + $0x30] sm:$0xf]
      %v2617 = vunpack.c.l.b16 %v2591
      %v2618 = vunpack.c.l.b16 %v2592
      %v2619 = vunpack.c.l.b16 %v2593
      %v2620 = vunpack.c.l.b16 %v2594
      %v2621 = vunpack.c.l.b16 %v2595
      %v2622 = vunpack.c.l.b16 %v2596
      %v2623 = vunpack.c.l.b16 %v2597
      %v2624 = vunpack.c.l.b16 %v2598
      %v2625 = vunpack.c.l.b16 %v2599
      %v2626 = vunpack.c.l.b16 %v2600
      %v2627 = vunpack.c.l.b16 %v2601
      %v2628 = vunpack.c.l.b16 %v2602
      %v2629 = vunpack.c.l.b16 %v2603
      %v2630 = vpack.c.b16 %v2618, %v2617
      %v2631 = vpack.c.b16 %v2620, %v2619
      %v2632 = vpack.c.b16 %v2622, %v2621
      %v2633 = vpack.c.b16 %v2624, %v2623
      %v2634 = vpack.c.b16 %v2626, %v2625
      %v2635 = vpack.c.b16 %v2628, %v2627
      %v2636 = vpack.c.b16 %v2629, %v2629
      %2637 = vrot.lane.b32.xlu0 %v2630, 110
      %v2638 = vpop.permute.xlu0 %2637
      %2639 = vrot.lane.b32.xlu0 %v2631, 110
      %v2640 = vpop.permute.xlu0 %2639
      %2641 = vrot.lane.b32.xlu0 %v2632, 110
      %v2642 = vpop.permute.xlu0 %2641
      %2643 = vrot.lane.b32.xlu0 %v2633, 110
      %v2644 = vpop.permute.xlu0 %2643
      %2645 = vrot.lane.b32.xlu0 %v2634, 110
      %v2646 = vpop.permute.xlu0 %2645
      %2647 = vrot.lane.b32.xlu0 %v2635, 110
      %v2648 = vpop.permute.xlu0 %2647
      %2649 = vrot.lane.b32.xlu0 %v2636, 110
      %v2650 = vpop.permute.xlu0 %2649
      %2651 = vrot.lane.b32.xlu0 %v2630, 86
      %v2652 = vpop.permute.xlu0 %2651
      %2653 = vrot.lane.b32.xlu0 %v2631, 86
      %v2654 = vpop.permute.xlu0 %2653
      %2655 = vrot.lane.b32.xlu0 %v2632, 86
      %v2656 = vpop.permute.xlu0 %2655
      %2657 = vrot.lane.b32.xlu0 %v2633, 86
      %v2658 = vpop.permute.xlu0 %2657
      %2659 = vrot.lane.b32.xlu0 %v2634, 86
      %v2660 = vpop.permute.xlu0 %2659
      %2661 = vrot.lane.b32.xlu0 %v2635, 86
      %v2662 = vpop.permute.xlu0 %2661
      %2663 = vrot.lane.b32.xlu0 %v2636, 86
      %v2664 = vpop.permute.xlu0 %2663
      %v2666 = vsel %vm874, %v2638, 0
      %v2669 = vsel %vm874, %v2640, 0
      %v2672 = vsel %vm874, %v2642, 0
      %v2675 = vsel %vm874, %v2644, 0
      %v2678 = vsel %vm874, %v2646, 0
      %v2681 = vsel %vm874, %v2648, 0
      %v2684 = vsel %vm874, %v2650, 0
      %v2687 = vsel %vm874, %v2652, 0
      %v2690 = vsel %vm874, %v2654, 0
      %v2693 = vsel %vm874, %v2656, 0
      %v2696 = vsel %vm874, %v2658, 0
      %v2699 = vsel %vm874, %v2660, 0
      %v2702 = vsel %vm874, %v2662, 0
      %v2705 = vsel %vm874, %v2664, 0
      %2707 = vmatprep.subr.bf16.mxu0 0
      %2708 = vmatpush1.bf16.xpose.msra.mxu0 %v2687
      %2709 = vmatprep.subr.bf16.mxu0 0
      %2710 = vmatpush1.bf16.xpose.msra.mxu0 %v2690
      %2711 = vmatprep.subr.bf16.mxu0 0
      %2712 = vmatpush1.bf16.xpose.msra.mxu0 %v2693
      %2713 = vmatprep.subr.bf16.mxu0 0
      %2714 = vmatpush1.bf16.xpose.msra.mxu0 %v2696
      %2715 = vmatprep.subr.bf16.mxu0 0
      %2716 = vmatpush1.bf16.xpose.msra.mxu0 %v2699
      %2717 = vmatprep.subr.bf16.mxu0 0
      %2718 = vmatpush1.bf16.xpose.msra.mxu0 %v2702
      %2719 = vmatprep.subr.bf16.mxu0 0
      %2720 = vmatpush1.bf16.xpose.msra.mxu0 %v2705
      %2721 = vmatprep.subr.bf16.mxu0 0
      %2722 = vmatpush1.bf16.xpose.msra.mxu0 0
      %2723 = vmatprep.subr.bf16.mxu0 0
      %2724 = vmatpush1.bf16.xpose.msra.mxu0 0
      %2725 = vmatprep.subr.bf16.mxu0 0
      %2726 = vmatpush1.bf16.xpose.msra.mxu0 0
      %2727 = vmatprep.subr.bf16.mxu0 0
      %2728 = vmatpush1.bf16.xpose.msra.mxu0 0
      %2729 = vmatprep.subr.bf16.mxu0 0
      %2730 = vmatpush1.bf16.xpose.msra.mxu0 0
      %2731 = vmatprep.subr.bf16.mxu0 0
      %2732 = vmatpush1.bf16.xpose.msra.mxu0 0
      %2733 = vmatprep.subr.bf16.mxu0 0
      %2734 = vmatpush1.bf16.xpose.msra.mxu0 0
      %2735 = vmatprep.subr.bf16.mxu0 0
      %2736 = vmatpush1.bf16.xpose.msra.mxu0 0
      %2737 = vmatprep.subr.bf16.mxu0 0
      %2738 = vmatpush1.bf16.xpose.msra.mxu0 0
      %2739 = vmatprep.mubr.bf16.mxu0 0
      %2740 = vmatmul.mubr.bf16.gmra.mrb[0].mxu0 %v2666
      %v2741 = vpop.f32.mrb[0].mxu0
      %v2742 = vadd.f32 0.0, %v2741
      %v2743 = vpop.f32.mrb[0].mxu0
      %v2744 = vpop.f32.mrb[0].mxu0
      %v2745 = vadd.f32 0.0, %v2744
      %v2746 = vpop.f32.mrb[0].mxu0
      %2747 = vmatprep.mubr.bf16.mxu0 0
      %2748 = vmatmul.mubr.bf16.gmra.mrb[0].mxu0 %v2669
      %v2749 = vpop.f32.mrb[0].mxu0
      %v2750 = vadd.f32 0.0, %v2749
      %v2751 = vpop.f32.mrb[0].mxu0
      %v2752 = vpop.f32.mrb[0].mxu0
      %v2753 = vadd.f32 0.0, %v2752
      %v2754 = vpop.f32.mrb[0].mxu0
      %2755 = vmatprep.mubr.bf16.mxu0 0
      %2756 = vmatmul.mubr.bf16.gmra.mrb[0].mxu0 %v2672
      %v2757 = vpop.f32.mrb[0].mxu0
      %v2758 = vadd.f32 0.0, %v2757
      %v2759 = vpop.f32.mrb[0].mxu0
      %v2760 = vpop.f32.mrb[0].mxu0
      %v2761 = vadd.f32 0.0, %v2760
      %v2762 = vpop.f32.mrb[0].mxu0
      %2763 = vmatprep.mubr.bf16.mxu0 0
      %2764 = vmatmul.mubr.bf16.gmra.mrb[0].mxu0 %v2675
      %v2765 = vpop.f32.mrb[0].mxu0
      %v2766 = vadd.f32 0.0, %v2765
      %v2767 = vpop.f32.mrb[0].mxu0
      %v2768 = vpop.f32.mrb[0].mxu0
      %v2769 = vadd.f32 0.0, %v2768
      %v2770 = vpop.f32.mrb[0].mxu0
      %2771 = vmatprep.mubr.bf16.mxu0 0
      %2772 = vmatmul.mubr.bf16.gmra.mrb[0].mxu0 %v2678
      %v2773 = vpop.f32.mrb[0].mxu0
      %v2774 = vadd.f32 0.0, %v2773
      %v2775 = vpop.f32.mrb[0].mxu0
      %v2776 = vpop.f32.mrb[0].mxu0
      %v2777 = vadd.f32 0.0, %v2776
      %v2778 = vpop.f32.mrb[0].mxu0
      %2779 = vmatprep.mubr.bf16.mxu0 0
      %2780 = vmatmul.mubr.bf16.gmra.mrb[0].mxu0 %v2681
      %v2781 = vpop.f32.mrb[0].mxu0
      %v2782 = vadd.f32 0.0, %v2781
      %v2783 = vpop.f32.mrb[0].mxu0
      %v2784 = vpop.f32.mrb[0].mxu0
      %v2785 = vadd.f32 0.0, %v2784
      %v2786 = vpop.f32.mrb[0].mxu0
      %2787 = vmatprep.mubr.bf16.mxu0 0
      %2788 = vmatmul.mubr.bf16.gmra.mrb[0].mxu0 %v2684
      %v2789 = vpop.f32.mrb[0].mxu0
      %v2790 = vadd.f32 0.0, %v2789
      %v2791 = vpop.f32.mrb[0].mxu0
      %v2792 = vpop.f32.mrb[0].mxu0
      %v2793 = vpop.f32.mrb[0].mxu0
      %2794 = vdwg.mxu0
      %v2795 = vmul.f32 %v2742, 0.4082483
      %v2796 = vmul.f32 %v2745, 0.4082483
      %v2797 = vmul.f32 %v2750, 0.4082483
      %v2798 = vmul.f32 %v2753, 0.4082483
      %v2799 = vmul.f32 %v2758, 0.4082483
      %v2800 = vmul.f32 %v2761, 0.4082483
      %v2801 = vmul.f32 %v2766, 0.4082483
      %v2802 = vmul.f32 %v2769, 0.4082483
      %v2803 = vmul.f32 %v2774, 0.4082483
      %v2804 = vmul.f32 %v2777, 0.4082483
      %v2805 = vmul.f32 %v2782, 0.4082483
      %v2806 = vmul.f32 %v2785, 0.4082483
      %v2807 = vmul.f32 %v2790, 0.4082483
      %v2808 = vsel %vm813, %v2795, -1e+30
      %v2809 = vsel %vm813, %v2796, -1e+30
      %v2810 = vsel %vm813, %v2797, -1e+30
      %v2811 = vsel %vm813, %v2798, -1e+30
      %v2812 = vsel %vm813, %v2799, -1e+30
      %v2813 = vsel %vm813, %v2800, -1e+30
      %v2814 = vsel %vm813, %v2801, -1e+30
      %v2815 = vsel %vm813, %v2802, -1e+30
      %v2816 = vsel %vm813, %v2803, -1e+30
      %v2817 = vsel %vm813, %v2804, -1e+30
      %v2818 = vsel %vm813, %v2805, -1e+30
      %v2819 = vsel %vm813, %v2806, -1e+30
      %v2820 = vsel %vm813, %v2807, -1e+30
      %v2821 = vsel %vm1031, %v2808, -inf
      %2822 = vmax.xlane.f32.xlu0 %v2821
      %v2823 = vpop.xlane.xlu0 %2822
      %v2824 = vsel %vm1031, %v2809, -inf
      %2825 = vmax.xlane.f32.xlu0 %v2824
      %v2826 = vpop.xlane.xlu0 %2825
      %v2827 = vsel %vm1031, %v2810, -inf
      %2828 = vmax.xlane.f32.xlu0 %v2827
      %v2829 = vpop.xlane.xlu0 %2828
      %v2830 = vsel %vm1031, %v2811, -inf
      %2831 = vmax.xlane.f32.xlu0 %v2830
      %v2832 = vpop.xlane.xlu0 %2831
      %v2833 = vsel %vm1031, %v2812, -inf
      %2834 = vmax.xlane.f32.xlu0 %v2833
      %v2835 = vpop.xlane.xlu0 %2834
      %v2836 = vsel %vm1031, %v2813, -inf
      %2837 = vmax.xlane.f32.xlu0 %v2836
      %v2838 = vpop.xlane.xlu0 %2837
      %v2839 = vsel %vm1031, %v2814, -inf
      %2840 = vmax.xlane.f32.xlu0 %v2839
      %v2841 = vpop.xlane.xlu0 %2840
      %v2842 = vsel %vm1031, %v2815, -inf
      %2843 = vmax.xlane.f32.xlu0 %v2842
      %v2844 = vpop.xlane.xlu0 %2843
      %v2845 = vsel %vm1031, %v2816, -inf
      %2846 = vmax.xlane.f32.xlu0 %v2845
      %v2847 = vpop.xlane.xlu0 %2846
      %v2848 = vsel %vm1031, %v2817, -inf
      %2849 = vmax.xlane.f32.xlu0 %v2848
      %v2850 = vpop.xlane.xlu0 %2849
      %v2851 = vsel %vm1031, %v2818, -inf
      %2852 = vmax.xlane.f32.xlu0 %v2851
      %v2853 = vpop.xlane.xlu0 %2852
      %v2854 = vsel %vm1031, %v2819, -inf
      %2855 = vmax.xlane.f32.xlu0 %v2854
      %v2856 = vpop.xlane.xlu0 %2855
      %v2857 = vsel %vm1031, %v2820, -inf
      %2858 = vmax.xlane.f32.xlu0 %v2857
      %v2859 = vpop.xlane.xlu0 %2858
      %v2860 = vsub.f32 %v2808, %v2823
      %v2861 = vsub.f32 %v2809, %v2826
      %v2862 = vsub.f32 %v2810, %v2829
      %v2863 = vsub.f32 %v2811, %v2832
      %v2864 = vsub.f32 %v2812, %v2835
      %v2865 = vsub.f32 %v2813, %v2838
      %v2866 = vsub.f32 %v2814, %v2841
      %v2867 = vsub.f32 %v2815, %v2844
      %v2868 = vsub.f32 %v2816, %v2847
      %v2869 = vsub.f32 %v2817, %v2850
      %v2870 = vsub.f32 %v2818, %v2853
      %v2871 = vsub.f32 %v2819, %v2856
      %v2872 = vsub.f32 %v2820, %v2859
      %v2873 = vmul.f32 %v2860, 1.442695
      %v2874 = vpow.pop %v2873
      %v2875 = vmul.f32 %v2861, 1.442695
      %v2876 = vpow.pop %v2875
      %v2877 = vmul.f32 %v2862, 1.442695
      %v2878 = vpow.pop %v2877
      %v2879 = vmul.f32 %v2863, 1.442695
      %v2880 = vpow.pop %v2879
      %v2881 = vmul.f32 %v2864, 1.442695
      %v2882 = vpow.pop %v2881
      %v2883 = vmul.f32 %v2865, 1.442695
      %v2884 = vpow.pop %v2883
      %v2885 = vmul.f32 %v2866, 1.442695
      %v2886 = vpow.pop %v2885
      %v2887 = vmul.f32 %v2867, 1.442695
      %v2888 = vpow.pop %v2887
      %v2889 = vmul.f32 %v2868, 1.442695
      %v2890 = vpow.pop %v2889
      %v2891 = vmul.f32 %v2869, 1.442695
      %v2892 = vpow.pop %v2891
      %v2893 = vmul.f32 %v2870, 1.442695
      %v2894 = vpow.pop %v2893
      %v2895 = vmul.f32 %v2871, 1.442695
      %v2896 = vpow.pop %v2895
      %v2897 = vmul.f32 %v2872, 1.442695
      %v2898 = vpow.pop %v2897
      %v2899 = vsel %vm1031, %v2874, 0.0
      %2900 = vadd.xlane.f32.xlu0 %v2899
      %v2901 = vpop.xlane.xlu0 %2900
      %v2902 = vsel %vm1031, %v2876, 0.0
      %2903 = vadd.xlane.f32.xlu0 %v2902
      %v2904 = vpop.xlane.xlu0 %2903
      %v2905 = vsel %vm1031, %v2878, 0.0
      %2906 = vadd.xlane.f32.xlu0 %v2905
      %v2907 = vpop.xlane.xlu0 %2906
      %v2908 = vsel %vm1031, %v2880, 0.0
      %2909 = vadd.xlane.f32.xlu0 %v2908
      %v2910 = vpop.xlane.xlu0 %2909
      %v2911 = vsel %vm1031, %v2882, 0.0
      %2912 = vadd.xlane.f32.xlu0 %v2911
      %v2913 = vpop.xlane.xlu0 %2912
      %v2914 = vsel %vm1031, %v2884, 0.0
      %2915 = vadd.xlane.f32.xlu0 %v2914
      %v2916 = vpop.xlane.xlu0 %2915
      %v2917 = vsel %vm1031, %v2886, 0.0
      %2918 = vadd.xlane.f32.xlu0 %v2917
      %v2919 = vpop.xlane.xlu0 %2918
      %v2920 = vsel %vm1031, %v2888, 0.0
      %2921 = vadd.xlane.f32.xlu0 %v2920
      %v2922 = vpop.xlane.xlu0 %2921
      %v2923 = vsel %vm1031, %v2890, 0.0
      %2924 = vadd.xlane.f32.xlu0 %v2923
      %v2925 = vpop.xlane.xlu0 %2924
      %v2926 = vsel %vm1031, %v2892, 0.0
      %2927 = vadd.xlane.f32.xlu0 %v2926
      %v2928 = vpop.xlane.xlu0 %2927
      %v2929 = vsel %vm1031, %v2894, 0.0
      %2930 = vadd.xlane.f32.xlu0 %v2929
      %v2931 = vpop.xlane.xlu0 %2930
      %v2932 = vsel %vm1031, %v2896, 0.0
      %2933 = vadd.xlane.f32.xlu0 %v2932
      %v2934 = vpop.xlane.xlu0 %2933
      %v2935 = vsel %vm1031, %v2898, 0.0
      %2936 = vadd.xlane.f32.xlu0 %v2935
      %v2937 = vpop.xlane.xlu0 %2936
      %v2938 = vrcp.pop %v2901
      %v2939 = vrcp.pop %v2904
      %v2940 = vrcp.pop %v2907
      %v2941 = vrcp.pop %v2910
      %v2942 = vrcp.pop %v2913
      %v2943 = vrcp.pop %v2916
      %v2944 = vrcp.pop %v2919
      %v2945 = vrcp.pop %v2922
      %v2946 = vrcp.pop %v2925
      %v2947 = vrcp.pop %v2928
      %v2948 = vrcp.pop %v2931
      %v2949 = vrcp.pop %v2934
      %v2950 = vrcp.pop %v2937
      %v2951 = vmul.f32 %v2874, %v2938
      %v2952 = vmul.f32 %v2876, %v2939
      %v2953 = vmul.f32 %v2878, %v2940
      %v2954 = vmul.f32 %v2880, %v2941
      %v2955 = vmul.f32 %v2882, %v2942
      %v2956 = vmul.f32 %v2884, %v2943
      %v2957 = vmul.f32 %v2886, %v2944
      %v2958 = vmul.f32 %v2888, %v2945
      %v2959 = vmul.f32 %v2890, %v2946
      %v2960 = vmul.f32 %v2892, %v2947
      %v2961 = vmul.f32 %v2894, %v2948
      %v2962 = vmul.f32 %v2896, %v2949
      %v2963 = vmul.f32 %v2898, %v2950
      %v2964 = vpack.c.bf16 %v2952, %v2951
      %v2965 = vpack.c.bf16 %v2954, %v2953
      %v2966 = vpack.c.bf16 %v2956, %v2955
      %v2967 = vpack.c.bf16 %v2958, %v2957
      %v2968 = vpack.c.bf16 %v2960, %v2959
      %v2969 = vpack.c.bf16 %v2962, %v2961
      %v2970 = vpack.c.bf16 %v2963, %v2963
      %2971 = vrot.lane.b32.xlu0 %v2630, 62
      %v2972 = vpop.permute.xlu0 %2971
      %2973 = vrot.lane.b32.xlu0 %v2631, 62
      %v2974 = vpop.permute.xlu0 %2973
      %2975 = vrot.lane.b32.xlu0 %v2632, 62
      %v2976 = vpop.permute.xlu0 %2975
      %2977 = vrot.lane.b32.xlu0 %v2633, 62
      %v2978 = vpop.permute.xlu0 %2977
      %2979 = vrot.lane.b32.xlu0 %v2634, 62
      %v2980 = vpop.permute.xlu0 %2979
      %2981 = vrot.lane.b32.xlu0 %v2635, 62
      %v2982 = vpop.permute.xlu0 %2981
      %2983 = vrot.lane.b32.xlu0 %v2636, 62
      %v2984 = vpop.permute.xlu0 %2983
      %v2992 = vsel %vm1031, %v2964, 0
      %v2995 = vsel %vm1031, %v2965, 0
      %v2998 = vsel %vm1031, %v2966, 0
      %v3001 = vsel %vm1031, %v2967, 0
      %v3004 = vsel %vm1031, %v2968, 0
      %v3007 = vsel %vm1031, %v2969, 0
      %v3010 = vsel %vm1031, %v2970, 0
      %v3013 = vsel %vm652, %v2984, 0
      %3015 = vmatprep.subr.bf16.mxu0 0
      %3016 = vmatpush1.bf16.msra.mxu0 %v2972
      %3017 = vmatprep.subr.bf16.mxu0 0
      %3018 = vmatpush1.bf16.msra.mxu0 %v2974
      %3019 = vmatprep.subr.bf16.mxu0 0
      %3020 = vmatpush1.bf16.msra.mxu0 %v2976
      %3021 = vmatprep.subr.bf16.mxu0 0
      %3022 = vmatpush1.bf16.msra.mxu0 %v2978
      %3023 = vmatprep.subr.bf16.mxu0 0
      %3024 = vmatpush1.bf16.msra.mxu0 %v2980
      %3025 = vmatprep.subr.bf16.mxu0 0
      %3026 = vmatpush1.bf16.msra.mxu0 %v2982
      %3027 = vmatprep.subr.bf16.mxu0 0
      %3028 = vmatpush1.bf16.msra.mxu0 %v3013
      %3029 = vmatprep.subr.bf16.mxu0 0
      %3030 = vmatpush1.bf16.msra.mxu0 0
      %3031 = vmatprep.subr.bf16.mxu0 0
      %3032 = vmatpush1.bf16.msra.mxu0 0
      %3033 = vmatprep.subr.bf16.mxu0 0
      %3034 = vmatpush1.bf16.msra.mxu0 0
      %3035 = vmatprep.subr.bf16.mxu0 0
      %3036 = vmatpush1.bf16.msra.mxu0 0
      %3037 = vmatprep.subr.bf16.mxu0 0
      %3038 = vmatpush1.bf16.msra.mxu0 0
      %3039 = vmatprep.subr.bf16.mxu0 0
      %3040 = vmatpush1.bf16.msra.mxu0 0
      %3041 = vmatprep.subr.bf16.mxu0 0
      %3042 = vmatpush1.bf16.msra.mxu0 0
      %3043 = vmatprep.subr.bf16.mxu0 0
      %3044 = vmatpush1.bf16.msra.mxu0 0
      %3045 = vmatprep.subr.bf16.mxu0 0
      %3046 = vmatpush1.bf16.msra.mxu0 0
      %3047 = vmatprep.mubr.bf16.mxu0 0
      %3048 = vmatmul.mubr.bf16.gmra.mrb[0].mxu0 %v2992
      %v3049 = vpop.f32.mrb[0].mxu0
      %v3050 = vadd.f32 0.0, %v3049
      %v3051 = vpop.f32.mrb[0].mxu0
      %v3052 = vpop.f32.mrb[0].mxu0
      %v3053 = vadd.f32 0.0, %v3052
      %v3054 = vpop.f32.mrb[0].mxu0
      %3055 = vmatprep.mubr.bf16.mxu0 0
      %3056 = vmatmul.mubr.bf16.gmra.mrb[0].mxu0 %v2995
      %v3057 = vpop.f32.mrb[0].mxu0
      %v3058 = vadd.f32 0.0, %v3057
      %v3059 = vpop.f32.mrb[0].mxu0
      %v3060 = vpop.f32.mrb[0].mxu0
      %v3061 = vadd.f32 0.0, %v3060
      %v3062 = vpop.f32.mrb[0].mxu0
      %3063 = vmatprep.mubr.bf16.mxu0 0
      %3064 = vmatmul.mubr.bf16.gmra.mrb[0].mxu0 %v2998
      %v3065 = vpop.f32.mrb[0].mxu0
      %v3066 = vadd.f32 0.0, %v3065
      %v3067 = vpop.f32.mrb[0].mxu0
      %v3068 = vpop.f32.mrb[0].mxu0
      %v3069 = vadd.f32 0.0, %v3068
      %v3070 = vpop.f32.mrb[0].mxu0
      %3071 = vmatprep.mubr.bf16.mxu0 0
      %3072 = vmatmul.mubr.bf16.gmra.mrb[0].mxu0 %v3001
      %v3073 = vpop.f32.mrb[0].mxu0
      %v3074 = vadd.f32 0.0, %v3073
      %v3075 = vpop.f32.mrb[0].mxu0
      %v3076 = vpop.f32.mrb[0].mxu0
      %v3077 = vadd.f32 0.0, %v3076
      %v3078 = vpop.f32.mrb[0].mxu0
      %3079 = vmatprep.mubr.bf16.mxu0 0
      %3080 = vmatmul.mubr.bf16.gmra.mrb[0].mxu0 %v3004
      %v3081 = vpop.f32.mrb[0].mxu0
      %v3082 = vadd.f32 0.0, %v3081
      %v3083 = vpop.f32.mrb[0].mxu0
      %v3084 = vpop.f32.mrb[0].mxu0
      %v3085 = vadd.f32 0.0, %v3084
      %v3086 = vpop.f32.mrb[0].mxu0
      %3087 = vmatprep.mubr.bf16.mxu0 0
      %3088 = vmatmul.mubr.bf16.gmra.mrb[0].mxu0 %v3007
      %v3089 = vpop.f32.mrb[0].mxu0
      %v3090 = vadd.f32 0.0, %v3089
      %v3091 = vpop.f32.mrb[0].mxu0
      %v3092 = vpop.f32.mrb[0].mxu0
      %v3093 = vadd.f32 0.0, %v3092
      %v3094 = vpop.f32.mrb[0].mxu0
      %3095 = vmatprep.mubr.bf16.mxu0 0
      %3096 = vmatmul.mubr.bf16.gmra.mrb[0].mxu0 %v3010
      %v3097 = vpop.f32.mrb[0].mxu0
      %v3098 = vadd.f32 0.0, %v3097
      %v3099 = vpop.f32.mrb[0].mxu0
      %v3100 = vpop.f32.mrb[0].mxu0
      %v3101 = vpop.f32.mrb[0].mxu0
      %3102 = vdwg.mxu0
      %v3103 = vpack.c.bf16 %v3053, %v3050
      %v3104 = vpack.c.bf16 %v3061, %v3058
      %v3105 = vpack.c.bf16 %v3069, %v3066
      %v3106 = vpack.c.bf16 %v3077, %v3074
      %v3107 = vpack.c.bf16 %v3085, %v3082
      %v3108 = vpack.c.bf16 %v3093, %v3090
      %v3109 = vpack.c.bf16 %v3098, %v3098
      %v3117 = vunpack.c.l.b16 %v3103
      %v3118 = vunpack.c.h.b16 %v3103
      %v3119 = vunpack.c.l.b16 %v3104
      %v3120 = vunpack.c.h.b16 %v3104
      %v3121 = vunpack.c.l.b16 %v3105
      %v3122 = vunpack.c.h.b16 %v3105
      %v3123 = vunpack.c.l.b16 %v3106
      %v3124 = vunpack.c.h.b16 %v3106
      %v3125 = vunpack.c.l.b16 %v3107
      %v3126 = vunpack.c.h.b16 %v3107
      %v3127 = vunpack.c.l.b16 %v3108
      %v3128 = vunpack.c.h.b16 %v3108
      %v3129 = vunpack.c.l.b16 %v3109
      %v3130 = vpack.c.b16 %v3117, %v3117
      %v3131 = vpack.c.b16 %v3118, %v3118
      %v3132 = vpack.c.b16 %v3119, %v3119
      %v3133 = vpack.c.b16 %v3120, %v3120
      %v3134 = vpack.c.b16 %v3121, %v3121
      %v3135 = vpack.c.b16 %v3122, %v3122
      %v3136 = vpack.c.b16 %v3123, %v3123
      %v3137 = vpack.c.b16 %v3124, %v3124
      %v3138 = vpack.c.b16 %v3125, %v3125
      %v3139 = vpack.c.b16 %v3126, %v3126
      %v3140 = vpack.c.b16 %v3127, %v3127
      %v3141 = vpack.c.b16 %v3128, %v3128
      %v3142 = vpack.c.b16 %v3129, %v3129
      %3143 = vrot.lane.b32.xlu0 %v3130, 18
      %v3144 = vpop.permute.xlu0 %3143
      %3145 = vrot.lane.b32.xlu0 %v3131, 18
      %v3146 = vpop.permute.xlu0 %3145
      %3147 = vrot.lane.b32.xlu0 %v3132, 18
      %v3148 = vpop.permute.xlu0 %3147
      %3149 = vrot.lane.b32.xlu0 %v3133, 18
      %v3150 = vpop.permute.xlu0 %3149
      %3151 = vrot.lane.b32.xlu0 %v3134, 18
      %v3152 = vpop.permute.xlu0 %3151
      %3153 = vrot.lane.b32.xlu0 %v3135, 18
      %v3154 = vpop.permute.xlu0 %3153
      %3155 = vrot.lane.b32.xlu0 %v3136, 18
      %v3156 = vpop.permute.xlu0 %3155
      %3157 = vrot.lane.b32.xlu0 %v3137, 18
      %v3158 = vpop.permute.xlu0 %3157
      %3159 = vrot.lane.b32.xlu0 %v3138, 18
      %v3160 = vpop.permute.xlu0 %3159
      %3161 = vrot.lane.b32.xlu0 %v3139, 18
      %v3162 = vpop.permute.xlu0 %3161
      %3163 = vrot.lane.b32.xlu0 %v3140, 18
      %v3164 = vpop.permute.xlu0 %3163
      %3165 = vrot.lane.b32.xlu0 %v3141, 18
      %v3166 = vpop.permute.xlu0 %3165
      %3167 = vrot.lane.b32.xlu0 %v3142, 18
      %v3168 = vpop.permute.xlu0 %3167
      %vm3182 = vcmask 191632
      %3183 = vst.msk [vmem:[#allocation3] sm:$0xf] %vm3182, %v3144
      %3184 = vst.msk [vmem:[#allocation3 + $0x4] sm:$0xf] %vm3182, %v3146
      %3185 = vst.msk [vmem:[#allocation3 + $0x8] sm:$0xf] %vm3182, %v3148
      %3186 = vst.msk [vmem:[#allocation3 + $0xc] sm:$0xf] %vm3182, %v3150
      %3187 = vst.msk [vmem:[#allocation3 + $0x10] sm:$0xf] %vm3182, %v3152
      %3188 = vst.msk [vmem:[#allocation3 + $0x14] sm:$0xf] %vm3182, %v3154
      %3189 = vst.msk [vmem:[#allocation3 + $0x18] sm:$0xf] %vm3182, %v3156
      %3190 = vst.msk [vmem:[#allocation3 + $0x1c] sm:$0xf] %vm3182, %v3158
      %3191 = vst.msk [vmem:[#allocation3 + $0x20] sm:$0xf] %vm3182, %v3160
      %3192 = vst.msk [vmem:[#allocation3 + $0x24] sm:$0xf] %vm3182, %v3162
      %3193 = vst.msk [vmem:[#allocation3 + $0x28] sm:$0xf] %vm3182, %v3164
      %3194 = vst.msk [vmem:[#allocation3 + $0x2c] sm:$0xf] %vm3182, %v3166
      %3195 = vst.msk [vmem:[#allocation3 + $0x30] sm:$0xf] %vm3182, %v3168
      %v3196 = vld [vmem:[#allocation3] sm:$0xf]
      %v3197 = vld [vmem:[#allocation3 + $0x4] sm:$0xf]
      %v3198 = vld [vmem:[#allocation3 + $0x8] sm:$0xf]
      %v3199 = vld [vmem:[#allocation3 + $0xc] sm:$0xf]
      %v3200 = vld [vmem:[#allocation3 + $0x10] sm:$0xf]
      %v3201 = vld [vmem:[#allocation3 + $0x14] sm:$0xf]
      %v3202 = vld [vmem:[#allocation3 + $0x18] sm:$0xf]
      %v3203 = vld [vmem:[#allocation3 + $0x1c] sm:$0xf]
      %v3204 = vld [vmem:[#allocation3 + $0x20] sm:$0xf]
      %v3205 = vld [vmem:[#allocation3 + $0x24] sm:$0xf]
      %v3206 = vld [vmem:[#allocation3 + $0x28] sm:$0xf]
      %v3207 = vld [vmem:[#allocation3 + $0x2c] sm:$0xf]
      %v3208 = vld [vmem:[#allocation3 + $0x30] sm:$0xf]
      %v3209 = vld [vmem:[%s4] sm:$0xf]
      %v3210 = vld [vmem:[%s4 + $0x4] sm:$0xf]
      %v3211 = vld [vmem:[%s4 + $0x8] sm:$0xf]
      %v3225 = vunpack.c.l.b16 %v3196
      %v3226 = vunpack.c.l.b16 %v3197
      %v3227 = vunpack.c.l.b16 %v3198
      %v3228 = vunpack.c.l.b16 %v3199
      %v3229 = vunpack.c.l.b16 %v3200
      %v3230 = vunpack.c.l.b16 %v3201
      %v3231 = vunpack.c.l.b16 %v3202
      %v3232 = vunpack.c.l.b16 %v3203
      %v3233 = vunpack.c.l.b16 %v3204
      %v3234 = vunpack.c.l.b16 %v3205
      %v3235 = vunpack.c.l.b16 %v3206
      %v3236 = vunpack.c.l.b16 %v3207
      %v3237 = vunpack.c.l.b16 %v3208
      %v3238 = vpack.c.b16 %v3226, %v3225
      %v3239 = vpack.c.b16 %v3228, %v3227
      %v3240 = vpack.c.b16 %v3230, %v3229
      %v3241 = vpack.c.b16 %v3232, %v3231
      %v3242 = vpack.c.b16 %v3234, %v3233
      %v3243 = vpack.c.b16 %v3236, %v3235
      %v3244 = vpack.c.b16 %v3237, %v3237
      %v3248 = vunpack.c.l.b16 %v3209
      %v3249 = vunpack.c.l.b16 %v3210
      %v3250 = vunpack.c.l.b16 %v3211
      %v3251 = vpack.c.b16 %v3249, %v3248
      %v3252 = vpack.c.b16 %v3250, %v3250
      %v3255 = vsel %vm403, %v3238, 0
      %v3258 = vsel %vm403, %v3239, 0
      %v3261 = vsel %vm403, %v3240, 0
      %v3264 = vsel %vm403, %v3241, 0
      %v3267 = vsel %vm403, %v3242, 0
      %v3270 = vsel %vm403, %v3243, 0
      %v3273 = vsel %vm403, %v3244, 0
      %v3276 = vsel %vm652, %v3252, 0
      %3278 = vmatprep.subr.bf16.mxu0 0
      %3279 = vmatpush1.bf16.msra.mxu0 %v3251
      %3280 = vmatprep.subr.bf16.mxu0 0
      %3281 = vmatpush1.bf16.msra.mxu0 %v3276
      %3282 = vmatprep.subr.bf16.mxu0 0
      %3283 = vmatpush1.bf16.msra.mxu0 0
      %3284 = vmatprep.subr.bf16.mxu0 0
      %3285 = vmatpush1.bf16.msra.mxu0 0
      %3286 = vmatprep.subr.bf16.mxu0 0
      %3287 = vmatpush1.bf16.msra.mxu0 0
      %3288 = vmatprep.subr.bf16.mxu0 0
      %3289 = vmatpush1.bf16.msra.mxu0 0
      %3290 = vmatprep.subr.bf16.mxu0 0
      %3291 = vmatpush1.bf16.msra.mxu0 0
      %3292 = vmatprep.subr.bf16.mxu0 0
      %3293 = vmatpush1.bf16.msra.mxu0 0
      %3294 = vmatprep.subr.bf16.mxu0 0
      %3295 = vmatpush1.bf16.msra.mxu0 0
      %3296 = vmatprep.subr.bf16.mxu0 0
      %3297 = vmatpush1.bf16.msra.mxu0 0
      %3298 = vmatprep.subr.bf16.mxu0 0
      %3299 = vmatpush1.bf16.msra.mxu0 0
      %3300 = vmatprep.subr.bf16.mxu0 0
      %3301 = vmatpush1.bf16.msra.mxu0 0
      %3302 = vmatprep.subr.bf16.mxu0 0
      %3303 = vmatpush1.bf16.msra.mxu0 0
      %3304 = vmatprep.subr.bf16.mxu0 0
      %3305 = vmatpush1.bf16.msra.mxu0 0
      %3306 = vmatprep.subr.bf16.mxu0 0
      %3307 = vmatpush1.bf16.msra.mxu0 0
      %3308 = vmatprep.subr.bf16.mxu0 0
      %3309 = vmatpush1.bf16.msra.mxu0 0
      %3310 = vmatprep.mubr.bf16.mxu0 0
      %3311 = vmatmul.mubr.bf16.gmra.mrb[0].mxu0 %v3255
      %v3312 = vpop.f32.mrb[0].mxu0
      %v3313 = vadd.f32 0.0, %v3312
      %v3314 = vpop.f32.mrb[0].mxu0
      %v3315 = vpop.f32.mrb[0].mxu0
      %v3316 = vadd.f32 0.0, %v3315
      %v3317 = vpop.f32.mrb[0].mxu0
      %3318 = vmatprep.mubr.bf16.mxu0 0
      %3319 = vmatmul.mubr.bf16.gmra.mrb[0].mxu0 %v3258
      %v3320 = vpop.f32.mrb[0].mxu0
      %v3321 = vadd.f32 0.0, %v3320
      %v3322 = vpop.f32.mrb[0].mxu0
      %v3323 = vpop.f32.mrb[0].mxu0
      %v3324 = vadd.f32 0.0, %v3323
      %v3325 = vpop.f32.mrb[0].mxu0
      %3326 = vmatprep.mubr.bf16.mxu0 0
      %3327 = vmatmul.mubr.bf16.gmra.mrb[0].mxu0 %v3261
      %v3328 = vpop.f32.mrb[0].mxu0
      %v3329 = vadd.f32 0.0, %v3328
      %v3330 = vpop.f32.mrb[0].mxu0
      %v3331 = vpop.f32.mrb[0].mxu0
      %v3332 = vadd.f32 0.0, %v3331
      %v3333 = vpop.f32.mrb[0].mxu0
      %3334 = vmatprep.mubr.bf16.mxu0 0
      %3335 = vmatmul.mubr.bf16.gmra.mrb[0].mxu0 %v3264
      %v3336 = vpop.f32.mrb[0].mxu0
      %v3337 = vadd.f32 0.0, %v3336
      %v3338 = vpop.f32.mrb[0].mxu0
      %v3339 = vpop.f32.mrb[0].mxu0
      %v3340 = vadd.f32 0.0, %v3339
      %v3341 = vpop.f32.mrb[0].mxu0
      %3342 = vmatprep.mubr.bf16.mxu0 0
      %3343 = vmatmul.mubr.bf16.gmra.mrb[0].mxu0 %v3267
      %v3344 = vpop.f32.mrb[0].mxu0
      %v3345 = vadd.f32 0.0, %v3344
      %v3346 = vpop.f32.mrb[0].mxu0
      %v3347 = vpop.f32.mrb[0].mxu0
      %v3348 = vadd.f32 0.0, %v3347
      %v3349 = vpop.f32.mrb[0].mxu0
      %3350 = vmatprep.mubr.bf16.mxu0 0
      %3351 = vmatmul.mubr.bf16.gmra.mrb[0].mxu0 %v3270
      %v3352 = vpop.f32.mrb[0].mxu0
      %v3353 = vadd.f32 0.0, %v3352
      %v3354 = vpop.f32.mrb[0].mxu0
      %v3355 = vpop.f32.mrb[0].mxu0
      %v3356 = vadd.f32 0.0, %v3355
      %v3357 = vpop.f32.mrb[0].mxu0
      %3358 = vmatprep.mubr.bf16.mxu0 0
      %3359 = vmatmul.mubr.bf16.gmra.mrb[0].mxu0 %v3273
      %v3360 = vpop.f32.mrb[0].mxu0
      %v3361 = vadd.f32 0.0, %v3360
      %v3362 = vpop.f32.mrb[0].mxu0
      %v3363 = vpop.f32.mrb[0].mxu0
      %v3364 = vpop.f32.mrb[0].mxu0
      %3365 = vdwg.mxu0
      %v3366 = vadd.f32 %v388, %v3313
      %v3367 = vadd.f32 %v389, %v3316
      %v3368 = vadd.f32 %v390, %v3321
      %v3369 = vadd.f32 %v391, %v3324
      %v3370 = vadd.f32 %v392, %v3329
      %v3371 = vadd.f32 %v393, %v3332
      %v3372 = vadd.f32 %v394, %v3337
      %v3373 = vadd.f32 %v395, %v3340
      %v3374 = vadd.f32 %v396, %v3345
      %v3375 = vadd.f32 %v397, %v3348
      %v3376 = vadd.f32 %v398, %v3353
      %v3377 = vadd.f32 %v399, %v3356
      %v3378 = vadd.f32 %v400, %v3361
      %v3379 = vld [vmem:[%s5] sm:$0x1]
      %v3380 = vld [vmem:[%s6] sm:$0x1]
      %v3381 = vsel %vm403, %v3366, 0.0
      %3382 = vadd.xlane.f32.xlu0 %v3381
      %v3383 = vpop.xlane.xlu0 %3382
      %v3384 = vsel %vm403, %v3367, 0.0
      %3385 = vadd.xlane.f32.xlu0 %v3384
      %v3386 = vpop.xlane.xlu0 %3385
      %v3387 = vsel %vm403, %v3368, 0.0
      %3388 = vadd.xlane.f32.xlu0 %v3387
      %v3389 = vpop.xlane.xlu0 %3388
      %v3390 = vsel %vm403, %v3369, 0.0
      %3391 = vadd.xlane.f32.xlu0 %v3390
      %v3392 = vpop.xlane.xlu0 %3391
      %v3393 = vsel %vm403, %v3370, 0.0
      %3394 = vadd.xlane.f32.xlu0 %v3393
      %v3395 = vpop.xlane.xlu0 %3394
      %v3396 = vsel %vm403, %v3371, 0.0
      %3397 = vadd.xlane.f32.xlu0 %v3396
      %v3398 = vpop.xlane.xlu0 %3397
      %v3399 = vsel %vm403, %v3372, 0.0
      %3400 = vadd.xlane.f32.xlu0 %v3399
      %v3401 = vpop.xlane.xlu0 %3400
      %v3402 = vsel %vm403, %v3373, 0.0
      %3403 = vadd.xlane.f32.xlu0 %v3402
      %v3404 = vpop.xlane.xlu0 %3403
      %v3405 = vsel %vm403, %v3374, 0.0
      %3406 = vadd.xlane.f32.xlu0 %v3405
      %v3407 = vpop.xlane.xlu0 %3406
      %v3408 = vsel %vm403, %v3375, 0.0
      %3409 = vadd.xlane.f32.xlu0 %v3408
      %v3410 = vpop.xlane.xlu0 %3409
      %v3411 = vsel %vm403, %v3376, 0.0
      %3412 = vadd.xlane.f32.xlu0 %v3411
      %v3413 = vpop.xlane.xlu0 %3412
      %v3414 = vsel %vm403, %v3377, 0.0
      %3415 = vadd.xlane.f32.xlu0 %v3414
      %v3416 = vpop.xlane.xlu0 %3415
      %v3417 = vsel %vm403, %v3378, 0.0
      %3418 = vadd.xlane.f32.xlu0 %v3417
      %v3419 = vpop.xlane.xlu0 %3418
      %v3420 = vmul.f32 %v3383, %v443
      %v3421 = vmul.f32 %v3386, %v443
      %v3422 = vmul.f32 %v3389, %v443
      %v3423 = vmul.f32 %v3392, %v443
      %v3424 = vmul.f32 %v3395, %v443
      %v3425 = vmul.f32 %v3398, %v443
      %v3426 = vmul.f32 %v3401, %v443
      %v3427 = vmul.f32 %v3404, %v443
      %v3428 = vmul.f32 %v3407, %v443
      %v3429 = vmul.f32 %v3410, %v443
      %v3430 = vmul.f32 %v3413, %v443
      %v3431 = vmul.f32 %v3416, %v443
      %v3432 = vmul.f32 %v3419, %v443
      %v3433 = vsub.f32 %v3366, %v3420
      %v3434 = vsub.f32 %v3367, %v3421
      %v3435 = vsub.f32 %v3368, %v3422
      %v3436 = vsub.f32 %v3369, %v3423
      %v3437 = vsub.f32 %v3370, %v3424
      %v3438 = vsub.f32 %v3371, %v3425
      %v3439 = vsub.f32 %v3372, %v3426
      %v3440 = vsub.f32 %v3373, %v3427
      %v3441 = vsub.f32 %v3374, %v3428
      %v3442 = vsub.f32 %v3375, %v3429
      %v3443 = vsub.f32 %v3376, %v3430
      %v3444 = vsub.f32 %v3377, %v3431
      %v3445 = vsub.f32 %v3378, %v3432
      %v3446 = vmul.f32 %v3433, %v3433
      %v3447 = vmul.f32 %v3434, %v3434
      %v3448 = vmul.f32 %v3435, %v3435
      %v3449 = vmul.f32 %v3436, %v3436
      %v3450 = vmul.f32 %v3437, %v3437
      %v3451 = vmul.f32 %v3438, %v3438
      %v3452 = vmul.f32 %v3439, %v3439
      %v3453 = vmul.f32 %v3440, %v3440
      %v3454 = vmul.f32 %v3441, %v3441
      %v3455 = vmul.f32 %v3442, %v3442
      %v3456 = vmul.f32 %v3443, %v3443
      %v3457 = vmul.f32 %v3444, %v3444
      %v3458 = vmul.f32 %v3445, %v3445
      %v3459 = vsel %vm403, %v3446, 0.0
      %3460 = vadd.xlane.f32.xlu0 %v3459
      %v3461 = vpop.xlane.xlu0 %3460
      %v3462 = vsel %vm403, %v3447, 0.0
      %3463 = vadd.xlane.f32.xlu0 %v3462
      %v3464 = vpop.xlane.xlu0 %3463
      %v3465 = vsel %vm403, %v3448, 0.0
      %3466 = vadd.xlane.f32.xlu0 %v3465
      %v3467 = vpop.xlane.xlu0 %3466
      %v3468 = vsel %vm403, %v3449, 0.0
      %3469 = vadd.xlane.f32.xlu0 %v3468
      %v3470 = vpop.xlane.xlu0 %3469
      %v3471 = vsel %vm403, %v3450, 0.0
      %3472 = vadd.xlane.f32.xlu0 %v3471
      %v3473 = vpop.xlane.xlu0 %3472
      %v3474 = vsel %vm403, %v3451, 0.0
      %3475 = vadd.xlane.f32.xlu0 %v3474
      %v3476 = vpop.xlane.xlu0 %3475
      %v3477 = vsel %vm403, %v3452, 0.0
      %3478 = vadd.xlane.f32.xlu0 %v3477
      %v3479 = vpop.xlane.xlu0 %3478
      %v3480 = vsel %vm403, %v3453, 0.0
      %3481 = vadd.xlane.f32.xlu0 %v3480
      %v3482 = vpop.xlane.xlu0 %3481
      %v3483 = vsel %vm403, %v3454, 0.0
      %3484 = vadd.xlane.f32.xlu0 %v3483
      %v3485 = vpop.xlane.xlu0 %3484
      %v3486 = vsel %vm403, %v3455, 0.0
      %3487 = vadd.xlane.f32.xlu0 %v3486
      %v3488 = vpop.xlane.xlu0 %3487
      %v3489 = vsel %vm403, %v3456, 0.0
      %3490 = vadd.xlane.f32.xlu0 %v3489
      %v3491 = vpop.xlane.xlu0 %3490
      %v3492 = vsel %vm403, %v3457, 0.0
      %3493 = vadd.xlane.f32.xlu0 %v3492
      %v3494 = vpop.xlane.xlu0 %3493
      %v3495 = vsel %vm403, %v3458, 0.0
      %3496 = vadd.xlane.f32.xlu0 %v3495
      %v3497 = vpop.xlane.xlu0 %3496
      %v3498 = vmul.f32 %v3461, %v443
      %v3499 = vmul.f32 %v3464, %v443
      %v3500 = vmul.f32 %v3467, %v443
      %v3501 = vmul.f32 %v3470, %v443
      %v3502 = vmul.f32 %v3473, %v443
      %v3503 = vmul.f32 %v3476, %v443
      %v3504 = vmul.f32 %v3479, %v443
      %v3505 = vmul.f32 %v3482, %v443
      %v3506 = vmul.f32 %v3485, %v443
      %v3507 = vmul.f32 %v3488, %v443
      %v3508 = vmul.f32 %v3491, %v443
      %v3509 = vmul.f32 %v3494, %v443
      %v3510 = vmul.f32 %v3497, %v443
      %v3511 = vadd.f32 %v3498, 1e-05
      %v3512 = vadd.f32 %v3499, 1e-05
      %v3513 = vadd.f32 %v3500, 1e-05
      %v3514 = vadd.f32 %v3501, 1e-05
      %v3515 = vadd.f32 %v3502, 1e-05
      %v3516 = vadd.f32 %v3503, 1e-05
      %v3517 = vadd.f32 %v3504, 1e-05
      %v3518 = vadd.f32 %v3505, 1e-05
      %v3519 = vadd.f32 %v3506, 1e-05
      %v3520 = vadd.f32 %v3507, 1e-05
      %v3521 = vadd.f32 %v3508, 1e-05
      %v3522 = vadd.f32 %v3509, 1e-05
      %v3523 = vadd.f32 %v3510, 1e-05
      %v3524 = vrsqrt.pop %v3511
      %v3525 = vrsqrt.pop %v3512
      %v3526 = vrsqrt.pop %v3513
      %v3527 = vrsqrt.pop %v3514
      %v3528 = vrsqrt.pop %v3515
      %v3529 = vrsqrt.pop %v3516
      %v3530 = vrsqrt.pop %v3517
      %v3531 = vrsqrt.pop %v3518
      %v3532 = vrsqrt.pop %v3519
      %v3533 = vrsqrt.pop %v3520
      %v3534 = vrsqrt.pop %v3521
      %v3535 = vrsqrt.pop %v3522
      %v3536 = vrsqrt.pop %v3523
      %v3537 = vmul.f32 %v3433, %v3524
      %v3538 = vmul.f32 %v3434, %v3525
      %v3539 = vmul.f32 %v3435, %v3526
      %v3540 = vmul.f32 %v3436, %v3527
      %v3541 = vmul.f32 %v3437, %v3528
      %v3542 = vmul.f32 %v3438, %v3529
      %v3543 = vmul.f32 %v3439, %v3530
      %v3544 = vmul.f32 %v3440, %v3531
      %v3545 = vmul.f32 %v3441, %v3532
      %v3546 = vmul.f32 %v3442, %v3533
      %v3547 = vmul.f32 %v3443, %v3534
      %v3548 = vmul.f32 %v3444, %v3535
      %v3549 = vmul.f32 %v3445, %v3536
      %v3551 = vlaneseq
      %v3552 = vshrl.u32 %v3551, 7
      %v3553 = vsub.s32 0, %v3552
      %v3554 = vrot.slane %v3379, %v3553
      %v3556 = vmul.f32 %v3537, %v3554
      %v3557 = vmul.f32 %v3538, %v3554
      %v3558 = vmul.f32 %v3539, %v3554
      %v3559 = vmul.f32 %v3540, %v3554
      %v3560 = vmul.f32 %v3541, %v3554
      %v3561 = vmul.f32 %v3542, %v3554
      %v3562 = vmul.f32 %v3543, %v3554
      %v3563 = vmul.f32 %v3544, %v3554
      %v3564 = vmul.f32 %v3545, %v3554
      %v3565 = vmul.f32 %v3546, %v3554
      %v3566 = vmul.f32 %v3547, %v3554
      %v3567 = vmul.f32 %v3548, %v3554
      %v3568 = vmul.f32 %v3549, %v3554
      %v3570 = vlaneseq
      %v3571 = vshrl.u32 %v3570, 7
      %v3572 = vsub.s32 0, %v3571
      %v3573 = vrot.slane %v3380, %v3572
      %v3575 = vadd.f32 %v3556, %v3573
      %v3576 = vadd.f32 %v3557, %v3573
      %v3577 = vadd.f32 %v3558, %v3573
      %v3578 = vadd.f32 %v3559, %v3573
      %v3579 = vadd.f32 %v3560, %v3573
      %v3580 = vadd.f32 %v3561, %v3573
      %v3581 = vadd.f32 %v3562, %v3573
      %v3582 = vadd.f32 %v3563, %v3573
      %v3583 = vadd.f32 %v3564, %v3573
      %v3584 = vadd.f32 %v3565, %v3573
      %v3585 = vadd.f32 %v3566, %v3573
      %v3586 = vadd.f32 %v3567, %v3573
      %v3587 = vadd.f32 %v3568, %v3573
      %v3588 = vpack.c.bf16 %v3576, %v3575
      %v3589 = vpack.c.bf16 %v3578, %v3577
      %v3590 = vpack.c.bf16 %v3580, %v3579
      %v3591 = vpack.c.bf16 %v3582, %v3581
      %v3592 = vpack.c.bf16 %v3584, %v3583
      %v3593 = vpack.c.bf16 %v3586, %v3585
      %v3594 = vpack.c.bf16 %v3587, %v3587
      %v3595 = vld [vmem:[%s7] sm:$0xf]
      %v3596 = vld [vmem:[%s7 + $0x4] sm:$0xf]
      %v3597 = vld [vmem:[%s7 + $0x8] sm:$0xf]
      %v3598 = vld [vmem:[%s8] sm:$0x1]
      %v3600 = vlaneseq
      %v3601 = vshrl.u32 %v3600, 7
      %v3602 = vsub.s32 0, %v3601
      %v3603 = vrot.slane %v3598, %v3602
      %v3608 = vunpack.c.l.b16 %v3595
      %v3609 = vunpack.c.l.b16 %v3596
      %v3610 = vunpack.c.l.b16 %v3597
      %v3611 = vpack.c.b16 %v3609, %v3608
      %v3612 = vpack.c.b16 %v3610, %v3610
      %v3615 = vsel %vm403, %v3588, 0
      %v3618 = vsel %vm403, %v3589, 0
      %v3621 = vsel %vm403, %v3590, 0
      %v3624 = vsel %vm403, %v3591, 0
      %v3627 = vsel %vm403, %v3592, 0
      %v3630 = vsel %vm403, %v3593, 0
      %v3633 = vsel %vm403, %v3594, 0
      %v3636 = vsel %vm652, %v3612, 0
      %3638 = vmatprep.subr.bf16.mxu0 0
      %3639 = vmatpush1.bf16.msra.mxu0 %v3611
      %3640 = vmatprep.subr.bf16.mxu0 0
      %3641 = vmatpush1.bf16.msra.mxu0 %v3636
      %3642 = vmatprep.subr.bf16.mxu0 0
      %3643 = vmatpush1.bf16.msra.mxu0 0
      %3644 = vmatprep.subr.bf16.mxu0 0
      %3645 = vmatpush1.bf16.msra.mxu0 0
      %3646 = vmatprep.subr.bf16.mxu0 0
      %3647 = vmatpush1.bf16.msra.mxu0 0
      %3648 = vmatprep.subr.bf16.mxu0 0
      %3649 = vmatpush1.bf16.msra.mxu0 0
      %3650 = vmatprep.subr.bf16.mxu0 0
      %3651 = vmatpush1.bf16.msra.mxu0 0
      %3652 = vmatprep.subr.bf16.mxu0 0
      %3653 = vmatpush1.bf16.msra.mxu0 0
      %3654 = vmatprep.subr.bf16.mxu0 0
      %3655 = vmatpush1.bf16.msra.mxu0 0
      %3656 = vmatprep.subr.bf16.mxu0 0
      %3657 = vmatpush1.bf16.msra.mxu0 0
      %3658 = vmatprep.subr.bf16.mxu0 0
      %3659 = vmatpush1.bf16.msra.mxu0 0
      %3660 = vmatprep.subr.bf16.mxu0 0
      %3661 = vmatpush1.bf16.msra.mxu0 0
      %3662 = vmatprep.subr.bf16.mxu0 0
      %3663 = vmatpush1.bf16.msra.mxu0 0
      %3664 = vmatprep.subr.bf16.mxu0 0
      %3665 = vmatpush1.bf16.msra.mxu0 0
      %3666 = vmatprep.subr.bf16.mxu0 0
      %3667 = vmatpush1.bf16.msra.mxu0 0
      %3668 = vmatprep.subr.bf16.mxu0 0
      %3669 = vmatpush1.bf16.msra.mxu0 0
      %3670 = vmatprep.mubr.bf16.mxu0 0
      %3671 = vmatmul.mubr.bf16.gmra.mrb[0].mxu0 %v3615
      %v3672 = vpop.f32.mrb[0].mxu0
      %v3673 = vadd.f32 %v3603, %v3672
      %v3674 = vpop.f32.mrb[0].mxu0
      %v3675 = vpop.f32.mrb[0].mxu0
      %v3676 = vadd.f32 %v3603, %v3675
      %v3677 = vpop.f32.mrb[0].mxu0
      %3678 = vmatprep.mubr.bf16.mxu0 0
      %3679 = vmatmul.mubr.bf16.gmra.mrb[0].mxu0 %v3618
      %v3680 = vpop.f32.mrb[0].mxu0
      %v3681 = vadd.f32 %v3603, %v3680
      %v3682 = vpop.f32.mrb[0].mxu0
      %v3683 = vpop.f32.mrb[0].mxu0
      %v3684 = vadd.f32 %v3603, %v3683
      %v3685 = vpop.f32.mrb[0].mxu0
      %3686 = vmatprep.mubr.bf16.mxu0 0
      %3687 = vmatmul.mubr.bf16.gmra.mrb[0].mxu0 %v3621
      %v3688 = vpop.f32.mrb[0].mxu0
      %v3689 = vadd.f32 %v3603, %v3688
      %v3690 = vpop.f32.mrb[0].mxu0
      %v3691 = vpop.f32.mrb[0].mxu0
      %v3692 = vadd.f32 %v3603, %v3691
      %v3693 = vpop.f32.mrb[0].mxu0
      %3694 = vmatprep.mubr.bf16.mxu0 0
      %3695 = vmatmul.mubr.bf16.gmra.mrb[0].mxu0 %v3624
      %v3696 = vpop.f32.mrb[0].mxu0
      %v3697 = vadd.f32 %v3603, %v3696
      %v3698 = vpop.f32.mrb[0].mxu0
      %v3699 = vpop.f32.mrb[0].mxu0
      %v3700 = vadd.f32 %v3603, %v3699
      %v3701 = vpop.f32.mrb[0].mxu0
      %3702 = vmatprep.mubr.bf16.mxu0 0
      %3703 = vmatmul.mubr.bf16.gmra.mrb[0].mxu0 %v3627
      %v3704 = vpop.f32.mrb[0].mxu0
      %v3705 = vadd.f32 %v3603, %v3704
      %v3706 = vpop.f32.mrb[0].mxu0
      %v3707 = vpop.f32.mrb[0].mxu0
      %v3708 = vadd.f32 %v3603, %v3707
      %v3709 = vpop.f32.mrb[0].mxu0
      %3710 = vmatprep.mubr.bf16.mxu0 0
      %3711 = vmatmul.mubr.bf16.gmra.mrb[0].mxu0 %v3630
      %v3712 = vpop.f32.mrb[0].mxu0
      %v3713 = vadd.f32 %v3603, %v3712
      %v3714 = vpop.f32.mrb[0].mxu0
      %v3715 = vpop.f32.mrb[0].mxu0
      %v3716 = vadd.f32 %v3603, %v3715
      %v3717 = vpop.f32.mrb[0].mxu0
      %3718 = vmatprep.mubr.bf16.mxu0 0
      %3719 = vmatmul.mubr.bf16.gmra.mrb[0].mxu0 %v3633
      %v3720 = vpop.f32.mrb[0].mxu0
      %v3721 = vadd.f32 %v3603, %v3720
      %v3722 = vpop.f32.mrb[0].mxu0
      %v3723 = vpop.f32.mrb[0].mxu0
      %v3724 = vpop.f32.mrb[0].mxu0
      %3725 = vdwg.mxu0
      %v3726 = vmul.f32 %v3673, 0.5
      %v3727 = vmul.f32 %v3676, 0.5
      %v3728 = vmul.f32 %v3681, 0.5
      %v3729 = vmul.f32 %v3684, 0.5
      %v3730 = vmul.f32 %v3689, 0.5
      %v3731 = vmul.f32 %v3692, 0.5
      %v3732 = vmul.f32 %v3697, 0.5
      %v3733 = vmul.f32 %v3700, 0.5
      %v3734 = vmul.f32 %v3705, 0.5
      %v3735 = vmul.f32 %v3708, 0.5
      %v3736 = vmul.f32 %v3713, 0.5
      %v3737 = vmul.f32 %v3716, 0.5
      %v3738 = vmul.f32 %v3721, 0.5
      %v3739 = vmul.f32 %v3673, 0.70710677
      %v3740 = vmul.f32 %v3676, 0.70710677
      %v3741 = vmul.f32 %v3681, 0.70710677
      %v3742 = vmul.f32 %v3684, 0.70710677
      %v3743 = vmul.f32 %v3689, 0.70710677
      %v3744 = vmul.f32 %v3692, 0.70710677
      %v3745 = vmul.f32 %v3697, 0.70710677
      %v3746 = vmul.f32 %v3700, 0.70710677
      %v3747 = vmul.f32 %v3705, 0.70710677
      %v3748 = vmul.f32 %v3708, 0.70710677
      %v3749 = vmul.f32 %v3713, 0.70710677
      %v3750 = vmul.f32 %v3716, 0.70710677
      %v3751 = vmul.f32 %v3721, 0.70710677
      %v3752 = verf.f32.pop %v3739
      %v3753 = verf.f32.pop %v3740
      %v3754 = verf.f32.pop %v3741
      %v3755 = verf.f32.pop %v3742
      %v3756 = verf.f32.pop %v3743
      %v3757 = verf.f32.pop %v3744
      %v3758 = verf.f32.pop %v3745
      %v3759 = verf.f32.pop %v3746
      %v3760 = verf.f32.pop %v3747
      %v3761 = verf.f32.pop %v3748
      %v3762 = verf.f32.pop %v3749
      %v3763 = verf.f32.pop %v3750
      %v3764 = verf.f32.pop %v3751
      %v3765 = vadd.f32 %v3752, 1.0
      %v3766 = vadd.f32 %v3753, 1.0
      %v3767 = vadd.f32 %v3754, 1.0
      %v3768 = vadd.f32 %v3755, 1.0
      %v3769 = vadd.f32 %v3756, 1.0
      %v3770 = vadd.f32 %v3757, 1.0
      %v3771 = vadd.f32 %v3758, 1.0
      %v3772 = vadd.f32 %v3759, 1.0
      %v3773 = vadd.f32 %v3760, 1.0
      %v3774 = vadd.f32 %v3761, 1.0
      %v3775 = vadd.f32 %v3762, 1.0
      %v3776 = vadd.f32 %v3763, 1.0
      %v3777 = vadd.f32 %v3764, 1.0
      %v3778 = vmul.f32 %v3726, %v3765
      %v3779 = vmul.f32 %v3727, %v3766
      %v3780 = vmul.f32 %v3728, %v3767
      %v3781 = vmul.f32 %v3729, %v3768
      %v3782 = vmul.f32 %v3730, %v3769
      %v3783 = vmul.f32 %v3731, %v3770
      %v3784 = vmul.f32 %v3732, %v3771
      %v3785 = vmul.f32 %v3733, %v3772
      %v3786 = vmul.f32 %v3734, %v3773
      %v3787 = vmul.f32 %v3735, %v3774
      %v3788 = vmul.f32 %v3736, %v3775
      %v3789 = vmul.f32 %v3737, %v3776
      %v3790 = vmul.f32 %v3738, %v3777
      %v3791 = vpack.c.bf16 %v3779, %v3778
      %v3792 = vpack.c.bf16 %v3781, %v3780
      %v3793 = vpack.c.bf16 %v3783, %v3782
      %v3794 = vpack.c.bf16 %v3785, %v3784
      %v3795 = vpack.c.bf16 %v3787, %v3786
      %v3796 = vpack.c.bf16 %v3789, %v3788
      %v3797 = vpack.c.bf16 %v3790, %v3790
      %v3798 = vld [vmem:[%s9] sm:$0xf]
      %v3799 = vld [vmem:[%s9 + $0x4] sm:$0xf]
      %v3800 = vld [vmem:[%s9 + $0x8] sm:$0xf]
      %v3801 = vld [vmem:[%s9 + $0xc] sm:$0xf]
      %v3802 = vld [vmem:[%s9 + $0x10] sm:$0xf]
      %v3803 = vld [vmem:[%s9 + $0x14] sm:$0xf]
      %v3804 = vld [vmem:[%s10] sm:$0x1]
      %v3806 = vlaneseq
      %v3807 = vshrl.u32 %v3806, 7
      %v3808 = vsub.s32 0, %v3807
      %v3809 = vrot.slane %v3804, %v3808
      %v3817 = vunpack.c.l.b16 %v3798
      %v3818 = vunpack.c.l.b16 %v3799
      %v3819 = vunpack.c.l.b16 %v3800
      %v3820 = vunpack.c.l.b16 %v3801
      %v3821 = vunpack.c.l.b16 %v3802
      %v3822 = vunpack.c.l.b16 %v3803
      %v3823 = vpack.c.b16 %v3818, %v3817
      %v3824 = vpack.c.b16 %v3820, %v3819
      %v3825 = vpack.c.b16 %v3822, %v3821
      %vm3829 = vcmask 392192
      %v3831 = vsel %vm3829, %v3791, 0
      %v3834 = vsel %vm3829, %v3792, 0
      %v3837 = vsel %vm3829, %v3793, 0
      %v3840 = vsel %vm3829, %v3794, 0
      %v3843 = vsel %vm3829, %v3795, 0
      %v3846 = vsel %vm3829, %v3796, 0
      %v3849 = vsel %vm3829, %v3797, 0
      %3851 = vmatprep.subr.bf16.mxu0 0
      %3852 = vmatpush1.bf16.msra.mxu0 %v3823
      %3853 = vmatprep.subr.bf16.mxu0 0
      %3854 = vmatpush1.bf16.msra.mxu0 %v3824
      %3855 = vmatprep.subr.bf16.mxu0 0
      %3856 = vmatpush1.bf16.msra.mxu0 %v3825
      %3857 = vmatprep.subr.bf16.mxu0 0
      %3858 = vmatpush1.bf16.msra.mxu0 0
      %3859 = vmatprep.subr.bf16.mxu0 0
      %3860 = vmatpush1.bf16.msra.mxu0 0
      %3861 = vmatprep.subr.bf16.mxu0 0
      %3862 = vmatpush1.bf16.msra.mxu0 0
      %3863 = vmatprep.subr.bf16.mxu0 0
      %3864 = vmatpush1.bf16.msra.mxu0 0
      %3865 = vmatprep.subr.bf16.mxu0 0
      %3866 = vmatpush1.bf16.msra.mxu0 0
      %3867 = vmatprep.subr.bf16.mxu0 0
      %3868 = vmatpush1.bf16.msra.mxu0 0
      %3869 = vmatprep.subr.bf16.mxu0 0
      %3870 = vmatpush1.bf16.msra.mxu0 0
      %3871 = vmatprep.subr.bf16.mxu0 0
      %3872 = vmatpush1.bf16.msra.mxu0 0
      %3873 = vmatprep.subr.bf16.mxu0 0
      %3874 = vmatpush1.bf16.msra.mxu0 0
      %3875 = vmatprep.subr.bf16.mxu0 0
      %3876 = vmatpush1.bf16.msra.mxu0 0
      %3877 = vmatprep.subr.bf16.mxu0 0
      %3878 = vmatpush1.bf16.msra.mxu0 0
      %3879 = vmatprep.subr.bf16.mxu0 0
      %3880 = vmatpush1.bf16.msra.mxu0 0
      %3881 = vmatprep.subr.bf16.mxu0 0
      %3882 = vmatpush1.bf16.msra.mxu0 0
      %3883 = vmatprep.mubr.bf16.mxu0 0
      %3884 = vmatmul.mubr.bf16.gmra.mrb[0].mxu0 %v3831
      %v3885 = vpop.f32.mrb[0].mxu0
      %v3886 = vadd.f32 %v3809, %v3885
      %v3887 = vpop.f32.mrb[0].mxu0
      %v3888 = vpop.f32.mrb[0].mxu0
      %v3889 = vadd.f32 %v3809, %v3888
      %v3890 = vpop.f32.mrb[0].mxu0
      %3891 = vmatprep.mubr.bf16.mxu0 0
      %3892 = vmatmul.mubr.bf16.gmra.mrb[0].mxu0 %v3834
      %v3893 = vpop.f32.mrb[0].mxu0
      %v3894 = vadd.f32 %v3809, %v3893
      %v3895 = vpop.f32.mrb[0].mxu0
      %v3896 = vpop.f32.mrb[0].mxu0
      %v3897 = vadd.f32 %v3809, %v3896
      %v3898 = vpop.f32.mrb[0].mxu0
      %3899 = vmatprep.mubr.bf16.mxu0 0
      %3900 = vmatmul.mubr.bf16.gmra.mrb[0].mxu0 %v3837
      %v3901 = vpop.f32.mrb[0].mxu0
      %v3902 = vadd.f32 %v3809, %v3901
      %v3903 = vpop.f32.mrb[0].mxu0
      %v3904 = vpop.f32.mrb[0].mxu0
      %v3905 = vadd.f32 %v3809, %v3904
      %v3906 = vpop.f32.mrb[0].mxu0
      %3907 = vmatprep.mubr.bf16.mxu0 0
      %3908 = vmatmul.mubr.bf16.gmra.mrb[0].mxu0 %v3840
      %v3909 = vpop.f32.mrb[0].mxu0
      %v3910 = vadd.f32 %v3809, %v3909
      %v3911 = vpop.f32.mrb[0].mxu0
      %v3912 = vpop.f32.mrb[0].mxu0
      %v3913 = vadd.f32 %v3809, %v3912
      %v3914 = vpop.f32.mrb[0].mxu0
      %3915 = vmatprep.mubr.bf16.mxu0 0
      %3916 = vmatmul.mubr.bf16.gmra.mrb[0].mxu0 %v3843
      %v3917 = vpop.f32.mrb[0].mxu0
      %v3918 = vadd.f32 %v3809, %v3917
      %v3919 = vpop.f32.mrb[0].mxu0
      %v3920 = vpop.f32.mrb[0].mxu0
      %v3921 = vadd.f32 %v3809, %v3920
      %v3922 = vpop.f32.mrb[0].mxu0
      %3923 = vmatprep.mubr.bf16.mxu0 0
      %3924 = vmatmul.mubr.bf16.gmra.mrb[0].mxu0 %v3846
      %v3925 = vpop.f32.mrb[0].mxu0
      %v3926 = vadd.f32 %v3809, %v3925
      %v3927 = vpop.f32.mrb[0].mxu0
      %v3928 = vpop.f32.mrb[0].mxu0
      %v3929 = vadd.f32 %v3809, %v3928
      %v3930 = vpop.f32.mrb[0].mxu0
      %3931 = vmatprep.mubr.bf16.mxu0 0
      %3932 = vmatmul.mubr.bf16.gmra.mrb[0].mxu0 %v3849
      %v3933 = vpop.f32.mrb[0].mxu0
      %v3934 = vadd.f32 %v3809, %v3933
      %v3935 = vpop.f32.mrb[0].mxu0
      %v3936 = vpop.f32.mrb[0].mxu0
      %v3937 = vpop.f32.mrb[0].mxu0
      %3938 = vdwg.mxu0
      %v3939 = vadd.f32 %v3366, %v3886
      %v3940 = vadd.f32 %v3367, %v3889
      %v3941 = vadd.f32 %v3368, %v3894
      %v3942 = vadd.f32 %v3369, %v3897
      %v3943 = vadd.f32 %v3370, %v3902
      %v3944 = vadd.f32 %v3371, %v3905
      %v3945 = vadd.f32 %v3372, %v3910
      %v3946 = vadd.f32 %v3373, %v3913
      %v3947 = vadd.f32 %v3374, %v3918
      %v3948 = vadd.f32 %v3375, %v3921
      %v3949 = vadd.f32 %v3376, %v3926
      %v3950 = vadd.f32 %v3377, %v3929
      %v3951 = vadd.f32 %v3378, %v3934
      %3952 = vst.msk [vmem:[%s386] sm:$0xff] %vm403, %v3939
      %3953 = vst.msk [vmem:[%s386 + $0x8] sm:$0xff] %vm403, %v3940
      %3954 = vst.msk [vmem:[%s386 + $0x10] sm:$0xff] %vm403, %v3941
      %3955 = vst.msk [vmem:[%s386 + $0x18] sm:$0xff] %vm403, %v3942
      %3956 = vst.msk [vmem:[%s386 + $0x20] sm:$0xff] %vm403, %v3943
      %3957 = vst.msk [vmem:[%s386 + $0x28] sm:$0xff] %vm403, %v3944
      %3958 = vst.msk [vmem:[%s386 + $0x30] sm:$0xff] %vm403, %v3945
      %3959 = vst.msk [vmem:[%s386 + $0x38] sm:$0xff] %vm403, %v3946
      %3960 = vst.msk [vmem:[%s386 + $0x40] sm:$0xff] %vm403, %v3947
      %3961 = vst.msk [vmem:[%s386 + $0x48] sm:$0xff] %vm403, %v3948
      %3962 = vst.msk [vmem:[%s386 + $0x50] sm:$0xff] %vm403, %v3949
      %3963 = vst.msk [vmem:[%s386 + $0x58] sm:$0xff] %vm403, %v3950
      %3964 = vst.msk [vmem:[%s386 + $0x60] sm:$0xff] %vm403, %v3951
      %p3965 = scmp.lt.s32.totalorder %s22, 1
      %s3966 = scalar_select %p3965, %s22, 1
      %s3967 = smul.addr %s3966, 13
      %s3968 = smul.addr %s3967, 8
      %s3969 = scalar_lea.vmem %s11, %s3968
      // Predicated region
      $region65: #{tpu_custom_call.1} parent=63 // pred_check
        %p3970 = pneg %p276
      $region66: #{tpu_custom_call.1} parent=63 // pred_check_branch
        %3972 = sbr.rel (%p3970) target = $region68
      $region67: #{tpu_custom_call.1} parent=63 // pred_region
        _
      $region68: #{tpu_custom_call.1} parent=63 // pred_fallthru
        _
    $region64: #{tpu_custom_call.1} parent=5 // pred_fallthru
      _
    %p3973 = scmp.le.s32.totalorder 2, %s17
    // Predicated region
    $region69: #{tpu_custom_call.1} parent=5 // pred_check
      %p3974 = pneg %p3973
    $region70: #{tpu_custom_call.1} parent=5 // pred_check_branch
      %3976 = sbr.rel (%p3974) target = $region72
    $region71: #{tpu_custom_call.1} parent=5 // pred_region
      %s3977 = ssub.s32 %s17, 2
      // Predicated region
      $region73: #{tpu_custom_call.1} parent=71 // pred_check
        %p3978 = pneg %p282
      $region74: #{tpu_custom_call.1} parent=71 // pred_check_branch
        %3980 = sbr.rel (%p3978) target = $region76
      $region75: #{tpu_custom_call.1} parent=71 // pred_region
        %p3981 = scmp.lt.s32.totalorder %s23, 1
        %s3982 = scalar_select %p3981, %s23, 1
        %s3983 = smul.addr %s3982, 13
        %s3984 = smul.addr %s3983, 8
        %s3985 = scalar_lea.vmem %s11, %s3984
      $region76: #{tpu_custom_call.1} parent=71 // pred_fallthru
        _
    $region72: #{tpu_custom_call.1} parent=5 // pred_fallthru
      _
  $region6: #{tpu_custom_call.1} parent=0 // loop_footer
    %s21 = sadd.s32 1, %s17
  $region7: #{tpu_custom_call.1} parent=0 // loop_footer_branch
    %16 = sbr.rel target = $region3
  $region8: #{tpu_custom_call.1} parent=0 // loop_exit
    _

</llo_original>
